<compile_context>
chip_gen: v7x
topology: tpu7x:2x2x1
jax: 0.10.0
libtpu: 0.0.40
codegen_flags: <defaults>
</compile_context>

<pallas_src>
import functools

import jax
import jax.numpy as jnp
import numpy as np
from jax.experimental import pallas as pl
from jax.experimental.pallas import tpu as pltpu

BN_EPS = 1e-5
NEG_SLOPE = 0.1
LANE = 128
TARGET_ROWS = 8192            # ~8K output rows per tile (review: amortize per-step overhead)


def _ceil_div(a, b):
    return -(-a // b)


def _round_up(a, b):
    return _ceil_div(a, b) * b


def _vmem_limit_bytes():
    """Per-generation scoped-VMEM budget (<= ~45 MiB on v7x, larger on 128 MiB parts)."""
    try:
        cap = int(pltpu.get_tpu_info().vmem_capacity_bytes)
        return max(32 * 1024 * 1024, min(int(cap * 0.7), 100 * 1024 * 1024))
    except Exception:
        return 48 * 1024 * 1024   # safe on v5e / v6e / v7x


# ---------------------------------------------------------------------------
# Shared conv body: k*k shifted (rows, Cin) x (Cin, Cout_pad) bf16 MXU matmuls,
# accumulated in an f32 VMEM scratch ref (patch extraction happens on-chip).
# ---------------------------------------------------------------------------
def _accumulate_conv(slab_ref, w_ref, acc_ref, *, k, th, wq, cin):
    slab = slab_ref[...]                                  # single full-tile load
    for i in range(k):
        for j in range(k):
            xs = slab[i:i + th, j:j + wq, :].reshape(th * wq, cin)
            part = jnp.dot(xs, w_ref[i * k + j], preferred_element_type=jnp.float32)
            if i == 0 and j == 0:
                acc_ref[...] = part
            else:
                acc_ref[...] += part


# ---------------------------------------------------------------------------
# Pass 1: conv (recomputed later in pass 2) -> per-tile masked BN partial sums.
# Only (2, Cout) floats per tile are written to HBM.
# ---------------------------------------------------------------------------
def _conv_stats_kernel(slab_ref, w_ref, mask_ref, stats_ref, acc_ref, *, k, th, wq, cin):
    cout = stats_ref.shape[-1]
    _accumulate_conv(slab_ref, w_ref, acc_ref, k=k, th=th, wq=wq, cin=cin)
    acc = acc_ref[...]                                    # (tile_rows, cpad) f32
    ym = acc * mask_ref[...]                              # zero out padded rows/cols
    stats_ref[0:1, :] = jnp.sum(ym, axis=0, keepdims=True)[:, :cout]
    stats_ref[1:2, :] = jnp.sum(ym * acc, axis=0, keepdims=True)[:, :cout]


# ---------------------------------------------------------------------------
# Pass 2: recompute conv, apply pre-folded BN affine + LeakyReLU, store only the
# real Cout channels (final output rows) in f32.
# ---------------------------------------------------------------------------
def _conv_bn_lrelu_kernel(slab_ref, w_ref, scale_ref, bias_ref, o_ref, acc_ref,
                          *, k, th, wq, cin):
    cout = o_ref.shape[-1]
    _accumulate_conv(slab_ref, w_ref, acc_ref, k=k, th=th, wq=wq, cin=cin)
    z = acc_ref[...][:, :cout] * scale_ref[...] + bias_ref[...]
    o_ref[...] = jnp.where(z >= 0, z, NEG_SLOPE * z)


@functools.partial(jax.jit, static_argnames=("kernel",))
def conv_bn_leaky_relu(x, weight, gamma, beta, *, kernel):
    """
    x:      (N, Cin, H, W)    float32 (NCHW, same as PyTorch)
    weight: (Cout, Cin, k, k) float32 (PyTorch Conv2d weight layout)
    gamma, beta: (Cout,)      float32 (BatchNorm affine params)
    returns (N, Cout, H, W)   float32
    """
    n, cin, h, w = x.shape
    cout = weight.shape[0]
    k = kernel
    assert k % 2 == 1, "ConvBnLeakyReLU uses odd kernels (same-size output)."
    p = (k - 1) // 2
    cpad = _round_up(max(cout, LANE), LANE)   # VMEM/MXU-only padding; never stored to HBM

    # ---- tiling (robust to ragged H / W) --------------------------------------------
    wq = _round_up(w, 8)                      # padded output width (sublane multiple)
    th = max(1, min(h, TARGET_ROWS // wq))    # output rows per tile
    if n * _ceil_div(h, th) < 2:              # keep >= 2 grid steps for v7x megacore
        th = max(1, _ceil_div(h, 2))
    n_hb = _ceil_div(h, th)
    hq = n_hb * th                            # padded output height
    thp, wqp = th + 2 * p, wq + 2 * p
    tile_rows = th * wq
    n_tiles = n * n_hb
    m_valid = n * h * w                       # true element count for BN statistics
    m_rows = n_tiles * tile_rows
    vmem_limit = _vmem_limit_bytes()

    # ---- layout prep in XLA (NCHW -> NHWC, conv halo + ragged zero-fill, halo slabs) --
    x_nhwc = jnp.transpose(x, (0, 2, 3, 1)).astype(jnp.bfloat16)          # (N, H, W, Cin)
    x_pad = jnp.pad(x_nhwc, ((0, 0), (p, p + hq - h), (p, p + wq - w), (0, 0)))
    # Halo'd row slabs: duplication factor (th+2p)/th instead of k^2 im2col.
    slabs = jnp.stack([x_pad[:, hb * th: hb * th + thp] for hb in range(n_hb)], axis=1)
    slabs = slabs.reshape(n_tiles, thp, wqp, cin)                          # (T, thp, wqp, Cin)

    # Per-shift weights: w_shift[i*k+j, c, o] = weight[o, c, i, j]; Cout padded to 128
    # only for the MXU (weights are tiny; the padding never reaches the outputs).
    w_shift = jnp.transpose(weight, (2, 3, 1, 0)).reshape(k * k, cin, cout)
    w_shift = jnp.pad(w_shift, ((0, 0), (0, 0), (0, cpad - cout))).astype(jnp.bfloat16)

    # Validity mask over the padded (hq, wq) spatial block -> (n_hb * tile_rows, 1) f32.
    row_h = jax.lax.broadcasted_iota(jnp.int32, (hq, wq), 0)
    row_w = jax.lax.broadcasted_iota(jnp.int32, (hq, wq), 1)
    mask = ((row_h < h) & (row_w < w)).astype(jnp.float32).reshape(n_hb * tile_rows, 1)

    # ---- pass 1: conv + per-tile masked BN partial sums (tiny HBM output) ------------
    kern1 = functools.partial(_conv_stats_kernel, k=k, th=th, wq=wq, cin=cin)
    stats = pl.pallas_call(
        kern1,
        grid=(n_tiles,),
        in_specs=[
            pl.BlockSpec((None, thp, wqp, cin), lambda t: (t, 0, 0, 0)),
            pl.BlockSpec((k * k, cin, cpad), lambda t: (0, 0, 0)),
            pl.BlockSpec((tile_rows, 1), lambda t: (t % n_hb, 0)),
        ],
        out_specs=pl.BlockSpec((None, 2, cout), lambda t: (t, 0, 0)),
        out_shape=jax.ShapeDtypeStruct((n_tiles, 2, cout), jnp.float32),
        scratch_shapes=[pltpu.VMEM((tile_rows, cpad), jnp.float32)],
        compiler_params=pltpu.CompilerParams(
            dimension_semantics=("parallel",), vmem_limit_bytes=vmem_limit),
    )(slabs, w_shift, mask)

    # ---- combine stats across tiles (training-mode BN: biased variance over N*H*W) ---
    tot = jnp.sum(stats[:, 0, :], axis=0)
    tot_sq = jnp.sum(stats[:, 1, :], axis=0)
    mean = tot / m_valid
    var = jnp.maximum(tot_sq / m_valid - mean * mean, 0.0)
    inv_std = jax.lax.rsqrt(var + BN_EPS)
    g32 = gamma.astype(jnp.float32)
    scale = (g32 * inv_std).reshape(1, cout)
    bias = (beta.astype(jnp.float32) - mean * g32 * inv_std).reshape(1, cout)

    # ---- pass 2: recompute conv, BN affine + LeakyReLU, write final rows directly ----
    kern2 = functools.partial(_conv_bn_lrelu_kernel, k=k, th=th, wq=wq, cin=cin)
    out_flat = pl.pallas_call(
        kern2,
        grid=(n_tiles,),
        in_specs=[
            pl.BlockSpec((None, thp, wqp, cin), lambda t: (t, 0, 0, 0)),
            pl.BlockSpec((k * k, cin, cpad), lambda t: (0, 0, 0)),
            pl.BlockSpec((1, cout), lambda t: (0, 0)),
            pl.BlockSpec((1, cout), lambda t: (0, 0)),
        ],
        out_specs=pl.BlockSpec((tile_rows, cout), lambda t: (t, 0)),
        out_shape=jax.ShapeDtypeStruct((m_rows, cout), jnp.float32),
        scratch_shapes=[pltpu.VMEM((tile_rows, cpad), jnp.float32)],
        compiler_params=pltpu.CompilerParams(
            dimension_semantics=("parallel",), vmem_limit_bytes=vmem_limit),
    )(slabs, w_shift, scale, bias)

    # Only a (metadata) reshape + the unavoidable NHWC->NCHW transpose remain in XLA;
    # the ragged slice is a no-op for aligned shapes.
    out = out_flat.reshape(n, hq, wq, cout)
    if hq != h or wq != w:
        out = out[:, :h, :w, :]
    return jnp.transpose(out, (0, 3, 1, 2))


def _reference(x, weight, gamma, beta, kernel):
    """Pure-JAX reference reproducing the PyTorch forward (training-mode BN)."""
    p = (kernel - 1) // 2
    y = jax.lax.conv_general_dilated(
        x, weight, window_strides=(1, 1), padding=[(p, p), (p, p)],
        dimension_numbers=("NCHW", "OIHW", "NCHW"))
    mean = jnp.mean(y, axis=(0, 2, 3), keepdims=True)
    var = jnp.mean((y - mean) ** 2, axis=(0, 2, 3), keepdims=True)
    y_hat = (y - mean) * jax.lax.rsqrt(var + BN_EPS)
    z = y_hat * gamma.reshape(1, -1, 1, 1) + beta.reshape(1, -1, 1, 1)
    return jnp.where(z >= 0, z, NEG_SLOPE * z)


if __name__ == "__main__":
    # Module config (small, consistent with ConvBnLeakyReLU(inCh, outCh, kernel)):
    in_ch, out_ch, kernel = 4, 8, 3
    n, h, w = 2, 16, 16

    key = jax.random.PRNGKey(0)
    kx, kw, kg, kb = jax.random.split(key, 4)

    x = jax.random.normal(kx, (n, in_ch, h, w), dtype=jnp.float32)
    weight = jax.random.normal(kw, (out_ch, in_ch, kernel, kernel), dtype=jnp.float32) * 0.1
    gamma = 1.0 + 0.1 * jax.random.normal(kg, (out_ch,), dtype=jnp.float32)
    beta = 0.1 * jax.random.normal(kb, (out_ch,), dtype=jnp.float32)

    out = jax.block_until_ready(conv_bn_leaky_relu(x, weight, gamma, beta, kernel=kernel))
    ref = jax.block_until_ready(_reference(x, weight, gamma, beta, kernel))

    assert out.shape == (n, out_ch, h, w)
    # Tolerance vs the f32 reference accounts for the bf16 MXU inputs (f32 accumulation,
    # f32 BN statistics taken from the same accumulator that is normalized).
    np.testing.assert_allclose(np.asarray(out), np.asarray(ref), rtol=2e-2, atol=2e-2)

    print("KERNEL_OK")
</pallas_src>

<mosaic_0001>
module attributes {stable_mosaic.version = 11 : i64} {
  func.func @_conv_bn_lrelu_kernel(%arg0: i32, %arg1: memref<1x18x18x4xbf16, #tpu.memory_space<vmem>>, %arg2: memref<9x4x128xbf16, #tpu.memory_space<vmem>>, %arg3: memref<1x8xf32, #tpu.memory_space<vmem>>, %arg4: memref<1x8xf32, #tpu.memory_space<vmem>>, %arg5: memref<256x8xf32, #tpu.memory_space<vmem>>, %arg6: memref<256x128xf32, #tpu.memory_space<vmem>>) attributes {dimension_semantics = [#tpu.dimension_semantics<parallel>], iteration_bounds = array<i64: 2>, scalar_prefetch = 0 : i64, scratch_operands = 1 : i64, tpu.core_type = #tpu.core_type<tc>, window_params = [{transform_indices = @transform_0, window_bounds = array<i64: 1, 18, 18, 4>}, {pipeline_mode = #tpu.pipeline_mode<synchronous>, transform_indices = @transform_1, window_bounds = array<i64: 9, 4, 128>}, {pipeline_mode = #tpu.pipeline_mode<synchronous>, transform_indices = @transform_2, window_bounds = array<i64: 1, 8>}, {pipeline_mode = #tpu.pipeline_mode<synchronous>, transform_indices = @transform_3, window_bounds = array<i64: 1, 8>}, {transform_indices = @transform_4, window_bounds = array<i64: 256, 8>}]} {
    %c0 = arith.constant 0 : index
    %c0_0 = arith.constant 0 : index
    %c0_1 = arith.constant 0 : index
    %c0_2 = arith.constant 0 : index
    %0 = vector.load %arg1[%c0, %c0_0, %c0_1, %c0_2] : memref<1x18x18x4xbf16, #tpu.memory_space<vmem>>, vector<1x18x18x4xbf16>
    %1 = vector.shape_cast %0 : vector<1x18x18x4xbf16> to vector<18x18x4xbf16>
    %2 = vector.extract_strided_slice %1 {offsets = [0, 0, 0], sizes = [16, 16, 4], strides = [1, 1, 1]} : vector<18x18x4xbf16> to vector<16x16x4xbf16>
    %3 = vector.shape_cast %2 : vector<16x16x4xbf16> to vector<256x4xbf16>
    %c0_3 = arith.constant 0 : index
    %c0_4 = arith.constant 0 : index
    %c0_5 = arith.constant 0 : index
    %4 = vector.load %arg2[%c0_3, %c0_4, %c0_5] : memref<9x4x128xbf16, #tpu.memory_space<vmem>>, vector<1x4x128xbf16>
    %5 = vector.shape_cast %4 : vector<1x4x128xbf16> to vector<4x128xbf16>
    %cst = arith.constant dense<0.000000e+00> : vector<256x128xf32>
    %6 = tpu.matmul %3, %5, %cst {dimension_numbers = #tpu.dot_dimension_numbers<[1], [0], [0], [1], [0, 0, 1, 1], [], []>} : vector<256x4xbf16>, vector<4x128xbf16>, vector<256x128xf32> -> vector<256x128xf32>
    %c0_6 = arith.constant 0 : index
    %c0_7 = arith.constant 0 : index
    %7 = vector.load %arg6[%c0_6, %c0_7] : memref<256x128xf32, #tpu.memory_space<vmem>>, vector<256x128xf32>
    tpu.vector_store %arg6[%c0_6, %c0_7], %6 {strides = array<i32>} : memref<256x128xf32, #tpu.memory_space<vmem>>, vector<256x128xf32>,
    %8 = vector.extract_strided_slice %1 {offsets = [0, 1, 0], sizes = [16, 16, 4], strides = [1, 1, 1]} : vector<18x18x4xbf16> to vector<16x16x4xbf16>
    %9 = vector.shape_cast %8 : vector<16x16x4xbf16> to vector<256x4xbf16>
    %c1 = arith.constant 1 : index
    %c0_8 = arith.constant 0 : index
    %c0_9 = arith.constant 0 : index
    %10 = vector.load %arg2[%c1, %c0_8, %c0_9] : memref<9x4x128xbf16, #tpu.memory_space<vmem>>, vector<1x4x128xbf16>
    %11 = vector.shape_cast %10 : vector<1x4x128xbf16> to vector<4x128xbf16>
    %cst_10 = arith.constant dense<0.000000e+00> : vector<256x128xf32>
    %12 = tpu.matmul %9, %11, %cst_10 {dimension_numbers = #tpu.dot_dimension_numbers<[1], [0], [0], [1], [0, 0, 1, 1], [], []>} : vector<256x4xbf16>, vector<4x128xbf16>, vector<256x128xf32> -> vector<256x128xf32>
    %c0_11 = arith.constant 0 : index
    %c0_12 = arith.constant 0 : index
    %13 = vector.load %arg6[%c0_11, %c0_12] : memref<256x128xf32, #tpu.memory_space<vmem>>, vector<256x128xf32>
    %14 = arith.addf %13, %12 : vector<256x128xf32>
    %c0_13 = arith.constant 0 : index
    %c0_14 = arith.constant 0 : index
    %15 = vector.load %arg6[%c0_13, %c0_14] : memref<256x128xf32, #tpu.memory_space<vmem>>, vector<256x128xf32>
    tpu.vector_store %arg6[%c0_13, %c0_14], %14 {strides = array<i32>} : memref<256x128xf32, #tpu.memory_space<vmem>>, vector<256x128xf32>,
    %16 = vector.extract_strided_slice %1 {offsets = [0, 2, 0], sizes = [16, 16, 4], strides = [1, 1, 1]} : vector<18x18x4xbf16> to vector<16x16x4xbf16>
    %17 = vector.shape_cast %16 : vector<16x16x4xbf16> to vector<256x4xbf16>
    %c2 = arith.constant 2 : index
    %c0_15 = arith.constant 0 : index
    %c0_16 = arith.constant 0 : index
    %18 = vector.load %arg2[%c2, %c0_15, %c0_16] : memref<9x4x128xbf16, #tpu.memory_space<vmem>>, vector<1x4x128xbf16>
    %19 = vector.shape_cast %18 : vector<1x4x128xbf16> to vector<4x128xbf16>
    %cst_17 = arith.constant dense<0.000000e+00> : vector<256x128xf32>
    %20 = tpu.matmul %17, %19, %cst_17 {dimension_numbers = #tpu.dot_dimension_numbers<[1], [0], [0], [1], [0, 0, 1, 1], [], []>} : vector<256x4xbf16>, vector<4x128xbf16>, vector<256x128xf32> -> vector<256x128xf32>
    %c0_18 = arith.constant 0 : index
    %c0_19 = arith.constant 0 : index
    %21 = vector.load %arg6[%c0_18, %c0_19] : memref<256x128xf32, #tpu.memory_space<vmem>>, vector<256x128xf32>
    %22 = arith.addf %21, %20 : vector<256x128xf32>
    %c0_20 = arith.constant 0 : index
    %c0_21 = arith.constant 0 : index
    %23 = vector.load %arg6[%c0_20, %c0_21] : memref<256x128xf32, #tpu.memory_space<vmem>>, vector<256x128xf32>
    tpu.vector_store %arg6[%c0_20, %c0_21], %22 {strides = array<i32>} : memref<256x128xf32, #tpu.memory_space<vmem>>, vector<256x128xf32>,
    %24 = vector.extract_strided_slice %1 {offsets = [1, 0, 0], sizes = [16, 16, 4], strides = [1, 1, 1]} : vector<18x18x4xbf16> to vector<16x16x4xbf16>
    %25 = vector.shape_cast %24 : vector<16x16x4xbf16> to vector<256x4xbf16>
    %c3 = arith.constant 3 : index
    %c0_22 = arith.constant 0 : index
    %c0_23 = arith.constant 0 : index
    %26 = vector.load %arg2[%c3, %c0_22, %c0_23] : memref<9x4x128xbf16, #tpu.memory_space<vmem>>, vector<1x4x128xbf16>
    %27 = vector.shape_cast %26 : vector<1x4x128xbf16> to vector<4x128xbf16>
    %cst_24 = arith.constant dense<0.000000e+00> : vector<256x128xf32>
    %28 = tpu.matmul %25, %27, %cst_24 {dimension_numbers = #tpu.dot_dimension_numbers<[1], [0], [0], [1], [0, 0, 1, 1], [], []>} : vector<256x4xbf16>, vector<4x128xbf16>, vector<256x128xf32> -> vector<256x128xf32>
    %c0_25 = arith.constant 0 : index
    %c0_26 = arith.constant 0 : index
    %29 = vector.load %arg6[%c0_25, %c0_26] : memref<256x128xf32, #tpu.memory_space<vmem>>, vector<256x128xf32>
    %30 = arith.addf %29, %28 : vector<256x128xf32>
    %c0_27 = arith.constant 0 : index
    %c0_28 = arith.constant 0 : index
    %31 = vector.load %arg6[%c0_27, %c0_28] : memref<256x128xf32, #tpu.memory_space<vmem>>, vector<256x128xf32>
    tpu.vector_store %arg6[%c0_27, %c0_28], %30 {strides = array<i32>} : memref<256x128xf32, #tpu.memory_space<vmem>>, vector<256x128xf32>,
    %32 = vector.extract_strided_slice %1 {offsets = [1, 1, 0], sizes = [16, 16, 4], strides = [1, 1, 1]} : vector<18x18x4xbf16> to vector<16x16x4xbf16>
    %33 = vector.shape_cast %32 : vector<16x16x4xbf16> to vector<256x4xbf16>
    %c4 = arith.constant 4 : index
    %c0_29 = arith.constant 0 : index
    %c0_30 = arith.constant 0 : index
    %34 = vector.load %arg2[%c4, %c0_29, %c0_30] : memref<9x4x128xbf16, #tpu.memory_space<vmem>>, vector<1x4x128xbf16>
    %35 = vector.shape_cast %34 : vector<1x4x128xbf16> to vector<4x128xbf16>
    %cst_31 = arith.constant dense<0.000000e+00> : vector<256x128xf32>
    %36 = tpu.matmul %33, %35, %cst_31 {dimension_numbers = #tpu.dot_dimension_numbers<[1], [0], [0], [1], [0, 0, 1, 1], [], []>} : vector<256x4xbf16>, vector<4x128xbf16>, vector<256x128xf32> -> vector<256x128xf32>
    %c0_32 = arith.constant 0 : index
    %c0_33 = arith.constant 0 : index
    %37 = vector.load %arg6[%c0_32, %c0_33] : memref<256x128xf32, #tpu.memory_space<vmem>>, vector<256x128xf32>
    %38 = arith.addf %37, %36 : vector<256x128xf32>
    %c0_34 = arith.constant 0 : index
    %c0_35 = arith.constant 0 : index
    %39 = vector.load %arg6[%c0_34, %c0_35] : memref<256x128xf32, #tpu.memory_space<vmem>>, vector<256x128xf32>
    tpu.vector_store %arg6[%c0_34, %c0_35], %38 {strides = array<i32>} : memref<256x128xf32, #tpu.memory_space<vmem>>, vector<256x128xf32>,
    %40 = vector.extract_strided_slice %1 {offsets = [1, 2, 0], sizes = [16, 16, 4], strides = [1, 1, 1]} : vector<18x18x4xbf16> to vector<16x16x4xbf16>
    %41 = vector.shape_cast %40 : vector<16x16x4xbf16> to vector<256x4xbf16>
    %c5 = arith.constant 5 : index
    %c0_36 = arith.constant 0 : index
    %c0_37 = arith.constant 0 : index
    %42 = vector.load %arg2[%c5, %c0_36, %c0_37] : memref<9x4x128xbf16, #tpu.memory_space<vmem>>, vector<1x4x128xbf16>
    %43 = vector.shape_cast %42 : vector<1x4x128xbf16> to vector<4x128xbf16>
    %cst_38 = arith.constant dense<0.000000e+00> : vector<256x128xf32>
    %44 = tpu.matmul %41, %43, %cst_38 {dimension_numbers = #tpu.dot_dimension_numbers<[1], [0], [0], [1], [0, 0, 1, 1], [], []>} : vector<256x4xbf16>, vector<4x128xbf16>, vector<256x128xf32> -> vector<256x128xf32>
    %c0_39 = arith.constant 0 : index
    %c0_40 = arith.constant 0 : index
    %45 = vector.load %arg6[%c0_39, %c0_40] : memref<256x128xf32, #tpu.memory_space<vmem>>, vector<256x128xf32>
    %46 = arith.addf %45, %44 : vector<256x128xf32>
    %c0_41 = arith.constant 0 : index
    %c0_42 = arith.constant 0 : index
    %47 = vector.load %arg6[%c0_41, %c0_42] : memref<256x128xf32, #tpu.memory_space<vmem>>, vector<256x128xf32>
    tpu.vector_store %arg6[%c0_41, %c0_42], %46 {strides = array<i32>} : memref<256x128xf32, #tpu.memory_space<vmem>>, vector<256x128xf32>,
    %48 = vector.extract_strided_slice %1 {offsets = [2, 0, 0], sizes = [16, 16, 4], strides = [1, 1, 1]} : vector<18x18x4xbf16> to vector<16x16x4xbf16>
    %49 = vector.shape_cast %48 : vector<16x16x4xbf16> to vector<256x4xbf16>
    %c6 = arith.constant 6 : index
    %c0_43 = arith.constant 0 : index
    %c0_44 = arith.constant 0 : index
    %50 = vector.load %arg2[%c6, %c0_43, %c0_44] : memref<9x4x128xbf16, #tpu.memory_space<vmem>>, vector<1x4x128xbf16>
    %51 = vector.shape_cast %50 : vector<1x4x128xbf16> to vector<4x128xbf16>
    %cst_45 = arith.constant dense<0.000000e+00> : vector<256x128xf32>
    %52 = tpu.matmul %49, %51, %cst_45 {dimension_numbers = #tpu.dot_dimension_numbers<[1], [0], [0], [1], [0, 0, 1, 1], [], []>} : vector<256x4xbf16>, vector<4x128xbf16>, vector<256x128xf32> -> vector<256x128xf32>
    %c0_46 = arith.constant 0 : index
    %c0_47 = arith.constant 0 : index
    %53 = vector.load %arg6[%c0_46, %c0_47] : memref<256x128xf32, #tpu.memory_space<vmem>>, vector<256x128xf32>
    %54 = arith.addf %53, %52 : vector<256x128xf32>
    %c0_48 = arith.constant 0 : index
    %c0_49 = arith.constant 0 : index
    %55 = vector.load %arg6[%c0_48, %c0_49] : memref<256x128xf32, #tpu.memory_space<vmem>>, vector<256x128xf32>
    tpu.vector_store %arg6[%c0_48, %c0_49], %54 {strides = array<i32>} : memref<256x128xf32, #tpu.memory_space<vmem>>, vector<256x128xf32>,
    %56 = vector.extract_strided_slice %1 {offsets = [2, 1, 0], sizes = [16, 16, 4], strides = [1, 1, 1]} : vector<18x18x4xbf16> to vector<16x16x4xbf16>
    %57 = vector.shape_cast %56 : vector<16x16x4xbf16> to vector<256x4xbf16>
    %c7 = arith.constant 7 : index
    %c0_50 = arith.constant 0 : index
    %c0_51 = arith.constant 0 : index
    %58 = vector.load %arg2[%c7, %c0_50, %c0_51] : memref<9x4x128xbf16, #tpu.memory_space<vmem>>, vector<1x4x128xbf16>
    %59 = vector.shape_cast %58 : vector<1x4x128xbf16> to vector<4x128xbf16>
    %cst_52 = arith.constant dense<0.000000e+00> : vector<256x128xf32>
    %60 = tpu.matmul %57, %59, %cst_52 {dimension_numbers = #tpu.dot_dimension_numbers<[1], [0], [0], [1], [0, 0, 1, 1], [], []>} : vector<256x4xbf16>, vector<4x128xbf16>, vector<256x128xf32> -> vector<256x128xf32>
    %c0_53 = arith.constant 0 : index
    %c0_54 = arith.constant 0 : index
    %61 = vector.load %arg6[%c0_53, %c0_54] : memref<256x128xf32, #tpu.memory_space<vmem>>, vector<256x128xf32>
    %62 = arith.addf %61, %60 : vector<256x128xf32>
    %c0_55 = arith.constant 0 : index
    %c0_56 = arith.constant 0 : index
    %63 = vector.load %arg6[%c0_55, %c0_56] : memref<256x128xf32, #tpu.memory_space<vmem>>, vector<256x128xf32>
    tpu.vector_store %arg6[%c0_55, %c0_56], %62 {strides = array<i32>} : memref<256x128xf32, #tpu.memory_space<vmem>>, vector<256x128xf32>,
    %64 = vector.extract_strided_slice %1 {offsets = [2, 2, 0], sizes = [16, 16, 4], strides = [1, 1, 1]} : vector<18x18x4xbf16> to vector<16x16x4xbf16>
    %65 = vector.shape_cast %64 : vector<16x16x4xbf16> to vector<256x4xbf16>
    %c8 = arith.constant 8 : index
    %c0_57 = arith.constant 0 : index
    %c0_58 = arith.constant 0 : index
    %66 = vector.load %arg2[%c8, %c0_57, %c0_58] : memref<9x4x128xbf16, #tpu.memory_space<vmem>>, vector<1x4x128xbf16>
    %67 = vector.shape_cast %66 : vector<1x4x128xbf16> to vector<4x128xbf16>
    %cst_59 = arith.constant dense<0.000000e+00> : vector<256x128xf32>
    %68 = tpu.matmul %65, %67, %cst_59 {dimension_numbers = #tpu.dot_dimension_numbers<[1], [0], [0], [1], [0, 0, 1, 1], [], []>} : vector<256x4xbf16>, vector<4x128xbf16>, vector<256x128xf32> -> vector<256x128xf32>
    %c0_60 = arith.constant 0 : index
    %c0_61 = arith.constant 0 : index
    %69 = vector.load %arg6[%c0_60, %c0_61] : memref<256x128xf32, #tpu.memory_space<vmem>>, vector<256x128xf32>
    %70 = arith.addf %69, %68 : vector<256x128xf32>
    %c0_62 = arith.constant 0 : index
    %c0_63 = arith.constant 0 : index
    %71 = vector.load %arg6[%c0_62, %c0_63] : memref<256x128xf32, #tpu.memory_space<vmem>>, vector<256x128xf32>
    tpu.vector_store %arg6[%c0_62, %c0_63], %70 {strides = array<i32>} : memref<256x128xf32, #tpu.memory_space<vmem>>, vector<256x128xf32>,
    %c0_64 = arith.constant 0 : index
    %c0_65 = arith.constant 0 : index
    %72 = vector.load %arg6[%c0_64, %c0_65] : memref<256x128xf32, #tpu.memory_space<vmem>>, vector<256x128xf32>
    %73 = vector.extract_strided_slice %72 {offsets = [0, 0], sizes = [256, 8], strides = [1, 1]} : vector<256x128xf32> to vector<256x8xf32>
    %c0_66 = arith.constant 0 : index
    %c0_67 = arith.constant 0 : index
    %74 = vector.load %arg3[%c0_66, %c0_67] : memref<1x8xf32, #tpu.memory_space<vmem>>, vector<1x8xf32>
    %75 = vector.broadcast %74 : vector<1x8xf32> to vector<256x8xf32>
    %76 = arith.mulf %73, %75 : vector<256x8xf32>
    %c0_68 = arith.constant 0 : index
    %c0_69 = arith.constant 0 : index
    %77 = vector.load %arg4[%c0_68, %c0_69] : memref<1x8xf32, #tpu.memory_space<vmem>>, vector<1x8xf32>
    %78 = vector.broadcast %77 : vector<1x8xf32> to vector<256x8xf32>
    %79 = arith.addf %76, %78 : vector<256x8xf32>
    %cst_70 = arith.constant 0.000000e+00 : f32
    %80 = vector.broadcast %cst_70 : f32 to vector<256x8xf32>
    %81 = arith.cmpf oge, %79, %80 : vector<256x8xf32>
    %cst_71 = arith.constant 1.000000e-01 : f32
    %82 = vector.broadcast %cst_71 : f32 to vector<256x8xf32>
    %83 = arith.mulf %82, %79 : vector<256x8xf32>
    %84 = arith.select %81, %79, %83 : vector<256x8xi1>, vector<256x8xf32>
    %c0_72 = arith.constant 0 : index
    %c0_73 = arith.constant 0 : index
    %85 = vector.load %arg5[%c0_72, %c0_73] : memref<256x8xf32, #tpu.memory_space<vmem>>, vector<256x8xf32>
    tpu.vector_store %arg5[%c0_72, %c0_73], %84 {strides = array<i32>} : memref<256x8xf32, #tpu.memory_space<vmem>>, vector<256x8xf32>,
    return
  }
  func.func @transform_0(%arg0: i32) -> (i32, i32, i32, i32) {
    %c0_i32 = arith.constant 0 : i32
    %c0_i32_0 = arith.constant 0 : i32
    %c0_i32_1 = arith.constant 0 : i32
    %c0_i32_2 = arith.constant 0 : i32
    return %arg0, %c0_i32, %c0_i32_0, %c0_i32_1 : i32, i32, i32, i32
  }
  func.func @transform_1(%arg0: i32) -> (i32, i32, i32) {
    %c0_i32 = arith.constant 0 : i32
    %c0_i32_0 = arith.constant 0 : i32
    %c0_i32_1 = arith.constant 0 : i32
    %c0_i32_2 = arith.constant 0 : i32
    return %c0_i32, %c0_i32_0, %c0_i32_1 : i32, i32, i32
  }
  func.func @transform_2(%arg0: i32) -> (i32, i32) {
    %c0_i32 = arith.constant 0 : i32
    %c0_i32_0 = arith.constant 0 : i32
    %c0_i32_1 = arith.constant 0 : i32
    return %c0_i32, %c0_i32_0 : i32, i32
  }
  func.func @transform_3(%arg0: i32) -> (i32, i32) {
    %c0_i32 = arith.constant 0 : i32
    %c0_i32_0 = arith.constant 0 : i32
    %c0_i32_1 = arith.constant 0 : i32
    return %c0_i32, %c0_i32_0 : i32, i32
  }
  func.func @transform_4(%arg0: i32) -> (i32, i32) {
    %c0_i32 = arith.constant 0 : i32
    %c0_i32_0 = arith.constant 0 : i32
    return %arg0, %c0_i32 : i32, i32
  }
}

module attributes {stable_mosaic.version = 11 : i64} {
  func.func @_conv_stats_kernel(%arg0: i32, %arg1: memref<1x18x18x4xbf16, #tpu.memory_space<vmem>>, %arg2: memref<9x4x128xbf16, #tpu.memory_space<vmem>>, %arg3: memref<256x1xf32, #tpu.memory_space<vmem>>, %arg4: memref<1x2x8xf32, #tpu.memory_space<vmem>>, %arg5: memref<256x128xf32, #tpu.memory_space<vmem>>) attributes {dimension_semantics = [#tpu.dimension_semantics<parallel>], iteration_bounds = array<i64: 2>, scalar_prefetch = 0 : i64, scratch_operands = 1 : i64, tpu.core_type = #tpu.core_type<tc>, window_params = [{transform_indices = @transform_0, window_bounds = array<i64: 1, 18, 18, 4>}, {pipeline_mode = #tpu.pipeline_mode<synchronous>, transform_indices = @transform_1, window_bounds = array<i64: 9, 4, 128>}, {transform_indices = @transform_2, window_bounds = array<i64: 256, 1>}, {transform_indices = @transform_3, window_bounds = array<i64: 1, 2, 8>}]} {
    %c0 = arith.constant 0 : index
    %c0_0 = arith.constant 0 : index
    %c0_1 = arith.constant 0 : index
    %c0_2 = arith.constant 0 : index
    %0 = vector.load %arg1[%c0, %c0_0, %c0_1, %c0_2] : memref<1x18x18x4xbf16, #tpu.memory_space<vmem>>, vector<1x18x18x4xbf16>
    %1 = vector.shape_cast %0 : vector<1x18x18x4xbf16> to vector<18x18x4xbf16>
    %2 = vector.extract_strided_slice %1 {offsets = [0, 0, 0], sizes = [16, 16, 4], strides = [1, 1, 1]} : vector<18x18x4xbf16> to vector<16x16x4xbf16>
    %3 = vector.shape_cast %2 : vector<16x16x4xbf16> to vector<256x4xbf16>
    %c0_3 = arith.constant 0 : index
    %c0_4 = arith.constant 0 : index
    %c0_5 = arith.constant 0 : index
    %4 = vector.load %arg2[%c0_3, %c0_4, %c0_5] : memref<9x4x128xbf16, #tpu.memory_space<vmem>>, vector<1x4x128xbf16>
    %5 = vector.shape_cast %4 : vector<1x4x128xbf16> to vector<4x128xbf16>
    %cst = arith.constant dense<0.000000e+00> : vector<256x128xf32>
    %6 = tpu.matmul %3, %5, %cst {dimension_numbers = #tpu.dot_dimension_numbers<[1], [0], [0], [1], [0, 0, 1, 1], [], []>} : vector<256x4xbf16>, vector<4x128xbf16>, vector<256x128xf32> -> vector<256x128xf32>
    %c0_6 = arith.constant 0 : index
    %c0_7 = arith.constant 0 : index
    %7 = vector.load %arg5[%c0_6, %c0_7] : memref<256x128xf32, #tpu.memory_space<vmem>>, vector<256x128xf32>
    tpu.vector_store %arg5[%c0_6, %c0_7], %6 {strides = array<i32>} : memref<256x128xf32, #tpu.memory_space<vmem>>, vector<256x128xf32>,
    %8 = vector.extract_strided_slice %1 {offsets = [0, 1, 0], sizes = [16, 16, 4], strides = [1, 1, 1]} : vector<18x18x4xbf16> to vector<16x16x4xbf16>
    %9 = vector.shape_cast %8 : vector<16x16x4xbf16> to vector<256x4xbf16>
    %c1 = arith.constant 1 : index
    %c0_8 = arith.constant 0 : index
    %c0_9 = arith.constant 0 : index
    %10 = vector.load %arg2[%c1, %c0_8, %c0_9] : memref<9x4x128xbf16, #tpu.memory_space<vmem>>, vector<1x4x128xbf16>
    %11 = vector.shape_cast %10 : vector<1x4x128xbf16> to vector<4x128xbf16>
    %cst_10 = arith.constant dense<0.000000e+00> : vector<256x128xf32>
    %12 = tpu.matmul %9, %11, %cst_10 {dimension_numbers = #tpu.dot_dimension_numbers<[1], [0], [0], [1], [0, 0, 1, 1], [], []>} : vector<256x4xbf16>, vector<4x128xbf16>, vector<256x128xf32> -> vector<256x128xf32>
    %c0_11 = arith.constant 0 : index
    %c0_12 = arith.constant 0 : index
    %13 = vector.load %arg5[%c0_11, %c0_12] : memref<256x128xf32, #tpu.memory_space<vmem>>, vector<256x128xf32>
    %14 = arith.addf %13, %12 : vector<256x128xf32>
    %c0_13 = arith.constant 0 : index
    %c0_14 = arith.constant 0 : index
    %15 = vector.load %arg5[%c0_13, %c0_14] : memref<256x128xf32, #tpu.memory_space<vmem>>, vector<256x128xf32>
    tpu.vector_store %arg5[%c0_13, %c0_14], %14 {strides = array<i32>} : memref<256x128xf32, #tpu.memory_space<vmem>>, vector<256x128xf32>,
    %16 = vector.extract_strided_slice %1 {offsets = [0, 2, 0], sizes = [16, 16, 4], strides = [1, 1, 1]} : vector<18x18x4xbf16> to vector<16x16x4xbf16>
    %17 = vector.shape_cast %16 : vector<16x16x4xbf16> to vector<256x4xbf16>
    %c2 = arith.constant 2 : index
    %c0_15 = arith.constant 0 : index
    %c0_16 = arith.constant 0 : index
    %18 = vector.load %arg2[%c2, %c0_15, %c0_16] : memref<9x4x128xbf16, #tpu.memory_space<vmem>>, vector<1x4x128xbf16>
    %19 = vector.shape_cast %18 : vector<1x4x128xbf16> to vector<4x128xbf16>
    %cst_17 = arith.constant dense<0.000000e+00> : vector<256x128xf32>
    %20 = tpu.matmul %17, %19, %cst_17 {dimension_numbers = #tpu.dot_dimension_numbers<[1], [0], [0], [1], [0, 0, 1, 1], [], []>} : vector<256x4xbf16>, vector<4x128xbf16>, vector<256x128xf32> -> vector<256x128xf32>
    %c0_18 = arith.constant 0 : index
    %c0_19 = arith.constant 0 : index
    %21 = vector.load %arg5[%c0_18, %c0_19] : memref<256x128xf32, #tpu.memory_space<vmem>>, vector<256x128xf32>
    %22 = arith.addf %21, %20 : vector<256x128xf32>
    %c0_20 = arith.constant 0 : index
    %c0_21 = arith.constant 0 : index
    %23 = vector.load %arg5[%c0_20, %c0_21] : memref<256x128xf32, #tpu.memory_space<vmem>>, vector<256x128xf32>
    tpu.vector_store %arg5[%c0_20, %c0_21], %22 {strides = array<i32>} : memref<256x128xf32, #tpu.memory_space<vmem>>, vector<256x128xf32>,
    %24 = vector.extract_strided_slice %1 {offsets = [1, 0, 0], sizes = [16, 16, 4], strides = [1, 1, 1]} : vector<18x18x4xbf16> to vector<16x16x4xbf16>
    %25 = vector.shape_cast %24 : vector<16x16x4xbf16> to vector<256x4xbf16>
    %c3 = arith.constant 3 : index
    %c0_22 = arith.constant 0 : index
    %c0_23 = arith.constant 0 : index
    %26 = vector.load %arg2[%c3, %c0_22, %c0_23] : memref<9x4x128xbf16, #tpu.memory_space<vmem>>, vector<1x4x128xbf16>
    %27 = vector.shape_cast %26 : vector<1x4x128xbf16> to vector<4x128xbf16>
    %cst_24 = arith.constant dense<0.000000e+00> : vector<256x128xf32>
    %28 = tpu.matmul %25, %27, %cst_24 {dimension_numbers = #tpu.dot_dimension_numbers<[1], [0], [0], [1], [0, 0, 1, 1], [], []>} : vector<256x4xbf16>, vector<4x128xbf16>, vector<256x128xf32> -> vector<256x128xf32>
    %c0_25 = arith.constant 0 : index
    %c0_26 = arith.constant 0 : index
    %29 = vector.load %arg5[%c0_25, %c0_26] : memref<256x128xf32, #tpu.memory_space<vmem>>, vector<256x128xf32>
    %30 = arith.addf %29, %28 : vector<256x128xf32>
    %c0_27 = arith.constant 0 : index
    %c0_28 = arith.constant 0 : index
    %31 = vector.load %arg5[%c0_27, %c0_28] : memref<256x128xf32, #tpu.memory_space<vmem>>, vector<256x128xf32>
    tpu.vector_store %arg5[%c0_27, %c0_28], %30 {strides = array<i32>} : memref<256x128xf32, #tpu.memory_space<vmem>>, vector<256x128xf32>,
    %32 = vector.extract_strided_slice %1 {offsets = [1, 1, 0], sizes = [16, 16, 4], strides = [1, 1, 1]} : vector<18x18x4xbf16> to vector<16x16x4xbf16>
    %33 = vector.shape_cast %32 : vector<16x16x4xbf16> to vector<256x4xbf16>
    %c4 = arith.constant 4 : index
    %c0_29 = arith.constant 0 : index
    %c0_30 = arith.constant 0 : index
    %34 = vector.load %arg2[%c4, %c0_29, %c0_30] : memref<9x4x128xbf16, #tpu.memory_space<vmem>>, vector<1x4x128xbf16>
    %35 = vector.shape_cast %34 : vector<1x4x128xbf16> to vector<4x128xbf16>
    %cst_31 = arith.constant dense<0.000000e+00> : vector<256x128xf32>
    %36 = tpu.matmul %33, %35, %cst_31 {dimension_numbers = #tpu.dot_dimension_numbers<[1], [0], [0], [1], [0, 0, 1, 1], [], []>} : vector<256x4xbf16>, vector<4x128xbf16>, vector<256x128xf32> -> vector<256x128xf32>
    %c0_32 = arith.constant 0 : index
    %c0_33 = arith.constant 0 : index
    %37 = vector.load %arg5[%c0_32, %c0_33] : memref<256x128xf32, #tpu.memory_space<vmem>>, vector<256x128xf32>
    %38 = arith.addf %37, %36 : vector<256x128xf32>
    %c0_34 = arith.constant 0 : index
    %c0_35 = arith.constant 0 : index
    %39 = vector.load %arg5[%c0_34, %c0_35] : memref<256x128xf32, #tpu.memory_space<vmem>>, vector<256x128xf32>
    tpu.vector_store %arg5[%c0_34, %c0_35], %38 {strides = array<i32>} : memref<256x128xf32, #tpu.memory_space<vmem>>, vector<256x128xf32>,
    %40 = vector.extract_strided_slice %1 {offsets = [1, 2, 0], sizes = [16, 16, 4], strides = [1, 1, 1]} : vector<18x18x4xbf16> to vector<16x16x4xbf16>
    %41 = vector.shape_cast %40 : vector<16x16x4xbf16> to vector<256x4xbf16>
    %c5 = arith.constant 5 : index
    %c0_36 = arith.constant 0 : index
    %c0_37 = arith.constant 0 : index
    %42 = vector.load %arg2[%c5, %c0_36, %c0_37] : memref<9x4x128xbf16, #tpu.memory_space<vmem>>, vector<1x4x128xbf16>
    %43 = vector.shape_cast %42 : vector<1x4x128xbf16> to vector<4x128xbf16>
    %cst_38 = arith.constant dense<0.000000e+00> : vector<256x128xf32>
    %44 = tpu.matmul %41, %43, %cst_38 {dimension_numbers = #tpu.dot_dimension_numbers<[1], [0], [0], [1], [0, 0, 1, 1], [], []>} : vector<256x4xbf16>, vector<4x128xbf16>, vector<256x128xf32> -> vector<256x128xf32>
    %c0_39 = arith.constant 0 : index
    %c0_40 = arith.constant 0 : index
    %45 = vector.load %arg5[%c0_39, %c0_40] : memref<256x128xf32, #tpu.memory_space<vmem>>, vector<256x128xf32>
    %46 = arith.addf %45, %44 : vector<256x128xf32>
    %c0_41 = arith.constant 0 : index
    %c0_42 = arith.constant 0 : index
    %47 = vector.load %arg5[%c0_41, %c0_42] : memref<256x128xf32, #tpu.memory_space<vmem>>, vector<256x128xf32>
    tpu.vector_store %arg5[%c0_41, %c0_42], %46 {strides = array<i32>} : memref<256x128xf32, #tpu.memory_space<vmem>>, vector<256x128xf32>,
    %48 = vector.extract_strided_slice %1 {offsets = [2, 0, 0], sizes = [16, 16, 4], strides = [1, 1, 1]} : vector<18x18x4xbf16> to vector<16x16x4xbf16>
    %49 = vector.shape_cast %48 : vector<16x16x4xbf16> to vector<256x4xbf16>
    %c6 = arith.constant 6 : index
    %c0_43 = arith.constant 0 : index
    %c0_44 = arith.constant 0 : index
    %50 = vector.load %arg2[%c6, %c0_43, %c0_44] : memref<9x4x128xbf16, #tpu.memory_space<vmem>>, vector<1x4x128xbf16>
    %51 = vector.shape_cast %50 : vector<1x4x128xbf16> to vector<4x128xbf16>
    %cst_45 = arith.constant dense<0.000000e+00> : vector<256x128xf32>
    %52 = tpu.matmul %49, %51, %cst_45 {dimension_numbers = #tpu.dot_dimension_numbers<[1], [0], [0], [1], [0, 0, 1, 1], [], []>} : vector<256x4xbf16>, vector<4x128xbf16>, vector<256x128xf32> -> vector<256x128xf32>
    %c0_46 = arith.constant 0 : index
    %c0_47 = arith.constant 0 : index
    %53 = vector.load %arg5[%c0_46, %c0_47] : memref<256x128xf32, #tpu.memory_space<vmem>>, vector<256x128xf32>
    %54 = arith.addf %53, %52 : vector<256x128xf32>
    %c0_48 = arith.constant 0 : index
    %c0_49 = arith.constant 0 : index
    %55 = vector.load %arg5[%c0_48, %c0_49] : memref<256x128xf32, #tpu.memory_space<vmem>>, vector<256x128xf32>
    tpu.vector_store %arg5[%c0_48, %c0_49], %54 {strides = array<i32>} : memref<256x128xf32, #tpu.memory_space<vmem>>, vector<256x128xf32>,
    %56 = vector.extract_strided_slice %1 {offsets = [2, 1, 0], sizes = [16, 16, 4], strides = [1, 1, 1]} : vector<18x18x4xbf16> to vector<16x16x4xbf16>
    %57 = vector.shape_cast %56 : vector<16x16x4xbf16> to vector<256x4xbf16>
    %c7 = arith.constant 7 : index
    %c0_50 = arith.constant 0 : index
    %c0_51 = arith.constant 0 : index
    %58 = vector.load %arg2[%c7, %c0_50, %c0_51] : memref<9x4x128xbf16, #tpu.memory_space<vmem>>, vector<1x4x128xbf16>
    %59 = vector.shape_cast %58 : vector<1x4x128xbf16> to vector<4x128xbf16>
    %cst_52 = arith.constant dense<0.000000e+00> : vector<256x128xf32>
    %60 = tpu.matmul %57, %59, %cst_52 {dimension_numbers = #tpu.dot_dimension_numbers<[1], [0], [0], [1], [0, 0, 1, 1], [], []>} : vector<256x4xbf16>, vector<4x128xbf16>, vector<256x128xf32> -> vector<256x128xf32>
    %c0_53 = arith.constant 0 : index
    %c0_54 = arith.constant 0 : index
    %61 = vector.load %arg5[%c0_53, %c0_54] : memref<256x128xf32, #tpu.memory_space<vmem>>, vector<256x128xf32>
    %62 = arith.addf %61, %60 : vector<256x128xf32>
    %c0_55 = arith.constant 0 : index
    %c0_56 = arith.constant 0 : index
    %63 = vector.load %arg5[%c0_55, %c0_56] : memref<256x128xf32, #tpu.memory_space<vmem>>, vector<256x128xf32>
    tpu.vector_store %arg5[%c0_55, %c0_56], %62 {strides = array<i32>} : memref<256x128xf32, #tpu.memory_space<vmem>>, vector<256x128xf32>,
    %64 = vector.extract_strided_slice %1 {offsets = [2, 2, 0], sizes = [16, 16, 4], strides = [1, 1, 1]} : vector<18x18x4xbf16> to vector<16x16x4xbf16>
    %65 = vector.shape_cast %64 : vector<16x16x4xbf16> to vector<256x4xbf16>
    %c8 = arith.constant 8 : index
    %c0_57 = arith.constant 0 : index
    %c0_58 = arith.constant 0 : index
    %66 = vector.load %arg2[%c8, %c0_57, %c0_58] : memref<9x4x128xbf16, #tpu.memory_space<vmem>>, vector<1x4x128xbf16>
    %67 = vector.shape_cast %66 : vector<1x4x128xbf16> to vector<4x128xbf16>
    %cst_59 = arith.constant dense<0.000000e+00> : vector<256x128xf32>
    %68 = tpu.matmul %65, %67, %cst_59 {dimension_numbers = #tpu.dot_dimension_numbers<[1], [0], [0], [1], [0, 0, 1, 1], [], []>} : vector<256x4xbf16>, vector<4x128xbf16>, vector<256x128xf32> -> vector<256x128xf32>
    %c0_60 = arith.constant 0 : index
    %c0_61 = arith.constant 0 : index
    %69 = vector.load %arg5[%c0_60, %c0_61] : memref<256x128xf32, #tpu.memory_space<vmem>>, vector<256x128xf32>
    %70 = arith.addf %69, %68 : vector<256x128xf32>
    %c0_62 = arith.constant 0 : index
    %c0_63 = arith.constant 0 : index
    %71 = vector.load %arg5[%c0_62, %c0_63] : memref<256x128xf32, #tpu.memory_space<vmem>>, vector<256x128xf32>
    tpu.vector_store %arg5[%c0_62, %c0_63], %70 {strides = array<i32>} : memref<256x128xf32, #tpu.memory_space<vmem>>, vector<256x128xf32>,
    %c0_64 = arith.constant 0 : index
    %c0_65 = arith.constant 0 : index
    %72 = vector.load %arg5[%c0_64, %c0_65] : memref<256x128xf32, #tpu.memory_space<vmem>>, vector<256x128xf32>
    %c0_66 = arith.constant 0 : index
    %c0_67 = arith.constant 0 : index
    %73 = vector.load %arg3[%c0_66, %c0_67] : memref<256x1xf32, #tpu.memory_space<vmem>>, vector<256x1xf32>
    %74 = vector.broadcast %73 : vector<256x1xf32> to vector<256x128xf32>
    %75 = arith.mulf %72, %74 : vector<256x128xf32>
    %cst_68 = arith.constant dense<0.000000e+00> : vector<128xf32>
    %76 = vector.multi_reduction <add>, %75, %cst_68 [0] : vector<256x128xf32> to vector<128xf32>
    %77 = vector.shape_cast %76 : vector<128xf32> to vector<1x128xf32>
    %78 = vector.extract_strided_slice %77 {offsets = [0, 0], sizes = [1, 8], strides = [1, 1]} : vector<1x128xf32> to vector<1x8xf32>
    %c0_69 = arith.constant 0 : index
    %c0_70 = arith.constant 0 : index
    %c0_71 = arith.constant 0 : index
    %79 = vector.load %arg4[%c0_69, %c0_70, %c0_71] : memref<1x2x8xf32, #tpu.memory_space<vmem>>, vector<1x1x8xf32>
    %80 = vector.shape_cast %79 : vector<1x1x8xf32> to vector<1x8xf32>
    %81 = vector.shape_cast %78 : vector<1x8xf32> to vector<1x1x8xf32>
    tpu.vector_store %arg4[%c0_69, %c0_70, %c0_71], %81 {strides = array<i32>} : memref<1x2x8xf32, #tpu.memory_space<vmem>>, vector<1x1x8xf32>,
    %82 = arith.mulf %75, %72 : vector<256x128xf32>
    %cst_72 = arith.constant dense<0.000000e+00> : vector<128xf32>
    %83 = vector.multi_reduction <add>, %82, %cst_72 [0] : vector<256x128xf32> to vector<128xf32>
    %84 = vector.shape_cast %83 : vector<128xf32> to vector<1x128xf32>
    %85 = vector.extract_strided_slice %84 {offsets = [0, 0], sizes = [1, 8], strides = [1, 1]} : vector<1x128xf32> to vector<1x8xf32>
    %c0_73 = arith.constant 0 : index
    %c1_74 = arith.constant 1 : index
    %c0_75 = arith.constant 0 : index
    %86 = vector.load %arg4[%c0_73, %c1_74, %c0_75] : memref<1x2x8xf32, #tpu.memory_space<vmem>>, vector<1x1x8xf32>
    %87 = vector.shape_cast %86 : vector<1x1x8xf32> to vector<1x8xf32>
    %88 = vector.shape_cast %85 : vector<1x8xf32> to vector<1x1x8xf32>
    tpu.vector_store %arg4[%c0_73, %c1_74, %c0_75], %88 {strides = array<i32>} : memref<1x2x8xf32, #tpu.memory_space<vmem>>, vector<1x1x8xf32>,
    return
  }
  func.func @transform_0(%arg0: i32) -> (i32, i32, i32, i32) {
    %c0_i32 = arith.constant 0 : i32
    %c0_i32_0 = arith.constant 0 : i32
    %c0_i32_1 = arith.constant 0 : i32
    %c0_i32_2 = arith.constant 0 : i32
    return %arg0, %c0_i32, %c0_i32_0, %c0_i32_1 : i32, i32, i32, i32
  }
  func.func @transform_1(%arg0: i32) -> (i32, i32, i32) {
    %c0_i32 = arith.constant 0 : i32
    %c0_i32_0 = arith.constant 0 : i32
    %c0_i32_1 = arith.constant 0 : i32
    %c0_i32_2 = arith.constant 0 : i32
    return %c0_i32, %c0_i32_0, %c0_i32_1 : i32, i32, i32
  }
  func.func @transform_2(%arg0: i32) -> (i32, i32) {
    %c1_i32 = arith.constant 1 : i32
    %c0_i32 = arith.constant 0 : i32
    %0 = arith.cmpi eq, %c1_i32, %c0_i32 : i32
    %c1_i32_0 = arith.constant 1 : i32
    %1 = arith.select %0, %c1_i32_0, %c1_i32 : i32
    %2 = arith.remsi %arg0, %1 : i32
    %c0_i32_1 = arith.constant 0 : i32
    %3 = arith.cmpi ne, %2, %c0_i32_1 : i32
    %c0_i32_2 = arith.constant 0 : i32
    %4 = arith.cmpi slt, %2, %c0_i32_2 : i32
    %c0_i32_3 = arith.constant 0 : i32
    %5 = arith.cmpi slt, %1, %c0_i32_3 : i32
    %6 = arith.xori %4, %5 : i1
    %7 = arith.andi %6, %3 : i1
    %8 = arith.addi %2, %1 : i32
    %9 = arith.select %7, %8, %2 : i32
    %c0_i32_4 = arith.constant 0 : i32
    %c0_i32_5 = arith.constant 0 : i32
    return %9, %c0_i32_4 : i32, i32
  }
  func.func @transform_3(%arg0: i32) -> (i32, i32, i32) {
    %c0_i32 = arith.constant 0 : i32
    %c0_i32_0 = arith.constant 0 : i32
    %c0_i32_1 = arith.constant 0 : i32
    return %arg0, %c0_i32, %c0_i32_0 : i32, i32, i32
  }
}

</mosaic_0001>

<llo_original>
// kernel: conv_bn_leaky_relu.3
$region0: #{conv_bn_leaky_relu.3}
  #allocation0 [shape = 'u32[]', space=smem, size = 0x4, offset = 0x4, fixed_abs, tag = 'smem constant byte address 0x4 - core index']
  #allocation1 [shape = 'u32[144,128]{1,0:T(1,128)}', space=vmem, size = 0x12000, scoped, tag = 'internal scratch']
  #allocation2 [shape = 'f32[256,128]{1,0:T(8,128)}', space=vmem, size = 0x20000, scoped, tag = 'scratch operand']
  %s0 = inlined_call_operand.vmem [shape: bf16[2,18,18,4], index: 0, kind: input, shape index: {}]
  %s1 = inlined_call_operand.vmem [shape: bf16[9,4,128], index: 1, kind: input, shape index: {}]
  %s2 = inlined_call_operand.vmem [shape: f32[1,8], index: 2, kind: input, shape index: {}]
  %s3 = inlined_call_operand.vmem [shape: f32[1,8], index: 3, kind: input, shape index: {}]
  %s4 = inlined_call_operand.vmem [shape: f32[512,8], index: 4, kind: output, shape index: {}]
  %s5 = sld [smem:[#allocation0]]
  $region49: #{conv_bn_leaky_relu.3} parent=0
    _
  %s7 = ssub.s32 1, %s5
  %s8 = scalar_select 0, %s7, %s5
  loop: start=0, step=1, limit=4
  $region2: #{conv_bn_leaky_relu.3} parent=0 // loop_pre_header
    _
  $region3: #{conv_bn_leaky_relu.3} parent=0 // loop_header
    %s10 = sphi 0, %s14
    %p11 = scmp.ge.s32.totalorder %s10, 4
    %s20 = sphi 0, %s22
    %s23 = sphi 0, %s20
    %s24 = sphi 0, %s23
    %s40 = sphi 0, %s24
    %s44 = sphi 0, %s44
    %s46 = sphi 0, %s44
    %s47 = sphi 0, %s46
    %s61 = sphi 0, %s47
    %s65 = sphi 0, %s65
    %s67 = sphi 0, %s65
    %s68 = sphi 0, %s67
    %s82 = sphi 0, %s68
    %s86 = sphi 0, %s86
    %s88 = sphi 0, %s86
    %s89 = sphi 0, %s88
    %s103 = sphi 0, %s89
    %s109 = sphi 0, %s111
    %s112 = sphi 0, %s109
    %s113 = sphi 0, %s112
    %s129 = sphi 0, %s113
  $region4: #{conv_bn_leaky_relu.3} parent=0 // loop_header_branch
    %13 = sbr.rel (%p11) target = $region8
  $region5: #{conv_bn_leaky_relu.3} parent=0 // loop_body
    %s15 = ssub.s32 %s10, 1
    %s16 = ssub.s32 %s10, 2
    %s17 = sadd.s32 %s10, 1
    %s18 = ssub.s32 %s10, %s17
    %p19 = scmp.eq.s32.totalorder %s18, 0
    %s21 = sadd.s32 %s20, 1
    %s22 = scalar_select %p19, %s20, %s21
    %p25 = pneg %p19
    %p26 = scmp.eq.s32.totalorder %s10, 1
    %p27 = por %p25, %p26
    %p28 = scmp.ne.s32.totalorder %s20, %s23
    %p29 = scmp.eq.s32.totalorder %s10, 0
    %p30 = por %p28, %p29
    %p31 = scmp.ne.s32.totalorder %s20, %s23
    %p32 = scmp.eq.s32.totalorder %s15, 1
    %p33 = por %p31, %p32
    %p34 = scmp.ne.s32.totalorder %s23, %s24
    %p35 = scmp.eq.s32.totalorder %s15, 0
    %p36 = por %p34, %p35
    %p37 = scmp.ne.s32.totalorder %s23, %s24
    %p38 = scmp.eq.s32.totalorder %s16, 1
    %p39 = por %p37, %p38
    %p41 = scmp.ne.s32.totalorder %s24, %s40
    %p42 = scmp.eq.s32.totalorder %s16, 0
    %p43 = por %p41, %p42
    %s45 = sadd.s32 %s44, 1
    %p48 = scmp.eq.s32.totalorder %s10, 1
    %p49 = scmp.ne.s32.totalorder %s44, %s46
    %p50 = scmp.eq.s32.totalorder %s10, 0
    %p51 = por %p49, %p50
    %p52 = scmp.ne.s32.totalorder %s44, %s46
    %p53 = scmp.eq.s32.totalorder %s15, 1
    %p54 = por %p52, %p53
    %p55 = scmp.ne.s32.totalorder %s46, %s47
    %p56 = scmp.eq.s32.totalorder %s15, 0
    %p57 = por %p55, %p56
    %p58 = scmp.ne.s32.totalorder %s46, %s47
    %p59 = scmp.eq.s32.totalorder %s16, 1
    %p60 = por %p58, %p59
    %p62 = scmp.ne.s32.totalorder %s47, %s61
    %p63 = scmp.eq.s32.totalorder %s16, 0
    %p64 = por %p62, %p63
    %s66 = sadd.s32 %s65, 1
    %p69 = scmp.eq.s32.totalorder %s10, 1
    %p70 = scmp.ne.s32.totalorder %s65, %s67
    %p71 = scmp.eq.s32.totalorder %s10, 0
    %p72 = por %p70, %p71
    %p73 = scmp.ne.s32.totalorder %s65, %s67
    %p74 = scmp.eq.s32.totalorder %s15, 1
    %p75 = por %p73, %p74
    %p76 = scmp.ne.s32.totalorder %s67, %s68
    %p77 = scmp.eq.s32.totalorder %s15, 0
    %p78 = por %p76, %p77
    %p79 = scmp.ne.s32.totalorder %s67, %s68
    %p80 = scmp.eq.s32.totalorder %s16, 1
    %p81 = por %p79, %p80
    %p83 = scmp.ne.s32.totalorder %s68, %s82
    %p84 = scmp.eq.s32.totalorder %s16, 0
    %p85 = por %p83, %p84
    %s87 = sadd.s32 %s86, 1
    %p90 = scmp.eq.s32.totalorder %s10, 1
    %p91 = scmp.ne.s32.totalorder %s86, %s88
    %p92 = scmp.eq.s32.totalorder %s10, 0
    %p93 = por %p91, %p92
    %p94 = scmp.ne.s32.totalorder %s86, %s88
    %p95 = scmp.eq.s32.totalorder %s15, 1
    %p96 = por %p94, %p95
    %p97 = scmp.ne.s32.totalorder %s88, %s89
    %p98 = scmp.eq.s32.totalorder %s15, 0
    %p99 = por %p97, %p98
    %p100 = scmp.ne.s32.totalorder %s88, %s89
    %p101 = scmp.eq.s32.totalorder %s16, 1
    %p102 = por %p100, %p101
    %p104 = scmp.ne.s32.totalorder %s89, %s103
    %p105 = scmp.eq.s32.totalorder %s16, 0
    %p106 = por %p104, %p105
    %s107 = ssub.s32 %s10, %s17
    %p108 = scmp.eq.s32.totalorder %s107, 0
    %s110 = sadd.s32 %s109, 1
    %s111 = scalar_select %p108, %s109, %s110
    %p114 = pneg %p108
    %p115 = scmp.eq.s32.totalorder %s10, 1
    %p116 = por %p114, %p115
    %p117 = scmp.ne.s32.totalorder %s109, %s112
    %p118 = scmp.eq.s32.totalorder %s10, 0
    %p119 = por %p117, %p118
    %p120 = scmp.ne.s32.totalorder %s109, %s112
    %p121 = scmp.eq.s32.totalorder %s15, 1
    %p122 = por %p120, %p121
    %p123 = scmp.ne.s32.totalorder %s112, %s113
    %p124 = scmp.eq.s32.totalorder %s15, 0
    %p125 = por %p123, %p124
    %p126 = scmp.ne.s32.totalorder %s112, %s113
    %p127 = scmp.eq.s32.totalorder %s16, 1
    %p128 = por %p126, %p127
    %p130 = scmp.ne.s32.totalorder %s113, %s129
    %p131 = scmp.eq.s32.totalorder %s16, 0
    %p132 = por %p130, %p131
    %p133 = scmp.le.s32.totalorder 1, %s10
    %p134 = scmp.lt.s32.totalorder %s10, 3
    %p135 = pnand %p133, %p134
    %p136 = pneg %p135
    // Predicated region
    $region9: #{conv_bn_leaky_relu.3} parent=5 // pred_check
      _
    $region10: #{conv_bn_leaky_relu.3} parent=5 // pred_check_branch
      %138 = sbr.rel (%p135) target = $region12
    $region11: #{conv_bn_leaky_relu.3} parent=5 // pred_region
      %s139 = ssub.s32 %s10, 1
      // Predicated region
      $region13: #{conv_bn_leaky_relu.3} parent=11 // pred_check
        %p140 = pneg %p57
      $region14: #{conv_bn_leaky_relu.3} parent=11 // pred_check_branch
        %142 = sbr.rel (%p140) target = $region16
      $region15: #{conv_bn_leaky_relu.3} parent=11 // pred_region
        _
      $region16: #{conv_bn_leaky_relu.3} parent=11 // pred_fallthru
        _
      // Predicated region
      $region17: #{conv_bn_leaky_relu.3} parent=11 // pred_check
        %p143 = pneg %p78
      $region18: #{conv_bn_leaky_relu.3} parent=11 // pred_check_branch
        %145 = sbr.rel (%p143) target = $region20
      $region19: #{conv_bn_leaky_relu.3} parent=11 // pred_region
        _
      $region20: #{conv_bn_leaky_relu.3} parent=11 // pred_fallthru
        _
      // Predicated region
      $region21: #{conv_bn_leaky_relu.3} parent=11 // pred_check
        %p146 = pneg %p99
      $region22: #{conv_bn_leaky_relu.3} parent=11 // pred_check_branch
        %148 = sbr.rel (%p146) target = $region24
      $region23: #{conv_bn_leaky_relu.3} parent=11 // pred_region
        _
      $region24: #{conv_bn_leaky_relu.3} parent=11 // pred_fallthru
        _
    $region12: #{conv_bn_leaky_relu.3} parent=5 // pred_fallthru
      _
    %p149 = scmp.lt.s32.totalorder %s10, 2
    // Predicated region
    $region25: #{conv_bn_leaky_relu.3} parent=5 // pred_check
      %p150 = pneg %p149
    $region26: #{conv_bn_leaky_relu.3} parent=5 // pred_check_branch
      %152 = sbr.rel (%p150) target = $region28
    $region27: #{conv_bn_leaky_relu.3} parent=5 // pred_region
      // Predicated region
      $region29: #{conv_bn_leaky_relu.3} parent=27 // pred_check
        %p153 = pneg %p30
      $region30: #{conv_bn_leaky_relu.3} parent=27 // pred_check_branch
        %155 = sbr.rel (%p153) target = $region32
      $region31: #{conv_bn_leaky_relu.3} parent=27 // pred_region
        %p156 = scmp.lt.s32.totalorder %s10, 1
        %s157 = scalar_select %p156, %s10, 1
        %s158 = smul.addr %s157, 54
        %s159 = smul.addr %s158, 4
        %s160 = scalar_lea.vmem %s0, %s159
      $region32: #{conv_bn_leaky_relu.3} parent=27 // pred_fallthru
        _
    $region28: #{conv_bn_leaky_relu.3} parent=5 // pred_fallthru
      _
    %p161 = scmp.le.s32.totalorder 1, %s10
    %p162 = scmp.lt.s32.totalorder %s10, 3
    %p163 = pnand %p161, %p162
    %p164 = pneg %p163
    // Predicated region
    $region33: #{conv_bn_leaky_relu.3} parent=5 // pred_check
      _
    $region34: #{conv_bn_leaky_relu.3} parent=5 // pred_check_branch
      %166 = sbr.rel (%p163) target = $region36
    $region35: #{conv_bn_leaky_relu.3} parent=5 // pred_region
      %s167 = ssub.s32 %s10, 1
      %p168 = scmp.lt.s32.totalorder %s15, 1
      %s169 = scalar_select %p168, %s15, 1
      %s170 = smul.addr %s169, 54
      %s171 = smul.addr %s170, 4
      %s172 = scalar_lea.vmem %s0, %s171
      %p173 = pneg %p36
      %p174 = pneg %p33
      %p175 = pneg %p57
      %p176 = pneg %p54
      %p177 = pneg %p78
      %p178 = pneg %p75
      %p179 = pneg %p99
      %p180 = pneg %p96
      %p181 = pneg %p125
      %p182 = pneg %p122
      %s183 = smul.u32 32, %s15
      %p184 = scmp.lt.s32.totalorder %s183, 63
      %s185 = scalar_select %p184, %s183, 63
      %s186 = smul.addr %s185, 8
      %s187 = scalar_lea.vmem %s4, %s186
      %p188 = scmp.lt.s32.totalorder %s15, 1
      %s189 = scalar_select %p188, %s15, 1
      %s190 = smul.addr %s189, 54
      %s191 = smul.addr %s190, 4
      %s192 = scalar_lea.vmem %s0, %s191
      %s193 = smul.u32 32, %s15
      %p194 = scmp.lt.s32.totalorder %s193, 63
      %s195 = scalar_select %p194, %s193, 63
      %s196 = smul.addr %s195, 8
      %s197 = scalar_lea.vmem %s4, %s196
      %s198 = smul.u32 32, %s15
      %v200 = vld [vmem:[%s192] sm:$0xf]
      %v201 = vld [vmem:[%s192 + $0x4] sm:$0xf]
      %v202 = vld [vmem:[%s192 + $0x8] sm:$0x1]
      %v203 = vld [vmem:[%s192 + $0xc] sm:$0xf]
      %v204 = vld [vmem:[%s192 + $0x10] sm:$0xf]
      %v205 = vld [vmem:[%s192 + $0x14] sm:$0x1]
      %v206 = vld [vmem:[%s192 + $0x18] sm:$0xf]
      %v207 = vld [vmem:[%s192 + $0x1c] sm:$0xf]
      %v208 = vld [vmem:[%s192 + $0x20] sm:$0x1]
      %v209 = vld [vmem:[%s192 + $0x24] sm:$0xf]
      %v210 = vld [vmem:[%s192 + $0x28] sm:$0xf]
      %v211 = vld [vmem:[%s192 + $0x2c] sm:$0x1]
      %v212 = vld [vmem:[%s192 + $0x30] sm:$0xf]
      %v213 = vld [vmem:[%s192 + $0x34] sm:$0xf]
      %v214 = vld [vmem:[%s192 + $0x38] sm:$0x1]
      %v215 = vld [vmem:[%s192 + $0x3c] sm:$0xf]
      %v216 = vld [vmem:[%s192 + $0x40] sm:$0xf]
      %v217 = vld [vmem:[%s192 + $0x44] sm:$0x1]
      %v218 = vld [vmem:[%s192 + $0x48] sm:$0xf]
      %v219 = vld [vmem:[%s192 + $0x4c] sm:$0xf]
      %v220 = vld [vmem:[%s192 + $0x50] sm:$0x1]
      %v221 = vld [vmem:[%s192 + $0x54] sm:$0xf]
      %v222 = vld [vmem:[%s192 + $0x58] sm:$0xf]
      %v223 = vld [vmem:[%s192 + $0x5c] sm:$0x1]
      %v224 = vld [vmem:[%s192 + $0x60] sm:$0xf]
      %v225 = vld [vmem:[%s192 + $0x64] sm:$0xf]
      %v226 = vld [vmem:[%s192 + $0x68] sm:$0x1]
      %v227 = vld [vmem:[%s192 + $0x6c] sm:$0xf]
      %v228 = vld [vmem:[%s192 + $0x70] sm:$0xf]
      %v229 = vld [vmem:[%s192 + $0x74] sm:$0x1]
      %v230 = vld [vmem:[%s192 + $0x78] sm:$0xf]
      %v231 = vld [vmem:[%s192 + $0x7c] sm:$0xf]
      %v232 = vld [vmem:[%s192 + $0x80] sm:$0x1]
      %v233 = vld [vmem:[%s192 + $0x84] sm:$0xf]
      %v234 = vld [vmem:[%s192 + $0x88] sm:$0xf]
      %v235 = vld [vmem:[%s192 + $0x8c] sm:$0x1]
      %v236 = vld [vmem:[%s192 + $0x90] sm:$0xf]
      %v237 = vld [vmem:[%s192 + $0x94] sm:$0xf]
      %v238 = vld [vmem:[%s192 + $0x98] sm:$0x1]
      %v239 = vld [vmem:[%s192 + $0x9c] sm:$0xf]
      %v240 = vld [vmem:[%s192 + $0xa0] sm:$0xf]
      %v241 = vld [vmem:[%s192 + $0xa4] sm:$0x1]
      %v242 = vld [vmem:[%s192 + $0xa8] sm:$0xf]
      %v243 = vld [vmem:[%s192 + $0xac] sm:$0xf]
      %v244 = vld [vmem:[%s192 + $0xb0] sm:$0x1]
      %v245 = vld [vmem:[%s192 + $0xb4] sm:$0xf]
      %v246 = vld [vmem:[%s192 + $0xb8] sm:$0xf]
      %v247 = vld [vmem:[%s192 + $0xbc] sm:$0x1]
      %v248 = vld [vmem:[%s192 + $0xc0] sm:$0xf]
      %v249 = vld [vmem:[%s192 + $0xc4] sm:$0xf]
      %v250 = vld [vmem:[%s192 + $0xc8] sm:$0x1]
      %v251 = vld [vmem:[%s192 + $0xcc] sm:$0xf]
      %v252 = vld [vmem:[%s192 + $0xd0] sm:$0xf]
      %v253 = vld [vmem:[%s192 + $0xd4] sm:$0x1]
      %v254 = vld [vmem:[%s1] sm:$0x3]
      %v287 = vunpack.c.l.b16 %v200
      %v288 = vunpack.c.l.b16 %v201
      %v289 = vunpack.c.l.b16 %v203
      %v290 = vunpack.c.l.b16 %v204
      %v291 = vunpack.c.l.b16 %v206
      %v292 = vunpack.c.l.b16 %v207
      %v293 = vunpack.c.l.b16 %v209
      %v294 = vunpack.c.l.b16 %v210
      %v295 = vunpack.c.l.b16 %v212
      %v296 = vunpack.c.l.b16 %v213
      %v297 = vunpack.c.l.b16 %v215
      %v298 = vunpack.c.l.b16 %v216
      %v299 = vunpack.c.l.b16 %v218
      %v300 = vunpack.c.l.b16 %v219
      %v301 = vunpack.c.l.b16 %v221
      %v302 = vunpack.c.l.b16 %v222
      %v303 = vunpack.c.l.b16 %v224
      %v304 = vunpack.c.l.b16 %v225
      %v305 = vunpack.c.l.b16 %v227
      %v306 = vunpack.c.l.b16 %v228
      %v307 = vunpack.c.l.b16 %v230
      %v308 = vunpack.c.l.b16 %v231
      %v309 = vunpack.c.l.b16 %v233
      %v310 = vunpack.c.l.b16 %v234
      %v311 = vunpack.c.l.b16 %v236
      %v312 = vunpack.c.l.b16 %v237
      %v313 = vunpack.c.l.b16 %v239
      %v314 = vunpack.c.l.b16 %v240
      %v315 = vunpack.c.l.b16 %v242
      %v316 = vunpack.c.l.b16 %v243
      %v317 = vunpack.c.l.b16 %v245
      %v318 = vunpack.c.l.b16 %v246
      %v319 = vpack.c.b16 %v288, %v287
      %v320 = vpack.c.b16 %v290, %v289
      %v321 = vpack.c.b16 %v292, %v291
      %v322 = vpack.c.b16 %v294, %v293
      %v323 = vpack.c.b16 %v296, %v295
      %v324 = vpack.c.b16 %v298, %v297
      %v325 = vpack.c.b16 %v300, %v299
      %v326 = vpack.c.b16 %v302, %v301
      %v327 = vpack.c.b16 %v304, %v303
      %v328 = vpack.c.b16 %v306, %v305
      %v329 = vpack.c.b16 %v308, %v307
      %v330 = vpack.c.b16 %v310, %v309
      %v331 = vpack.c.b16 %v312, %v311
      %v332 = vpack.c.b16 %v314, %v313
      %v333 = vpack.c.b16 %v316, %v315
      %v334 = vpack.c.b16 %v318, %v317
      %vm335 = vcmask 31744
      %v337 = vsel %vm335, %v319, 0
      %v340 = vsel %vm335, %v320, 0
      %v343 = vsel %vm335, %v321, 0
      %v346 = vsel %vm335, %v322, 0
      %v349 = vsel %vm335, %v323, 0
      %v352 = vsel %vm335, %v324, 0
      %v355 = vsel %vm335, %v325, 0
      %v358 = vsel %vm335, %v326, 0
      %v361 = vsel %vm335, %v327, 0
      %v364 = vsel %vm335, %v328, 0
      %v367 = vsel %vm335, %v329, 0
      %v370 = vsel %vm335, %v330, 0
      %v373 = vsel %vm335, %v331, 0
      %v376 = vsel %vm335, %v332, 0
      %v379 = vsel %vm335, %v333, 0
      %v382 = vsel %vm335, %v334, 0
      %vm384 = vcmask 1041408
      %v386 = vsel %vm384, %v254, 0
      %388 = vmatprep.subr.bf16.mxu0 0
      %389 = vmatpush1.bf16.msra.mxu0 %v386
      %390 = vmatprep.subr.bf16.mxu0 0
      %391 = vmatpush1.bf16.msra.mxu0 0
      %392 = vmatprep.subr.bf16.mxu0 0
      %393 = vmatpush1.bf16.msra.mxu0 0
      %394 = vmatprep.subr.bf16.mxu0 0
      %395 = vmatpush1.bf16.msra.mxu0 0
      %396 = vmatprep.subr.bf16.mxu0 0
      %397 = vmatpush1.bf16.msra.mxu0 0
      %398 = vmatprep.subr.bf16.mxu0 0
      %399 = vmatpush1.bf16.msra.mxu0 0
      %400 = vmatprep.subr.bf16.mxu0 0
      %401 = vmatpush1.bf16.msra.mxu0 0
      %402 = vmatprep.subr.bf16.mxu0 0
      %403 = vmatpush1.bf16.msra.mxu0 0
      %404 = vmatprep.subr.bf16.mxu0 0
      %405 = vmatpush1.bf16.msra.mxu0 0
      %406 = vmatprep.subr.bf16.mxu0 0
      %407 = vmatpush1.bf16.msra.mxu0 0
      %408 = vmatprep.subr.bf16.mxu0 0
      %409 = vmatpush1.bf16.msra.mxu0 0
      %410 = vmatprep.subr.bf16.mxu0 0
      %411 = vmatpush1.bf16.msra.mxu0 0
      %412 = vmatprep.subr.bf16.mxu0 0
      %413 = vmatpush1.bf16.msra.mxu0 0
      %414 = vmatprep.subr.bf16.mxu0 0
      %415 = vmatpush1.bf16.msra.mxu0 0
      %416 = vmatprep.subr.bf16.mxu0 0
      %417 = vmatpush1.bf16.msra.mxu0 0
      %418 = vmatprep.subr.bf16.mxu0 0
      %419 = vmatpush1.bf16.msra.mxu0 0
      %420 = vmatprep.mubr.bf16.mxu0 0
      %421 = vmatmul.mubr.bf16.gmra.mrb[0].mxu0 %v337
      %v422 = vpop.f32.mrb[0].mxu0
      %v423 = vadd.f32 0.0, %v422
      %v424 = vpop.f32.mrb[0].mxu0
      %v425 = vpop.f32.mrb[0].mxu0
      %v426 = vadd.f32 0.0, %v425
      %v427 = vpop.f32.mrb[0].mxu0
      %428 = vmatprep.mubr.bf16.mxu0 0
      %429 = vmatmul.mubr.bf16.gmra.mrb[0].mxu0 %v340
      %v430 = vpop.f32.mrb[0].mxu0
      %v431 = vadd.f32 0.0, %v430
      %v432 = vpop.f32.mrb[0].mxu0
      %v433 = vpop.f32.mrb[0].mxu0
      %v434 = vadd.f32 0.0, %v433
      %v435 = vpop.f32.mrb[0].mxu0
      %436 = vmatprep.mubr.bf16.mxu0 0
      %437 = vmatmul.mubr.bf16.gmra.mrb[0].mxu0 %v343
      %v438 = vpop.f32.mrb[0].mxu0
      %v439 = vadd.f32 0.0, %v438
      %v440 = vpop.f32.mrb[0].mxu0
      %v441 = vpop.f32.mrb[0].mxu0
      %v442 = vadd.f32 0.0, %v441
      %v443 = vpop.f32.mrb[0].mxu0
      %444 = vmatprep.mubr.bf16.mxu0 0
      %445 = vmatmul.mubr.bf16.gmra.mrb[0].mxu0 %v346
      %v446 = vpop.f32.mrb[0].mxu0
      %v447 = vadd.f32 0.0, %v446
      %v448 = vpop.f32.mrb[0].mxu0
      %v449 = vpop.f32.mrb[0].mxu0
      %v450 = vadd.f32 0.0, %v449
      %v451 = vpop.f32.mrb[0].mxu0
      %452 = vmatprep.mubr.bf16.mxu0 0
      %453 = vmatmul.mubr.bf16.gmra.mrb[0].mxu0 %v349
      %v454 = vpop.f32.mrb[0].mxu0
      %v455 = vadd.f32 0.0, %v454
      %v456 = vpop.f32.mrb[0].mxu0
      %v457 = vpop.f32.mrb[0].mxu0
      %v458 = vadd.f32 0.0, %v457
      %v459 = vpop.f32.mrb[0].mxu0
      %460 = vmatprep.mubr.bf16.mxu0 0
      %461 = vmatmul.mubr.bf16.gmra.mrb[0].mxu0 %v352
      %v462 = vpop.f32.mrb[0].mxu0
      %v463 = vadd.f32 0.0, %v462
      %v464 = vpop.f32.mrb[0].mxu0
      %v465 = vpop.f32.mrb[0].mxu0
      %v466 = vadd.f32 0.0, %v465
      %v467 = vpop.f32.mrb[0].mxu0
      %468 = vmatprep.mubr.bf16.mxu0 0
      %469 = vmatmul.mubr.bf16.gmra.mrb[0].mxu0 %v355
      %v470 = vpop.f32.mrb[0].mxu0
      %v471 = vadd.f32 0.0, %v470
      %v472 = vpop.f32.mrb[0].mxu0
      %v473 = vpop.f32.mrb[0].mxu0
      %v474 = vadd.f32 0.0, %v473
      %v475 = vpop.f32.mrb[0].mxu0
      %476 = vmatprep.mubr.bf16.mxu0 0
      %477 = vmatmul.mubr.bf16.gmra.mrb[0].mxu0 %v358
      %v478 = vpop.f32.mrb[0].mxu0
      %v479 = vadd.f32 0.0, %v478
      %v480 = vpop.f32.mrb[0].mxu0
      %v481 = vpop.f32.mrb[0].mxu0
      %v482 = vadd.f32 0.0, %v481
      %v483 = vpop.f32.mrb[0].mxu0
      %484 = vmatprep.mubr.bf16.mxu0 0
      %485 = vmatmul.mubr.bf16.gmra.mrb[0].mxu0 %v361
      %v486 = vpop.f32.mrb[0].mxu0
      %v487 = vadd.f32 0.0, %v486
      %v488 = vpop.f32.mrb[0].mxu0
      %v489 = vpop.f32.mrb[0].mxu0
      %v490 = vadd.f32 0.0, %v489
      %v491 = vpop.f32.mrb[0].mxu0
      %492 = vmatprep.mubr.bf16.mxu0 0
      %493 = vmatmul.mubr.bf16.gmra.mrb[0].mxu0 %v364
      %v494 = vpop.f32.mrb[0].mxu0
      %v495 = vadd.f32 0.0, %v494
      %v496 = vpop.f32.mrb[0].mxu0
      %v497 = vpop.f32.mrb[0].mxu0
      %v498 = vadd.f32 0.0, %v497
      %v499 = vpop.f32.mrb[0].mxu0
      %500 = vmatprep.mubr.bf16.mxu0 0
      %501 = vmatmul.mubr.bf16.gmra.mrb[0].mxu0 %v367
      %v502 = vpop.f32.mrb[0].mxu0
      %v503 = vadd.f32 0.0, %v502
      %v504 = vpop.f32.mrb[0].mxu0
      %v505 = vpop.f32.mrb[0].mxu0
      %v506 = vadd.f32 0.0, %v505
      %v507 = vpop.f32.mrb[0].mxu0
      %508 = vmatprep.mubr.bf16.mxu0 0
      %509 = vmatmul.mubr.bf16.gmra.mrb[0].mxu0 %v370
      %v510 = vpop.f32.mrb[0].mxu0
      %v511 = vadd.f32 0.0, %v510
      %v512 = vpop.f32.mrb[0].mxu0
      %v513 = vpop.f32.mrb[0].mxu0
      %v514 = vadd.f32 0.0, %v513
      %v515 = vpop.f32.mrb[0].mxu0
      %516 = vmatprep.mubr.bf16.mxu0 0
      %517 = vmatmul.mubr.bf16.gmra.mrb[0].mxu0 %v373
      %v518 = vpop.f32.mrb[0].mxu0
      %v519 = vadd.f32 0.0, %v518
      %v520 = vpop.f32.mrb[0].mxu0
      %v521 = vpop.f32.mrb[0].mxu0
      %v522 = vadd.f32 0.0, %v521
      %v523 = vpop.f32.mrb[0].mxu0
      %524 = vmatprep.mubr.bf16.mxu0 0
      %525 = vmatmul.mubr.bf16.gmra.mrb[0].mxu0 %v376
      %v526 = vpop.f32.mrb[0].mxu0
      %v527 = vadd.f32 0.0, %v526
      %v528 = vpop.f32.mrb[0].mxu0
      %v529 = vpop.f32.mrb[0].mxu0
      %v530 = vadd.f32 0.0, %v529
      %v531 = vpop.f32.mrb[0].mxu0
      %532 = vmatprep.mubr.bf16.mxu0 0
      %533 = vmatmul.mubr.bf16.gmra.mrb[0].mxu0 %v379
      %v534 = vpop.f32.mrb[0].mxu0
      %v535 = vadd.f32 0.0, %v534
      %v536 = vpop.f32.mrb[0].mxu0
      %v537 = vpop.f32.mrb[0].mxu0
      %v538 = vadd.f32 0.0, %v537
      %v539 = vpop.f32.mrb[0].mxu0
      %540 = vmatprep.mubr.bf16.mxu0 0
      %541 = vmatmul.mubr.bf16.gmra.mrb[0].mxu0 %v382
      %v542 = vpop.f32.mrb[0].mxu0
      %v543 = vadd.f32 0.0, %v542
      %v544 = vpop.f32.mrb[0].mxu0
      %v545 = vpop.f32.mrb[0].mxu0
      %v546 = vadd.f32 0.0, %v545
      %v547 = vpop.f32.mrb[0].mxu0
      %548 = vdwg.mxu0
      %549 = vst [vmem:[#allocation2] sm:$0xff] %v423
      %550 = vst [vmem:[#allocation2 + $0x8] sm:$0xff] %v426
      %551 = vst [vmem:[#allocation2 + $0x10] sm:$0xff] %v431
      %552 = vst [vmem:[#allocation2 + $0x18] sm:$0xff] %v434
      %553 = vst [vmem:[#allocation2 + $0x20] sm:$0xff] %v439
      %554 = vst [vmem:[#allocation2 + $0x28] sm:$0xff] %v442
      %555 = vst [vmem:[#allocation2 + $0x30] sm:$0xff] %v447
      %556 = vst [vmem:[#allocation2 + $0x38] sm:$0xff] %v450
      %557 = vst [vmem:[#allocation2 + $0x40] sm:$0xff] %v455
      %558 = vst [vmem:[#allocation2 + $0x48] sm:$0xff] %v458
      %559 = vst [vmem:[#allocation2 + $0x50] sm:$0xff] %v463
      %560 = vst [vmem:[#allocation2 + $0x58] sm:$0xff] %v466
      %561 = vst [vmem:[#allocation2 + $0x60] sm:$0xff] %v471
      %562 = vst [vmem:[#allocation2 + $0x68] sm:$0xff] %v474
      %563 = vst [vmem:[#allocation2 + $0x70] sm:$0xff] %v479
      %564 = vst [vmem:[#allocation2 + $0x78] sm:$0xff] %v482
      %565 = vst [vmem:[#allocation2 + $0x80] sm:$0xff] %v487
      %566 = vst [vmem:[#allocation2 + $0x88] sm:$0xff] %v490
      %567 = vst [vmem:[#allocation2 + $0x90] sm:$0xff] %v495
      %568 = vst [vmem:[#allocation2 + $0x98] sm:$0xff] %v498
      %569 = vst [vmem:[#allocation2 + $0xa0] sm:$0xff] %v503
      %570 = vst [vmem:[#allocation2 + $0xa8] sm:$0xff] %v506
      %571 = vst [vmem:[#allocation2 + $0xb0] sm:$0xff] %v511
      %572 = vst [vmem:[#allocation2 + $0xb8] sm:$0xff] %v514
      %573 = vst [vmem:[#allocation2 + $0xc0] sm:$0xff] %v519
      %574 = vst [vmem:[#allocation2 + $0xc8] sm:$0xff] %v522
      %575 = vst [vmem:[#allocation2 + $0xd0] sm:$0xff] %v527
      %576 = vst [vmem:[#allocation2 + $0xd8] sm:$0xff] %v530
      %577 = vst [vmem:[#allocation2 + $0xe0] sm:$0xff] %v535
      %578 = vst [vmem:[#allocation2 + $0xe8] sm:$0xff] %v538
      %579 = vst [vmem:[#allocation2 + $0xf0] sm:$0xff] %v543
      %580 = vst [vmem:[#allocation2 + $0xf8] sm:$0xff] %v546
      %vm581 = vsmask.f32 3328
      %vm582 = vsmask.f32 7440
      %vm583 = vmor %vm581, %vm582
      %v585 = vshrl.u32 %v200, 16
      %v587 = vrot.slane %v585, 4
      %v588 = vshll.u32 %v200, 16
      %v590 = vrot.slane %v588, 5
      %v591 = vor.u32 %v587, %v590
      %v592 = vrot.slane %v591, 4
      %v594 = vshll.u32 %v201, 16
      %v596 = vrot.slane %v594, 5
      %v597 = vsel %vm583, %v592, %v596
      %v598 = vshrl.u32 %v201, 16
      %v600 = vrot.slane %v598, 4
      %v601 = vor.u32 %v600, %v596
      %v602 = vrot.slane %v601, 4
      %v604 = vshll.u32 %v202, 16
      %v606 = vrot.slane %v604, 5
      %v607 = vsel %vm583, %v602, %v606
      %v609 = vshrl.u32 %v203, 16
      %v611 = vrot.slane %v609, 4
      %v612 = vshll.u32 %v203, 16
      %v614 = vrot.slane %v612, 5
      %v615 = vor.u32 %v611, %v614
      %v616 = vrot.slane %v615, 4
      %v618 = vshll.u32 %v204, 16
      %v620 = vrot.slane %v618, 5
      %v621 = vsel %vm583, %v616, %v620
      %v622 = vshrl.u32 %v204, 16
      %v624 = vrot.slane %v622, 4
      %v625 = vor.u32 %v624, %v620
      %v626 = vrot.slane %v625, 4
      %v628 = vshll.u32 %v205, 16
      %v630 = vrot.slane %v628, 5
      %v631 = vsel %vm583, %v626, %v630
      %v633 = vshrl.u32 %v206, 16
      %v635 = vrot.slane %v633, 4
      %v636 = vshll.u32 %v206, 16
      %v638 = vrot.slane %v636, 5
      %v639 = vor.u32 %v635, %v638
      %v640 = vrot.slane %v639, 4
      %v642 = vshll.u32 %v207, 16
      %v644 = vrot.slane %v642, 5
      %v645 = vsel %vm583, %v640, %v644
      %v646 = vshrl.u32 %v207, 16
      %v648 = vrot.slane %v646, 4
      %v649 = vor.u32 %v648, %v644
      %v650 = vrot.slane %v649, 4
      %v652 = vshll.u32 %v208, 16
      %v654 = vrot.slane %v652, 5
      %v655 = vsel %vm583, %v650, %v654
      %v657 = vshrl.u32 %v209, 16
      %v659 = vrot.slane %v657, 4
      %v660 = vshll.u32 %v209, 16
      %v662 = vrot.slane %v660, 5
      %v663 = vor.u32 %v659, %v662
      %v664 = vrot.slane %v663, 4
      %v666 = vshll.u32 %v210, 16
      %v668 = vrot.slane %v666, 5
      %v669 = vsel %vm583, %v664, %v668
      %v670 = vshrl.u32 %v210, 16
      %v672 = vrot.slane %v670, 4
      %v673 = vor.u32 %v672, %v668
      %v674 = vrot.slane %v673, 4
      %v676 = vshll.u32 %v211, 16
      %v678 = vrot.slane %v676, 5
      %v679 = vsel %vm583, %v674, %v678
      %v681 = vshrl.u32 %v212, 16
      %v683 = vrot.slane %v681, 4
      %v684 = vshll.u32 %v212, 16
      %v686 = vrot.slane %v684, 5
      %v687 = vor.u32 %v683, %v686
      %v688 = vrot.slane %v687, 4
      %v690 = vshll.u32 %v213, 16
      %v692 = vrot.slane %v690, 5
      %v693 = vsel %vm583, %v688, %v692
      %v694 = vshrl.u32 %v213, 16
      %v696 = vrot.slane %v694, 4
      %v697 = vor.u32 %v696, %v692
      %v698 = vrot.slane %v697, 4
      %v700 = vshll.u32 %v214, 16
      %v702 = vrot.slane %v700, 5
      %v703 = vsel %vm583, %v698, %v702
      %v705 = vshrl.u32 %v215, 16
      %v707 = vrot.slane %v705, 4
      %v708 = vshll.u32 %v215, 16
      %v710 = vrot.slane %v708, 5
      %v711 = vor.u32 %v707, %v710
      %v712 = vrot.slane %v711, 4
      %v714 = vshll.u32 %v216, 16
      %v716 = vrot.slane %v714, 5
      %v717 = vsel %vm583, %v712, %v716
      %v718 = vshrl.u32 %v216, 16
      %v720 = vrot.slane %v718, 4
      %v721 = vor.u32 %v720, %v716
      %v722 = vrot.slane %v721, 4
      %v724 = vshll.u32 %v217, 16
      %v726 = vrot.slane %v724, 5
      %v727 = vsel %vm583, %v722, %v726
      %v729 = vshrl.u32 %v218, 16
      %v731 = vrot.slane %v729, 4
      %v732 = vshll.u32 %v218, 16
      %v734 = vrot.slane %v732, 5
      %v735 = vor.u32 %v731, %v734
      %v736 = vrot.slane %v735, 4
      %v738 = vshll.u32 %v219, 16
      %v740 = vrot.slane %v738, 5
      %v741 = vsel %vm583, %v736, %v740
      %v742 = vshrl.u32 %v219, 16
      %v744 = vrot.slane %v742, 4
      %v745 = vor.u32 %v744, %v740
      %v746 = vrot.slane %v745, 4
      %v748 = vshll.u32 %v220, 16
      %v750 = vrot.slane %v748, 5
      %v751 = vsel %vm583, %v746, %v750
      %v753 = vshrl.u32 %v221, 16
      %v755 = vrot.slane %v753, 4
      %v756 = vshll.u32 %v221, 16
      %v758 = vrot.slane %v756, 5
      %v759 = vor.u32 %v755, %v758
      %v760 = vrot.slane %v759, 4
      %v762 = vshll.u32 %v222, 16
      %v764 = vrot.slane %v762, 5
      %v765 = vsel %vm583, %v760, %v764
      %v766 = vshrl.u32 %v222, 16
      %v768 = vrot.slane %v766, 4
      %v769 = vor.u32 %v768, %v764
      %v770 = vrot.slane %v769, 4
      %v772 = vshll.u32 %v223, 16
      %v774 = vrot.slane %v772, 5
      %v775 = vsel %vm583, %v770, %v774
      %v777 = vshrl.u32 %v224, 16
      %v779 = vrot.slane %v777, 4
      %v780 = vshll.u32 %v224, 16
      %v782 = vrot.slane %v780, 5
      %v783 = vor.u32 %v779, %v782
      %v784 = vrot.slane %v783, 4
      %v786 = vshll.u32 %v225, 16
      %v788 = vrot.slane %v786, 5
      %v789 = vsel %vm583, %v784, %v788
      %v790 = vshrl.u32 %v225, 16
      %v792 = vrot.slane %v790, 4
      %v793 = vor.u32 %v792, %v788
      %v794 = vrot.slane %v793, 4
      %v796 = vshll.u32 %v226, 16
      %v798 = vrot.slane %v796, 5
      %v799 = vsel %vm583, %v794, %v798
      %v801 = vshrl.u32 %v227, 16
      %v803 = vrot.slane %v801, 4
      %v804 = vshll.u32 %v227, 16
      %v806 = vrot.slane %v804, 5
      %v807 = vor.u32 %v803, %v806
      %v808 = vrot.slane %v807, 4
      %v810 = vshll.u32 %v228, 16
      %v812 = vrot.slane %v810, 5
      %v813 = vsel %vm583, %v808, %v812
      %v814 = vshrl.u32 %v228, 16
      %v816 = vrot.slane %v814, 4
      %v817 = vor.u32 %v816, %v812
      %v818 = vrot.slane %v817, 4
      %v820 = vshll.u32 %v229, 16
      %v822 = vrot.slane %v820, 5
      %v823 = vsel %vm583, %v818, %v822
      %v825 = vshrl.u32 %v230, 16
      %v827 = vrot.slane %v825, 4
      %v828 = vshll.u32 %v230, 16
      %v830 = vrot.slane %v828, 5
      %v831 = vor.u32 %v827, %v830
      %v832 = vrot.slane %v831, 4
      %v834 = vshll.u32 %v231, 16
      %v836 = vrot.slane %v834, 5
      %v837 = vsel %vm583, %v832, %v836
      %v838 = vshrl.u32 %v231, 16
      %v840 = vrot.slane %v838, 4
      %v841 = vor.u32 %v840, %v836
      %v842 = vrot.slane %v841, 4
      %v844 = vshll.u32 %v232, 16
      %v846 = vrot.slane %v844, 5
      %v847 = vsel %vm583, %v842, %v846
      %v849 = vshrl.u32 %v233, 16
      %v851 = vrot.slane %v849, 4
      %v852 = vshll.u32 %v233, 16
      %v854 = vrot.slane %v852, 5
      %v855 = vor.u32 %v851, %v854
      %v856 = vrot.slane %v855, 4
      %v858 = vshll.u32 %v234, 16
      %v860 = vrot.slane %v858, 5
      %v861 = vsel %vm583, %v856, %v860
      %v862 = vshrl.u32 %v234, 16
      %v864 = vrot.slane %v862, 4
      %v865 = vor.u32 %v864, %v860
      %v866 = vrot.slane %v865, 4
      %v868 = vshll.u32 %v235, 16
      %v870 = vrot.slane %v868, 5
      %v871 = vsel %vm583, %v866, %v870
      %v873 = vshrl.u32 %v236, 16
      %v875 = vrot.slane %v873, 4
      %v876 = vshll.u32 %v236, 16
      %v878 = vrot.slane %v876, 5
      %v879 = vor.u32 %v875, %v878
      %v880 = vrot.slane %v879, 4
      %v882 = vshll.u32 %v237, 16
      %v884 = vrot.slane %v882, 5
      %v885 = vsel %vm583, %v880, %v884
      %v886 = vshrl.u32 %v237, 16
      %v888 = vrot.slane %v886, 4
      %v889 = vor.u32 %v888, %v884
      %v890 = vrot.slane %v889, 4
      %v892 = vshll.u32 %v238, 16
      %v894 = vrot.slane %v892, 5
      %v895 = vsel %vm583, %v890, %v894
      %v897 = vshrl.u32 %v239, 16
      %v899 = vrot.slane %v897, 4
      %v900 = vshll.u32 %v239, 16
      %v902 = vrot.slane %v900, 5
      %v903 = vor.u32 %v899, %v902
      %v904 = vrot.slane %v903, 4
      %v906 = vshll.u32 %v240, 16
      %v908 = vrot.slane %v906, 5
      %v909 = vsel %vm583, %v904, %v908
      %v910 = vshrl.u32 %v240, 16
      %v912 = vrot.slane %v910, 4
      %v913 = vor.u32 %v912, %v908
      %v914 = vrot.slane %v913, 4
      %v916 = vshll.u32 %v241, 16
      %v918 = vrot.slane %v916, 5
      %v919 = vsel %vm583, %v914, %v918
      %v921 = vshrl.u32 %v242, 16
      %v923 = vrot.slane %v921, 4
      %v924 = vshll.u32 %v242, 16
      %v926 = vrot.slane %v924, 5
      %v927 = vor.u32 %v923, %v926
      %v928 = vrot.slane %v927, 4
      %v930 = vshll.u32 %v243, 16
      %v932 = vrot.slane %v930, 5
      %v933 = vsel %vm583, %v928, %v932
      %v934 = vshrl.u32 %v243, 16
      %v936 = vrot.slane %v934, 4
      %v937 = vor.u32 %v936, %v932
      %v938 = vrot.slane %v937, 4
      %v940 = vshll.u32 %v244, 16
      %v942 = vrot.slane %v940, 5
      %v943 = vsel %vm583, %v938, %v942
      %v945 = vshrl.u32 %v245, 16
      %v947 = vrot.slane %v945, 4
      %v948 = vshll.u32 %v245, 16
      %v950 = vrot.slane %v948, 5
      %v951 = vor.u32 %v947, %v950
      %v952 = vrot.slane %v951, 4
      %v954 = vshll.u32 %v246, 16
      %v956 = vrot.slane %v954, 5
      %v957 = vsel %vm583, %v952, %v956
      %v958 = vshrl.u32 %v246, 16
      %v960 = vrot.slane %v958, 4
      %v961 = vor.u32 %v960, %v956
      %v962 = vrot.slane %v961, 4
      %v964 = vshll.u32 %v247, 16
      %v966 = vrot.slane %v964, 5
      %v967 = vsel %vm583, %v962, %v966
      %s968 = scalar_lea.vmem %s1, 2
      %v969 = vld [vmem:[%s968] sm:$0x3]
      %v970 = vunpack.c.l.b16 %v597
      %v971 = vunpack.c.l.b16 %v607
      %v972 = vunpack.c.l.b16 %v621
      %v973 = vunpack.c.l.b16 %v631
      %v974 = vunpack.c.l.b16 %v645
      %v975 = vunpack.c.l.b16 %v655
      %v976 = vunpack.c.l.b16 %v669
      %v977 = vunpack.c.l.b16 %v679
      %v978 = vunpack.c.l.b16 %v693
      %v979 = vunpack.c.l.b16 %v703
      %v980 = vunpack.c.l.b16 %v717
      %v981 = vunpack.c.l.b16 %v727
      %v982 = vunpack.c.l.b16 %v741
      %v983 = vunpack.c.l.b16 %v751
      %v984 = vunpack.c.l.b16 %v765
      %v985 = vunpack.c.l.b16 %v775
      %v986 = vunpack.c.l.b16 %v789
      %v987 = vunpack.c.l.b16 %v799
      %v988 = vunpack.c.l.b16 %v813
      %v989 = vunpack.c.l.b16 %v823
      %v990 = vunpack.c.l.b16 %v837
      %v991 = vunpack.c.l.b16 %v847
      %v992 = vunpack.c.l.b16 %v861
      %v993 = vunpack.c.l.b16 %v871
      %v994 = vunpack.c.l.b16 %v885
      %v995 = vunpack.c.l.b16 %v895
      %v996 = vunpack.c.l.b16 %v909
      %v997 = vunpack.c.l.b16 %v919
      %v998 = vunpack.c.l.b16 %v933
      %v999 = vunpack.c.l.b16 %v943
      %v1000 = vunpack.c.l.b16 %v957
      %v1001 = vunpack.c.l.b16 %v967
      %v1002 = vpack.c.b16 %v971, %v970
      %v1003 = vpack.c.b16 %v973, %v972
      %v1004 = vpack.c.b16 %v975, %v974
      %v1005 = vpack.c.b16 %v977, %v976
      %v1006 = vpack.c.b16 %v979, %v978
      %v1007 = vpack.c.b16 %v981, %v980
      %v1008 = vpack.c.b16 %v983, %v982
      %v1009 = vpack.c.b16 %v985, %v984
      %v1010 = vpack.c.b16 %v987, %v986
      %v1011 = vpack.c.b16 %v989, %v988
      %v1012 = vpack.c.b16 %v991, %v990
      %v1013 = vpack.c.b16 %v993, %v992
      %v1014 = vpack.c.b16 %v995, %v994
      %v1015 = vpack.c.b16 %v997, %v996
      %v1016 = vpack.c.b16 %v999, %v998
      %v1017 = vpack.c.b16 %v1001, %v1000
      %v1019 = vsel %vm335, %v1002, 0
      %v1022 = vsel %vm335, %v1003, 0
      %v1025 = vsel %vm335, %v1004, 0
      %v1028 = vsel %vm335, %v1005, 0
      %v1031 = vsel %vm335, %v1006, 0
      %v1034 = vsel %vm335, %v1007, 0
      %v1037 = vsel %vm335, %v1008, 0
      %v1040 = vsel %vm335, %v1009, 0
      %v1043 = vsel %vm335, %v1010, 0
      %v1046 = vsel %vm335, %v1011, 0
      %v1049 = vsel %vm335, %v1012, 0
      %v1052 = vsel %vm335, %v1013, 0
      %v1055 = vsel %vm335, %v1014, 0
      %v1058 = vsel %vm335, %v1015, 0
      %v1061 = vsel %vm335, %v1016, 0
      %v1064 = vsel %vm335, %v1017, 0
      %v1067 = vsel %vm384, %v969, 0
      %1069 = vmatprep.subr.bf16.mxu0 0
      %1070 = vmatpush1.bf16.msra.mxu0 %v1067
      %1071 = vmatprep.subr.bf16.mxu0 0
      %1072 = vmatpush1.bf16.msra.mxu0 0
      %1073 = vmatprep.subr.bf16.mxu0 0
      %1074 = vmatpush1.bf16.msra.mxu0 0
      %1075 = vmatprep.subr.bf16.mxu0 0
      %1076 = vmatpush1.bf16.msra.mxu0 0
      %1077 = vmatprep.subr.bf16.mxu0 0
      %1078 = vmatpush1.bf16.msra.mxu0 0
      %1079 = vmatprep.subr.bf16.mxu0 0
      %1080 = vmatpush1.bf16.msra.mxu0 0
      %1081 = vmatprep.subr.bf16.mxu0 0
      %1082 = vmatpush1.bf16.msra.mxu0 0
      %1083 = vmatprep.subr.bf16.mxu0 0
      %1084 = vmatpush1.bf16.msra.mxu0 0
      %1085 = vmatprep.subr.bf16.mxu0 0
      %1086 = vmatpush1.bf16.msra.mxu0 0
      %1087 = vmatprep.subr.bf16.mxu0 0
      %1088 = vmatpush1.bf16.msra.mxu0 0
      %1089 = vmatprep.subr.bf16.mxu0 0
      %1090 = vmatpush1.bf16.msra.mxu0 0
      %1091 = vmatprep.subr.bf16.mxu0 0
      %1092 = vmatpush1.bf16.msra.mxu0 0
      %1093 = vmatprep.subr.bf16.mxu0 0
      %1094 = vmatpush1.bf16.msra.mxu0 0
      %1095 = vmatprep.subr.bf16.mxu0 0
      %1096 = vmatpush1.bf16.msra.mxu0 0
      %1097 = vmatprep.subr.bf16.mxu0 0
      %1098 = vmatpush1.bf16.msra.mxu0 0
      %1099 = vmatprep.subr.bf16.mxu0 0
      %1100 = vmatpush1.bf16.msra.mxu0 0
      %1101 = vmatprep.mubr.bf16.mxu0 0
      %1102 = vmatmul.mubr.bf16.gmra.mrb[0].mxu0 %v1019
      %v1103 = vpop.f32.mrb[0].mxu0
      %v1104 = vadd.f32 0.0, %v1103
      %v1105 = vpop.f32.mrb[0].mxu0
      %v1106 = vpop.f32.mrb[0].mxu0
      %v1107 = vadd.f32 0.0, %v1106
      %v1108 = vpop.f32.mrb[0].mxu0
      %1109 = vmatprep.mubr.bf16.mxu0 0
      %1110 = vmatmul.mubr.bf16.gmra.mrb[0].mxu0 %v1022
      %v1111 = vpop.f32.mrb[0].mxu0
      %v1112 = vadd.f32 0.0, %v1111
      %v1113 = vpop.f32.mrb[0].mxu0
      %v1114 = vpop.f32.mrb[0].mxu0
      %v1115 = vadd.f32 0.0, %v1114
      %v1116 = vpop.f32.mrb[0].mxu0
      %1117 = vmatprep.mubr.bf16.mxu0 0
      %1118 = vmatmul.mubr.bf16.gmra.mrb[0].mxu0 %v1025
      %v1119 = vpop.f32.mrb[0].mxu0
      %v1120 = vadd.f32 0.0, %v1119
      %v1121 = vpop.f32.mrb[0].mxu0
      %v1122 = vpop.f32.mrb[0].mxu0
      %v1123 = vadd.f32 0.0, %v1122
      %v1124 = vpop.f32.mrb[0].mxu0
      %1125 = vmatprep.mubr.bf16.mxu0 0
      %1126 = vmatmul.mubr.bf16.gmra.mrb[0].mxu0 %v1028
      %v1127 = vpop.f32.mrb[0].mxu0
      %v1128 = vadd.f32 0.0, %v1127
      %v1129 = vpop.f32.mrb[0].mxu0
      %v1130 = vpop.f32.mrb[0].mxu0
      %v1131 = vadd.f32 0.0, %v1130
      %v1132 = vpop.f32.mrb[0].mxu0
      %1133 = vmatprep.mubr.bf16.mxu0 0
      %1134 = vmatmul.mubr.bf16.gmra.mrb[0].mxu0 %v1031
      %v1135 = vpop.f32.mrb[0].mxu0
      %v1136 = vadd.f32 0.0, %v1135
      %v1137 = vpop.f32.mrb[0].mxu0
      %v1138 = vpop.f32.mrb[0].mxu0
      %v1139 = vadd.f32 0.0, %v1138
      %v1140 = vpop.f32.mrb[0].mxu0
      %1141 = vmatprep.mubr.bf16.mxu0 0
      %1142 = vmatmul.mubr.bf16.gmra.mrb[0].mxu0 %v1034
      %v1143 = vpop.f32.mrb[0].mxu0
      %v1144 = vadd.f32 0.0, %v1143
      %v1145 = vpop.f32.mrb[0].mxu0
      %v1146 = vpop.f32.mrb[0].mxu0
      %v1147 = vadd.f32 0.0, %v1146
      %v1148 = vpop.f32.mrb[0].mxu0
      %1149 = vmatprep.mubr.bf16.mxu0 0
      %1150 = vmatmul.mubr.bf16.gmra.mrb[0].mxu0 %v1037
      %v1151 = vpop.f32.mrb[0].mxu0
      %v1152 = vadd.f32 0.0, %v1151
      %v1153 = vpop.f32.mrb[0].mxu0
      %v1154 = vpop.f32.mrb[0].mxu0
      %v1155 = vadd.f32 0.0, %v1154
      %v1156 = vpop.f32.mrb[0].mxu0
      %1157 = vmatprep.mubr.bf16.mxu0 0
      %1158 = vmatmul.mubr.bf16.gmra.mrb[0].mxu0 %v1040
      %v1159 = vpop.f32.mrb[0].mxu0
      %v1160 = vadd.f32 0.0, %v1159
      %v1161 = vpop.f32.mrb[0].mxu0
      %v1162 = vpop.f32.mrb[0].mxu0
      %v1163 = vadd.f32 0.0, %v1162
      %v1164 = vpop.f32.mrb[0].mxu0
      %1165 = vmatprep.mubr.bf16.mxu0 0
      %1166 = vmatmul.mubr.bf16.gmra.mrb[0].mxu0 %v1043
      %v1167 = vpop.f32.mrb[0].mxu0
      %v1168 = vadd.f32 0.0, %v1167
      %v1169 = vpop.f32.mrb[0].mxu0
      %v1170 = vpop.f32.mrb[0].mxu0
      %v1171 = vadd.f32 0.0, %v1170
      %v1172 = vpop.f32.mrb[0].mxu0
      %1173 = vmatprep.mubr.bf16.mxu0 0
      %1174 = vmatmul.mubr.bf16.gmra.mrb[0].mxu0 %v1046
      %v1175 = vpop.f32.mrb[0].mxu0
      %v1176 = vadd.f32 0.0, %v1175
      %v1177 = vpop.f32.mrb[0].mxu0
      %v1178 = vpop.f32.mrb[0].mxu0
      %v1179 = vadd.f32 0.0, %v1178
      %v1180 = vpop.f32.mrb[0].mxu0
      %1181 = vmatprep.mubr.bf16.mxu0 0
      %1182 = vmatmul.mubr.bf16.gmra.mrb[0].mxu0 %v1049
      %v1183 = vpop.f32.mrb[0].mxu0
      %v1184 = vadd.f32 0.0, %v1183
      %v1185 = vpop.f32.mrb[0].mxu0
      %v1186 = vpop.f32.mrb[0].mxu0
      %v1187 = vadd.f32 0.0, %v1186
      %v1188 = vpop.f32.mrb[0].mxu0
      %1189 = vmatprep.mubr.bf16.mxu0 0
      %1190 = vmatmul.mubr.bf16.gmra.mrb[0].mxu0 %v1052
      %v1191 = vpop.f32.mrb[0].mxu0
      %v1192 = vadd.f32 0.0, %v1191
      %v1193 = vpop.f32.mrb[0].mxu0
      %v1194 = vpop.f32.mrb[0].mxu0
      %v1195 = vadd.f32 0.0, %v1194
      %v1196 = vpop.f32.mrb[0].mxu0
      %1197 = vmatprep.mubr.bf16.mxu0 0
      %1198 = vmatmul.mubr.bf16.gmra.mrb[0].mxu0 %v1055
      %v1199 = vpop.f32.mrb[0].mxu0
      %v1200 = vadd.f32 0.0, %v1199
      %v1201 = vpop.f32.mrb[0].mxu0
      %v1202 = vpop.f32.mrb[0].mxu0
      %v1203 = vadd.f32 0.0, %v1202
      %v1204 = vpop.f32.mrb[0].mxu0
      %1205 = vmatprep.mubr.bf16.mxu0 0
      %1206 = vmatmul.mubr.bf16.gmra.mrb[0].mxu0 %v1058
      %v1207 = vpop.f32.mrb[0].mxu0
      %v1208 = vadd.f32 0.0, %v1207
      %v1209 = vpop.f32.mrb[0].mxu0
      %v1210 = vpop.f32.mrb[0].mxu0
      %v1211 = vadd.f32 0.0, %v1210
      %v1212 = vpop.f32.mrb[0].mxu0
      %1213 = vmatprep.mubr.bf16.mxu0 0
      %1214 = vmatmul.mubr.bf16.gmra.mrb[0].mxu0 %v1061
      %v1215 = vpop.f32.mrb[0].mxu0
      %v1216 = vadd.f32 0.0, %v1215
      %v1217 = vpop.f32.mrb[0].mxu0
      %v1218 = vpop.f32.mrb[0].mxu0
      %v1219 = vadd.f32 0.0, %v1218
      %v1220 = vpop.f32.mrb[0].mxu0
      %1221 = vmatprep.mubr.bf16.mxu0 0
      %1222 = vmatmul.mubr.bf16.gmra.mrb[0].mxu0 %v1064
      %v1223 = vpop.f32.mrb[0].mxu0
      %v1224 = vadd.f32 0.0, %v1223
      %v1225 = vpop.f32.mrb[0].mxu0
      %v1226 = vpop.f32.mrb[0].mxu0
      %v1227 = vadd.f32 0.0, %v1226
      %v1228 = vpop.f32.mrb[0].mxu0
      %1229 = vdwg.mxu0
      %v1230 = vld [vmem:[#allocation2] sm:$0xff]
      %v1231 = vld [vmem:[#allocation2 + $0x8] sm:$0xff]
      %v1232 = vld [vmem:[#allocation2 + $0x10] sm:$0xff]
      %v1233 = vld [vmem:[#allocation2 + $0x18] sm:$0xff]
      %v1234 = vld [vmem:[#allocation2 + $0x20] sm:$0xff]
      %v1235 = vld [vmem:[#allocation2 + $0x28] sm:$0xff]
      %v1236 = vld [vmem:[#allocation2 + $0x30] sm:$0xff]
      %v1237 = vld [vmem:[#allocation2 + $0x38] sm:$0xff]
      %v1238 = vld [vmem:[#allocation2 + $0x40] sm:$0xff]
      %v1239 = vld [vmem:[#allocation2 + $0x48] sm:$0xff]
      %v1240 = vld [vmem:[#allocation2 + $0x50] sm:$0xff]
      %v1241 = vld [vmem:[#allocation2 + $0x58] sm:$0xff]
      %v1242 = vld [vmem:[#allocation2 + $0x60] sm:$0xff]
      %v1243 = vld [vmem:[#allocation2 + $0x68] sm:$0xff]
      %v1244 = vld [vmem:[#allocation2 + $0x70] sm:$0xff]
      %v1245 = vld [vmem:[#allocation2 + $0x78] sm:$0xff]
      %v1246 = vld [vmem:[#allocation2 + $0x80] sm:$0xff]
      %v1247 = vld [vmem:[#allocation2 + $0x88] sm:$0xff]
      %v1248 = vld [vmem:[#allocation2 + $0x90] sm:$0xff]
      %v1249 = vld [vmem:[#allocation2 + $0x98] sm:$0xff]
      %v1250 = vld [vmem:[#allocation2 + $0xa0] sm:$0xff]
      %v1251 = vld [vmem:[#allocation2 + $0xa8] sm:$0xff]
      %v1252 = vld [vmem:[#allocation2 + $0xb0] sm:$0xff]
      %v1253 = vld [vmem:[#allocation2 + $0xb8] sm:$0xff]
      %v1254 = vld [vmem:[#allocation2 + $0xc0] sm:$0xff]
      %v1255 = vld [vmem:[#allocation2 + $0xc8] sm:$0xff]
      %v1256 = vld [vmem:[#allocation2 + $0xd0] sm:$0xff]
      %v1257 = vld [vmem:[#allocation2 + $0xd8] sm:$0xff]
      %v1258 = vld [vmem:[#allocation2 + $0xe0] sm:$0xff]
      %v1259 = vld [vmem:[#allocation2 + $0xe8] sm:$0xff]
      %v1260 = vld [vmem:[#allocation2 + $0xf0] sm:$0xff]
      %v1261 = vld [vmem:[#allocation2 + $0xf8] sm:$0xff]
      %v1262 = vadd.f32 %v1230, %v1104
      %v1263 = vadd.f32 %v1231, %v1107
      %v1264 = vadd.f32 %v1232, %v1112
      %v1265 = vadd.f32 %v1233, %v1115
      %v1266 = vadd.f32 %v1234, %v1120
      %v1267 = vadd.f32 %v1235, %v1123
      %v1268 = vadd.f32 %v1236, %v1128
      %v1269 = vadd.f32 %v1237, %v1131
      %v1270 = vadd.f32 %v1238, %v1136
      %v1271 = vadd.f32 %v1239, %v1139
      %v1272 = vadd.f32 %v1240, %v1144
      %v1273 = vadd.f32 %v1241, %v1147
      %v1274 = vadd.f32 %v1242, %v1152
      %v1275 = vadd.f32 %v1243, %v1155
      %v1276 = vadd.f32 %v1244, %v1160
      %v1277 = vadd.f32 %v1245, %v1163
      %v1278 = vadd.f32 %v1246, %v1168
      %v1279 = vadd.f32 %v1247, %v1171
      %v1280 = vadd.f32 %v1248, %v1176
      %v1281 = vadd.f32 %v1249, %v1179
      %v1282 = vadd.f32 %v1250, %v1184
      %v1283 = vadd.f32 %v1251, %v1187
      %v1284 = vadd.f32 %v1252, %v1192
      %v1285 = vadd.f32 %v1253, %v1195
      %v1286 = vadd.f32 %v1254, %v1200
      %v1287 = vadd.f32 %v1255, %v1203
      %v1288 = vadd.f32 %v1256, %v1208
      %v1289 = vadd.f32 %v1257, %v1211
      %v1290 = vadd.f32 %v1258, %v1216
      %v1291 = vadd.f32 %v1259, %v1219
      %v1292 = vadd.f32 %v1260, %v1224
      %v1293 = vadd.f32 %v1261, %v1227
      %1294 = vst [vmem:[#allocation2] sm:$0xff] %v1262
      %1295 = vst [vmem:[#allocation2 + $0x8] sm:$0xff] %v1263
      %1296 = vst [vmem:[#allocation2 + $0x10] sm:$0xff] %v1264
      %1297 = vst [vmem:[#allocation2 + $0x18] sm:$0xff] %v1265
      %1298 = vst [vmem:[#allocation2 + $0x20] sm:$0xff] %v1266
      %1299 = vst [vmem:[#allocation2 + $0x28] sm:$0xff] %v1267
      %1300 = vst [vmem:[#allocation2 + $0x30] sm:$0xff] %v1268
      %1301 = vst [vmem:[#allocation2 + $0x38] sm:$0xff] %v1269
      %1302 = vst [vmem:[#allocation2 + $0x40] sm:$0xff] %v1270
      %1303 = vst [vmem:[#allocation2 + $0x48] sm:$0xff] %v1271
      %1304 = vst [vmem:[#allocation2 + $0x50] sm:$0xff] %v1272
      %1305 = vst [vmem:[#allocation2 + $0x58] sm:$0xff] %v1273
      %1306 = vst [vmem:[#allocation2 + $0x60] sm:$0xff] %v1274
      %1307 = vst [vmem:[#allocation2 + $0x68] sm:$0xff] %v1275
      %1308 = vst [vmem:[#allocation2 + $0x70] sm:$0xff] %v1276
      %1309 = vst [vmem:[#allocation2 + $0x78] sm:$0xff] %v1277
      %1310 = vst [vmem:[#allocation2 + $0x80] sm:$0xff] %v1278
      %1311 = vst [vmem:[#allocation2 + $0x88] sm:$0xff] %v1279
      %1312 = vst [vmem:[#allocation2 + $0x90] sm:$0xff] %v1280
      %1313 = vst [vmem:[#allocation2 + $0x98] sm:$0xff] %v1281
      %1314 = vst [vmem:[#allocation2 + $0xa0] sm:$0xff] %v1282
      %1315 = vst [vmem:[#allocation2 + $0xa8] sm:$0xff] %v1283
      %1316 = vst [vmem:[#allocation2 + $0xb0] sm:$0xff] %v1284
      %1317 = vst [vmem:[#allocation2 + $0xb8] sm:$0xff] %v1285
      %1318 = vst [vmem:[#allocation2 + $0xc0] sm:$0xff] %v1286
      %1319 = vst [vmem:[#allocation2 + $0xc8] sm:$0xff] %v1287
      %1320 = vst [vmem:[#allocation2 + $0xd0] sm:$0xff] %v1288
      %1321 = vst [vmem:[#allocation2 + $0xd8] sm:$0xff] %v1289
      %1322 = vst [vmem:[#allocation2 + $0xe0] sm:$0xff] %v1290
      %1323 = vst [vmem:[#allocation2 + $0xe8] sm:$0xff] %v1291
      %1324 = vst [vmem:[#allocation2 + $0xf0] sm:$0xff] %v1292
      %1325 = vst [vmem:[#allocation2 + $0xf8] sm:$0xff] %v1293
      %vm1342 = vcmask 1042432
      %vm1343 = vcmask 1046532
      %vm1344 = vmor %vm1342, %vm1343
      %v1345 = vrot.slane %v200, 5
      %v1346 = vrot.slane %v1345, 4
      %v1347 = vrot.slane %v201, 5
      %v1348 = vsel %vm1344, %v1346, %v1347
      %v1349 = vrot.slane %v1347, 4
      %v1350 = vrot.slane %v202, 5
      %v1351 = vsel %vm1344, %v1349, %v1350
      %v1352 = vrot.slane %v203, 5
      %v1353 = vrot.slane %v1352, 4
      %v1354 = vrot.slane %v204, 5
      %v1355 = vsel %vm1344, %v1353, %v1354
      %v1356 = vrot.slane %v1354, 4
      %v1357 = vrot.slane %v205, 5
      %v1358 = vsel %vm1344, %v1356, %v1357
      %v1359 = vrot.slane %v206, 5
      %v1360 = vrot.slane %v1359, 4
      %v1361 = vrot.slane %v207, 5
      %v1362 = vsel %vm1344, %v1360, %v1361
      %v1363 = vrot.slane %v1361, 4
      %v1364 = vrot.slane %v208, 5
      %v1365 = vsel %vm1344, %v1363, %v1364
      %v1366 = vrot.slane %v209, 5
      %v1367 = vrot.slane %v1366, 4
      %v1368 = vrot.slane %v210, 5
      %v1369 = vsel %vm1344, %v1367, %v1368
      %v1370 = vrot.slane %v1368, 4
      %v1371 = vrot.slane %v211, 5
      %v1372 = vsel %vm1344, %v1370, %v1371
      %v1373 = vrot.slane %v212, 5
      %v1374 = vrot.slane %v1373, 4
      %v1375 = vrot.slane %v213, 5
      %v1376 = vsel %vm1344, %v1374, %v1375
      %v1377 = vrot.slane %v1375, 4
      %v1378 = vrot.slane %v214, 5
      %v1379 = vsel %vm1344, %v1377, %v1378
      %v1380 = vrot.slane %v215, 5
      %v1381 = vrot.slane %v1380, 4
      %v1382 = vrot.slane %v216, 5
      %v1383 = vsel %vm1344, %v1381, %v1382
      %v1384 = vrot.slane %v1382, 4
      %v1385 = vrot.slane %v217, 5
      %v1386 = vsel %vm1344, %v1384, %v1385
      %v1387 = vrot.slane %v218, 5
      %v1388 = vrot.slane %v1387, 4
      %v1389 = vrot.slane %v219, 5
      %v1390 = vsel %vm1344, %v1388, %v1389
      %v1391 = vrot.slane %v1389, 4
      %v1392 = vrot.slane %v220, 5
      %v1393 = vsel %vm1344, %v1391, %v1392
      %v1394 = vrot.slane %v221, 5
      %v1395 = vrot.slane %v1394, 4
      %v1396 = vrot.slane %v222, 5
      %v1397 = vsel %vm1344, %v1395, %v1396
      %v1398 = vrot.slane %v1396, 4
      %v1399 = vrot.slane %v223, 5
      %v1400 = vsel %vm1344, %v1398, %v1399
      %v1401 = vrot.slane %v224, 5
      %v1402 = vrot.slane %v1401, 4
      %v1403 = vrot.slane %v225, 5
      %v1404 = vsel %vm1344, %v1402, %v1403
      %v1405 = vrot.slane %v1403, 4
      %v1406 = vrot.slane %v226, 5
      %v1407 = vsel %vm1344, %v1405, %v1406
      %v1408 = vrot.slane %v227, 5
      %v1409 = vrot.slane %v1408, 4
      %v1410 = vrot.slane %v228, 5
      %v1411 = vsel %vm1344, %v1409, %v1410
      %v1412 = vrot.slane %v1410, 4
      %v1413 = vrot.slane %v229, 5
      %v1414 = vsel %vm1344, %v1412, %v1413
      %v1415 = vrot.slane %v230, 5
      %v1416 = vrot.slane %v1415, 4
      %v1417 = vrot.slane %v231, 5
      %v1418 = vsel %vm1344, %v1416, %v1417
      %v1419 = vrot.slane %v1417, 4
      %v1420 = vrot.slane %v232, 5
      %v1421 = vsel %vm1344, %v1419, %v1420
      %v1422 = vrot.slane %v233, 5
      %v1423 = vrot.slane %v1422, 4
      %v1424 = vrot.slane %v234, 5
      %v1425 = vsel %vm1344, %v1423, %v1424
      %v1426 = vrot.slane %v1424, 4
      %v1427 = vrot.slane %v235, 5
      %v1428 = vsel %vm1344, %v1426, %v1427
      %v1429 = vrot.slane %v236, 5
      %v1430 = vrot.slane %v1429, 4
      %v1431 = vrot.slane %v237, 5
      %v1432 = vsel %vm1344, %v1430, %v1431
      %v1433 = vrot.slane %v1431, 4
      %v1434 = vrot.slane %v238, 5
      %v1435 = vsel %vm1344, %v1433, %v1434
      %v1436 = vrot.slane %v239, 5
      %v1437 = vrot.slane %v1436, 4
      %v1438 = vrot.slane %v240, 5
      %v1439 = vsel %vm1344, %v1437, %v1438
      %v1440 = vrot.slane %v1438, 4
      %v1441 = vrot.slane %v241, 5
      %v1442 = vsel %vm1344, %v1440, %v1441
      %v1443 = vrot.slane %v242, 5
      %v1444 = vrot.slane %v1443, 4
      %v1445 = vrot.slane %v243, 5
      %v1446 = vsel %vm1344, %v1444, %v1445
      %v1447 = vrot.slane %v1445, 4
      %v1448 = vrot.slane %v244, 5
      %v1449 = vsel %vm1344, %v1447, %v1448
      %v1450 = vrot.slane %v245, 5
      %v1451 = vrot.slane %v1450, 4
      %v1452 = vrot.slane %v246, 5
      %v1453 = vsel %vm1344, %v1451, %v1452
      %v1454 = vrot.slane %v1452, 4
      %v1455 = vrot.slane %v247, 5
      %v1456 = vsel %vm1344, %v1454, %v1455
      %s1457 = scalar_lea.vmem %s1, 4
      %v1458 = vld [vmem:[%s1457] sm:$0x3]
      %v1459 = vunpack.c.l.b16 %v1348
      %v1460 = vunpack.c.l.b16 %v1351
      %v1461 = vunpack.c.l.b16 %v1355
      %v1462 = vunpack.c.l.b16 %v1358
      %v1463 = vunpack.c.l.b16 %v1362
      %v1464 = vunpack.c.l.b16 %v1365
      %v1465 = vunpack.c.l.b16 %v1369
      %v1466 = vunpack.c.l.b16 %v1372
      %v1467 = vunpack.c.l.b16 %v1376
      %v1468 = vunpack.c.l.b16 %v1379
      %v1469 = vunpack.c.l.b16 %v1383
      %v1470 = vunpack.c.l.b16 %v1386
      %v1471 = vunpack.c.l.b16 %v1390
      %v1472 = vunpack.c.l.b16 %v1393
      %v1473 = vunpack.c.l.b16 %v1397
      %v1474 = vunpack.c.l.b16 %v1400
      %v1475 = vunpack.c.l.b16 %v1404
      %v1476 = vunpack.c.l.b16 %v1407
      %v1477 = vunpack.c.l.b16 %v1411
      %v1478 = vunpack.c.l.b16 %v1414
      %v1479 = vunpack.c.l.b16 %v1418
      %v1480 = vunpack.c.l.b16 %v1421
      %v1481 = vunpack.c.l.b16 %v1425
      %v1482 = vunpack.c.l.b16 %v1428
      %v1483 = vunpack.c.l.b16 %v1432
      %v1484 = vunpack.c.l.b16 %v1435
      %v1485 = vunpack.c.l.b16 %v1439
      %v1486 = vunpack.c.l.b16 %v1442
      %v1487 = vunpack.c.l.b16 %v1446
      %v1488 = vunpack.c.l.b16 %v1449
      %v1489 = vunpack.c.l.b16 %v1453
      %v1490 = vunpack.c.l.b16 %v1456
      %v1491 = vpack.c.b16 %v1460, %v1459
      %v1492 = vpack.c.b16 %v1462, %v1461
      %v1493 = vpack.c.b16 %v1464, %v1463
      %v1494 = vpack.c.b16 %v1466, %v1465
      %v1495 = vpack.c.b16 %v1468, %v1467
      %v1496 = vpack.c.b16 %v1470, %v1469
      %v1497 = vpack.c.b16 %v1472, %v1471
      %v1498 = vpack.c.b16 %v1474, %v1473
      %v1499 = vpack.c.b16 %v1476, %v1475
      %v1500 = vpack.c.b16 %v1478, %v1477
      %v1501 = vpack.c.b16 %v1480, %v1479
      %v1502 = vpack.c.b16 %v1482, %v1481
      %v1503 = vpack.c.b16 %v1484, %v1483
      %v1504 = vpack.c.b16 %v1486, %v1485
      %v1505 = vpack.c.b16 %v1488, %v1487
      %v1506 = vpack.c.b16 %v1490, %v1489
      %v1508 = vsel %vm335, %v1491, 0
      %v1511 = vsel %vm335, %v1492, 0
      %v1514 = vsel %vm335, %v1493, 0
      %v1517 = vsel %vm335, %v1494, 0
      %v1520 = vsel %vm335, %v1495, 0
      %v1523 = vsel %vm335, %v1496, 0
      %v1526 = vsel %vm335, %v1497, 0
      %v1529 = vsel %vm335, %v1498, 0
      %v1532 = vsel %vm335, %v1499, 0
      %v1535 = vsel %vm335, %v1500, 0
      %v1538 = vsel %vm335, %v1501, 0
      %v1541 = vsel %vm335, %v1502, 0
      %v1544 = vsel %vm335, %v1503, 0
      %v1547 = vsel %vm335, %v1504, 0
      %v1550 = vsel %vm335, %v1505, 0
      %v1553 = vsel %vm335, %v1506, 0
      %v1556 = vsel %vm384, %v1458, 0
      %1558 = vmatprep.subr.bf16.mxu0 0
      %1559 = vmatpush1.bf16.msra.mxu0 %v1556
      %1560 = vmatprep.subr.bf16.mxu0 0
      %1561 = vmatpush1.bf16.msra.mxu0 0
      %1562 = vmatprep.subr.bf16.mxu0 0
      %1563 = vmatpush1.bf16.msra.mxu0 0
      %1564 = vmatprep.subr.bf16.mxu0 0
      %1565 = vmatpush1.bf16.msra.mxu0 0
      %1566 = vmatprep.subr.bf16.mxu0 0
      %1567 = vmatpush1.bf16.msra.mxu0 0
      %1568 = vmatprep.subr.bf16.mxu0 0
      %1569 = vmatpush1.bf16.msra.mxu0 0
      %1570 = vmatprep.subr.bf16.mxu0 0
      %1571 = vmatpush1.bf16.msra.mxu0 0
      %1572 = vmatprep.subr.bf16.mxu0 0
      %1573 = vmatpush1.bf16.msra.mxu0 0
      %1574 = vmatprep.subr.bf16.mxu0 0
      %1575 = vmatpush1.bf16.msra.mxu0 0
      %1576 = vmatprep.subr.bf16.mxu0 0
      %1577 = vmatpush1.bf16.msra.mxu0 0
      %1578 = vmatprep.subr.bf16.mxu0 0
      %1579 = vmatpush1.bf16.msra.mxu0 0
      %1580 = vmatprep.subr.bf16.mxu0 0
      %1581 = vmatpush1.bf16.msra.mxu0 0
      %1582 = vmatprep.subr.bf16.mxu0 0
      %1583 = vmatpush1.bf16.msra.mxu0 0
      %1584 = vmatprep.subr.bf16.mxu0 0
      %1585 = vmatpush1.bf16.msra.mxu0 0
      %1586 = vmatprep.subr.bf16.mxu0 0
      %1587 = vmatpush1.bf16.msra.mxu0 0
      %1588 = vmatprep.subr.bf16.mxu0 0
      %1589 = vmatpush1.bf16.msra.mxu0 0
      %1590 = vmatprep.mubr.bf16.mxu0 0
      %1591 = vmatmul.mubr.bf16.gmra.mrb[0].mxu0 %v1508
      %v1592 = vpop.f32.mrb[0].mxu0
      %v1593 = vadd.f32 0.0, %v1592
      %v1594 = vpop.f32.mrb[0].mxu0
      %v1595 = vpop.f32.mrb[0].mxu0
      %v1596 = vadd.f32 0.0, %v1595
      %v1597 = vpop.f32.mrb[0].mxu0
      %1598 = vmatprep.mubr.bf16.mxu0 0
      %1599 = vmatmul.mubr.bf16.gmra.mrb[0].mxu0 %v1511
      %v1600 = vpop.f32.mrb[0].mxu0
      %v1601 = vadd.f32 0.0, %v1600
      %v1602 = vpop.f32.mrb[0].mxu0
      %v1603 = vpop.f32.mrb[0].mxu0
      %v1604 = vadd.f32 0.0, %v1603
      %v1605 = vpop.f32.mrb[0].mxu0
      %1606 = vmatprep.mubr.bf16.mxu0 0
      %1607 = vmatmul.mubr.bf16.gmra.mrb[0].mxu0 %v1514
      %v1608 = vpop.f32.mrb[0].mxu0
      %v1609 = vadd.f32 0.0, %v1608
      %v1610 = vpop.f32.mrb[0].mxu0
      %v1611 = vpop.f32.mrb[0].mxu0
      %v1612 = vadd.f32 0.0, %v1611
      %v1613 = vpop.f32.mrb[0].mxu0
      %1614 = vmatprep.mubr.bf16.mxu0 0
      %1615 = vmatmul.mubr.bf16.gmra.mrb[0].mxu0 %v1517
      %v1616 = vpop.f32.mrb[0].mxu0
      %v1617 = vadd.f32 0.0, %v1616
      %v1618 = vpop.f32.mrb[0].mxu0
      %v1619 = vpop.f32.mrb[0].mxu0
      %v1620 = vadd.f32 0.0, %v1619
      %v1621 = vpop.f32.mrb[0].mxu0
      %1622 = vmatprep.mubr.bf16.mxu0 0
      %1623 = vmatmul.mubr.bf16.gmra.mrb[0].mxu0 %v1520
      %v1624 = vpop.f32.mrb[0].mxu0
      %v1625 = vadd.f32 0.0, %v1624
      %v1626 = vpop.f32.mrb[0].mxu0
      %v1627 = vpop.f32.mrb[0].mxu0
      %v1628 = vadd.f32 0.0, %v1627
      %v1629 = vpop.f32.mrb[0].mxu0
      %1630 = vmatprep.mubr.bf16.mxu0 0
      %1631 = vmatmul.mubr.bf16.gmra.mrb[0].mxu0 %v1523
      %v1632 = vpop.f32.mrb[0].mxu0
      %v1633 = vadd.f32 0.0, %v1632
      %v1634 = vpop.f32.mrb[0].mxu0
      %v1635 = vpop.f32.mrb[0].mxu0
      %v1636 = vadd.f32 0.0, %v1635
      %v1637 = vpop.f32.mrb[0].mxu0
      %1638 = vmatprep.mubr.bf16.mxu0 0
      %1639 = vmatmul.mubr.bf16.gmra.mrb[0].mxu0 %v1526
      %v1640 = vpop.f32.mrb[0].mxu0
      %v1641 = vadd.f32 0.0, %v1640
      %v1642 = vpop.f32.mrb[0].mxu0
      %v1643 = vpop.f32.mrb[0].mxu0
      %v1644 = vadd.f32 0.0, %v1643
      %v1645 = vpop.f32.mrb[0].mxu0
      %1646 = vmatprep.mubr.bf16.mxu0 0
      %1647 = vmatmul.mubr.bf16.gmra.mrb[0].mxu0 %v1529
      %v1648 = vpop.f32.mrb[0].mxu0
      %v1649 = vadd.f32 0.0, %v1648
      %v1650 = vpop.f32.mrb[0].mxu0
      %v1651 = vpop.f32.mrb[0].mxu0
      %v1652 = vadd.f32 0.0, %v1651
      %v1653 = vpop.f32.mrb[0].mxu0
      %1654 = vmatprep.mubr.bf16.mxu0 0
      %1655 = vmatmul.mubr.bf16.gmra.mrb[0].mxu0 %v1532
      %v1656 = vpop.f32.mrb[0].mxu0
      %v1657 = vadd.f32 0.0, %v1656
      %v1658 = vpop.f32.mrb[0].mxu0
      %v1659 = vpop.f32.mrb[0].mxu0
      %v1660 = vadd.f32 0.0, %v1659
      %v1661 = vpop.f32.mrb[0].mxu0
      %1662 = vmatprep.mubr.bf16.mxu0 0
      %1663 = vmatmul.mubr.bf16.gmra.mrb[0].mxu0 %v1535
      %v1664 = vpop.f32.mrb[0].mxu0
      %v1665 = vadd.f32 0.0, %v1664
      %v1666 = vpop.f32.mrb[0].mxu0
      %v1667 = vpop.f32.mrb[0].mxu0
      %v1668 = vadd.f32 0.0, %v1667
      %v1669 = vpop.f32.mrb[0].mxu0
      %1670 = vmatprep.mubr.bf16.mxu0 0
      %1671 = vmatmul.mubr.bf16.gmra.mrb[0].mxu0 %v1538
      %v1672 = vpop.f32.mrb[0].mxu0
      %v1673 = vadd.f32 0.0, %v1672
      %v1674 = vpop.f32.mrb[0].mxu0
      %v1675 = vpop.f32.mrb[0].mxu0
      %v1676 = vadd.f32 0.0, %v1675
      %v1677 = vpop.f32.mrb[0].mxu0
      %1678 = vmatprep.mubr.bf16.mxu0 0
      %1679 = vmatmul.mubr.bf16.gmra.mrb[0].mxu0 %v1541
      %v1680 = vpop.f32.mrb[0].mxu0
      %v1681 = vadd.f32 0.0, %v1680
      %v1682 = vpop.f32.mrb[0].mxu0
      %v1683 = vpop.f32.mrb[0].mxu0
      %v1684 = vadd.f32 0.0, %v1683
      %v1685 = vpop.f32.mrb[0].mxu0
      %1686 = vmatprep.mubr.bf16.mxu0 0
      %1687 = vmatmul.mubr.bf16.gmra.mrb[0].mxu0 %v1544
      %v1688 = vpop.f32.mrb[0].mxu0
      %v1689 = vadd.f32 0.0, %v1688
      %v1690 = vpop.f32.mrb[0].mxu0
      %v1691 = vpop.f32.mrb[0].mxu0
      %v1692 = vadd.f32 0.0, %v1691
      %v1693 = vpop.f32.mrb[0].mxu0
      %1694 = vmatprep.mubr.bf16.mxu0 0
      %1695 = vmatmul.mubr.bf16.gmra.mrb[0].mxu0 %v1547
      %v1696 = vpop.f32.mrb[0].mxu0
      %v1697 = vadd.f32 0.0, %v1696
      %v1698 = vpop.f32.mrb[0].mxu0
      %v1699 = vpop.f32.mrb[0].mxu0
      %v1700 = vadd.f32 0.0, %v1699
      %v1701 = vpop.f32.mrb[0].mxu0
      %1702 = vmatprep.mubr.bf16.mxu0 0
      %1703 = vmatmul.mubr.bf16.gmra.mrb[0].mxu0 %v1550
      %v1704 = vpop.f32.mrb[0].mxu0
      %v1705 = vadd.f32 0.0, %v1704
      %v1706 = vpop.f32.mrb[0].mxu0
      %v1707 = vpop.f32.mrb[0].mxu0
      %v1708 = vadd.f32 0.0, %v1707
      %v1709 = vpop.f32.mrb[0].mxu0
      %1710 = vmatprep.mubr.bf16.mxu0 0
      %1711 = vmatmul.mubr.bf16.gmra.mrb[0].mxu0 %v1553
      %v1712 = vpop.f32.mrb[0].mxu0
      %v1713 = vadd.f32 0.0, %v1712
      %v1714 = vpop.f32.mrb[0].mxu0
      %v1715 = vpop.f32.mrb[0].mxu0
      %v1716 = vadd.f32 0.0, %v1715
      %v1717 = vpop.f32.mrb[0].mxu0
      %1718 = vdwg.mxu0
      %v1719 = vld [vmem:[#allocation2] sm:$0xff]
      %v1720 = vld [vmem:[#allocation2 + $0x8] sm:$0xff]
      %v1721 = vld [vmem:[#allocation2 + $0x10] sm:$0xff]
      %v1722 = vld [vmem:[#allocation2 + $0x18] sm:$0xff]
      %v1723 = vld [vmem:[#allocation2 + $0x20] sm:$0xff]
      %v1724 = vld [vmem:[#allocation2 + $0x28] sm:$0xff]
      %v1725 = vld [vmem:[#allocation2 + $0x30] sm:$0xff]
      %v1726 = vld [vmem:[#allocation2 + $0x38] sm:$0xff]
      %v1727 = vld [vmem:[#allocation2 + $0x40] sm:$0xff]
      %v1728 = vld [vmem:[#allocation2 + $0x48] sm:$0xff]
      %v1729 = vld [vmem:[#allocation2 + $0x50] sm:$0xff]
      %v1730 = vld [vmem:[#allocation2 + $0x58] sm:$0xff]
      %v1731 = vld [vmem:[#allocation2 + $0x60] sm:$0xff]
      %v1732 = vld [vmem:[#allocation2 + $0x68] sm:$0xff]
      %v1733 = vld [vmem:[#allocation2 + $0x70] sm:$0xff]
      %v1734 = vld [vmem:[#allocation2 + $0x78] sm:$0xff]
      %v1735 = vld [vmem:[#allocation2 + $0x80] sm:$0xff]
      %v1736 = vld [vmem:[#allocation2 + $0x88] sm:$0xff]
      %v1737 = vld [vmem:[#allocation2 + $0x90] sm:$0xff]
      %v1738 = vld [vmem:[#allocation2 + $0x98] sm:$0xff]
      %v1739 = vld [vmem:[#allocation2 + $0xa0] sm:$0xff]
      %v1740 = vld [vmem:[#allocation2 + $0xa8] sm:$0xff]
      %v1741 = vld [vmem:[#allocation2 + $0xb0] sm:$0xff]
      %v1742 = vld [vmem:[#allocation2 + $0xb8] sm:$0xff]
      %v1743 = vld [vmem:[#allocation2 + $0xc0] sm:$0xff]
      %v1744 = vld [vmem:[#allocation2 + $0xc8] sm:$0xff]
      %v1745 = vld [vmem:[#allocation2 + $0xd0] sm:$0xff]
      %v1746 = vld [vmem:[#allocation2 + $0xd8] sm:$0xff]
      %v1747 = vld [vmem:[#allocation2 + $0xe0] sm:$0xff]
      %v1748 = vld [vmem:[#allocation2 + $0xe8] sm:$0xff]
      %v1749 = vld [vmem:[#allocation2 + $0xf0] sm:$0xff]
      %v1750 = vld [vmem:[#allocation2 + $0xf8] sm:$0xff]
      %v1751 = vadd.f32 %v1719, %v1593
      %v1752 = vadd.f32 %v1720, %v1596
      %v1753 = vadd.f32 %v1721, %v1601
      %v1754 = vadd.f32 %v1722, %v1604
      %v1755 = vadd.f32 %v1723, %v1609
      %v1756 = vadd.f32 %v1724, %v1612
      %v1757 = vadd.f32 %v1725, %v1617
      %v1758 = vadd.f32 %v1726, %v1620
      %v1759 = vadd.f32 %v1727, %v1625
      %v1760 = vadd.f32 %v1728, %v1628
      %v1761 = vadd.f32 %v1729, %v1633
      %v1762 = vadd.f32 %v1730, %v1636
      %v1763 = vadd.f32 %v1731, %v1641
      %v1764 = vadd.f32 %v1732, %v1644
      %v1765 = vadd.f32 %v1733, %v1649
      %v1766 = vadd.f32 %v1734, %v1652
      %v1767 = vadd.f32 %v1735, %v1657
      %v1768 = vadd.f32 %v1736, %v1660
      %v1769 = vadd.f32 %v1737, %v1665
      %v1770 = vadd.f32 %v1738, %v1668
      %v1771 = vadd.f32 %v1739, %v1673
      %v1772 = vadd.f32 %v1740, %v1676
      %v1773 = vadd.f32 %v1741, %v1681
      %v1774 = vadd.f32 %v1742, %v1684
      %v1775 = vadd.f32 %v1743, %v1689
      %v1776 = vadd.f32 %v1744, %v1692
      %v1777 = vadd.f32 %v1745, %v1697
      %v1778 = vadd.f32 %v1746, %v1700
      %v1779 = vadd.f32 %v1747, %v1705
      %v1780 = vadd.f32 %v1748, %v1708
      %v1781 = vadd.f32 %v1749, %v1713
      %v1782 = vadd.f32 %v1750, %v1716
      %1783 = vst [vmem:[#allocation2] sm:$0xff] %v1751
      %1784 = vst [vmem:[#allocation2 + $0x8] sm:$0xff] %v1752
      %1785 = vst [vmem:[#allocation2 + $0x10] sm:$0xff] %v1753
      %1786 = vst [vmem:[#allocation2 + $0x18] sm:$0xff] %v1754
      %1787 = vst [vmem:[#allocation2 + $0x20] sm:$0xff] %v1755
      %1788 = vst [vmem:[#allocation2 + $0x28] sm:$0xff] %v1756
      %1789 = vst [vmem:[#allocation2 + $0x30] sm:$0xff] %v1757
      %1790 = vst [vmem:[#allocation2 + $0x38] sm:$0xff] %v1758
      %1791 = vst [vmem:[#allocation2 + $0x40] sm:$0xff] %v1759
      %1792 = vst [vmem:[#allocation2 + $0x48] sm:$0xff] %v1760
      %1793 = vst [vmem:[#allocation2 + $0x50] sm:$0xff] %v1761
      %1794 = vst [vmem:[#allocation2 + $0x58] sm:$0xff] %v1762
      %1795 = vst [vmem:[#allocation2 + $0x60] sm:$0xff] %v1763
      %1796 = vst [vmem:[#allocation2 + $0x68] sm:$0xff] %v1764
      %1797 = vst [vmem:[#allocation2 + $0x70] sm:$0xff] %v1765
      %1798 = vst [vmem:[#allocation2 + $0x78] sm:$0xff] %v1766
      %1799 = vst [vmem:[#allocation2 + $0x80] sm:$0xff] %v1767
      %1800 = vst [vmem:[#allocation2 + $0x88] sm:$0xff] %v1768
      %1801 = vst [vmem:[#allocation2 + $0x90] sm:$0xff] %v1769
      %1802 = vst [vmem:[#allocation2 + $0x98] sm:$0xff] %v1770
      %1803 = vst [vmem:[#allocation2 + $0xa0] sm:$0xff] %v1771
      %1804 = vst [vmem:[#allocation2 + $0xa8] sm:$0xff] %v1772
      %1805 = vst [vmem:[#allocation2 + $0xb0] sm:$0xff] %v1773
      %1806 = vst [vmem:[#allocation2 + $0xb8] sm:$0xff] %v1774
      %1807 = vst [vmem:[#allocation2 + $0xc0] sm:$0xff] %v1775
      %1808 = vst [vmem:[#allocation2 + $0xc8] sm:$0xff] %v1776
      %1809 = vst [vmem:[#allocation2 + $0xd0] sm:$0xff] %v1777
      %1810 = vst [vmem:[#allocation2 + $0xd8] sm:$0xff] %v1778
      %1811 = vst [vmem:[#allocation2 + $0xe0] sm:$0xff] %v1779
      %1812 = vst [vmem:[#allocation2 + $0xe8] sm:$0xff] %v1780
      %1813 = vst [vmem:[#allocation2 + $0xf0] sm:$0xff] %v1781
      %1814 = vst [vmem:[#allocation2 + $0xf8] sm:$0xff] %v1782
      %s1815 = scalar_lea.vmem %s1, 6
      %v1816 = vld [vmem:[%s1815] sm:$0x3]
      %v1819 = vunpack.c.l.b16 %v248
      %v1820 = vunpack.c.l.b16 %v249
      %v1821 = vpack.c.b16 %v1820, %v1819
      %v1823 = vsel %vm335, %v1821, 0
      %v1826 = vsel %vm384, %v1816, 0
      %1828 = vmatprep.subr.bf16.mxu0 0
      %1829 = vmatpush1.bf16.msra.mxu0 %v1826
      %1830 = vmatprep.subr.bf16.mxu0 0
      %1831 = vmatpush1.bf16.msra.mxu0 0
      %1832 = vmatprep.subr.bf16.mxu0 0
      %1833 = vmatpush1.bf16.msra.mxu0 0
      %1834 = vmatprep.subr.bf16.mxu0 0
      %1835 = vmatpush1.bf16.msra.mxu0 0
      %1836 = vmatprep.subr.bf16.mxu0 0
      %1837 = vmatpush1.bf16.msra.mxu0 0
      %1838 = vmatprep.subr.bf16.mxu0 0
      %1839 = vmatpush1.bf16.msra.mxu0 0
      %1840 = vmatprep.subr.bf16.mxu0 0
      %1841 = vmatpush1.bf16.msra.mxu0 0
      %1842 = vmatprep.subr.bf16.mxu0 0
      %1843 = vmatpush1.bf16.msra.mxu0 0
      %1844 = vmatprep.subr.bf16.mxu0 0
      %1845 = vmatpush1.bf16.msra.mxu0 0
      %1846 = vmatprep.subr.bf16.mxu0 0
      %1847 = vmatpush1.bf16.msra.mxu0 0
      %1848 = vmatprep.subr.bf16.mxu0 0
      %1849 = vmatpush1.bf16.msra.mxu0 0
      %1850 = vmatprep.subr.bf16.mxu0 0
      %1851 = vmatpush1.bf16.msra.mxu0 0
      %1852 = vmatprep.subr.bf16.mxu0 0
      %1853 = vmatpush1.bf16.msra.mxu0 0
      %1854 = vmatprep.subr.bf16.mxu0 0
      %1855 = vmatpush1.bf16.msra.mxu0 0
      %1856 = vmatprep.subr.bf16.mxu0 0
      %1857 = vmatpush1.bf16.msra.mxu0 0
      %1858 = vmatprep.subr.bf16.mxu0 0
      %1859 = vmatpush1.bf16.msra.mxu0 0
      %1860 = vmatprep.mubr.bf16.mxu0 0
      %1861 = vmatmul.mubr.bf16.gmra.mrb[0].mxu0 %v340
      %v1862 = vpop.f32.mrb[0].mxu0
      %v1863 = vadd.f32 0.0, %v1862
      %v1864 = vpop.f32.mrb[0].mxu0
      %v1865 = vpop.f32.mrb[0].mxu0
      %v1866 = vadd.f32 0.0, %v1865
      %v1867 = vpop.f32.mrb[0].mxu0
      %1868 = vmatprep.mubr.bf16.mxu0 0
      %1869 = vmatmul.mubr.bf16.gmra.mrb[0].mxu0 %v343
      %v1870 = vpop.f32.mrb[0].mxu0
      %v1871 = vadd.f32 0.0, %v1870
      %v1872 = vpop.f32.mrb[0].mxu0
      %v1873 = vpop.f32.mrb[0].mxu0
      %v1874 = vadd.f32 0.0, %v1873
      %v1875 = vpop.f32.mrb[0].mxu0
      %1876 = vmatprep.mubr.bf16.mxu0 0
      %1877 = vmatmul.mubr.bf16.gmra.mrb[0].mxu0 %v346
      %v1878 = vpop.f32.mrb[0].mxu0
      %v1879 = vadd.f32 0.0, %v1878
      %v1880 = vpop.f32.mrb[0].mxu0
      %v1881 = vpop.f32.mrb[0].mxu0
      %v1882 = vadd.f32 0.0, %v1881
      %v1883 = vpop.f32.mrb[0].mxu0
      %1884 = vmatprep.mubr.bf16.mxu0 0
      %1885 = vmatmul.mubr.bf16.gmra.mrb[0].mxu0 %v349
      %v1886 = vpop.f32.mrb[0].mxu0
      %v1887 = vadd.f32 0.0, %v1886
      %v1888 = vpop.f32.mrb[0].mxu0
      %v1889 = vpop.f32.mrb[0].mxu0
      %v1890 = vadd.f32 0.0, %v1889
      %v1891 = vpop.f32.mrb[0].mxu0
      %1892 = vmatprep.mubr.bf16.mxu0 0
      %1893 = vmatmul.mubr.bf16.gmra.mrb[0].mxu0 %v352
      %v1894 = vpop.f32.mrb[0].mxu0
      %v1895 = vadd.f32 0.0, %v1894
      %v1896 = vpop.f32.mrb[0].mxu0
      %v1897 = vpop.f32.mrb[0].mxu0
      %v1898 = vadd.f32 0.0, %v1897
      %v1899 = vpop.f32.mrb[0].mxu0
      %1900 = vmatprep.mubr.bf16.mxu0 0
      %1901 = vmatmul.mubr.bf16.gmra.mrb[0].mxu0 %v355
      %v1902 = vpop.f32.mrb[0].mxu0
      %v1903 = vadd.f32 0.0, %v1902
      %v1904 = vpop.f32.mrb[0].mxu0
      %v1905 = vpop.f32.mrb[0].mxu0
      %v1906 = vadd.f32 0.0, %v1905
      %v1907 = vpop.f32.mrb[0].mxu0
      %1908 = vmatprep.mubr.bf16.mxu0 0
      %1909 = vmatmul.mubr.bf16.gmra.mrb[0].mxu0 %v358
      %v1910 = vpop.f32.mrb[0].mxu0
      %v1911 = vadd.f32 0.0, %v1910
      %v1912 = vpop.f32.mrb[0].mxu0
      %v1913 = vpop.f32.mrb[0].mxu0
      %v1914 = vadd.f32 0.0, %v1913
      %v1915 = vpop.f32.mrb[0].mxu0
      %1916 = vmatprep.mubr.bf16.mxu0 0
      %1917 = vmatmul.mubr.bf16.gmra.mrb[0].mxu0 %v361
      %v1918 = vpop.f32.mrb[0].mxu0
      %v1919 = vadd.f32 0.0, %v1918
      %v1920 = vpop.f32.mrb[0].mxu0
      %v1921 = vpop.f32.mrb[0].mxu0
      %v1922 = vadd.f32 0.0, %v1921
      %v1923 = vpop.f32.mrb[0].mxu0
      %1924 = vmatprep.mubr.bf16.mxu0 0
      %1925 = vmatmul.mubr.bf16.gmra.mrb[0].mxu0 %v364
      %v1926 = vpop.f32.mrb[0].mxu0
      %v1927 = vadd.f32 0.0, %v1926
      %v1928 = vpop.f32.mrb[0].mxu0
      %v1929 = vpop.f32.mrb[0].mxu0
      %v1930 = vadd.f32 0.0, %v1929
      %v1931 = vpop.f32.mrb[0].mxu0
      %1932 = vmatprep.mubr.bf16.mxu0 0
      %1933 = vmatmul.mubr.bf16.gmra.mrb[0].mxu0 %v367
      %v1934 = vpop.f32.mrb[0].mxu0
      %v1935 = vadd.f32 0.0, %v1934
      %v1936 = vpop.f32.mrb[0].mxu0
      %v1937 = vpop.f32.mrb[0].mxu0
      %v1938 = vadd.f32 0.0, %v1937
      %v1939 = vpop.f32.mrb[0].mxu0
      %1940 = vmatprep.mubr.bf16.mxu0 0
      %1941 = vmatmul.mubr.bf16.gmra.mrb[0].mxu0 %v370
      %v1942 = vpop.f32.mrb[0].mxu0
      %v1943 = vadd.f32 0.0, %v1942
      %v1944 = vpop.f32.mrb[0].mxu0
      %v1945 = vpop.f32.mrb[0].mxu0
      %v1946 = vadd.f32 0.0, %v1945
      %v1947 = vpop.f32.mrb[0].mxu0
      %1948 = vmatprep.mubr.bf16.mxu0 0
      %1949 = vmatmul.mubr.bf16.gmra.mrb[0].mxu0 %v373
      %v1950 = vpop.f32.mrb[0].mxu0
      %v1951 = vadd.f32 0.0, %v1950
      %v1952 = vpop.f32.mrb[0].mxu0
      %v1953 = vpop.f32.mrb[0].mxu0
      %v1954 = vadd.f32 0.0, %v1953
      %v1955 = vpop.f32.mrb[0].mxu0
      %1956 = vmatprep.mubr.bf16.mxu0 0
      %1957 = vmatmul.mubr.bf16.gmra.mrb[0].mxu0 %v376
      %v1958 = vpop.f32.mrb[0].mxu0
      %v1959 = vadd.f32 0.0, %v1958
      %v1960 = vpop.f32.mrb[0].mxu0
      %v1961 = vpop.f32.mrb[0].mxu0
      %v1962 = vadd.f32 0.0, %v1961
      %v1963 = vpop.f32.mrb[0].mxu0
      %1964 = vmatprep.mubr.bf16.mxu0 0
      %1965 = vmatmul.mubr.bf16.gmra.mrb[0].mxu0 %v379
      %v1966 = vpop.f32.mrb[0].mxu0
      %v1967 = vadd.f32 0.0, %v1966
      %v1968 = vpop.f32.mrb[0].mxu0
      %v1969 = vpop.f32.mrb[0].mxu0
      %v1970 = vadd.f32 0.0, %v1969
      %v1971 = vpop.f32.mrb[0].mxu0
      %1972 = vmatprep.mubr.bf16.mxu0 0
      %1973 = vmatmul.mubr.bf16.gmra.mrb[0].mxu0 %v382
      %v1974 = vpop.f32.mrb[0].mxu0
      %v1975 = vadd.f32 0.0, %v1974
      %v1976 = vpop.f32.mrb[0].mxu0
      %v1977 = vpop.f32.mrb[0].mxu0
      %v1978 = vadd.f32 0.0, %v1977
      %v1979 = vpop.f32.mrb[0].mxu0
      %1980 = vmatprep.mubr.bf16.mxu0 0
      %1981 = vmatmul.mubr.bf16.gmra.mrb[0].mxu0 %v1823
      %v1982 = vpop.f32.mrb[0].mxu0
      %v1983 = vadd.f32 0.0, %v1982
      %v1984 = vpop.f32.mrb[0].mxu0
      %v1985 = vpop.f32.mrb[0].mxu0
      %v1986 = vadd.f32 0.0, %v1985
      %v1987 = vpop.f32.mrb[0].mxu0
      %1988 = vdwg.mxu0
      %v1989 = vld [vmem:[#allocation2] sm:$0xff]
      %v1990 = vld [vmem:[#allocation2 + $0x8] sm:$0xff]
      %v1991 = vld [vmem:[#allocation2 + $0x10] sm:$0xff]
      %v1992 = vld [vmem:[#allocation2 + $0x18] sm:$0xff]
      %v1993 = vld [vmem:[#allocation2 + $0x20] sm:$0xff]
      %v1994 = vld [vmem:[#allocation2 + $0x28] sm:$0xff]
      %v1995 = vld [vmem:[#allocation2 + $0x30] sm:$0xff]
      %v1996 = vld [vmem:[#allocation2 + $0x38] sm:$0xff]
      %v1997 = vld [vmem:[#allocation2 + $0x40] sm:$0xff]
      %v1998 = vld [vmem:[#allocation2 + $0x48] sm:$0xff]
      %v1999 = vld [vmem:[#allocation2 + $0x50] sm:$0xff]
      %v2000 = vld [vmem:[#allocation2 + $0x58] sm:$0xff]
      %v2001 = vld [vmem:[#allocation2 + $0x60] sm:$0xff]
      %v2002 = vld [vmem:[#allocation2 + $0x68] sm:$0xff]
      %v2003 = vld [vmem:[#allocation2 + $0x70] sm:$0xff]
      %v2004 = vld [vmem:[#allocation2 + $0x78] sm:$0xff]
      %v2005 = vld [vmem:[#allocation2 + $0x80] sm:$0xff]
      %v2006 = vld [vmem:[#allocation2 + $0x88] sm:$0xff]
      %v2007 = vld [vmem:[#allocation2 + $0x90] sm:$0xff]
      %v2008 = vld [vmem:[#allocation2 + $0x98] sm:$0xff]
      %v2009 = vld [vmem:[#allocation2 + $0xa0] sm:$0xff]
      %v2010 = vld [vmem:[#allocation2 + $0xa8] sm:$0xff]
      %v2011 = vld [vmem:[#allocation2 + $0xb0] sm:$0xff]
      %v2012 = vld [vmem:[#allocation2 + $0xb8] sm:$0xff]
      %v2013 = vld [vmem:[#allocation2 + $0xc0] sm:$0xff]
      %v2014 = vld [vmem:[#allocation2 + $0xc8] sm:$0xff]
      %v2015 = vld [vmem:[#allocation2 + $0xd0] sm:$0xff]
      %v2016 = vld [vmem:[#allocation2 + $0xd8] sm:$0xff]
      %v2017 = vld [vmem:[#allocation2 + $0xe0] sm:$0xff]
      %v2018 = vld [vmem:[#allocation2 + $0xe8] sm:$0xff]
      %v2019 = vld [vmem:[#allocation2 + $0xf0] sm:$0xff]
      %v2020 = vld [vmem:[#allocation2 + $0xf8] sm:$0xff]
      %v2021 = vadd.f32 %v1989, %v1863
      %v2022 = vadd.f32 %v1990, %v1866
      %v2023 = vadd.f32 %v1991, %v1871
      %v2024 = vadd.f32 %v1992, %v1874
      %v2025 = vadd.f32 %v1993, %v1879
      %v2026 = vadd.f32 %v1994, %v1882
      %v2027 = vadd.f32 %v1995, %v1887
      %v2028 = vadd.f32 %v1996, %v1890
      %v2029 = vadd.f32 %v1997, %v1895
      %v2030 = vadd.f32 %v1998, %v1898
      %v2031 = vadd.f32 %v1999, %v1903
      %v2032 = vadd.f32 %v2000, %v1906
      %v2033 = vadd.f32 %v2001, %v1911
      %v2034 = vadd.f32 %v2002, %v1914
      %v2035 = vadd.f32 %v2003, %v1919
      %v2036 = vadd.f32 %v2004, %v1922
      %v2037 = vadd.f32 %v2005, %v1927
      %v2038 = vadd.f32 %v2006, %v1930
      %v2039 = vadd.f32 %v2007, %v1935
      %v2040 = vadd.f32 %v2008, %v1938
      %v2041 = vadd.f32 %v2009, %v1943
      %v2042 = vadd.f32 %v2010, %v1946
      %v2043 = vadd.f32 %v2011, %v1951
      %v2044 = vadd.f32 %v2012, %v1954
      %v2045 = vadd.f32 %v2013, %v1959
      %v2046 = vadd.f32 %v2014, %v1962
      %v2047 = vadd.f32 %v2015, %v1967
      %v2048 = vadd.f32 %v2016, %v1970
      %v2049 = vadd.f32 %v2017, %v1975
      %v2050 = vadd.f32 %v2018, %v1978
      %v2051 = vadd.f32 %v2019, %v1983
      %v2052 = vadd.f32 %v2020, %v1986
      %2053 = vst [vmem:[#allocation2] sm:$0xff] %v2021
      %2054 = vst [vmem:[#allocation2 + $0x8] sm:$0xff] %v2022
      %2055 = vst [vmem:[#allocation2 + $0x10] sm:$0xff] %v2023
      %2056 = vst [vmem:[#allocation2 + $0x18] sm:$0xff] %v2024
      %2057 = vst [vmem:[#allocation2 + $0x20] sm:$0xff] %v2025
      %2058 = vst [vmem:[#allocation2 + $0x28] sm:$0xff] %v2026
      %2059 = vst [vmem:[#allocation2 + $0x30] sm:$0xff] %v2027
      %2060 = vst [vmem:[#allocation2 + $0x38] sm:$0xff] %v2028
      %2061 = vst [vmem:[#allocation2 + $0x40] sm:$0xff] %v2029
      %2062 = vst [vmem:[#allocation2 + $0x48] sm:$0xff] %v2030
      %2063 = vst [vmem:[#allocation2 + $0x50] sm:$0xff] %v2031
      %2064 = vst [vmem:[#allocation2 + $0x58] sm:$0xff] %v2032
      %2065 = vst [vmem:[#allocation2 + $0x60] sm:$0xff] %v2033
      %2066 = vst [vmem:[#allocation2 + $0x68] sm:$0xff] %v2034
      %2067 = vst [vmem:[#allocation2 + $0x70] sm:$0xff] %v2035
      %2068 = vst [vmem:[#allocation2 + $0x78] sm:$0xff] %v2036
      %2069 = vst [vmem:[#allocation2 + $0x80] sm:$0xff] %v2037
      %2070 = vst [vmem:[#allocation2 + $0x88] sm:$0xff] %v2038
      %2071 = vst [vmem:[#allocation2 + $0x90] sm:$0xff] %v2039
      %2072 = vst [vmem:[#allocation2 + $0x98] sm:$0xff] %v2040
      %2073 = vst [vmem:[#allocation2 + $0xa0] sm:$0xff] %v2041
      %2074 = vst [vmem:[#allocation2 + $0xa8] sm:$0xff] %v2042
      %2075 = vst [vmem:[#allocation2 + $0xb0] sm:$0xff] %v2043
      %2076 = vst [vmem:[#allocation2 + $0xb8] sm:$0xff] %v2044
      %2077 = vst [vmem:[#allocation2 + $0xc0] sm:$0xff] %v2045
      %2078 = vst [vmem:[#allocation2 + $0xc8] sm:$0xff] %v2046
      %2079 = vst [vmem:[#allocation2 + $0xd0] sm:$0xff] %v2047
      %2080 = vst [vmem:[#allocation2 + $0xd8] sm:$0xff] %v2048
      %2081 = vst [vmem:[#allocation2 + $0xe0] sm:$0xff] %v2049
      %2082 = vst [vmem:[#allocation2 + $0xe8] sm:$0xff] %v2050
      %2083 = vst [vmem:[#allocation2 + $0xf0] sm:$0xff] %v2051
      %2084 = vst [vmem:[#allocation2 + $0xf8] sm:$0xff] %v2052
      %v2086 = vshrl.u32 %v248, 16
      %v2088 = vrot.slane %v2086, 4
      %v2089 = vshll.u32 %v248, 16
      %v2091 = vrot.slane %v2089, 5
      %v2092 = vor.u32 %v2088, %v2091
      %v2093 = vrot.slane %v2092, 4
      %v2095 = vshll.u32 %v249, 16
      %v2097 = vrot.slane %v2095, 5
      %v2098 = vsel %vm583, %v2093, %v2097
      %v2099 = vshrl.u32 %v249, 16
      %v2101 = vrot.slane %v2099, 4
      %v2102 = vor.u32 %v2101, %v2097
      %v2103 = vrot.slane %v2102, 4
      %v2105 = vshll.u32 %v250, 16
      %v2107 = vrot.slane %v2105, 5
      %v2108 = vsel %vm583, %v2103, %v2107
      %s2109 = scalar_lea.vmem %s1, 8
      %v2110 = vld [vmem:[%s2109] sm:$0x3]
      %v2111 = vunpack.c.l.b16 %v2098
      %v2112 = vunpack.c.l.b16 %v2108
      %v2113 = vpack.c.b16 %v2112, %v2111
      %v2115 = vsel %vm335, %v2113, 0
      %v2118 = vsel %vm384, %v2110, 0
      %2120 = vmatprep.subr.bf16.mxu0 0
      %2121 = vmatpush1.bf16.msra.mxu0 %v2118
      %2122 = vmatprep.subr.bf16.mxu0 0
      %2123 = vmatpush1.bf16.msra.mxu0 0
      %2124 = vmatprep.subr.bf16.mxu0 0
      %2125 = vmatpush1.bf16.msra.mxu0 0
      %2126 = vmatprep.subr.bf16.mxu0 0
      %2127 = vmatpush1.bf16.msra.mxu0 0
      %2128 = vmatprep.subr.bf16.mxu0 0
      %2129 = vmatpush1.bf16.msra.mxu0 0
      %2130 = vmatprep.subr.bf16.mxu0 0
      %2131 = vmatpush1.bf16.msra.mxu0 0
      %2132 = vmatprep.subr.bf16.mxu0 0
      %2133 = vmatpush1.bf16.msra.mxu0 0
      %2134 = vmatprep.subr.bf16.mxu0 0
      %2135 = vmatpush1.bf16.msra.mxu0 0
      %2136 = vmatprep.subr.bf16.mxu0 0
      %2137 = vmatpush1.bf16.msra.mxu0 0
      %2138 = vmatprep.subr.bf16.mxu0 0
      %2139 = vmatpush1.bf16.msra.mxu0 0
      %2140 = vmatprep.subr.bf16.mxu0 0
      %2141 = vmatpush1.bf16.msra.mxu0 0
      %2142 = vmatprep.subr.bf16.mxu0 0
      %2143 = vmatpush1.bf16.msra.mxu0 0
      %2144 = vmatprep.subr.bf16.mxu0 0
      %2145 = vmatpush1.bf16.msra.mxu0 0
      %2146 = vmatprep.subr.bf16.mxu0 0
      %2147 = vmatpush1.bf16.msra.mxu0 0
      %2148 = vmatprep.subr.bf16.mxu0 0
      %2149 = vmatpush1.bf16.msra.mxu0 0
      %2150 = vmatprep.subr.bf16.mxu0 0
      %2151 = vmatpush1.bf16.msra.mxu0 0
      %2152 = vmatprep.mubr.bf16.mxu0 0
      %2153 = vmatmul.mubr.bf16.gmra.mrb[0].mxu0 %v1022
      %v2154 = vpop.f32.mrb[0].mxu0
      %v2155 = vadd.f32 0.0, %v2154
      %v2156 = vpop.f32.mrb[0].mxu0
      %v2157 = vpop.f32.mrb[0].mxu0
      %v2158 = vadd.f32 0.0, %v2157
      %v2159 = vpop.f32.mrb[0].mxu0
      %2160 = vmatprep.mubr.bf16.mxu0 0
      %2161 = vmatmul.mubr.bf16.gmra.mrb[0].mxu0 %v1025
      %v2162 = vpop.f32.mrb[0].mxu0
      %v2163 = vadd.f32 0.0, %v2162
      %v2164 = vpop.f32.mrb[0].mxu0
      %v2165 = vpop.f32.mrb[0].mxu0
      %v2166 = vadd.f32 0.0, %v2165
      %v2167 = vpop.f32.mrb[0].mxu0
      %2168 = vmatprep.mubr.bf16.mxu0 0
      %2169 = vmatmul.mubr.bf16.gmra.mrb[0].mxu0 %v1028
      %v2170 = vpop.f32.mrb[0].mxu0
      %v2171 = vadd.f32 0.0, %v2170
      %v2172 = vpop.f32.mrb[0].mxu0
      %v2173 = vpop.f32.mrb[0].mxu0
      %v2174 = vadd.f32 0.0, %v2173
      %v2175 = vpop.f32.mrb[0].mxu0
      %2176 = vmatprep.mubr.bf16.mxu0 0
      %2177 = vmatmul.mubr.bf16.gmra.mrb[0].mxu0 %v1031
      %v2178 = vpop.f32.mrb[0].mxu0
      %v2179 = vadd.f32 0.0, %v2178
      %v2180 = vpop.f32.mrb[0].mxu0
      %v2181 = vpop.f32.mrb[0].mxu0
      %v2182 = vadd.f32 0.0, %v2181
      %v2183 = vpop.f32.mrb[0].mxu0
      %2184 = vmatprep.mubr.bf16.mxu0 0
      %2185 = vmatmul.mubr.bf16.gmra.mrb[0].mxu0 %v1034
      %v2186 = vpop.f32.mrb[0].mxu0
      %v2187 = vadd.f32 0.0, %v2186
      %v2188 = vpop.f32.mrb[0].mxu0
      %v2189 = vpop.f32.mrb[0].mxu0
      %v2190 = vadd.f32 0.0, %v2189
      %v2191 = vpop.f32.mrb[0].mxu0
      %2192 = vmatprep.mubr.bf16.mxu0 0
      %2193 = vmatmul.mubr.bf16.gmra.mrb[0].mxu0 %v1037
      %v2194 = vpop.f32.mrb[0].mxu0
      %v2195 = vadd.f32 0.0, %v2194
      %v2196 = vpop.f32.mrb[0].mxu0
      %v2197 = vpop.f32.mrb[0].mxu0
      %v2198 = vadd.f32 0.0, %v2197
      %v2199 = vpop.f32.mrb[0].mxu0
      %2200 = vmatprep.mubr.bf16.mxu0 0
      %2201 = vmatmul.mubr.bf16.gmra.mrb[0].mxu0 %v1040
      %v2202 = vpop.f32.mrb[0].mxu0
      %v2203 = vadd.f32 0.0, %v2202
      %v2204 = vpop.f32.mrb[0].mxu0
      %v2205 = vpop.f32.mrb[0].mxu0
      %v2206 = vadd.f32 0.0, %v2205
      %v2207 = vpop.f32.mrb[0].mxu0
      %2208 = vmatprep.mubr.bf16.mxu0 0
      %2209 = vmatmul.mubr.bf16.gmra.mrb[0].mxu0 %v1043
      %v2210 = vpop.f32.mrb[0].mxu0
      %v2211 = vadd.f32 0.0, %v2210
      %v2212 = vpop.f32.mrb[0].mxu0
      %v2213 = vpop.f32.mrb[0].mxu0
      %v2214 = vadd.f32 0.0, %v2213
      %v2215 = vpop.f32.mrb[0].mxu0
      %2216 = vmatprep.mubr.bf16.mxu0 0
      %2217 = vmatmul.mubr.bf16.gmra.mrb[0].mxu0 %v1046
      %v2218 = vpop.f32.mrb[0].mxu0
      %v2219 = vadd.f32 0.0, %v2218
      %v2220 = vpop.f32.mrb[0].mxu0
      %v2221 = vpop.f32.mrb[0].mxu0
      %v2222 = vadd.f32 0.0, %v2221
      %v2223 = vpop.f32.mrb[0].mxu0
      %2224 = vmatprep.mubr.bf16.mxu0 0
      %2225 = vmatmul.mubr.bf16.gmra.mrb[0].mxu0 %v1049
      %v2226 = vpop.f32.mrb[0].mxu0
      %v2227 = vadd.f32 0.0, %v2226
      %v2228 = vpop.f32.mrb[0].mxu0
      %v2229 = vpop.f32.mrb[0].mxu0
      %v2230 = vadd.f32 0.0, %v2229
      %v2231 = vpop.f32.mrb[0].mxu0
      %2232 = vmatprep.mubr.bf16.mxu0 0
      %2233 = vmatmul.mubr.bf16.gmra.mrb[0].mxu0 %v1052
      %v2234 = vpop.f32.mrb[0].mxu0
      %v2235 = vadd.f32 0.0, %v2234
      %v2236 = vpop.f32.mrb[0].mxu0
      %v2237 = vpop.f32.mrb[0].mxu0
      %v2238 = vadd.f32 0.0, %v2237
      %v2239 = vpop.f32.mrb[0].mxu0
      %2240 = vmatprep.mubr.bf16.mxu0 0
      %2241 = vmatmul.mubr.bf16.gmra.mrb[0].mxu0 %v1055
      %v2242 = vpop.f32.mrb[0].mxu0
      %v2243 = vadd.f32 0.0, %v2242
      %v2244 = vpop.f32.mrb[0].mxu0
      %v2245 = vpop.f32.mrb[0].mxu0
      %v2246 = vadd.f32 0.0, %v2245
      %v2247 = vpop.f32.mrb[0].mxu0
      %2248 = vmatprep.mubr.bf16.mxu0 0
      %2249 = vmatmul.mubr.bf16.gmra.mrb[0].mxu0 %v1058
      %v2250 = vpop.f32.mrb[0].mxu0
      %v2251 = vadd.f32 0.0, %v2250
      %v2252 = vpop.f32.mrb[0].mxu0
      %v2253 = vpop.f32.mrb[0].mxu0
      %v2254 = vadd.f32 0.0, %v2253
      %v2255 = vpop.f32.mrb[0].mxu0
      %2256 = vmatprep.mubr.bf16.mxu0 0
      %2257 = vmatmul.mubr.bf16.gmra.mrb[0].mxu0 %v1061
      %v2258 = vpop.f32.mrb[0].mxu0
      %v2259 = vadd.f32 0.0, %v2258
      %v2260 = vpop.f32.mrb[0].mxu0
      %v2261 = vpop.f32.mrb[0].mxu0
      %v2262 = vadd.f32 0.0, %v2261
      %v2263 = vpop.f32.mrb[0].mxu0
      %2264 = vmatprep.mubr.bf16.mxu0 0
      %2265 = vmatmul.mubr.bf16.gmra.mrb[0].mxu0 %v1064
      %v2266 = vpop.f32.mrb[0].mxu0
      %v2267 = vadd.f32 0.0, %v2266
      %v2268 = vpop.f32.mrb[0].mxu0
      %v2269 = vpop.f32.mrb[0].mxu0
      %v2270 = vadd.f32 0.0, %v2269
      %v2271 = vpop.f32.mrb[0].mxu0
      %2272 = vmatprep.mubr.bf16.mxu0 0
      %2273 = vmatmul.mubr.bf16.gmra.mrb[0].mxu0 %v2115
      %v2274 = vpop.f32.mrb[0].mxu0
      %v2275 = vadd.f32 0.0, %v2274
      %v2276 = vpop.f32.mrb[0].mxu0
      %v2277 = vpop.f32.mrb[0].mxu0
      %v2278 = vadd.f32 0.0, %v2277
      %v2279 = vpop.f32.mrb[0].mxu0
      %2280 = vdwg.mxu0
      %v2281 = vld [vmem:[#allocation2] sm:$0xff]
      %v2282 = vld [vmem:[#allocation2 + $0x8] sm:$0xff]
      %v2283 = vld [vmem:[#allocation2 + $0x10] sm:$0xff]
      %v2284 = vld [vmem:[#allocation2 + $0x18] sm:$0xff]
      %v2285 = vld [vmem:[#allocation2 + $0x20] sm:$0xff]
      %v2286 = vld [vmem:[#allocation2 + $0x28] sm:$0xff]
      %v2287 = vld [vmem:[#allocation2 + $0x30] sm:$0xff]
      %v2288 = vld [vmem:[#allocation2 + $0x38] sm:$0xff]
      %v2289 = vld [vmem:[#allocation2 + $0x40] sm:$0xff]
      %v2290 = vld [vmem:[#allocation2 + $0x48] sm:$0xff]
      %v2291 = vld [vmem:[#allocation2 + $0x50] sm:$0xff]
      %v2292 = vld [vmem:[#allocation2 + $0x58] sm:$0xff]
      %v2293 = vld [vmem:[#allocation2 + $0x60] sm:$0xff]
      %v2294 = vld [vmem:[#allocation2 + $0x68] sm:$0xff]
      %v2295 = vld [vmem:[#allocation2 + $0x70] sm:$0xff]
      %v2296 = vld [vmem:[#allocation2 + $0x78] sm:$0xff]
      %v2297 = vld [vmem:[#allocation2 + $0x80] sm:$0xff]
      %v2298 = vld [vmem:[#allocation2 + $0x88] sm:$0xff]
      %v2299 = vld [vmem:[#allocation2 + $0x90] sm:$0xff]
      %v2300 = vld [vmem:[#allocation2 + $0x98] sm:$0xff]
      %v2301 = vld [vmem:[#allocation2 + $0xa0] sm:$0xff]
      %v2302 = vld [vmem:[#allocation2 + $0xa8] sm:$0xff]
      %v2303 = vld [vmem:[#allocation2 + $0xb0] sm:$0xff]
      %v2304 = vld [vmem:[#allocation2 + $0xb8] sm:$0xff]
      %v2305 = vld [vmem:[#allocation2 + $0xc0] sm:$0xff]
      %v2306 = vld [vmem:[#allocation2 + $0xc8] sm:$0xff]
      %v2307 = vld [vmem:[#allocation2 + $0xd0] sm:$0xff]
      %v2308 = vld [vmem:[#allocation2 + $0xd8] sm:$0xff]
      %v2309 = vld [vmem:[#allocation2 + $0xe0] sm:$0xff]
      %v2310 = vld [vmem:[#allocation2 + $0xe8] sm:$0xff]
      %v2311 = vld [vmem:[#allocation2 + $0xf0] sm:$0xff]
      %v2312 = vld [vmem:[#allocation2 + $0xf8] sm:$0xff]
      %v2313 = vadd.f32 %v2281, %v2155
      %v2314 = vadd.f32 %v2282, %v2158
      %v2315 = vadd.f32 %v2283, %v2163
      %v2316 = vadd.f32 %v2284, %v2166
      %v2317 = vadd.f32 %v2285, %v2171
      %v2318 = vadd.f32 %v2286, %v2174
      %v2319 = vadd.f32 %v2287, %v2179
      %v2320 = vadd.f32 %v2288, %v2182
      %v2321 = vadd.f32 %v2289, %v2187
      %v2322 = vadd.f32 %v2290, %v2190
      %v2323 = vadd.f32 %v2291, %v2195
      %v2324 = vadd.f32 %v2292, %v2198
      %v2325 = vadd.f32 %v2293, %v2203
      %v2326 = vadd.f32 %v2294, %v2206
      %v2327 = vadd.f32 %v2295, %v2211
      %v2328 = vadd.f32 %v2296, %v2214
      %v2329 = vadd.f32 %v2297, %v2219
      %v2330 = vadd.f32 %v2298, %v2222
      %v2331 = vadd.f32 %v2299, %v2227
      %v2332 = vadd.f32 %v2300, %v2230
      %v2333 = vadd.f32 %v2301, %v2235
      %v2334 = vadd.f32 %v2302, %v2238
      %v2335 = vadd.f32 %v2303, %v2243
      %v2336 = vadd.f32 %v2304, %v2246
      %v2337 = vadd.f32 %v2305, %v2251
      %v2338 = vadd.f32 %v2306, %v2254
      %v2339 = vadd.f32 %v2307, %v2259
      %v2340 = vadd.f32 %v2308, %v2262
      %v2341 = vadd.f32 %v2309, %v2267
      %v2342 = vadd.f32 %v2310, %v2270
      %v2343 = vadd.f32 %v2311, %v2275
      %v2344 = vadd.f32 %v2312, %v2278
      %2345 = vst [vmem:[#allocation2] sm:$0xff] %v2313
      %2346 = vst [vmem:[#allocation2 + $0x8] sm:$0xff] %v2314
      %2347 = vst [vmem:[#allocation2 + $0x10] sm:$0xff] %v2315
      %2348 = vst [vmem:[#allocation2 + $0x18] sm:$0xff] %v2316
      %2349 = vst [vmem:[#allocation2 + $0x20] sm:$0xff] %v2317
      %2350 = vst [vmem:[#allocation2 + $0x28] sm:$0xff] %v2318
      %2351 = vst [vmem:[#allocation2 + $0x30] sm:$0xff] %v2319
      %2352 = vst [vmem:[#allocation2 + $0x38] sm:$0xff] %v2320
      %2353 = vst [vmem:[#allocation2 + $0x40] sm:$0xff] %v2321
      %2354 = vst [vmem:[#allocation2 + $0x48] sm:$0xff] %v2322
      %2355 = vst [vmem:[#allocation2 + $0x50] sm:$0xff] %v2323
      %2356 = vst [vmem:[#allocation2 + $0x58] sm:$0xff] %v2324
      %2357 = vst [vmem:[#allocation2 + $0x60] sm:$0xff] %v2325
      %2358 = vst [vmem:[#allocation2 + $0x68] sm:$0xff] %v2326
      %2359 = vst [vmem:[#allocation2 + $0x70] sm:$0xff] %v2327
      %2360 = vst [vmem:[#allocation2 + $0x78] sm:$0xff] %v2328
      %2361 = vst [vmem:[#allocation2 + $0x80] sm:$0xff] %v2329
      %2362 = vst [vmem:[#allocation2 + $0x88] sm:$0xff] %v2330
      %2363 = vst [vmem:[#allocation2 + $0x90] sm:$0xff] %v2331
      %2364 = vst [vmem:[#allocation2 + $0x98] sm:$0xff] %v2332
      %2365 = vst [vmem:[#allocation2 + $0xa0] sm:$0xff] %v2333
      %2366 = vst [vmem:[#allocation2 + $0xa8] sm:$0xff] %v2334
      %2367 = vst [vmem:[#allocation2 + $0xb0] sm:$0xff] %v2335
      %2368 = vst [vmem:[#allocation2 + $0xb8] sm:$0xff] %v2336
      %2369 = vst [vmem:[#allocation2 + $0xc0] sm:$0xff] %v2337
      %2370 = vst [vmem:[#allocation2 + $0xc8] sm:$0xff] %v2338
      %2371 = vst [vmem:[#allocation2 + $0xd0] sm:$0xff] %v2339
      %2372 = vst [vmem:[#allocation2 + $0xd8] sm:$0xff] %v2340
      %2373 = vst [vmem:[#allocation2 + $0xe0] sm:$0xff] %v2341
      %2374 = vst [vmem:[#allocation2 + $0xe8] sm:$0xff] %v2342
      %2375 = vst [vmem:[#allocation2 + $0xf0] sm:$0xff] %v2343
      %2376 = vst [vmem:[#allocation2 + $0xf8] sm:$0xff] %v2344
      %v2378 = vrot.slane %v248, 5
      %v2379 = vrot.slane %v2378, 4
      %v2380 = vrot.slane %v249, 5
      %v2381 = vsel %vm1344, %v2379, %v2380
      %v2382 = vrot.slane %v2380, 4
      %v2383 = vrot.slane %v250, 5
      %v2384 = vsel %vm1344, %v2382, %v2383
      %s2385 = scalar_lea.vmem %s1, 10
      %v2386 = vld [vmem:[%s2385] sm:$0x3]
      %v2387 = vunpack.c.l.b16 %v2381
      %v2388 = vunpack.c.l.b16 %v2384
      %v2389 = vpack.c.b16 %v2388, %v2387
      %v2391 = vsel %vm335, %v2389, 0
      %v2394 = vsel %vm384, %v2386, 0
      %2396 = vmatprep.subr.bf16.mxu0 0
      %2397 = vmatpush1.bf16.msra.mxu0 %v2394
      %2398 = vmatprep.subr.bf16.mxu0 0
      %2399 = vmatpush1.bf16.msra.mxu0 0
      %2400 = vmatprep.subr.bf16.mxu0 0
      %2401 = vmatpush1.bf16.msra.mxu0 0
      %2402 = vmatprep.subr.bf16.mxu0 0
      %2403 = vmatpush1.bf16.msra.mxu0 0
      %2404 = vmatprep.subr.bf16.mxu0 0
      %2405 = vmatpush1.bf16.msra.mxu0 0
      %2406 = vmatprep.subr.bf16.mxu0 0
      %2407 = vmatpush1.bf16.msra.mxu0 0
      %2408 = vmatprep.subr.bf16.mxu0 0
      %2409 = vmatpush1.bf16.msra.mxu0 0
      %2410 = vmatprep.subr.bf16.mxu0 0
      %2411 = vmatpush1.bf16.msra.mxu0 0
      %2412 = vmatprep.subr.bf16.mxu0 0
      %2413 = vmatpush1.bf16.msra.mxu0 0
      %2414 = vmatprep.subr.bf16.mxu0 0
      %2415 = vmatpush1.bf16.msra.mxu0 0
      %2416 = vmatprep.subr.bf16.mxu0 0
      %2417 = vmatpush1.bf16.msra.mxu0 0
      %2418 = vmatprep.subr.bf16.mxu0 0
      %2419 = vmatpush1.bf16.msra.mxu0 0
      %2420 = vmatprep.subr.bf16.mxu0 0
      %2421 = vmatpush1.bf16.msra.mxu0 0
      %2422 = vmatprep.subr.bf16.mxu0 0
      %2423 = vmatpush1.bf16.msra.mxu0 0
      %2424 = vmatprep.subr.bf16.mxu0 0
      %2425 = vmatpush1.bf16.msra.mxu0 0
      %2426 = vmatprep.subr.bf16.mxu0 0
      %2427 = vmatpush1.bf16.msra.mxu0 0
      %2428 = vmatprep.mubr.bf16.mxu0 0
      %2429 = vmatmul.mubr.bf16.gmra.mrb[0].mxu0 %v1511
      %v2430 = vpop.f32.mrb[0].mxu0
      %v2431 = vadd.f32 0.0, %v2430
      %v2432 = vpop.f32.mrb[0].mxu0
      %v2433 = vpop.f32.mrb[0].mxu0
      %v2434 = vadd.f32 0.0, %v2433
      %v2435 = vpop.f32.mrb[0].mxu0
      %2436 = vmatprep.mubr.bf16.mxu0 0
      %2437 = vmatmul.mubr.bf16.gmra.mrb[0].mxu0 %v1514
      %v2438 = vpop.f32.mrb[0].mxu0
      %v2439 = vadd.f32 0.0, %v2438
      %v2440 = vpop.f32.mrb[0].mxu0
      %v2441 = vpop.f32.mrb[0].mxu0
      %v2442 = vadd.f32 0.0, %v2441
      %v2443 = vpop.f32.mrb[0].mxu0
      %2444 = vmatprep.mubr.bf16.mxu0 0
      %2445 = vmatmul.mubr.bf16.gmra.mrb[0].mxu0 %v1517
      %v2446 = vpop.f32.mrb[0].mxu0
      %v2447 = vadd.f32 0.0, %v2446
      %v2448 = vpop.f32.mrb[0].mxu0
      %v2449 = vpop.f32.mrb[0].mxu0
      %v2450 = vadd.f32 0.0, %v2449
      %v2451 = vpop.f32.mrb[0].mxu0
      %2452 = vmatprep.mubr.bf16.mxu0 0
      %2453 = vmatmul.mubr.bf16.gmra.mrb[0].mxu0 %v1520
      %v2454 = vpop.f32.mrb[0].mxu0
      %v2455 = vadd.f32 0.0, %v2454
      %v2456 = vpop.f32.mrb[0].mxu0
      %v2457 = vpop.f32.mrb[0].mxu0
      %v2458 = vadd.f32 0.0, %v2457
      %v2459 = vpop.f32.mrb[0].mxu0
      %2460 = vmatprep.mubr.bf16.mxu0 0
      %2461 = vmatmul.mubr.bf16.gmra.mrb[0].mxu0 %v1523
      %v2462 = vpop.f32.mrb[0].mxu0
      %v2463 = vadd.f32 0.0, %v2462
      %v2464 = vpop.f32.mrb[0].mxu0
      %v2465 = vpop.f32.mrb[0].mxu0
      %v2466 = vadd.f32 0.0, %v2465
      %v2467 = vpop.f32.mrb[0].mxu0
      %2468 = vmatprep.mubr.bf16.mxu0 0
      %2469 = vmatmul.mubr.bf16.gmra.mrb[0].mxu0 %v1526
      %v2470 = vpop.f32.mrb[0].mxu0
      %v2471 = vadd.f32 0.0, %v2470
      %v2472 = vpop.f32.mrb[0].mxu0
      %v2473 = vpop.f32.mrb[0].mxu0
      %v2474 = vadd.f32 0.0, %v2473
      %v2475 = vpop.f32.mrb[0].mxu0
      %2476 = vmatprep.mubr.bf16.mxu0 0
      %2477 = vmatmul.mubr.bf16.gmra.mrb[0].mxu0 %v1529
      %v2478 = vpop.f32.mrb[0].mxu0
      %v2479 = vadd.f32 0.0, %v2478
      %v2480 = vpop.f32.mrb[0].mxu0
      %v2481 = vpop.f32.mrb[0].mxu0
      %v2482 = vadd.f32 0.0, %v2481
      %v2483 = vpop.f32.mrb[0].mxu0
      %2484 = vmatprep.mubr.bf16.mxu0 0
      %2485 = vmatmul.mubr.bf16.gmra.mrb[0].mxu0 %v1532
      %v2486 = vpop.f32.mrb[0].mxu0
      %v2487 = vadd.f32 0.0, %v2486
      %v2488 = vpop.f32.mrb[0].mxu0
      %v2489 = vpop.f32.mrb[0].mxu0
      %v2490 = vadd.f32 0.0, %v2489
      %v2491 = vpop.f32.mrb[0].mxu0
      %2492 = vmatprep.mubr.bf16.mxu0 0
      %2493 = vmatmul.mubr.bf16.gmra.mrb[0].mxu0 %v1535
      %v2494 = vpop.f32.mrb[0].mxu0
      %v2495 = vadd.f32 0.0, %v2494
      %v2496 = vpop.f32.mrb[0].mxu0
      %v2497 = vpop.f32.mrb[0].mxu0
      %v2498 = vadd.f32 0.0, %v2497
      %v2499 = vpop.f32.mrb[0].mxu0
      %2500 = vmatprep.mubr.bf16.mxu0 0
      %2501 = vmatmul.mubr.bf16.gmra.mrb[0].mxu0 %v1538
      %v2502 = vpop.f32.mrb[0].mxu0
      %v2503 = vadd.f32 0.0, %v2502
      %v2504 = vpop.f32.mrb[0].mxu0
      %v2505 = vpop.f32.mrb[0].mxu0
      %v2506 = vadd.f32 0.0, %v2505
      %v2507 = vpop.f32.mrb[0].mxu0
      %2508 = vmatprep.mubr.bf16.mxu0 0
      %2509 = vmatmul.mubr.bf16.gmra.mrb[0].mxu0 %v1541
      %v2510 = vpop.f32.mrb[0].mxu0
      %v2511 = vadd.f32 0.0, %v2510
      %v2512 = vpop.f32.mrb[0].mxu0
      %v2513 = vpop.f32.mrb[0].mxu0
      %v2514 = vadd.f32 0.0, %v2513
      %v2515 = vpop.f32.mrb[0].mxu0
      %2516 = vmatprep.mubr.bf16.mxu0 0
      %2517 = vmatmul.mubr.bf16.gmra.mrb[0].mxu0 %v1544
      %v2518 = vpop.f32.mrb[0].mxu0
      %v2519 = vadd.f32 0.0, %v2518
      %v2520 = vpop.f32.mrb[0].mxu0
      %v2521 = vpop.f32.mrb[0].mxu0
      %v2522 = vadd.f32 0.0, %v2521
      %v2523 = vpop.f32.mrb[0].mxu0
      %2524 = vmatprep.mubr.bf16.mxu0 0
      %2525 = vmatmul.mubr.bf16.gmra.mrb[0].mxu0 %v1547
      %v2526 = vpop.f32.mrb[0].mxu0
      %v2527 = vadd.f32 0.0, %v2526
      %v2528 = vpop.f32.mrb[0].mxu0
      %v2529 = vpop.f32.mrb[0].mxu0
      %v2530 = vadd.f32 0.0, %v2529
      %v2531 = vpop.f32.mrb[0].mxu0
      %2532 = vmatprep.mubr.bf16.mxu0 0
      %2533 = vmatmul.mubr.bf16.gmra.mrb[0].mxu0 %v1550
      %v2534 = vpop.f32.mrb[0].mxu0
      %v2535 = vadd.f32 0.0, %v2534
      %v2536 = vpop.f32.mrb[0].mxu0
      %v2537 = vpop.f32.mrb[0].mxu0
      %v2538 = vadd.f32 0.0, %v2537
      %v2539 = vpop.f32.mrb[0].mxu0
      %2540 = vmatprep.mubr.bf16.mxu0 0
      %2541 = vmatmul.mubr.bf16.gmra.mrb[0].mxu0 %v1553
      %v2542 = vpop.f32.mrb[0].mxu0
      %v2543 = vadd.f32 0.0, %v2542
      %v2544 = vpop.f32.mrb[0].mxu0
      %v2545 = vpop.f32.mrb[0].mxu0
      %v2546 = vadd.f32 0.0, %v2545
      %v2547 = vpop.f32.mrb[0].mxu0
      %2548 = vmatprep.mubr.bf16.mxu0 0
      %2549 = vmatmul.mubr.bf16.gmra.mrb[0].mxu0 %v2391
      %v2550 = vpop.f32.mrb[0].mxu0
      %v2551 = vadd.f32 0.0, %v2550
      %v2552 = vpop.f32.mrb[0].mxu0
      %v2553 = vpop.f32.mrb[0].mxu0
      %v2554 = vadd.f32 0.0, %v2553
      %v2555 = vpop.f32.mrb[0].mxu0
      %2556 = vdwg.mxu0
      %v2557 = vld [vmem:[#allocation2] sm:$0xff]
      %v2558 = vld [vmem:[#allocation2 + $0x8] sm:$0xff]
      %v2559 = vld [vmem:[#allocation2 + $0x10] sm:$0xff]
      %v2560 = vld [vmem:[#allocation2 + $0x18] sm:$0xff]
      %v2561 = vld [vmem:[#allocation2 + $0x20] sm:$0xff]
      %v2562 = vld [vmem:[#allocation2 + $0x28] sm:$0xff]
      %v2563 = vld [vmem:[#allocation2 + $0x30] sm:$0xff]
      %v2564 = vld [vmem:[#allocation2 + $0x38] sm:$0xff]
      %v2565 = vld [vmem:[#allocation2 + $0x40] sm:$0xff]
      %v2566 = vld [vmem:[#allocation2 + $0x48] sm:$0xff]
      %v2567 = vld [vmem:[#allocation2 + $0x50] sm:$0xff]
      %v2568 = vld [vmem:[#allocation2 + $0x58] sm:$0xff]
      %v2569 = vld [vmem:[#allocation2 + $0x60] sm:$0xff]
      %v2570 = vld [vmem:[#allocation2 + $0x68] sm:$0xff]
      %v2571 = vld [vmem:[#allocation2 + $0x70] sm:$0xff]
      %v2572 = vld [vmem:[#allocation2 + $0x78] sm:$0xff]
      %v2573 = vld [vmem:[#allocation2 + $0x80] sm:$0xff]
      %v2574 = vld [vmem:[#allocation2 + $0x88] sm:$0xff]
      %v2575 = vld [vmem:[#allocation2 + $0x90] sm:$0xff]
      %v2576 = vld [vmem:[#allocation2 + $0x98] sm:$0xff]
      %v2577 = vld [vmem:[#allocation2 + $0xa0] sm:$0xff]
      %v2578 = vld [vmem:[#allocation2 + $0xa8] sm:$0xff]
      %v2579 = vld [vmem:[#allocation2 + $0xb0] sm:$0xff]
      %v2580 = vld [vmem:[#allocation2 + $0xb8] sm:$0xff]
      %v2581 = vld [vmem:[#allocation2 + $0xc0] sm:$0xff]
      %v2582 = vld [vmem:[#allocation2 + $0xc8] sm:$0xff]
      %v2583 = vld [vmem:[#allocation2 + $0xd0] sm:$0xff]
      %v2584 = vld [vmem:[#allocation2 + $0xd8] sm:$0xff]
      %v2585 = vld [vmem:[#allocation2 + $0xe0] sm:$0xff]
      %v2586 = vld [vmem:[#allocation2 + $0xe8] sm:$0xff]
      %v2587 = vld [vmem:[#allocation2 + $0xf0] sm:$0xff]
      %v2588 = vld [vmem:[#allocation2 + $0xf8] sm:$0xff]
      %v2589 = vadd.f32 %v2557, %v2431
      %v2590 = vadd.f32 %v2558, %v2434
      %v2591 = vadd.f32 %v2559, %v2439
      %v2592 = vadd.f32 %v2560, %v2442
      %v2593 = vadd.f32 %v2561, %v2447
      %v2594 = vadd.f32 %v2562, %v2450
      %v2595 = vadd.f32 %v2563, %v2455
      %v2596 = vadd.f32 %v2564, %v2458
      %v2597 = vadd.f32 %v2565, %v2463
      %v2598 = vadd.f32 %v2566, %v2466
      %v2599 = vadd.f32 %v2567, %v2471
      %v2600 = vadd.f32 %v2568, %v2474
      %v2601 = vadd.f32 %v2569, %v2479
      %v2602 = vadd.f32 %v2570, %v2482
      %v2603 = vadd.f32 %v2571, %v2487
      %v2604 = vadd.f32 %v2572, %v2490
      %v2605 = vadd.f32 %v2573, %v2495
      %v2606 = vadd.f32 %v2574, %v2498
      %v2607 = vadd.f32 %v2575, %v2503
      %v2608 = vadd.f32 %v2576, %v2506
      %v2609 = vadd.f32 %v2577, %v2511
      %v2610 = vadd.f32 %v2578, %v2514
      %v2611 = vadd.f32 %v2579, %v2519
      %v2612 = vadd.f32 %v2580, %v2522
      %v2613 = vadd.f32 %v2581, %v2527
      %v2614 = vadd.f32 %v2582, %v2530
      %v2615 = vadd.f32 %v2583, %v2535
      %v2616 = vadd.f32 %v2584, %v2538
      %v2617 = vadd.f32 %v2585, %v2543
      %v2618 = vadd.f32 %v2586, %v2546
      %v2619 = vadd.f32 %v2587, %v2551
      %v2620 = vadd.f32 %v2588, %v2554
      %2621 = vst [vmem:[#allocation2] sm:$0xff] %v2589
      %2622 = vst [vmem:[#allocation2 + $0x8] sm:$0xff] %v2590
      %2623 = vst [vmem:[#allocation2 + $0x10] sm:$0xff] %v2591
      %2624 = vst [vmem:[#allocation2 + $0x18] sm:$0xff] %v2592
      %2625 = vst [vmem:[#allocation2 + $0x20] sm:$0xff] %v2593
      %2626 = vst [vmem:[#allocation2 + $0x28] sm:$0xff] %v2594
      %2627 = vst [vmem:[#allocation2 + $0x30] sm:$0xff] %v2595
      %2628 = vst [vmem:[#allocation2 + $0x38] sm:$0xff] %v2596
      %2629 = vst [vmem:[#allocation2 + $0x40] sm:$0xff] %v2597
      %2630 = vst [vmem:[#allocation2 + $0x48] sm:$0xff] %v2598
      %2631 = vst [vmem:[#allocation2 + $0x50] sm:$0xff] %v2599
      %2632 = vst [vmem:[#allocation2 + $0x58] sm:$0xff] %v2600
      %2633 = vst [vmem:[#allocation2 + $0x60] sm:$0xff] %v2601
      %2634 = vst [vmem:[#allocation2 + $0x68] sm:$0xff] %v2602
      %2635 = vst [vmem:[#allocation2 + $0x70] sm:$0xff] %v2603
      %2636 = vst [vmem:[#allocation2 + $0x78] sm:$0xff] %v2604
      %2637 = vst [vmem:[#allocation2 + $0x80] sm:$0xff] %v2605
      %2638 = vst [vmem:[#allocation2 + $0x88] sm:$0xff] %v2606
      %2639 = vst [vmem:[#allocation2 + $0x90] sm:$0xff] %v2607
      %2640 = vst [vmem:[#allocation2 + $0x98] sm:$0xff] %v2608
      %2641 = vst [vmem:[#allocation2 + $0xa0] sm:$0xff] %v2609
      %2642 = vst [vmem:[#allocation2 + $0xa8] sm:$0xff] %v2610
      %2643 = vst [vmem:[#allocation2 + $0xb0] sm:$0xff] %v2611
      %2644 = vst [vmem:[#allocation2 + $0xb8] sm:$0xff] %v2612
      %2645 = vst [vmem:[#allocation2 + $0xc0] sm:$0xff] %v2613
      %2646 = vst [vmem:[#allocation2 + $0xc8] sm:$0xff] %v2614
      %2647 = vst [vmem:[#allocation2 + $0xd0] sm:$0xff] %v2615
      %2648 = vst [vmem:[#allocation2 + $0xd8] sm:$0xff] %v2616
      %2649 = vst [vmem:[#allocation2 + $0xe0] sm:$0xff] %v2617
      %2650 = vst [vmem:[#allocation2 + $0xe8] sm:$0xff] %v2618
      %2651 = vst [vmem:[#allocation2 + $0xf0] sm:$0xff] %v2619
      %2652 = vst [vmem:[#allocation2 + $0xf8] sm:$0xff] %v2620
      %s2653 = scalar_lea.vmem %s1, 12
      %v2654 = vld [vmem:[%s2653] sm:$0x3]
      %v2657 = vunpack.c.l.b16 %v251
      %v2658 = vunpack.c.l.b16 %v252
      %v2659 = vpack.c.b16 %v2658, %v2657
      %v2661 = vsel %vm335, %v2659, 0
      %v2664 = vsel %vm384, %v2654, 0
      %2666 = vmatprep.subr.bf16.mxu0 0
      %2667 = vmatpush1.bf16.msra.mxu0 %v2664
      %2668 = vmatprep.subr.bf16.mxu0 0
      %2669 = vmatpush1.bf16.msra.mxu0 0
      %2670 = vmatprep.subr.bf16.mxu0 0
      %2671 = vmatpush1.bf16.msra.mxu0 0
      %2672 = vmatprep.subr.bf16.mxu0 0
      %2673 = vmatpush1.bf16.msra.mxu0 0
      %2674 = vmatprep.subr.bf16.mxu0 0
      %2675 = vmatpush1.bf16.msra.mxu0 0
      %2676 = vmatprep.subr.bf16.mxu0 0
      %2677 = vmatpush1.bf16.msra.mxu0 0
      %2678 = vmatprep.subr.bf16.mxu0 0
      %2679 = vmatpush1.bf16.msra.mxu0 0
      %2680 = vmatprep.subr.bf16.mxu0 0
      %2681 = vmatpush1.bf16.msra.mxu0 0
      %2682 = vmatprep.subr.bf16.mxu0 0
      %2683 = vmatpush1.bf16.msra.mxu0 0
      %2684 = vmatprep.subr.bf16.mxu0 0
      %2685 = vmatpush1.bf16.msra.mxu0 0
      %2686 = vmatprep.subr.bf16.mxu0 0
      %2687 = vmatpush1.bf16.msra.mxu0 0
      %2688 = vmatprep.subr.bf16.mxu0 0
      %2689 = vmatpush1.bf16.msra.mxu0 0
      %2690 = vmatprep.subr.bf16.mxu0 0
      %2691 = vmatpush1.bf16.msra.mxu0 0
      %2692 = vmatprep.subr.bf16.mxu0 0
      %2693 = vmatpush1.bf16.msra.mxu0 0
      %2694 = vmatprep.subr.bf16.mxu0 0
      %2695 = vmatpush1.bf16.msra.mxu0 0
      %2696 = vmatprep.subr.bf16.mxu0 0
      %2697 = vmatpush1.bf16.msra.mxu0 0
      %2698 = vmatprep.mubr.bf16.mxu0 0
      %2699 = vmatmul.mubr.bf16.gmra.mrb[0].mxu0 %v343
      %v2700 = vpop.f32.mrb[0].mxu0
      %v2701 = vadd.f32 0.0, %v2700
      %v2702 = vpop.f32.mrb[0].mxu0
      %v2703 = vpop.f32.mrb[0].mxu0
      %v2704 = vadd.f32 0.0, %v2703
      %v2705 = vpop.f32.mrb[0].mxu0
      %2706 = vmatprep.mubr.bf16.mxu0 0
      %2707 = vmatmul.mubr.bf16.gmra.mrb[0].mxu0 %v346
      %v2708 = vpop.f32.mrb[0].mxu0
      %v2709 = vadd.f32 0.0, %v2708
      %v2710 = vpop.f32.mrb[0].mxu0
      %v2711 = vpop.f32.mrb[0].mxu0
      %v2712 = vadd.f32 0.0, %v2711
      %v2713 = vpop.f32.mrb[0].mxu0
      %2714 = vmatprep.mubr.bf16.mxu0 0
      %2715 = vmatmul.mubr.bf16.gmra.mrb[0].mxu0 %v349
      %v2716 = vpop.f32.mrb[0].mxu0
      %v2717 = vadd.f32 0.0, %v2716
      %v2718 = vpop.f32.mrb[0].mxu0
      %v2719 = vpop.f32.mrb[0].mxu0
      %v2720 = vadd.f32 0.0, %v2719
      %v2721 = vpop.f32.mrb[0].mxu0
      %2722 = vmatprep.mubr.bf16.mxu0 0
      %2723 = vmatmul.mubr.bf16.gmra.mrb[0].mxu0 %v352
      %v2724 = vpop.f32.mrb[0].mxu0
      %v2725 = vadd.f32 0.0, %v2724
      %v2726 = vpop.f32.mrb[0].mxu0
      %v2727 = vpop.f32.mrb[0].mxu0
      %v2728 = vadd.f32 0.0, %v2727
      %v2729 = vpop.f32.mrb[0].mxu0
      %2730 = vmatprep.mubr.bf16.mxu0 0
      %2731 = vmatmul.mubr.bf16.gmra.mrb[0].mxu0 %v355
      %v2732 = vpop.f32.mrb[0].mxu0
      %v2733 = vadd.f32 0.0, %v2732
      %v2734 = vpop.f32.mrb[0].mxu0
      %v2735 = vpop.f32.mrb[0].mxu0
      %v2736 = vadd.f32 0.0, %v2735
      %v2737 = vpop.f32.mrb[0].mxu0
      %2738 = vmatprep.mubr.bf16.mxu0 0
      %2739 = vmatmul.mubr.bf16.gmra.mrb[0].mxu0 %v358
      %v2740 = vpop.f32.mrb[0].mxu0
      %v2741 = vadd.f32 0.0, %v2740
      %v2742 = vpop.f32.mrb[0].mxu0
      %v2743 = vpop.f32.mrb[0].mxu0
      %v2744 = vadd.f32 0.0, %v2743
      %v2745 = vpop.f32.mrb[0].mxu0
      %2746 = vmatprep.mubr.bf16.mxu0 0
      %2747 = vmatmul.mubr.bf16.gmra.mrb[0].mxu0 %v361
      %v2748 = vpop.f32.mrb[0].mxu0
      %v2749 = vadd.f32 0.0, %v2748
      %v2750 = vpop.f32.mrb[0].mxu0
      %v2751 = vpop.f32.mrb[0].mxu0
      %v2752 = vadd.f32 0.0, %v2751
      %v2753 = vpop.f32.mrb[0].mxu0
      %2754 = vmatprep.mubr.bf16.mxu0 0
      %2755 = vmatmul.mubr.bf16.gmra.mrb[0].mxu0 %v364
      %v2756 = vpop.f32.mrb[0].mxu0
      %v2757 = vadd.f32 0.0, %v2756
      %v2758 = vpop.f32.mrb[0].mxu0
      %v2759 = vpop.f32.mrb[0].mxu0
      %v2760 = vadd.f32 0.0, %v2759
      %v2761 = vpop.f32.mrb[0].mxu0
      %2762 = vmatprep.mubr.bf16.mxu0 0
      %2763 = vmatmul.mubr.bf16.gmra.mrb[0].mxu0 %v367
      %v2764 = vpop.f32.mrb[0].mxu0
      %v2765 = vadd.f32 0.0, %v2764
      %v2766 = vpop.f32.mrb[0].mxu0
      %v2767 = vpop.f32.mrb[0].mxu0
      %v2768 = vadd.f32 0.0, %v2767
      %v2769 = vpop.f32.mrb[0].mxu0
      %2770 = vmatprep.mubr.bf16.mxu0 0
      %2771 = vmatmul.mubr.bf16.gmra.mrb[0].mxu0 %v370
      %v2772 = vpop.f32.mrb[0].mxu0
      %v2773 = vadd.f32 0.0, %v2772
      %v2774 = vpop.f32.mrb[0].mxu0
      %v2775 = vpop.f32.mrb[0].mxu0
      %v2776 = vadd.f32 0.0, %v2775
      %v2777 = vpop.f32.mrb[0].mxu0
      %2778 = vmatprep.mubr.bf16.mxu0 0
      %2779 = vmatmul.mubr.bf16.gmra.mrb[0].mxu0 %v373
      %v2780 = vpop.f32.mrb[0].mxu0
      %v2781 = vadd.f32 0.0, %v2780
      %v2782 = vpop.f32.mrb[0].mxu0
      %v2783 = vpop.f32.mrb[0].mxu0
      %v2784 = vadd.f32 0.0, %v2783
      %v2785 = vpop.f32.mrb[0].mxu0
      %2786 = vmatprep.mubr.bf16.mxu0 0
      %2787 = vmatmul.mubr.bf16.gmra.mrb[0].mxu0 %v376
      %v2788 = vpop.f32.mrb[0].mxu0
      %v2789 = vadd.f32 0.0, %v2788
      %v2790 = vpop.f32.mrb[0].mxu0
      %v2791 = vpop.f32.mrb[0].mxu0
      %v2792 = vadd.f32 0.0, %v2791
      %v2793 = vpop.f32.mrb[0].mxu0
      %2794 = vmatprep.mubr.bf16.mxu0 0
      %2795 = vmatmul.mubr.bf16.gmra.mrb[0].mxu0 %v379
      %v2796 = vpop.f32.mrb[0].mxu0
      %v2797 = vadd.f32 0.0, %v2796
      %v2798 = vpop.f32.mrb[0].mxu0
      %v2799 = vpop.f32.mrb[0].mxu0
      %v2800 = vadd.f32 0.0, %v2799
      %v2801 = vpop.f32.mrb[0].mxu0
      %2802 = vmatprep.mubr.bf16.mxu0 0
      %2803 = vmatmul.mubr.bf16.gmra.mrb[0].mxu0 %v382
      %v2804 = vpop.f32.mrb[0].mxu0
      %v2805 = vadd.f32 0.0, %v2804
      %v2806 = vpop.f32.mrb[0].mxu0
      %v2807 = vpop.f32.mrb[0].mxu0
      %v2808 = vadd.f32 0.0, %v2807
      %v2809 = vpop.f32.mrb[0].mxu0
      %2810 = vmatprep.mubr.bf16.mxu0 0
      %2811 = vmatmul.mubr.bf16.gmra.mrb[0].mxu0 %v1823
      %v2812 = vpop.f32.mrb[0].mxu0
      %v2813 = vadd.f32 0.0, %v2812
      %v2814 = vpop.f32.mrb[0].mxu0
      %v2815 = vpop.f32.mrb[0].mxu0
      %v2816 = vadd.f32 0.0, %v2815
      %v2817 = vpop.f32.mrb[0].mxu0
      %2818 = vmatprep.mubr.bf16.mxu0 0
      %2819 = vmatmul.mubr.bf16.gmra.mrb[0].mxu0 %v2661
      %v2820 = vpop.f32.mrb[0].mxu0
      %v2821 = vadd.f32 0.0, %v2820
      %v2822 = vpop.f32.mrb[0].mxu0
      %v2823 = vpop.f32.mrb[0].mxu0
      %v2824 = vadd.f32 0.0, %v2823
      %v2825 = vpop.f32.mrb[0].mxu0
      %2826 = vdwg.mxu0
      %v2827 = vld [vmem:[#allocation2] sm:$0xff]
      %v2828 = vld [vmem:[#allocation2 + $0x8] sm:$0xff]
      %v2829 = vld [vmem:[#allocation2 + $0x10] sm:$0xff]
      %v2830 = vld [vmem:[#allocation2 + $0x18] sm:$0xff]
      %v2831 = vld [vmem:[#allocation2 + $0x20] sm:$0xff]
      %v2832 = vld [vmem:[#allocation2 + $0x28] sm:$0xff]
      %v2833 = vld [vmem:[#allocation2 + $0x30] sm:$0xff]
      %v2834 = vld [vmem:[#allocation2 + $0x38] sm:$0xff]
      %v2835 = vld [vmem:[#allocation2 + $0x40] sm:$0xff]
      %v2836 = vld [vmem:[#allocation2 + $0x48] sm:$0xff]
      %v2837 = vld [vmem:[#allocation2 + $0x50] sm:$0xff]
      %v2838 = vld [vmem:[#allocation2 + $0x58] sm:$0xff]
      %v2839 = vld [vmem:[#allocation2 + $0x60] sm:$0xff]
      %v2840 = vld [vmem:[#allocation2 + $0x68] sm:$0xff]
      %v2841 = vld [vmem:[#allocation2 + $0x70] sm:$0xff]
      %v2842 = vld [vmem:[#allocation2 + $0x78] sm:$0xff]
      %v2843 = vld [vmem:[#allocation2 + $0x80] sm:$0xff]
      %v2844 = vld [vmem:[#allocation2 + $0x88] sm:$0xff]
      %v2845 = vld [vmem:[#allocation2 + $0x90] sm:$0xff]
      %v2846 = vld [vmem:[#allocation2 + $0x98] sm:$0xff]
      %v2847 = vld [vmem:[#allocation2 + $0xa0] sm:$0xff]
      %v2848 = vld [vmem:[#allocation2 + $0xa8] sm:$0xff]
      %v2849 = vld [vmem:[#allocation2 + $0xb0] sm:$0xff]
      %v2850 = vld [vmem:[#allocation2 + $0xb8] sm:$0xff]
      %v2851 = vld [vmem:[#allocation2 + $0xc0] sm:$0xff]
      %v2852 = vld [vmem:[#allocation2 + $0xc8] sm:$0xff]
      %v2853 = vld [vmem:[#allocation2 + $0xd0] sm:$0xff]
      %v2854 = vld [vmem:[#allocation2 + $0xd8] sm:$0xff]
      %v2855 = vld [vmem:[#allocation2 + $0xe0] sm:$0xff]
      %v2856 = vld [vmem:[#allocation2 + $0xe8] sm:$0xff]
      %v2857 = vld [vmem:[#allocation2 + $0xf0] sm:$0xff]
      %v2858 = vld [vmem:[#allocation2 + $0xf8] sm:$0xff]
      %v2859 = vadd.f32 %v2827, %v2701
      %v2860 = vadd.f32 %v2828, %v2704
      %v2861 = vadd.f32 %v2829, %v2709
      %v2862 = vadd.f32 %v2830, %v2712
      %v2863 = vadd.f32 %v2831, %v2717
      %v2864 = vadd.f32 %v2832, %v2720
      %v2865 = vadd.f32 %v2833, %v2725
      %v2866 = vadd.f32 %v2834, %v2728
      %v2867 = vadd.f32 %v2835, %v2733
      %v2868 = vadd.f32 %v2836, %v2736
      %v2869 = vadd.f32 %v2837, %v2741
      %v2870 = vadd.f32 %v2838, %v2744
      %v2871 = vadd.f32 %v2839, %v2749
      %v2872 = vadd.f32 %v2840, %v2752
      %v2873 = vadd.f32 %v2841, %v2757
      %v2874 = vadd.f32 %v2842, %v2760
      %v2875 = vadd.f32 %v2843, %v2765
      %v2876 = vadd.f32 %v2844, %v2768
      %v2877 = vadd.f32 %v2845, %v2773
      %v2878 = vadd.f32 %v2846, %v2776
      %v2879 = vadd.f32 %v2847, %v2781
      %v2880 = vadd.f32 %v2848, %v2784
      %v2881 = vadd.f32 %v2849, %v2789
      %v2882 = vadd.f32 %v2850, %v2792
      %v2883 = vadd.f32 %v2851, %v2797
      %v2884 = vadd.f32 %v2852, %v2800
      %v2885 = vadd.f32 %v2853, %v2805
      %v2886 = vadd.f32 %v2854, %v2808
      %v2887 = vadd.f32 %v2855, %v2813
      %v2888 = vadd.f32 %v2856, %v2816
      %v2889 = vadd.f32 %v2857, %v2821
      %v2890 = vadd.f32 %v2858, %v2824
      %2891 = vst [vmem:[#allocation2] sm:$0xff] %v2859
      %2892 = vst [vmem:[#allocation2 + $0x8] sm:$0xff] %v2860
      %2893 = vst [vmem:[#allocation2 + $0x10] sm:$0xff] %v2861
      %2894 = vst [vmem:[#allocation2 + $0x18] sm:$0xff] %v2862
      %2895 = vst [vmem:[#allocation2 + $0x20] sm:$0xff] %v2863
      %2896 = vst [vmem:[#allocation2 + $0x28] sm:$0xff] %v2864
      %2897 = vst [vmem:[#allocation2 + $0x30] sm:$0xff] %v2865
      %2898 = vst [vmem:[#allocation2 + $0x38] sm:$0xff] %v2866
      %2899 = vst [vmem:[#allocation2 + $0x40] sm:$0xff] %v2867
      %2900 = vst [vmem:[#allocation2 + $0x48] sm:$0xff] %v2868
      %2901 = vst [vmem:[#allocation2 + $0x50] sm:$0xff] %v2869
      %2902 = vst [vmem:[#allocation2 + $0x58] sm:$0xff] %v2870
      %2903 = vst [vmem:[#allocation2 + $0x60] sm:$0xff] %v2871
      %2904 = vst [vmem:[#allocation2 + $0x68] sm:$0xff] %v2872
      %2905 = vst [vmem:[#allocation2 + $0x70] sm:$0xff] %v2873
      %2906 = vst [vmem:[#allocation2 + $0x78] sm:$0xff] %v2874
      %2907 = vst [vmem:[#allocation2 + $0x80] sm:$0xff] %v2875
      %2908 = vst [vmem:[#allocation2 + $0x88] sm:$0xff] %v2876
      %2909 = vst [vmem:[#allocation2 + $0x90] sm:$0xff] %v2877
      %2910 = vst [vmem:[#allocation2 + $0x98] sm:$0xff] %v2878
      %2911 = vst [vmem:[#allocation2 + $0xa0] sm:$0xff] %v2879
      %2912 = vst [vmem:[#allocation2 + $0xa8] sm:$0xff] %v2880
      %2913 = vst [vmem:[#allocation2 + $0xb0] sm:$0xff] %v2881
      %2914 = vst [vmem:[#allocation2 + $0xb8] sm:$0xff] %v2882
      %2915 = vst [vmem:[#allocation2 + $0xc0] sm:$0xff] %v2883
      %2916 = vst [vmem:[#allocation2 + $0xc8] sm:$0xff] %v2884
      %2917 = vst [vmem:[#allocation2 + $0xd0] sm:$0xff] %v2885
      %2918 = vst [vmem:[#allocation2 + $0xd8] sm:$0xff] %v2886
      %2919 = vst [vmem:[#allocation2 + $0xe0] sm:$0xff] %v2887
      %2920 = vst [vmem:[#allocation2 + $0xe8] sm:$0xff] %v2888
      %2921 = vst [vmem:[#allocation2 + $0xf0] sm:$0xff] %v2889
      %2922 = vst [vmem:[#allocation2 + $0xf8] sm:$0xff] %v2890
      %v2924 = vshrl.u32 %v251, 16
      %v2926 = vrot.slane %v2924, 4
      %v2927 = vshll.u32 %v251, 16
      %v2929 = vrot.slane %v2927, 5
      %v2930 = vor.u32 %v2926, %v2929
      %v2931 = vrot.slane %v2930, 4
      %v2933 = vshll.u32 %v252, 16
      %v2935 = vrot.slane %v2933, 5
      %v2936 = vsel %vm583, %v2931, %v2935
      %v2937 = vshrl.u32 %v252, 16
      %v2939 = vrot.slane %v2937, 4
      %v2940 = vor.u32 %v2939, %v2935
      %v2941 = vrot.slane %v2940, 4
      %v2943 = vshll.u32 %v253, 16
      %v2945 = vrot.slane %v2943, 5
      %v2946 = vsel %vm583, %v2941, %v2945
      %s2947 = scalar_lea.vmem %s1, 14
      %v2948 = vld [vmem:[%s2947] sm:$0x3]
      %v2949 = vunpack.c.l.b16 %v2936
      %v2950 = vunpack.c.l.b16 %v2946
      %v2951 = vpack.c.b16 %v2950, %v2949
      %v2953 = vsel %vm335, %v2951, 0
      %v2956 = vsel %vm384, %v2948, 0
      %2958 = vmatprep.subr.bf16.mxu0 0
      %2959 = vmatpush1.bf16.msra.mxu0 %v2956
      %2960 = vmatprep.subr.bf16.mxu0 0
      %2961 = vmatpush1.bf16.msra.mxu0 0
      %2962 = vmatprep.subr.bf16.mxu0 0
      %2963 = vmatpush1.bf16.msra.mxu0 0
      %2964 = vmatprep.subr.bf16.mxu0 0
      %2965 = vmatpush1.bf16.msra.mxu0 0
      %2966 = vmatprep.subr.bf16.mxu0 0
      %2967 = vmatpush1.bf16.msra.mxu0 0
      %2968 = vmatprep.subr.bf16.mxu0 0
      %2969 = vmatpush1.bf16.msra.mxu0 0
      %2970 = vmatprep.subr.bf16.mxu0 0
      %2971 = vmatpush1.bf16.msra.mxu0 0
      %2972 = vmatprep.subr.bf16.mxu0 0
      %2973 = vmatpush1.bf16.msra.mxu0 0
      %2974 = vmatprep.subr.bf16.mxu0 0
      %2975 = vmatpush1.bf16.msra.mxu0 0
      %2976 = vmatprep.subr.bf16.mxu0 0
      %2977 = vmatpush1.bf16.msra.mxu0 0
      %2978 = vmatprep.subr.bf16.mxu0 0
      %2979 = vmatpush1.bf16.msra.mxu0 0
      %2980 = vmatprep.subr.bf16.mxu0 0
      %2981 = vmatpush1.bf16.msra.mxu0 0
      %2982 = vmatprep.subr.bf16.mxu0 0
      %2983 = vmatpush1.bf16.msra.mxu0 0
      %2984 = vmatprep.subr.bf16.mxu0 0
      %2985 = vmatpush1.bf16.msra.mxu0 0
      %2986 = vmatprep.subr.bf16.mxu0 0
      %2987 = vmatpush1.bf16.msra.mxu0 0
      %2988 = vmatprep.subr.bf16.mxu0 0
      %2989 = vmatpush1.bf16.msra.mxu0 0
      %2990 = vmatprep.mubr.bf16.mxu0 0
      %2991 = vmatmul.mubr.bf16.gmra.mrb[0].mxu0 %v1025
      %v2992 = vpop.f32.mrb[0].mxu0
      %v2993 = vadd.f32 0.0, %v2992
      %v2994 = vpop.f32.mrb[0].mxu0
      %v2995 = vpop.f32.mrb[0].mxu0
      %v2996 = vadd.f32 0.0, %v2995
      %v2997 = vpop.f32.mrb[0].mxu0
      %2998 = vmatprep.mubr.bf16.mxu0 0
      %2999 = vmatmul.mubr.bf16.gmra.mrb[0].mxu0 %v1028
      %v3000 = vpop.f32.mrb[0].mxu0
      %v3001 = vadd.f32 0.0, %v3000
      %v3002 = vpop.f32.mrb[0].mxu0
      %v3003 = vpop.f32.mrb[0].mxu0
      %v3004 = vadd.f32 0.0, %v3003
      %v3005 = vpop.f32.mrb[0].mxu0
      %3006 = vmatprep.mubr.bf16.mxu0 0
      %3007 = vmatmul.mubr.bf16.gmra.mrb[0].mxu0 %v1031
      %v3008 = vpop.f32.mrb[0].mxu0
      %v3009 = vadd.f32 0.0, %v3008
      %v3010 = vpop.f32.mrb[0].mxu0
      %v3011 = vpop.f32.mrb[0].mxu0
      %v3012 = vadd.f32 0.0, %v3011
      %v3013 = vpop.f32.mrb[0].mxu0
      %3014 = vmatprep.mubr.bf16.mxu0 0
      %3015 = vmatmul.mubr.bf16.gmra.mrb[0].mxu0 %v1034
      %v3016 = vpop.f32.mrb[0].mxu0
      %v3017 = vadd.f32 0.0, %v3016
      %v3018 = vpop.f32.mrb[0].mxu0
      %v3019 = vpop.f32.mrb[0].mxu0
      %v3020 = vadd.f32 0.0, %v3019
      %v3021 = vpop.f32.mrb[0].mxu0
      %3022 = vmatprep.mubr.bf16.mxu0 0
      %3023 = vmatmul.mubr.bf16.gmra.mrb[0].mxu0 %v1037
      %v3024 = vpop.f32.mrb[0].mxu0
      %v3025 = vadd.f32 0.0, %v3024
      %v3026 = vpop.f32.mrb[0].mxu0
      %v3027 = vpop.f32.mrb[0].mxu0
      %v3028 = vadd.f32 0.0, %v3027
      %v3029 = vpop.f32.mrb[0].mxu0
      %3030 = vmatprep.mubr.bf16.mxu0 0
      %3031 = vmatmul.mubr.bf16.gmra.mrb[0].mxu0 %v1040
      %v3032 = vpop.f32.mrb[0].mxu0
      %v3033 = vadd.f32 0.0, %v3032
      %v3034 = vpop.f32.mrb[0].mxu0
      %v3035 = vpop.f32.mrb[0].mxu0
      %v3036 = vadd.f32 0.0, %v3035
      %v3037 = vpop.f32.mrb[0].mxu0
      %3038 = vmatprep.mubr.bf16.mxu0 0
      %3039 = vmatmul.mubr.bf16.gmra.mrb[0].mxu0 %v1043
      %v3040 = vpop.f32.mrb[0].mxu0
      %v3041 = vadd.f32 0.0, %v3040
      %v3042 = vpop.f32.mrb[0].mxu0
      %v3043 = vpop.f32.mrb[0].mxu0
      %v3044 = vadd.f32 0.0, %v3043
      %v3045 = vpop.f32.mrb[0].mxu0
      %3046 = vmatprep.mubr.bf16.mxu0 0
      %3047 = vmatmul.mubr.bf16.gmra.mrb[0].mxu0 %v1046
      %v3048 = vpop.f32.mrb[0].mxu0
      %v3049 = vadd.f32 0.0, %v3048
      %v3050 = vpop.f32.mrb[0].mxu0
      %v3051 = vpop.f32.mrb[0].mxu0
      %v3052 = vadd.f32 0.0, %v3051
      %v3053 = vpop.f32.mrb[0].mxu0
      %3054 = vmatprep.mubr.bf16.mxu0 0
      %3055 = vmatmul.mubr.bf16.gmra.mrb[0].mxu0 %v1049
      %v3056 = vpop.f32.mrb[0].mxu0
      %v3057 = vadd.f32 0.0, %v3056
      %v3058 = vpop.f32.mrb[0].mxu0
      %v3059 = vpop.f32.mrb[0].mxu0
      %v3060 = vadd.f32 0.0, %v3059
      %v3061 = vpop.f32.mrb[0].mxu0
      %3062 = vmatprep.mubr.bf16.mxu0 0
      %3063 = vmatmul.mubr.bf16.gmra.mrb[0].mxu0 %v1052
      %v3064 = vpop.f32.mrb[0].mxu0
      %v3065 = vadd.f32 0.0, %v3064
      %v3066 = vpop.f32.mrb[0].mxu0
      %v3067 = vpop.f32.mrb[0].mxu0
      %v3068 = vadd.f32 0.0, %v3067
      %v3069 = vpop.f32.mrb[0].mxu0
      %3070 = vmatprep.mubr.bf16.mxu0 0
      %3071 = vmatmul.mubr.bf16.gmra.mrb[0].mxu0 %v1055
      %v3072 = vpop.f32.mrb[0].mxu0
      %v3073 = vadd.f32 0.0, %v3072
      %v3074 = vpop.f32.mrb[0].mxu0
      %v3075 = vpop.f32.mrb[0].mxu0
      %v3076 = vadd.f32 0.0, %v3075
      %v3077 = vpop.f32.mrb[0].mxu0
      %3078 = vmatprep.mubr.bf16.mxu0 0
      %3079 = vmatmul.mubr.bf16.gmra.mrb[0].mxu0 %v1058
      %v3080 = vpop.f32.mrb[0].mxu0
      %v3081 = vadd.f32 0.0, %v3080
      %v3082 = vpop.f32.mrb[0].mxu0
      %v3083 = vpop.f32.mrb[0].mxu0
      %v3084 = vadd.f32 0.0, %v3083
      %v3085 = vpop.f32.mrb[0].mxu0
      %3086 = vmatprep.mubr.bf16.mxu0 0
      %3087 = vmatmul.mubr.bf16.gmra.mrb[0].mxu0 %v1061
      %v3088 = vpop.f32.mrb[0].mxu0
      %v3089 = vadd.f32 0.0, %v3088
      %v3090 = vpop.f32.mrb[0].mxu0
      %v3091 = vpop.f32.mrb[0].mxu0
      %v3092 = vadd.f32 0.0, %v3091
      %v3093 = vpop.f32.mrb[0].mxu0
      %3094 = vmatprep.mubr.bf16.mxu0 0
      %3095 = vmatmul.mubr.bf16.gmra.mrb[0].mxu0 %v1064
      %v3096 = vpop.f32.mrb[0].mxu0
      %v3097 = vadd.f32 0.0, %v3096
      %v3098 = vpop.f32.mrb[0].mxu0
      %v3099 = vpop.f32.mrb[0].mxu0
      %v3100 = vadd.f32 0.0, %v3099
      %v3101 = vpop.f32.mrb[0].mxu0
      %3102 = vmatprep.mubr.bf16.mxu0 0
      %3103 = vmatmul.mubr.bf16.gmra.mrb[0].mxu0 %v2115
      %v3104 = vpop.f32.mrb[0].mxu0
      %v3105 = vadd.f32 0.0, %v3104
      %v3106 = vpop.f32.mrb[0].mxu0
      %v3107 = vpop.f32.mrb[0].mxu0
      %v3108 = vadd.f32 0.0, %v3107
      %v3109 = vpop.f32.mrb[0].mxu0
      %3110 = vmatprep.mubr.bf16.mxu0 0
      %3111 = vmatmul.mubr.bf16.gmra.mrb[0].mxu0 %v2953
      %v3112 = vpop.f32.mrb[0].mxu0
      %v3113 = vadd.f32 0.0, %v3112
      %v3114 = vpop.f32.mrb[0].mxu0
      %v3115 = vpop.f32.mrb[0].mxu0
      %v3116 = vadd.f32 0.0, %v3115
      %v3117 = vpop.f32.mrb[0].mxu0
      %3118 = vdwg.mxu0
      %v3119 = vld [vmem:[#allocation2] sm:$0xff]
      %v3120 = vld [vmem:[#allocation2 + $0x8] sm:$0xff]
      %v3121 = vld [vmem:[#allocation2 + $0x10] sm:$0xff]
      %v3122 = vld [vmem:[#allocation2 + $0x18] sm:$0xff]
      %v3123 = vld [vmem:[#allocation2 + $0x20] sm:$0xff]
      %v3124 = vld [vmem:[#allocation2 + $0x28] sm:$0xff]
      %v3125 = vld [vmem:[#allocation2 + $0x30] sm:$0xff]
      %v3126 = vld [vmem:[#allocation2 + $0x38] sm:$0xff]
      %v3127 = vld [vmem:[#allocation2 + $0x40] sm:$0xff]
      %v3128 = vld [vmem:[#allocation2 + $0x48] sm:$0xff]
      %v3129 = vld [vmem:[#allocation2 + $0x50] sm:$0xff]
      %v3130 = vld [vmem:[#allocation2 + $0x58] sm:$0xff]
      %v3131 = vld [vmem:[#allocation2 + $0x60] sm:$0xff]
      %v3132 = vld [vmem:[#allocation2 + $0x68] sm:$0xff]
      %v3133 = vld [vmem:[#allocation2 + $0x70] sm:$0xff]
      %v3134 = vld [vmem:[#allocation2 + $0x78] sm:$0xff]
      %v3135 = vld [vmem:[#allocation2 + $0x80] sm:$0xff]
      %v3136 = vld [vmem:[#allocation2 + $0x88] sm:$0xff]
      %v3137 = vld [vmem:[#allocation2 + $0x90] sm:$0xff]
      %v3138 = vld [vmem:[#allocation2 + $0x98] sm:$0xff]
      %v3139 = vld [vmem:[#allocation2 + $0xa0] sm:$0xff]
      %v3140 = vld [vmem:[#allocation2 + $0xa8] sm:$0xff]
      %v3141 = vld [vmem:[#allocation2 + $0xb0] sm:$0xff]
      %v3142 = vld [vmem:[#allocation2 + $0xb8] sm:$0xff]
      %v3143 = vld [vmem:[#allocation2 + $0xc0] sm:$0xff]
      %v3144 = vld [vmem:[#allocation2 + $0xc8] sm:$0xff]
      %v3145 = vld [vmem:[#allocation2 + $0xd0] sm:$0xff]
      %v3146 = vld [vmem:[#allocation2 + $0xd8] sm:$0xff]
      %v3147 = vld [vmem:[#allocation2 + $0xe0] sm:$0xff]
      %v3148 = vld [vmem:[#allocation2 + $0xe8] sm:$0xff]
      %v3149 = vld [vmem:[#allocation2 + $0xf0] sm:$0xff]
      %v3150 = vld [vmem:[#allocation2 + $0xf8] sm:$0xff]
      %v3151 = vadd.f32 %v3119, %v2993
      %v3152 = vadd.f32 %v3120, %v2996
      %v3153 = vadd.f32 %v3121, %v3001
      %v3154 = vadd.f32 %v3122, %v3004
      %v3155 = vadd.f32 %v3123, %v3009
      %v3156 = vadd.f32 %v3124, %v3012
      %v3157 = vadd.f32 %v3125, %v3017
      %v3158 = vadd.f32 %v3126, %v3020
      %v3159 = vadd.f32 %v3127, %v3025
      %v3160 = vadd.f32 %v3128, %v3028
      %v3161 = vadd.f32 %v3129, %v3033
      %v3162 = vadd.f32 %v3130, %v3036
      %v3163 = vadd.f32 %v3131, %v3041
      %v3164 = vadd.f32 %v3132, %v3044
      %v3165 = vadd.f32 %v3133, %v3049
      %v3166 = vadd.f32 %v3134, %v3052
      %v3167 = vadd.f32 %v3135, %v3057
      %v3168 = vadd.f32 %v3136, %v3060
      %v3169 = vadd.f32 %v3137, %v3065
      %v3170 = vadd.f32 %v3138, %v3068
      %v3171 = vadd.f32 %v3139, %v3073
      %v3172 = vadd.f32 %v3140, %v3076
      %v3173 = vadd.f32 %v3141, %v3081
      %v3174 = vadd.f32 %v3142, %v3084
      %v3175 = vadd.f32 %v3143, %v3089
      %v3176 = vadd.f32 %v3144, %v3092
      %v3177 = vadd.f32 %v3145, %v3097
      %v3178 = vadd.f32 %v3146, %v3100
      %v3179 = vadd.f32 %v3147, %v3105
      %v3180 = vadd.f32 %v3148, %v3108
      %v3181 = vadd.f32 %v3149, %v3113
      %v3182 = vadd.f32 %v3150, %v3116
      %3183 = vst [vmem:[#allocation2] sm:$0xff] %v3151
      %3184 = vst [vmem:[#allocation2 + $0x8] sm:$0xff] %v3152
      %3185 = vst [vmem:[#allocation2 + $0x10] sm:$0xff] %v3153
      %3186 = vst [vmem:[#allocation2 + $0x18] sm:$0xff] %v3154
      %3187 = vst [vmem:[#allocation2 + $0x20] sm:$0xff] %v3155
      %3188 = vst [vmem:[#allocation2 + $0x28] sm:$0xff] %v3156
      %3189 = vst [vmem:[#allocation2 + $0x30] sm:$0xff] %v3157
      %3190 = vst [vmem:[#allocation2 + $0x38] sm:$0xff] %v3158
      %3191 = vst [vmem:[#allocation2 + $0x40] sm:$0xff] %v3159
      %3192 = vst [vmem:[#allocation2 + $0x48] sm:$0xff] %v3160
      %3193 = vst [vmem:[#allocation2 + $0x50] sm:$0xff] %v3161
      %3194 = vst [vmem:[#allocation2 + $0x58] sm:$0xff] %v3162
      %3195 = vst [vmem:[#allocation2 + $0x60] sm:$0xff] %v3163
      %3196 = vst [vmem:[#allocation2 + $0x68] sm:$0xff] %v3164
      %3197 = vst [vmem:[#allocation2 + $0x70] sm:$0xff] %v3165
      %3198 = vst [vmem:[#allocation2 + $0x78] sm:$0xff] %v3166
      %3199 = vst [vmem:[#allocation2 + $0x80] sm:$0xff] %v3167
      %3200 = vst [vmem:[#allocation2 + $0x88] sm:$0xff] %v3168
      %3201 = vst [vmem:[#allocation2 + $0x90] sm:$0xff] %v3169
      %3202 = vst [vmem:[#allocation2 + $0x98] sm:$0xff] %v3170
      %3203 = vst [vmem:[#allocation2 + $0xa0] sm:$0xff] %v3171
      %3204 = vst [vmem:[#allocation2 + $0xa8] sm:$0xff] %v3172
      %3205 = vst [vmem:[#allocation2 + $0xb0] sm:$0xff] %v3173
      %3206 = vst [vmem:[#allocation2 + $0xb8] sm:$0xff] %v3174
      %3207 = vst [vmem:[#allocation2 + $0xc0] sm:$0xff] %v3175
      %3208 = vst [vmem:[#allocation2 + $0xc8] sm:$0xff] %v3176
      %3209 = vst [vmem:[#allocation2 + $0xd0] sm:$0xff] %v3177
      %3210 = vst [vmem:[#allocation2 + $0xd8] sm:$0xff] %v3178
      %3211 = vst [vmem:[#allocation2 + $0xe0] sm:$0xff] %v3179
      %3212 = vst [vmem:[#allocation2 + $0xe8] sm:$0xff] %v3180
      %3213 = vst [vmem:[#allocation2 + $0xf0] sm:$0xff] %v3181
      %3214 = vst [vmem:[#allocation2 + $0xf8] sm:$0xff] %v3182
      %v3216 = vrot.slane %v251, 5
      %v3217 = vrot.slane %v3216, 4
      %v3218 = vrot.slane %v252, 5
      %v3219 = vsel %vm1344, %v3217, %v3218
      %v3220 = vrot.slane %v3218, 4
      %v3221 = vrot.slane %v253, 5
      %v3222 = vsel %vm1344, %v3220, %v3221
      %s3223 = scalar_lea.vmem %s1, 16
      %v3224 = vld [vmem:[%s3223] sm:$0x3]
      %v3225 = vunpack.c.l.b16 %v3219
      %v3226 = vunpack.c.l.b16 %v3222
      %v3227 = vpack.c.b16 %v3226, %v3225
      %v3229 = vsel %vm335, %v3227, 0
      %v3232 = vsel %vm384, %v3224, 0
      %3234 = vmatprep.subr.bf16.mxu0 0
      %3235 = vmatpush1.bf16.msra.mxu0 %v3232
      %3236 = vmatprep.subr.bf16.mxu0 0
      %3237 = vmatpush1.bf16.msra.mxu0 0
      %3238 = vmatprep.subr.bf16.mxu0 0
      %3239 = vmatpush1.bf16.msra.mxu0 0
      %3240 = vmatprep.subr.bf16.mxu0 0
      %3241 = vmatpush1.bf16.msra.mxu0 0
      %3242 = vmatprep.subr.bf16.mxu0 0
      %3243 = vmatpush1.bf16.msra.mxu0 0
      %3244 = vmatprep.subr.bf16.mxu0 0
      %3245 = vmatpush1.bf16.msra.mxu0 0
      %3246 = vmatprep.subr.bf16.mxu0 0
      %3247 = vmatpush1.bf16.msra.mxu0 0
      %3248 = vmatprep.subr.bf16.mxu0 0
      %3249 = vmatpush1.bf16.msra.mxu0 0
      %3250 = vmatprep.subr.bf16.mxu0 0
      %3251 = vmatpush1.bf16.msra.mxu0 0
      %3252 = vmatprep.subr.bf16.mxu0 0
      %3253 = vmatpush1.bf16.msra.mxu0 0
      %3254 = vmatprep.subr.bf16.mxu0 0
      %3255 = vmatpush1.bf16.msra.mxu0 0
      %3256 = vmatprep.subr.bf16.mxu0 0
      %3257 = vmatpush1.bf16.msra.mxu0 0
      %3258 = vmatprep.subr.bf16.mxu0 0
      %3259 = vmatpush1.bf16.msra.mxu0 0
      %3260 = vmatprep.subr.bf16.mxu0 0
      %3261 = vmatpush1.bf16.msra.mxu0 0
      %3262 = vmatprep.subr.bf16.mxu0 0
      %3263 = vmatpush1.bf16.msra.mxu0 0
      %3264 = vmatprep.subr.bf16.mxu0 0
      %3265 = vmatpush1.bf16.msra.mxu0 0
      %3266 = vmatprep.mubr.bf16.mxu0 0
      %3267 = vmatmul.mubr.bf16.gmra.mrb[0].mxu0 %v1514
      %v3268 = vpop.f32.mrb[0].mxu0
      %v3269 = vadd.f32 0.0, %v3268
      %v3270 = vpop.f32.mrb[0].mxu0
      %v3271 = vpop.f32.mrb[0].mxu0
      %v3272 = vadd.f32 0.0, %v3271
      %v3273 = vpop.f32.mrb[0].mxu0
      %3274 = vmatprep.mubr.bf16.mxu0 0
      %3275 = vmatmul.mubr.bf16.gmra.mrb[0].mxu0 %v1517
      %v3276 = vpop.f32.mrb[0].mxu0
      %v3277 = vadd.f32 0.0, %v3276
      %v3278 = vpop.f32.mrb[0].mxu0
      %v3279 = vpop.f32.mrb[0].mxu0
      %v3280 = vadd.f32 0.0, %v3279
      %v3281 = vpop.f32.mrb[0].mxu0
      %3282 = vmatprep.mubr.bf16.mxu0 0
      %3283 = vmatmul.mubr.bf16.gmra.mrb[0].mxu0 %v1520
      %v3284 = vpop.f32.mrb[0].mxu0
      %v3285 = vadd.f32 0.0, %v3284
      %v3286 = vpop.f32.mrb[0].mxu0
      %v3287 = vpop.f32.mrb[0].mxu0
      %v3288 = vadd.f32 0.0, %v3287
      %v3289 = vpop.f32.mrb[0].mxu0
      %3290 = vmatprep.mubr.bf16.mxu0 0
      %3291 = vmatmul.mubr.bf16.gmra.mrb[0].mxu0 %v1523
      %v3292 = vpop.f32.mrb[0].mxu0
      %v3293 = vadd.f32 0.0, %v3292
      %v3294 = vpop.f32.mrb[0].mxu0
      %v3295 = vpop.f32.mrb[0].mxu0
      %v3296 = vadd.f32 0.0, %v3295
      %v3297 = vpop.f32.mrb[0].mxu0
      %3298 = vmatprep.mubr.bf16.mxu0 0
      %3299 = vmatmul.mubr.bf16.gmra.mrb[0].mxu0 %v1526
      %v3300 = vpop.f32.mrb[0].mxu0
      %v3301 = vadd.f32 0.0, %v3300
      %v3302 = vpop.f32.mrb[0].mxu0
      %v3303 = vpop.f32.mrb[0].mxu0
      %v3304 = vadd.f32 0.0, %v3303
      %v3305 = vpop.f32.mrb[0].mxu0
      %3306 = vmatprep.mubr.bf16.mxu0 0
      %3307 = vmatmul.mubr.bf16.gmra.mrb[0].mxu0 %v1529
      %v3308 = vpop.f32.mrb[0].mxu0
      %v3309 = vadd.f32 0.0, %v3308
      %v3310 = vpop.f32.mrb[0].mxu0
      %v3311 = vpop.f32.mrb[0].mxu0
      %v3312 = vadd.f32 0.0, %v3311
      %v3313 = vpop.f32.mrb[0].mxu0
      %3314 = vmatprep.mubr.bf16.mxu0 0
      %3315 = vmatmul.mubr.bf16.gmra.mrb[0].mxu0 %v1532
      %v3316 = vpop.f32.mrb[0].mxu0
      %v3317 = vadd.f32 0.0, %v3316
      %v3318 = vpop.f32.mrb[0].mxu0
      %v3319 = vpop.f32.mrb[0].mxu0
      %v3320 = vadd.f32 0.0, %v3319
      %v3321 = vpop.f32.mrb[0].mxu0
      %3322 = vmatprep.mubr.bf16.mxu0 0
      %3323 = vmatmul.mubr.bf16.gmra.mrb[0].mxu0 %v1535
      %v3324 = vpop.f32.mrb[0].mxu0
      %v3325 = vadd.f32 0.0, %v3324
      %v3326 = vpop.f32.mrb[0].mxu0
      %v3327 = vpop.f32.mrb[0].mxu0
      %v3328 = vadd.f32 0.0, %v3327
      %v3329 = vpop.f32.mrb[0].mxu0
      %3330 = vmatprep.mubr.bf16.mxu0 0
      %3331 = vmatmul.mubr.bf16.gmra.mrb[0].mxu0 %v1538
      %v3332 = vpop.f32.mrb[0].mxu0
      %v3333 = vadd.f32 0.0, %v3332
      %v3334 = vpop.f32.mrb[0].mxu0
      %v3335 = vpop.f32.mrb[0].mxu0
      %v3336 = vadd.f32 0.0, %v3335
      %v3337 = vpop.f32.mrb[0].mxu0
      %3338 = vmatprep.mubr.bf16.mxu0 0
      %3339 = vmatmul.mubr.bf16.gmra.mrb[0].mxu0 %v1541
      %v3340 = vpop.f32.mrb[0].mxu0
      %v3341 = vadd.f32 0.0, %v3340
      %v3342 = vpop.f32.mrb[0].mxu0
      %v3343 = vpop.f32.mrb[0].mxu0
      %v3344 = vadd.f32 0.0, %v3343
      %v3345 = vpop.f32.mrb[0].mxu0
      %3346 = vmatprep.mubr.bf16.mxu0 0
      %3347 = vmatmul.mubr.bf16.gmra.mrb[0].mxu0 %v1544
      %v3348 = vpop.f32.mrb[0].mxu0
      %v3349 = vadd.f32 0.0, %v3348
      %v3350 = vpop.f32.mrb[0].mxu0
      %v3351 = vpop.f32.mrb[0].mxu0
      %v3352 = vadd.f32 0.0, %v3351
      %v3353 = vpop.f32.mrb[0].mxu0
      %3354 = vmatprep.mubr.bf16.mxu0 0
      %3355 = vmatmul.mubr.bf16.gmra.mrb[0].mxu0 %v1547
      %v3356 = vpop.f32.mrb[0].mxu0
      %v3357 = vadd.f32 0.0, %v3356
      %v3358 = vpop.f32.mrb[0].mxu0
      %v3359 = vpop.f32.mrb[0].mxu0
      %v3360 = vadd.f32 0.0, %v3359
      %v3361 = vpop.f32.mrb[0].mxu0
      %3362 = vmatprep.mubr.bf16.mxu0 0
      %3363 = vmatmul.mubr.bf16.gmra.mrb[0].mxu0 %v1550
      %v3364 = vpop.f32.mrb[0].mxu0
      %v3365 = vadd.f32 0.0, %v3364
      %v3366 = vpop.f32.mrb[0].mxu0
      %v3367 = vpop.f32.mrb[0].mxu0
      %v3368 = vadd.f32 0.0, %v3367
      %v3369 = vpop.f32.mrb[0].mxu0
      %3370 = vmatprep.mubr.bf16.mxu0 0
      %3371 = vmatmul.mubr.bf16.gmra.mrb[0].mxu0 %v1553
      %v3372 = vpop.f32.mrb[0].mxu0
      %v3373 = vadd.f32 0.0, %v3372
      %v3374 = vpop.f32.mrb[0].mxu0
      %v3375 = vpop.f32.mrb[0].mxu0
      %v3376 = vadd.f32 0.0, %v3375
      %v3377 = vpop.f32.mrb[0].mxu0
      %3378 = vmatprep.mubr.bf16.mxu0 0
      %3379 = vmatmul.mubr.bf16.gmra.mrb[0].mxu0 %v2391
      %v3380 = vpop.f32.mrb[0].mxu0
      %v3381 = vadd.f32 0.0, %v3380
      %v3382 = vpop.f32.mrb[0].mxu0
      %v3383 = vpop.f32.mrb[0].mxu0
      %v3384 = vadd.f32 0.0, %v3383
      %v3385 = vpop.f32.mrb[0].mxu0
      %3386 = vmatprep.mubr.bf16.mxu0 0
      %3387 = vmatmul.mubr.bf16.gmra.mrb[0].mxu0 %v3229
      %v3388 = vpop.f32.mrb[0].mxu0
      %v3389 = vadd.f32 0.0, %v3388
      %v3390 = vpop.f32.mrb[0].mxu0
      %v3391 = vpop.f32.mrb[0].mxu0
      %v3392 = vadd.f32 0.0, %v3391
      %v3393 = vpop.f32.mrb[0].mxu0
      %3394 = vdwg.mxu0
      %v3395 = vld [vmem:[#allocation2] sm:$0xff]
      %v3396 = vld [vmem:[#allocation2 + $0x8] sm:$0xff]
      %v3397 = vld [vmem:[#allocation2 + $0x10] sm:$0xff]
      %v3398 = vld [vmem:[#allocation2 + $0x18] sm:$0xff]
      %v3399 = vld [vmem:[#allocation2 + $0x20] sm:$0xff]
      %v3400 = vld [vmem:[#allocation2 + $0x28] sm:$0xff]
      %v3401 = vld [vmem:[#allocation2 + $0x30] sm:$0xff]
      %v3402 = vld [vmem:[#allocation2 + $0x38] sm:$0xff]
      %v3403 = vld [vmem:[#allocation2 + $0x40] sm:$0xff]
      %v3404 = vld [vmem:[#allocation2 + $0x48] sm:$0xff]
      %v3405 = vld [vmem:[#allocation2 + $0x50] sm:$0xff]
      %v3406 = vld [vmem:[#allocation2 + $0x58] sm:$0xff]
      %v3407 = vld [vmem:[#allocation2 + $0x60] sm:$0xff]
      %v3408 = vld [vmem:[#allocation2 + $0x68] sm:$0xff]
      %v3409 = vld [vmem:[#allocation2 + $0x70] sm:$0xff]
      %v3410 = vld [vmem:[#allocation2 + $0x78] sm:$0xff]
      %v3411 = vld [vmem:[#allocation2 + $0x80] sm:$0xff]
      %v3412 = vld [vmem:[#allocation2 + $0x88] sm:$0xff]
      %v3413 = vld [vmem:[#allocation2 + $0x90] sm:$0xff]
      %v3414 = vld [vmem:[#allocation2 + $0x98] sm:$0xff]
      %v3415 = vld [vmem:[#allocation2 + $0xa0] sm:$0xff]
      %v3416 = vld [vmem:[#allocation2 + $0xa8] sm:$0xff]
      %v3417 = vld [vmem:[#allocation2 + $0xb0] sm:$0xff]
      %v3418 = vld [vmem:[#allocation2 + $0xb8] sm:$0xff]
      %v3419 = vld [vmem:[#allocation2 + $0xc0] sm:$0xff]
      %v3420 = vld [vmem:[#allocation2 + $0xc8] sm:$0xff]
      %v3421 = vld [vmem:[#allocation2 + $0xd0] sm:$0xff]
      %v3422 = vld [vmem:[#allocation2 + $0xd8] sm:$0xff]
      %v3423 = vld [vmem:[#allocation2 + $0xe0] sm:$0xff]
      %v3424 = vld [vmem:[#allocation2 + $0xe8] sm:$0xff]
      %v3425 = vld [vmem:[#allocation2 + $0xf0] sm:$0xff]
      %v3426 = vld [vmem:[#allocation2 + $0xf8] sm:$0xff]
      %v3427 = vadd.f32 %v3395, %v3269
      %v3428 = vadd.f32 %v3396, %v3272
      %v3429 = vadd.f32 %v3397, %v3277
      %v3430 = vadd.f32 %v3398, %v3280
      %v3431 = vadd.f32 %v3399, %v3285
      %v3432 = vadd.f32 %v3400, %v3288
      %v3433 = vadd.f32 %v3401, %v3293
      %v3434 = vadd.f32 %v3402, %v3296
      %v3435 = vadd.f32 %v3403, %v3301
      %v3436 = vadd.f32 %v3404, %v3304
      %v3437 = vadd.f32 %v3405, %v3309
      %v3438 = vadd.f32 %v3406, %v3312
      %v3439 = vadd.f32 %v3407, %v3317
      %v3440 = vadd.f32 %v3408, %v3320
      %v3441 = vadd.f32 %v3409, %v3325
      %v3442 = vadd.f32 %v3410, %v3328
      %v3443 = vadd.f32 %v3411, %v3333
      %v3444 = vadd.f32 %v3412, %v3336
      %v3445 = vadd.f32 %v3413, %v3341
      %v3446 = vadd.f32 %v3414, %v3344
      %v3447 = vadd.f32 %v3415, %v3349
      %v3448 = vadd.f32 %v3416, %v3352
      %v3449 = vadd.f32 %v3417, %v3357
      %v3450 = vadd.f32 %v3418, %v3360
      %v3451 = vadd.f32 %v3419, %v3365
      %v3452 = vadd.f32 %v3420, %v3368
      %v3453 = vadd.f32 %v3421, %v3373
      %v3454 = vadd.f32 %v3422, %v3376
      %v3455 = vadd.f32 %v3423, %v3381
      %v3456 = vadd.f32 %v3424, %v3384
      %v3457 = vadd.f32 %v3425, %v3389
      %v3458 = vadd.f32 %v3426, %v3392
      %3459 = vst [vmem:[#allocation2] sm:$0xff] %v3427
      %3460 = vst [vmem:[#allocation2 + $0x8] sm:$0xff] %v3428
      %3461 = vst [vmem:[#allocation2 + $0x10] sm:$0xff] %v3429
      %3462 = vst [vmem:[#allocation2 + $0x18] sm:$0xff] %v3430
      %3463 = vst [vmem:[#allocation2 + $0x20] sm:$0xff] %v3431
      %3464 = vst [vmem:[#allocation2 + $0x28] sm:$0xff] %v3432
      %3465 = vst [vmem:[#allocation2 + $0x30] sm:$0xff] %v3433
      %3466 = vst [vmem:[#allocation2 + $0x38] sm:$0xff] %v3434
      %3467 = vst [vmem:[#allocation2 + $0x40] sm:$0xff] %v3435
      %3468 = vst [vmem:[#allocation2 + $0x48] sm:$0xff] %v3436
      %3469 = vst [vmem:[#allocation2 + $0x50] sm:$0xff] %v3437
      %3470 = vst [vmem:[#allocation2 + $0x58] sm:$0xff] %v3438
      %3471 = vst [vmem:[#allocation2 + $0x60] sm:$0xff] %v3439
      %3472 = vst [vmem:[#allocation2 + $0x68] sm:$0xff] %v3440
      %3473 = vst [vmem:[#allocation2 + $0x70] sm:$0xff] %v3441
      %3474 = vst [vmem:[#allocation2 + $0x78] sm:$0xff] %v3442
      %3475 = vst [vmem:[#allocation2 + $0x80] sm:$0xff] %v3443
      %3476 = vst [vmem:[#allocation2 + $0x88] sm:$0xff] %v3444
      %3477 = vst [vmem:[#allocation2 + $0x90] sm:$0xff] %v3445
      %3478 = vst [vmem:[#allocation2 + $0x98] sm:$0xff] %v3446
      %3479 = vst [vmem:[#allocation2 + $0xa0] sm:$0xff] %v3447
      %3480 = vst [vmem:[#allocation2 + $0xa8] sm:$0xff] %v3448
      %3481 = vst [vmem:[#allocation2 + $0xb0] sm:$0xff] %v3449
      %3482 = vst [vmem:[#allocation2 + $0xb8] sm:$0xff] %v3450
      %3483 = vst [vmem:[#allocation2 + $0xc0] sm:$0xff] %v3451
      %3484 = vst [vmem:[#allocation2 + $0xc8] sm:$0xff] %v3452
      %3485 = vst [vmem:[#allocation2 + $0xd0] sm:$0xff] %v3453
      %3486 = vst [vmem:[#allocation2 + $0xd8] sm:$0xff] %v3454
      %3487 = vst [vmem:[#allocation2 + $0xe0] sm:$0xff] %v3455
      %3488 = vst [vmem:[#allocation2 + $0xe8] sm:$0xff] %v3456
      %3489 = vst [vmem:[#allocation2 + $0xf0] sm:$0xff] %v3457
      %3490 = vst [vmem:[#allocation2 + $0xf8] sm:$0xff] %v3458
      %v3491 = vld [vmem:[#allocation2] sm:$0xff]
      %v3492 = vld [vmem:[#allocation2 + $0x8] sm:$0xff]
      %v3493 = vld [vmem:[#allocation2 + $0x10] sm:$0xff]
      %v3494 = vld [vmem:[#allocation2 + $0x18] sm:$0xff]
      %v3495 = vld [vmem:[#allocation2 + $0x20] sm:$0xff]
      %v3496 = vld [vmem:[#allocation2 + $0x28] sm:$0xff]
      %v3497 = vld [vmem:[#allocation2 + $0x30] sm:$0xff]
      %v3498 = vld [vmem:[#allocation2 + $0x38] sm:$0xff]
      %v3499 = vld [vmem:[#allocation2 + $0x40] sm:$0xff]
      %v3500 = vld [vmem:[#allocation2 + $0x48] sm:$0xff]
      %v3501 = vld [vmem:[#allocation2 + $0x50] sm:$0xff]
      %v3502 = vld [vmem:[#allocation2 + $0x58] sm:$0xff]
      %v3503 = vld [vmem:[#allocation2 + $0x60] sm:$0xff]
      %v3504 = vld [vmem:[#allocation2 + $0x68] sm:$0xff]
      %v3505 = vld [vmem:[#allocation2 + $0x70] sm:$0xff]
      %v3506 = vld [vmem:[#allocation2 + $0x78] sm:$0xff]
      %v3507 = vld [vmem:[#allocation2 + $0x80] sm:$0xff]
      %v3508 = vld [vmem:[#allocation2 + $0x88] sm:$0xff]
      %v3509 = vld [vmem:[#allocation2 + $0x90] sm:$0xff]
      %v3510 = vld [vmem:[#allocation2 + $0x98] sm:$0xff]
      %v3511 = vld [vmem:[#allocation2 + $0xa0] sm:$0xff]
      %v3512 = vld [vmem:[#allocation2 + $0xa8] sm:$0xff]
      %v3513 = vld [vmem:[#allocation2 + $0xb0] sm:$0xff]
      %v3514 = vld [vmem:[#allocation2 + $0xb8] sm:$0xff]
      %v3515 = vld [vmem:[#allocation2 + $0xc0] sm:$0xff]
      %v3516 = vld [vmem:[#allocation2 + $0xc8] sm:$0xff]
      %v3517 = vld [vmem:[#allocation2 + $0xd0] sm:$0xff]
      %v3518 = vld [vmem:[#allocation2 + $0xd8] sm:$0xff]
      %v3519 = vld [vmem:[#allocation2 + $0xe0] sm:$0xff]
      %v3520 = vld [vmem:[#allocation2 + $0xe8] sm:$0xff]
      %v3521 = vld [vmem:[#allocation2 + $0xf0] sm:$0xff]
      %v3522 = vld [vmem:[#allocation2 + $0xf8] sm:$0xff]
      %v3523 = vld [vmem:[%s2] sm:$0x1]
      %v3525 = vlaneseq
      %v3526 = vshrl.u32 %v3525, 7
      %v3527 = vsub.s32 0, %v3526
      %v3528 = vrot.slane %v3523, %v3527
      %v3530 = vmul.f32 %v3491, %v3528
      %v3531 = vmul.f32 %v3492, %v3528
      %v3532 = vmul.f32 %v3493, %v3528
      %v3533 = vmul.f32 %v3494, %v3528
      %v3534 = vmul.f32 %v3495, %v3528
      %v3535 = vmul.f32 %v3496, %v3528
      %v3536 = vmul.f32 %v3497, %v3528
      %v3537 = vmul.f32 %v3498, %v3528
      %v3538 = vmul.f32 %v3499, %v3528
      %v3539 = vmul.f32 %v3500, %v3528
      %v3540 = vmul.f32 %v3501, %v3528
      %v3541 = vmul.f32 %v3502, %v3528
      %v3542 = vmul.f32 %v3503, %v3528
      %v3543 = vmul.f32 %v3504, %v3528
      %v3544 = vmul.f32 %v3505, %v3528
      %v3545 = vmul.f32 %v3506, %v3528
      %v3546 = vmul.f32 %v3507, %v3528
      %v3547 = vmul.f32 %v3508, %v3528
      %v3548 = vmul.f32 %v3509, %v3528
      %v3549 = vmul.f32 %v3510, %v3528
      %v3550 = vmul.f32 %v3511, %v3528
      %v3551 = vmul.f32 %v3512, %v3528
      %v3552 = vmul.f32 %v3513, %v3528
      %v3553 = vmul.f32 %v3514, %v3528
      %v3554 = vmul.f32 %v3515, %v3528
      %v3555 = vmul.f32 %v3516, %v3528
      %v3556 = vmul.f32 %v3517, %v3528
      %v3557 = vmul.f32 %v3518, %v3528
      %v3558 = vmul.f32 %v3519, %v3528
      %v3559 = vmul.f32 %v3520, %v3528
      %v3560 = vmul.f32 %v3521, %v3528
      %v3561 = vmul.f32 %v3522, %v3528
      %v3562 = vld [vmem:[%s3] sm:$0x1]
      %v3564 = vlaneseq
      %v3565 = vshrl.u32 %v3564, 7
      %v3566 = vsub.s32 0, %v3565
      %v3567 = vrot.slane %v3562, %v3566
      %v3569 = vadd.f32 %v3530, %v3567
      %v3570 = vadd.f32 %v3531, %v3567
      %v3571 = vadd.f32 %v3532, %v3567
      %v3572 = vadd.f32 %v3533, %v3567
      %v3573 = vadd.f32 %v3534, %v3567
      %v3574 = vadd.f32 %v3535, %v3567
      %v3575 = vadd.f32 %v3536, %v3567
      %v3576 = vadd.f32 %v3537, %v3567
      %v3577 = vadd.f32 %v3538, %v3567
      %v3578 = vadd.f32 %v3539, %v3567
      %v3579 = vadd.f32 %v3540, %v3567
      %v3580 = vadd.f32 %v3541, %v3567
      %v3581 = vadd.f32 %v3542, %v3567
      %v3582 = vadd.f32 %v3543, %v3567
      %v3583 = vadd.f32 %v3544, %v3567
      %v3584 = vadd.f32 %v3545, %v3567
      %v3585 = vadd.f32 %v3546, %v3567
      %v3586 = vadd.f32 %v3547, %v3567
      %v3587 = vadd.f32 %v3548, %v3567
      %v3588 = vadd.f32 %v3549, %v3567
      %v3589 = vadd.f32 %v3550, %v3567
      %v3590 = vadd.f32 %v3551, %v3567
      %v3591 = vadd.f32 %v3552, %v3567
      %v3592 = vadd.f32 %v3553, %v3567
      %v3593 = vadd.f32 %v3554, %v3567
      %v3594 = vadd.f32 %v3555, %v3567
      %v3595 = vadd.f32 %v3556, %v3567
      %v3596 = vadd.f32 %v3557, %v3567
      %v3597 = vadd.f32 %v3558, %v3567
      %v3598 = vadd.f32 %v3559, %v3567
      %v3599 = vadd.f32 %v3560, %v3567
      %v3600 = vadd.f32 %v3561, %v3567
      %vm3601 = vcmp.ge.f32.partialorder %v3569, 0.0
      %vm3602 = vcmp.ge.f32.partialorder %v3570, 0.0
      %vm3603 = vcmp.ge.f32.partialorder %v3571, 0.0
      %vm3604 = vcmp.ge.f32.partialorder %v3572, 0.0
      %vm3605 = vcmp.ge.f32.partialorder %v3573, 0.0
      %vm3606 = vcmp.ge.f32.partialorder %v3574, 0.0
      %vm3607 = vcmp.ge.f32.partialorder %v3575, 0.0
      %vm3608 = vcmp.ge.f32.partialorder %v3576, 0.0
      %vm3609 = vcmp.ge.f32.partialorder %v3577, 0.0
      %vm3610 = vcmp.ge.f32.partialorder %v3578, 0.0
      %vm3611 = vcmp.ge.f32.partialorder %v3579, 0.0
      %vm3612 = vcmp.ge.f32.partialorder %v3580, 0.0
      %vm3613 = vcmp.ge.f32.partialorder %v3581, 0.0
      %vm3614 = vcmp.ge.f32.partialorder %v3582, 0.0
      %vm3615 = vcmp.ge.f32.partialorder %v3583, 0.0
      %vm3616 = vcmp.ge.f32.partialorder %v3584, 0.0
      %vm3617 = vcmp.ge.f32.partialorder %v3585, 0.0
      %vm3618 = vcmp.ge.f32.partialorder %v3586, 0.0
      %vm3619 = vcmp.ge.f32.partialorder %v3587, 0.0
      %vm3620 = vcmp.ge.f32.partialorder %v3588, 0.0
      %vm3621 = vcmp.ge.f32.partialorder %v3589, 0.0
      %vm3622 = vcmp.ge.f32.partialorder %v3590, 0.0
      %vm3623 = vcmp.ge.f32.partialorder %v3591, 0.0
      %vm3624 = vcmp.ge.f32.partialorder %v3592, 0.0
      %vm3625 = vcmp.ge.f32.partialorder %v3593, 0.0
      %vm3626 = vcmp.ge.f32.partialorder %v3594, 0.0
      %vm3627 = vcmp.ge.f32.partialorder %v3595, 0.0
      %vm3628 = vcmp.ge.f32.partialorder %v3596, 0.0
      %vm3629 = vcmp.ge.f32.partialorder %v3597, 0.0
      %vm3630 = vcmp.ge.f32.partialorder %v3598, 0.0
      %vm3631 = vcmp.ge.f32.partialorder %v3599, 0.0
      %vm3632 = vcmp.ge.f32.partialorder %v3600, 0.0
      %v3633 = vmul.f32 %v3569, 0.1
      %v3634 = vmul.f32 %v3570, 0.1
      %v3635 = vmul.f32 %v3571, 0.1
      %v3636 = vmul.f32 %v3572, 0.1
      %v3637 = vmul.f32 %v3573, 0.1
      %v3638 = vmul.f32 %v3574, 0.1
      %v3639 = vmul.f32 %v3575, 0.1
      %v3640 = vmul.f32 %v3576, 0.1
      %v3641 = vmul.f32 %v3577, 0.1
      %v3642 = vmul.f32 %v3578, 0.1
      %v3643 = vmul.f32 %v3579, 0.1
      %v3644 = vmul.f32 %v3580, 0.1
      %v3645 = vmul.f32 %v3581, 0.1
      %v3646 = vmul.f32 %v3582, 0.1
      %v3647 = vmul.f32 %v3583, 0.1
      %v3648 = vmul.f32 %v3584, 0.1
      %v3649 = vmul.f32 %v3585, 0.1
      %v3650 = vmul.f32 %v3586, 0.1
      %v3651 = vmul.f32 %v3587, 0.1
      %v3652 = vmul.f32 %v3588, 0.1
      %v3653 = vmul.f32 %v3589, 0.1
      %v3654 = vmul.f32 %v3590, 0.1
      %v3655 = vmul.f32 %v3591, 0.1
      %v3656 = vmul.f32 %v3592, 0.1
      %v3657 = vmul.f32 %v3593, 0.1
      %v3658 = vmul.f32 %v3594, 0.1
      %v3659 = vmul.f32 %v3595, 0.1
      %v3660 = vmul.f32 %v3596, 0.1
      %v3661 = vmul.f32 %v3597, 0.1
      %v3662 = vmul.f32 %v3598, 0.1
      %v3663 = vmul.f32 %v3599, 0.1
      %v3664 = vmul.f32 %v3600, 0.1
      %v3665 = vsel %vm3601, %v3569, %v3633
      %v3666 = vsel %vm3602, %v3570, %v3634
      %v3667 = vsel %vm3603, %v3571, %v3635
      %v3668 = vsel %vm3604, %v3572, %v3636
      %v3669 = vsel %vm3605, %v3573, %v3637
      %v3670 = vsel %vm3606, %v3574, %v3638
      %v3671 = vsel %vm3607, %v3575, %v3639
      %v3672 = vsel %vm3608, %v3576, %v3640
      %v3673 = vsel %vm3609, %v3577, %v3641
      %v3674 = vsel %vm3610, %v3578, %v3642
      %v3675 = vsel %vm3611, %v3579, %v3643
      %v3676 = vsel %vm3612, %v3580, %v3644
      %v3677 = vsel %vm3613, %v3581, %v3645
      %v3678 = vsel %vm3614, %v3582, %v3646
      %v3679 = vsel %vm3615, %v3583, %v3647
      %v3680 = vsel %vm3616, %v3584, %v3648
      %v3681 = vsel %vm3617, %v3585, %v3649
      %v3682 = vsel %vm3618, %v3586, %v3650
      %v3683 = vsel %vm3619, %v3587, %v3651
      %v3684 = vsel %vm3620, %v3588, %v3652
      %v3685 = vsel %vm3621, %v3589, %v3653
      %v3686 = vsel %vm3622, %v3590, %v3654
      %v3687 = vsel %vm3623, %v3591, %v3655
      %v3688 = vsel %vm3624, %v3592, %v3656
      %v3689 = vsel %vm3625, %v3593, %v3657
      %v3690 = vsel %vm3626, %v3594, %v3658
      %v3691 = vsel %vm3627, %v3595, %v3659
      %v3692 = vsel %vm3628, %v3596, %v3660
      %v3693 = vsel %vm3629, %v3597, %v3661
      %v3694 = vsel %vm3630, %v3598, %v3662
      %v3695 = vsel %vm3631, %v3599, %v3663
      %v3696 = vsel %vm3632, %v3600, %v3664
      %vm3697 = vcmask 64512
      %3698 = vst.msk [vmem:[%s197] sm:$0xff] %vm3697, %v3665
      %3699 = vst.msk [vmem:[%s197 + $0x8] sm:$0xff] %vm3697, %v3666
      %3700 = vst.msk [vmem:[%s197 + $0x10] sm:$0xff] %vm3697, %v3667
      %3701 = vst.msk [vmem:[%s197 + $0x18] sm:$0xff] %vm3697, %v3668
      %3702 = vst.msk [vmem:[%s197 + $0x20] sm:$0xff] %vm3697, %v3669
      %3703 = vst.msk [vmem:[%s197 + $0x28] sm:$0xff] %vm3697, %v3670
      %3704 = vst.msk [vmem:[%s197 + $0x30] sm:$0xff] %vm3697, %v3671
      %3705 = vst.msk [vmem:[%s197 + $0x38] sm:$0xff] %vm3697, %v3672
      %3706 = vst.msk [vmem:[%s197 + $0x40] sm:$0xff] %vm3697, %v3673
      %3707 = vst.msk [vmem:[%s197 + $0x48] sm:$0xff] %vm3697, %v3674
      %3708 = vst.msk [vmem:[%s197 + $0x50] sm:$0xff] %vm3697, %v3675
      %3709 = vst.msk [vmem:[%s197 + $0x58] sm:$0xff] %vm3697, %v3676
      %3710 = vst.msk [vmem:[%s197 + $0x60] sm:$0xff] %vm3697, %v3677
      %3711 = vst.msk [vmem:[%s197 + $0x68] sm:$0xff] %vm3697, %v3678
      %3712 = vst.msk [vmem:[%s197 + $0x70] sm:$0xff] %vm3697, %v3679
      %3713 = vst.msk [vmem:[%s197 + $0x78] sm:$0xff] %vm3697, %v3680
      %3714 = vst.msk [vmem:[%s197 + $0x80] sm:$0xff] %vm3697, %v3681
      %3715 = vst.msk [vmem:[%s197 + $0x88] sm:$0xff] %vm3697, %v3682
      %3716 = vst.msk [vmem:[%s197 + $0x90] sm:$0xff] %vm3697, %v3683
      %3717 = vst.msk [vmem:[%s197 + $0x98] sm:$0xff] %vm3697, %v3684
      %3718 = vst.msk [vmem:[%s197 + $0xa0] sm:$0xff] %vm3697, %v3685
      %3719 = vst.msk [vmem:[%s197 + $0xa8] sm:$0xff] %vm3697, %v3686
      %3720 = vst.msk [vmem:[%s197 + $0xb0] sm:$0xff] %vm3697, %v3687
      %3721 = vst.msk [vmem:[%s197 + $0xb8] sm:$0xff] %vm3697, %v3688
      %3722 = vst.msk [vmem:[%s197 + $0xc0] sm:$0xff] %vm3697, %v3689
      %3723 = vst.msk [vmem:[%s197 + $0xc8] sm:$0xff] %vm3697, %v3690
      %3724 = vst.msk [vmem:[%s197 + $0xd0] sm:$0xff] %vm3697, %v3691
      %3725 = vst.msk [vmem:[%s197 + $0xd8] sm:$0xff] %vm3697, %v3692
      %3726 = vst.msk [vmem:[%s197 + $0xe0] sm:$0xff] %vm3697, %v3693
      %3727 = vst.msk [vmem:[%s197 + $0xe8] sm:$0xff] %vm3697, %v3694
      %3728 = vst.msk [vmem:[%s197 + $0xf0] sm:$0xff] %vm3697, %v3695
      %3729 = vst.msk [vmem:[%s197 + $0xf8] sm:$0xff] %vm3697, %v3696
      %s3730 = smul.u32 32, %s15
      %p3731 = scmp.lt.s32.totalorder %s3730, 63
      %s3732 = scalar_select %p3731, %s3730, 63
      %s3733 = smul.addr %s3732, 8
      %s3734 = scalar_lea.vmem %s4, %s3733
      // Predicated region
      $region37: #{conv_bn_leaky_relu.3} parent=35 // pred_check
        %p3735 = pneg %p122
      $region38: #{conv_bn_leaky_relu.3} parent=35 // pred_check_branch
        %3737 = sbr.rel (%p3735) target = $region40
      $region39: #{conv_bn_leaky_relu.3} parent=35 // pred_region
        %s3738 = smul.u32 32, %s15
      $region40: #{conv_bn_leaky_relu.3} parent=35 // pred_fallthru
        _
    $region36: #{conv_bn_leaky_relu.3} parent=5 // pred_fallthru
      _
    %p3739 = scmp.le.s32.totalorder 2, %s10
    // Predicated region
    $region41: #{conv_bn_leaky_relu.3} parent=5 // pred_check
      %p3740 = pneg %p3739
    $region42: #{conv_bn_leaky_relu.3} parent=5 // pred_check_branch
      %3742 = sbr.rel (%p3740) target = $region44
    $region43: #{conv_bn_leaky_relu.3} parent=5 // pred_region
      %s3743 = ssub.s32 %s10, 2
      // Predicated region
      $region45: #{conv_bn_leaky_relu.3} parent=43 // pred_check
        %p3744 = pneg %p128
      $region46: #{conv_bn_leaky_relu.3} parent=43 // pred_check_branch
        %3746 = sbr.rel (%p3744) target = $region48
      $region47: #{conv_bn_leaky_relu.3} parent=43 // pred_region
        %s3747 = smul.u32 32, %s16
        %p3748 = scmp.lt.s32.totalorder %s3747, 63
        %s3749 = scalar_select %p3748, %s3747, 63
        %s3750 = smul.addr %s3749, 8
        %s3751 = scalar_lea.vmem %s4, %s3750
      $region48: #{conv_bn_leaky_relu.3} parent=43 // pred_fallthru
        _
    $region44: #{conv_bn_leaky_relu.3} parent=5 // pred_fallthru
      _
  $region6: #{conv_bn_leaky_relu.3} parent=0 // loop_footer
    %s14 = sadd.s32 1, %s10
  $region7: #{conv_bn_leaky_relu.3} parent=0 // loop_footer_branch
    %9 = sbr.rel target = $region3
  $region8: #{conv_bn_leaky_relu.3} parent=0 // loop_exit
    _

// kernel: conv_bn_leaky_relu.2
$region0: #{conv_bn_leaky_relu.2}
  #allocation0 [shape = 'u32[]', space=smem, size = 0x4, offset = 0x4, fixed_abs, tag = 'smem constant byte address 0x4 - core index']
  #allocation1 [shape = 'u32[144,128]{1,0:T(1,128)}', space=vmem, size = 0x12000, scoped, tag = 'internal scratch']
  #allocation2 [shape = 'f32[256,128]{1,0:T(8,128)}', space=vmem, size = 0x20000, scoped, tag = 'scratch operand']
  %s0 = inlined_call_operand.vmem [shape: bf16[2,18,18,4], index: 0, kind: input, shape index: {}]
  %s1 = inlined_call_operand.vmem [shape: bf16[9,4,128], index: 1, kind: input, shape index: {}]
  %s2 = inlined_call_operand.vmem [shape: f32[256,1], index: 2, kind: input, shape index: {}]
  %s3 = inlined_call_operand.vmem [shape: f32[2,2,8], index: 3, kind: output, shape index: {}]
  %s4 = sld [smem:[#allocation0]]
  $region45: #{conv_bn_leaky_relu.2} parent=0
    _
  %s6 = ssub.s32 1, %s4
  %s7 = scalar_select 0, %s6, %s4
  loop: start=0, step=1, limit=4
  $region2: #{conv_bn_leaky_relu.2} parent=0 // loop_pre_header
    _
  $region3: #{conv_bn_leaky_relu.2} parent=0 // loop_header
    %s9 = sphi 0, %s13
    %p10 = scmp.ge.s32.totalorder %s9, 4
    %s19 = sphi 0, %s21
    %s22 = sphi 0, %s19
    %s23 = sphi 0, %s22
    %s39 = sphi 0, %s23
    %s43 = sphi 0, %s43
    %s45 = sphi 0, %s43
    %s46 = sphi 0, %s45
    %s60 = sphi 0, %s46
    %s64 = sphi 0, %s64
    %s66 = sphi 0, %s64
    %s67 = sphi 0, %s66
    %s81 = sphi 0, %s67
    %s87 = sphi 0, %s89
    %s90 = sphi 0, %s87
    %s91 = sphi 0, %s90
    %s107 = sphi 0, %s91
  $region4: #{conv_bn_leaky_relu.2} parent=0 // loop_header_branch
    %12 = sbr.rel (%p10) target = $region8
  $region5: #{conv_bn_leaky_relu.2} parent=0 // loop_body
    %s14 = ssub.s32 %s9, 1
    %s15 = ssub.s32 %s9, 2
    %s16 = sadd.s32 %s9, 1
    %s17 = ssub.s32 %s9, %s16
    %p18 = scmp.eq.s32.totalorder %s17, 0
    %s20 = sadd.s32 %s19, 1
    %s21 = scalar_select %p18, %s19, %s20
    %p24 = pneg %p18
    %p25 = scmp.eq.s32.totalorder %s9, 1
    %p26 = por %p24, %p25
    %p27 = scmp.ne.s32.totalorder %s19, %s22
    %p28 = scmp.eq.s32.totalorder %s9, 0
    %p29 = por %p27, %p28
    %p30 = scmp.ne.s32.totalorder %s19, %s22
    %p31 = scmp.eq.s32.totalorder %s14, 1
    %p32 = por %p30, %p31
    %p33 = scmp.ne.s32.totalorder %s22, %s23
    %p34 = scmp.eq.s32.totalorder %s14, 0
    %p35 = por %p33, %p34
    %p36 = scmp.ne.s32.totalorder %s22, %s23
    %p37 = scmp.eq.s32.totalorder %s15, 1
    %p38 = por %p36, %p37
    %p40 = scmp.ne.s32.totalorder %s23, %s39
    %p41 = scmp.eq.s32.totalorder %s15, 0
    %p42 = por %p40, %p41
    %s44 = sadd.s32 %s43, 1
    %p47 = scmp.eq.s32.totalorder %s9, 1
    %p48 = scmp.ne.s32.totalorder %s43, %s45
    %p49 = scmp.eq.s32.totalorder %s9, 0
    %p50 = por %p48, %p49
    %p51 = scmp.ne.s32.totalorder %s43, %s45
    %p52 = scmp.eq.s32.totalorder %s14, 1
    %p53 = por %p51, %p52
    %p54 = scmp.ne.s32.totalorder %s45, %s46
    %p55 = scmp.eq.s32.totalorder %s14, 0
    %p56 = por %p54, %p55
    %p57 = scmp.ne.s32.totalorder %s45, %s46
    %p58 = scmp.eq.s32.totalorder %s15, 1
    %p59 = por %p57, %p58
    %p61 = scmp.ne.s32.totalorder %s46, %s60
    %p62 = scmp.eq.s32.totalorder %s15, 0
    %p63 = por %p61, %p62
    %s65 = sadd.s32 %s64, 1
    %p68 = scmp.eq.s32.totalorder %s9, 1
    %p69 = scmp.ne.s32.totalorder %s64, %s66
    %p70 = scmp.eq.s32.totalorder %s9, 0
    %p71 = por %p69, %p70
    %p72 = scmp.ne.s32.totalorder %s64, %s66
    %p73 = scmp.eq.s32.totalorder %s14, 1
    %p74 = por %p72, %p73
    %p75 = scmp.ne.s32.totalorder %s66, %s67
    %p76 = scmp.eq.s32.totalorder %s14, 0
    %p77 = por %p75, %p76
    %p78 = scmp.ne.s32.totalorder %s66, %s67
    %p79 = scmp.eq.s32.totalorder %s15, 1
    %p80 = por %p78, %p79
    %p82 = scmp.ne.s32.totalorder %s67, %s81
    %p83 = scmp.eq.s32.totalorder %s15, 0
    %p84 = por %p82, %p83
    %s85 = ssub.s32 %s9, %s16
    %p86 = scmp.eq.s32.totalorder %s85, 0
    %s88 = sadd.s32 %s87, 1
    %s89 = scalar_select %p86, %s87, %s88
    %p92 = pneg %p86
    %p93 = scmp.eq.s32.totalorder %s9, 1
    %p94 = por %p92, %p93
    %p95 = scmp.ne.s32.totalorder %s87, %s90
    %p96 = scmp.eq.s32.totalorder %s9, 0
    %p97 = por %p95, %p96
    %p98 = scmp.ne.s32.totalorder %s87, %s90
    %p99 = scmp.eq.s32.totalorder %s14, 1
    %p100 = por %p98, %p99
    %p101 = scmp.ne.s32.totalorder %s90, %s91
    %p102 = scmp.eq.s32.totalorder %s14, 0
    %p103 = por %p101, %p102
    %p104 = scmp.ne.s32.totalorder %s90, %s91
    %p105 = scmp.eq.s32.totalorder %s15, 1
    %p106 = por %p104, %p105
    %p108 = scmp.ne.s32.totalorder %s91, %s107
    %p109 = scmp.eq.s32.totalorder %s15, 0
    %p110 = por %p108, %p109
    %p111 = scmp.le.s32.totalorder 1, %s9
    %p112 = scmp.lt.s32.totalorder %s9, 3
    %p113 = pnand %p111, %p112
    %p114 = pneg %p113
    // Predicated region
    $region9: #{conv_bn_leaky_relu.2} parent=5 // pred_check
      _
    $region10: #{conv_bn_leaky_relu.2} parent=5 // pred_check_branch
      %116 = sbr.rel (%p113) target = $region12
    $region11: #{conv_bn_leaky_relu.2} parent=5 // pred_region
      %s117 = ssub.s32 %s9, 1
      // Predicated region
      $region13: #{conv_bn_leaky_relu.2} parent=11 // pred_check
        %p118 = pneg %p56
      $region14: #{conv_bn_leaky_relu.2} parent=11 // pred_check_branch
        %120 = sbr.rel (%p118) target = $region16
      $region15: #{conv_bn_leaky_relu.2} parent=11 // pred_region
        _
      $region16: #{conv_bn_leaky_relu.2} parent=11 // pred_fallthru
        _
      // Predicated region
      $region17: #{conv_bn_leaky_relu.2} parent=11 // pred_check
        %p121 = pneg %p77
      $region18: #{conv_bn_leaky_relu.2} parent=11 // pred_check_branch
        %123 = sbr.rel (%p121) target = $region20
      $region19: #{conv_bn_leaky_relu.2} parent=11 // pred_region
        _
      $region20: #{conv_bn_leaky_relu.2} parent=11 // pred_fallthru
        _
    $region12: #{conv_bn_leaky_relu.2} parent=5 // pred_fallthru
      _
    %p124 = scmp.lt.s32.totalorder %s9, 2
    // Predicated region
    $region21: #{conv_bn_leaky_relu.2} parent=5 // pred_check
      %p125 = pneg %p124
    $region22: #{conv_bn_leaky_relu.2} parent=5 // pred_check_branch
      %127 = sbr.rel (%p125) target = $region24
    $region23: #{conv_bn_leaky_relu.2} parent=5 // pred_region
      // Predicated region
      $region25: #{conv_bn_leaky_relu.2} parent=23 // pred_check
        %p128 = pneg %p29
      $region26: #{conv_bn_leaky_relu.2} parent=23 // pred_check_branch
        %130 = sbr.rel (%p128) target = $region28
      $region27: #{conv_bn_leaky_relu.2} parent=23 // pred_region
        %p131 = scmp.lt.s32.totalorder %s9, 1
        %s132 = scalar_select %p131, %s9, 1
        %s133 = smul.addr %s132, 54
        %s134 = smul.addr %s133, 4
        %s135 = scalar_lea.vmem %s0, %s134
      $region28: #{conv_bn_leaky_relu.2} parent=23 // pred_fallthru
        _
    $region24: #{conv_bn_leaky_relu.2} parent=5 // pred_fallthru
      _
    %p136 = scmp.le.s32.totalorder 1, %s9
    %p137 = scmp.lt.s32.totalorder %s9, 3
    %p138 = pnand %p136, %p137
    %p139 = pneg %p138
    // Predicated region
    $region29: #{conv_bn_leaky_relu.2} parent=5 // pred_check
      _
    $region30: #{conv_bn_leaky_relu.2} parent=5 // pred_check_branch
      %141 = sbr.rel (%p138) target = $region32
    $region31: #{conv_bn_leaky_relu.2} parent=5 // pred_region
      %s142 = ssub.s32 %s9, 1
      %p143 = scmp.lt.s32.totalorder %s14, 1
      %s144 = scalar_select %p143, %s14, 1
      %s145 = smul.addr %s144, 54
      %s146 = smul.addr %s145, 4
      %s147 = scalar_lea.vmem %s0, %s146
      %p148 = pneg %p35
      %p149 = pneg %p32
      %p150 = pneg %p56
      %p151 = pneg %p53
      %p152 = pneg %p77
      %p153 = pneg %p74
      %p154 = pneg %p103
      %p155 = pneg %p100
      %p156 = scmp.lt.s32.totalorder %s14, 1
      %s157 = scalar_select %p156, %s14, 1
      %s158 = smul.addr %s157, 2
      %s159 = scalar_lea.vmem %s3, %s158
      %p160 = scmp.lt.s32.totalorder %s14, 1
      %s161 = scalar_select %p160, %s14, 1
      %s162 = smul.addr %s161, 54
      %s163 = smul.addr %s162, 4
      %s164 = scalar_lea.vmem %s0, %s163
      %p165 = scmp.lt.s32.totalorder %s14, 1
      %s166 = scalar_select %p165, %s14, 1
      %s167 = smul.addr %s166, 2
      %s168 = scalar_lea.vmem %s3, %s167
      %v170 = vld [vmem:[%s164] sm:$0xf]
      %v171 = vld [vmem:[%s164 + $0x4] sm:$0xf]
      %v172 = vld [vmem:[%s164 + $0x8] sm:$0x1]
      %v173 = vld [vmem:[%s164 + $0xc] sm:$0xf]
      %v174 = vld [vmem:[%s164 + $0x10] sm:$0xf]
      %v175 = vld [vmem:[%s164 + $0x14] sm:$0x1]
      %v176 = vld [vmem:[%s164 + $0x18] sm:$0xf]
      %v177 = vld [vmem:[%s164 + $0x1c] sm:$0xf]
      %v178 = vld [vmem:[%s164 + $0x20] sm:$0x1]
      %v179 = vld [vmem:[%s164 + $0x24] sm:$0xf]
      %v180 = vld [vmem:[%s164 + $0x28] sm:$0xf]
      %v181 = vld [vmem:[%s164 + $0x2c] sm:$0x1]
      %v182 = vld [vmem:[%s164 + $0x30] sm:$0xf]
      %v183 = vld [vmem:[%s164 + $0x34] sm:$0xf]
      %v184 = vld [vmem:[%s164 + $0x38] sm:$0x1]
      %v185 = vld [vmem:[%s164 + $0x3c] sm:$0xf]
      %v186 = vld [vmem:[%s164 + $0x40] sm:$0xf]
      %v187 = vld [vmem:[%s164 + $0x44] sm:$0x1]
      %v188 = vld [vmem:[%s164 + $0x48] sm:$0xf]
      %v189 = vld [vmem:[%s164 + $0x4c] sm:$0xf]
      %v190 = vld [vmem:[%s164 + $0x50] sm:$0x1]
      %v191 = vld [vmem:[%s164 + $0x54] sm:$0xf]
      %v192 = vld [vmem:[%s164 + $0x58] sm:$0xf]
      %v193 = vld [vmem:[%s164 + $0x5c] sm:$0x1]
      %v194 = vld [vmem:[%s164 + $0x60] sm:$0xf]
      %v195 = vld [vmem:[%s164 + $0x64] sm:$0xf]
      %v196 = vld [vmem:[%s164 + $0x68] sm:$0x1]
      %v197 = vld [vmem:[%s164 + $0x6c] sm:$0xf]
      %v198 = vld [vmem:[%s164 + $0x70] sm:$0xf]
      %v199 = vld [vmem:[%s164 + $0x74] sm:$0x1]
      %v200 = vld [vmem:[%s164 + $0x78] sm:$0xf]
      %v201 = vld [vmem:[%s164 + $0x7c] sm:$0xf]
      %v202 = vld [vmem:[%s164 + $0x80] sm:$0x1]
      %v203 = vld [vmem:[%s164 + $0x84] sm:$0xf]
      %v204 = vld [vmem:[%s164 + $0x88] sm:$0xf]
      %v205 = vld [vmem:[%s164 + $0x8c] sm:$0x1]
      %v206 = vld [vmem:[%s164 + $0x90] sm:$0xf]
      %v207 = vld [vmem:[%s164 + $0x94] sm:$0xf]
      %v208 = vld [vmem:[%s164 + $0x98] sm:$0x1]
      %v209 = vld [vmem:[%s164 + $0x9c] sm:$0xf]
      %v210 = vld [vmem:[%s164 + $0xa0] sm:$0xf]
      %v211 = vld [vmem:[%s164 + $0xa4] sm:$0x1]
      %v212 = vld [vmem:[%s164 + $0xa8] sm:$0xf]
      %v213 = vld [vmem:[%s164 + $0xac] sm:$0xf]
      %v214 = vld [vmem:[%s164 + $0xb0] sm:$0x1]
      %v215 = vld [vmem:[%s164 + $0xb4] sm:$0xf]
      %v216 = vld [vmem:[%s164 + $0xb8] sm:$0xf]
      %v217 = vld [vmem:[%s164 + $0xbc] sm:$0x1]
      %v218 = vld [vmem:[%s164 + $0xc0] sm:$0xf]
      %v219 = vld [vmem:[%s164 + $0xc4] sm:$0xf]
      %v220 = vld [vmem:[%s164 + $0xc8] sm:$0x1]
      %v221 = vld [vmem:[%s164 + $0xcc] sm:$0xf]
      %v222 = vld [vmem:[%s164 + $0xd0] sm:$0xf]
      %v223 = vld [vmem:[%s164 + $0xd4] sm:$0x1]
      %v224 = vld [vmem:[%s1] sm:$0x3]
      %v257 = vunpack.c.l.b16 %v170
      %v258 = vunpack.c.l.b16 %v171
      %v259 = vunpack.c.l.b16 %v173
      %v260 = vunpack.c.l.b16 %v174
      %v261 = vunpack.c.l.b16 %v176
      %v262 = vunpack.c.l.b16 %v177
      %v263 = vunpack.c.l.b16 %v179
      %v264 = vunpack.c.l.b16 %v180
      %v265 = vunpack.c.l.b16 %v182
      %v266 = vunpack.c.l.b16 %v183
      %v267 = vunpack.c.l.b16 %v185
      %v268 = vunpack.c.l.b16 %v186
      %v269 = vunpack.c.l.b16 %v188
      %v270 = vunpack.c.l.b16 %v189
      %v271 = vunpack.c.l.b16 %v191
      %v272 = vunpack.c.l.b16 %v192
      %v273 = vunpack.c.l.b16 %v194
      %v274 = vunpack.c.l.b16 %v195
      %v275 = vunpack.c.l.b16 %v197
      %v276 = vunpack.c.l.b16 %v198
      %v277 = vunpack.c.l.b16 %v200
      %v278 = vunpack.c.l.b16 %v201
      %v279 = vunpack.c.l.b16 %v203
      %v280 = vunpack.c.l.b16 %v204
      %v281 = vunpack.c.l.b16 %v206
      %v282 = vunpack.c.l.b16 %v207
      %v283 = vunpack.c.l.b16 %v209
      %v284 = vunpack.c.l.b16 %v210
      %v285 = vunpack.c.l.b16 %v212
      %v286 = vunpack.c.l.b16 %v213
      %v287 = vunpack.c.l.b16 %v215
      %v288 = vunpack.c.l.b16 %v216
      %v289 = vpack.c.b16 %v258, %v257
      %v290 = vpack.c.b16 %v260, %v259
      %v291 = vpack.c.b16 %v262, %v261
      %v292 = vpack.c.b16 %v264, %v263
      %v293 = vpack.c.b16 %v266, %v265
      %v294 = vpack.c.b16 %v268, %v267
      %v295 = vpack.c.b16 %v270, %v269
      %v296 = vpack.c.b16 %v272, %v271
      %v297 = vpack.c.b16 %v274, %v273
      %v298 = vpack.c.b16 %v276, %v275
      %v299 = vpack.c.b16 %v278, %v277
      %v300 = vpack.c.b16 %v280, %v279
      %v301 = vpack.c.b16 %v282, %v281
      %v302 = vpack.c.b16 %v284, %v283
      %v303 = vpack.c.b16 %v286, %v285
      %v304 = vpack.c.b16 %v288, %v287
      %vm305 = vcmask 31744
      %v307 = vsel %vm305, %v289, 0
      %v310 = vsel %vm305, %v290, 0
      %v313 = vsel %vm305, %v291, 0
      %v316 = vsel %vm305, %v292, 0
      %v319 = vsel %vm305, %v293, 0
      %v322 = vsel %vm305, %v294, 0
      %v325 = vsel %vm305, %v295, 0
      %v328 = vsel %vm305, %v296, 0
      %v331 = vsel %vm305, %v297, 0
      %v334 = vsel %vm305, %v298, 0
      %v337 = vsel %vm305, %v299, 0
      %v340 = vsel %vm305, %v300, 0
      %v343 = vsel %vm305, %v301, 0
      %v346 = vsel %vm305, %v302, 0
      %v349 = vsel %vm305, %v303, 0
      %v352 = vsel %vm305, %v304, 0
      %vm354 = vcmask 1041408
      %v356 = vsel %vm354, %v224, 0
      %358 = vmatprep.subr.bf16.mxu0 0
      %359 = vmatpush1.bf16.msra.mxu0 %v356
      %360 = vmatprep.subr.bf16.mxu0 0
      %361 = vmatpush1.bf16.msra.mxu0 0
      %362 = vmatprep.subr.bf16.mxu0 0
      %363 = vmatpush1.bf16.msra.mxu0 0
      %364 = vmatprep.subr.bf16.mxu0 0
      %365 = vmatpush1.bf16.msra.mxu0 0
      %366 = vmatprep.subr.bf16.mxu0 0
      %367 = vmatpush1.bf16.msra.mxu0 0
      %368 = vmatprep.subr.bf16.mxu0 0
      %369 = vmatpush1.bf16.msra.mxu0 0
      %370 = vmatprep.subr.bf16.mxu0 0
      %371 = vmatpush1.bf16.msra.mxu0 0
      %372 = vmatprep.subr.bf16.mxu0 0
      %373 = vmatpush1.bf16.msra.mxu0 0
      %374 = vmatprep.subr.bf16.mxu0 0
      %375 = vmatpush1.bf16.msra.mxu0 0
      %376 = vmatprep.subr.bf16.mxu0 0
      %377 = vmatpush1.bf16.msra.mxu0 0
      %378 = vmatprep.subr.bf16.mxu0 0
      %379 = vmatpush1.bf16.msra.mxu0 0
      %380 = vmatprep.subr.bf16.mxu0 0
      %381 = vmatpush1.bf16.msra.mxu0 0
      %382 = vmatprep.subr.bf16.mxu0 0
      %383 = vmatpush1.bf16.msra.mxu0 0
      %384 = vmatprep.subr.bf16.mxu0 0
      %385 = vmatpush1.bf16.msra.mxu0 0
      %386 = vmatprep.subr.bf16.mxu0 0
      %387 = vmatpush1.bf16.msra.mxu0 0
      %388 = vmatprep.subr.bf16.mxu0 0
      %389 = vmatpush1.bf16.msra.mxu0 0
      %390 = vmatprep.mubr.bf16.mxu0 0
      %391 = vmatmul.mubr.bf16.gmra.mrb[0].mxu0 %v307
      %v392 = vpop.f32.mrb[0].mxu0
      %v393 = vadd.f32 0.0, %v392
      %v394 = vpop.f32.mrb[0].mxu0
      %v395 = vpop.f32.mrb[0].mxu0
      %v396 = vadd.f32 0.0, %v395
      %v397 = vpop.f32.mrb[0].mxu0
      %398 = vmatprep.mubr.bf16.mxu0 0
      %399 = vmatmul.mubr.bf16.gmra.mrb[0].mxu0 %v310
      %v400 = vpop.f32.mrb[0].mxu0
      %v401 = vadd.f32 0.0, %v400
      %v402 = vpop.f32.mrb[0].mxu0
      %v403 = vpop.f32.mrb[0].mxu0
      %v404 = vadd.f32 0.0, %v403
      %v405 = vpop.f32.mrb[0].mxu0
      %406 = vmatprep.mubr.bf16.mxu0 0
      %407 = vmatmul.mubr.bf16.gmra.mrb[0].mxu0 %v313
      %v408 = vpop.f32.mrb[0].mxu0
      %v409 = vadd.f32 0.0, %v408
      %v410 = vpop.f32.mrb[0].mxu0
      %v411 = vpop.f32.mrb[0].mxu0
      %v412 = vadd.f32 0.0, %v411
      %v413 = vpop.f32.mrb[0].mxu0
      %414 = vmatprep.mubr.bf16.mxu0 0
      %415 = vmatmul.mubr.bf16.gmra.mrb[0].mxu0 %v316
      %v416 = vpop.f32.mrb[0].mxu0
      %v417 = vadd.f32 0.0, %v416
      %v418 = vpop.f32.mrb[0].mxu0
      %v419 = vpop.f32.mrb[0].mxu0
      %v420 = vadd.f32 0.0, %v419
      %v421 = vpop.f32.mrb[0].mxu0
      %422 = vmatprep.mubr.bf16.mxu0 0
      %423 = vmatmul.mubr.bf16.gmra.mrb[0].mxu0 %v319
      %v424 = vpop.f32.mrb[0].mxu0
      %v425 = vadd.f32 0.0, %v424
      %v426 = vpop.f32.mrb[0].mxu0
      %v427 = vpop.f32.mrb[0].mxu0
      %v428 = vadd.f32 0.0, %v427
      %v429 = vpop.f32.mrb[0].mxu0
      %430 = vmatprep.mubr.bf16.mxu0 0
      %431 = vmatmul.mubr.bf16.gmra.mrb[0].mxu0 %v322
      %v432 = vpop.f32.mrb[0].mxu0
      %v433 = vadd.f32 0.0, %v432
      %v434 = vpop.f32.mrb[0].mxu0
      %v435 = vpop.f32.mrb[0].mxu0
      %v436 = vadd.f32 0.0, %v435
      %v437 = vpop.f32.mrb[0].mxu0
      %438 = vmatprep.mubr.bf16.mxu0 0
      %439 = vmatmul.mubr.bf16.gmra.mrb[0].mxu0 %v325
      %v440 = vpop.f32.mrb[0].mxu0
      %v441 = vadd.f32 0.0, %v440
      %v442 = vpop.f32.mrb[0].mxu0
      %v443 = vpop.f32.mrb[0].mxu0
      %v444 = vadd.f32 0.0, %v443
      %v445 = vpop.f32.mrb[0].mxu0
      %446 = vmatprep.mubr.bf16.mxu0 0
      %447 = vmatmul.mubr.bf16.gmra.mrb[0].mxu0 %v328
      %v448 = vpop.f32.mrb[0].mxu0
      %v449 = vadd.f32 0.0, %v448
      %v450 = vpop.f32.mrb[0].mxu0
      %v451 = vpop.f32.mrb[0].mxu0
      %v452 = vadd.f32 0.0, %v451
      %v453 = vpop.f32.mrb[0].mxu0
      %454 = vmatprep.mubr.bf16.mxu0 0
      %455 = vmatmul.mubr.bf16.gmra.mrb[0].mxu0 %v331
      %v456 = vpop.f32.mrb[0].mxu0
      %v457 = vadd.f32 0.0, %v456
      %v458 = vpop.f32.mrb[0].mxu0
      %v459 = vpop.f32.mrb[0].mxu0
      %v460 = vadd.f32 0.0, %v459
      %v461 = vpop.f32.mrb[0].mxu0
      %462 = vmatprep.mubr.bf16.mxu0 0
      %463 = vmatmul.mubr.bf16.gmra.mrb[0].mxu0 %v334
      %v464 = vpop.f32.mrb[0].mxu0
      %v465 = vadd.f32 0.0, %v464
      %v466 = vpop.f32.mrb[0].mxu0
      %v467 = vpop.f32.mrb[0].mxu0
      %v468 = vadd.f32 0.0, %v467
      %v469 = vpop.f32.mrb[0].mxu0
      %470 = vmatprep.mubr.bf16.mxu0 0
      %471 = vmatmul.mubr.bf16.gmra.mrb[0].mxu0 %v337
      %v472 = vpop.f32.mrb[0].mxu0
      %v473 = vadd.f32 0.0, %v472
      %v474 = vpop.f32.mrb[0].mxu0
      %v475 = vpop.f32.mrb[0].mxu0
      %v476 = vadd.f32 0.0, %v475
      %v477 = vpop.f32.mrb[0].mxu0
      %478 = vmatprep.mubr.bf16.mxu0 0
      %479 = vmatmul.mubr.bf16.gmra.mrb[0].mxu0 %v340
      %v480 = vpop.f32.mrb[0].mxu0
      %v481 = vadd.f32 0.0, %v480
      %v482 = vpop.f32.mrb[0].mxu0
      %v483 = vpop.f32.mrb[0].mxu0
      %v484 = vadd.f32 0.0, %v483
      %v485 = vpop.f32.mrb[0].mxu0
      %486 = vmatprep.mubr.bf16.mxu0 0
      %487 = vmatmul.mubr.bf16.gmra.mrb[0].mxu0 %v343
      %v488 = vpop.f32.mrb[0].mxu0
      %v489 = vadd.f32 0.0, %v488
      %v490 = vpop.f32.mrb[0].mxu0
      %v491 = vpop.f32.mrb[0].mxu0
      %v492 = vadd.f32 0.0, %v491
      %v493 = vpop.f32.mrb[0].mxu0
      %494 = vmatprep.mubr.bf16.mxu0 0
      %495 = vmatmul.mubr.bf16.gmra.mrb[0].mxu0 %v346
      %v496 = vpop.f32.mrb[0].mxu0
      %v497 = vadd.f32 0.0, %v496
      %v498 = vpop.f32.mrb[0].mxu0
      %v499 = vpop.f32.mrb[0].mxu0
      %v500 = vadd.f32 0.0, %v499
      %v501 = vpop.f32.mrb[0].mxu0
      %502 = vmatprep.mubr.bf16.mxu0 0
      %503 = vmatmul.mubr.bf16.gmra.mrb[0].mxu0 %v349
      %v504 = vpop.f32.mrb[0].mxu0
      %v505 = vadd.f32 0.0, %v504
      %v506 = vpop.f32.mrb[0].mxu0
      %v507 = vpop.f32.mrb[0].mxu0
      %v508 = vadd.f32 0.0, %v507
      %v509 = vpop.f32.mrb[0].mxu0
      %510 = vmatprep.mubr.bf16.mxu0 0
      %511 = vmatmul.mubr.bf16.gmra.mrb[0].mxu0 %v352
      %v512 = vpop.f32.mrb[0].mxu0
      %v513 = vadd.f32 0.0, %v512
      %v514 = vpop.f32.mrb[0].mxu0
      %v515 = vpop.f32.mrb[0].mxu0
      %v516 = vadd.f32 0.0, %v515
      %v517 = vpop.f32.mrb[0].mxu0
      %518 = vdwg.mxu0
      %519 = vst [vmem:[#allocation2] sm:$0xff] %v393
      %520 = vst [vmem:[#allocation2 + $0x8] sm:$0xff] %v396
      %521 = vst [vmem:[#allocation2 + $0x10] sm:$0xff] %v401
      %522 = vst [vmem:[#allocation2 + $0x18] sm:$0xff] %v404
      %523 = vst [vmem:[#allocation2 + $0x20] sm:$0xff] %v409
      %524 = vst [vmem:[#allocation2 + $0x28] sm:$0xff] %v412
      %525 = vst [vmem:[#allocation2 + $0x30] sm:$0xff] %v417
      %526 = vst [vmem:[#allocation2 + $0x38] sm:$0xff] %v420
      %527 = vst [vmem:[#allocation2 + $0x40] sm:$0xff] %v425
      %528 = vst [vmem:[#allocation2 + $0x48] sm:$0xff] %v428
      %529 = vst [vmem:[#allocation2 + $0x50] sm:$0xff] %v433
      %530 = vst [vmem:[#allocation2 + $0x58] sm:$0xff] %v436
      %531 = vst [vmem:[#allocation2 + $0x60] sm:$0xff] %v441
      %532 = vst [vmem:[#allocation2 + $0x68] sm:$0xff] %v444
      %533 = vst [vmem:[#allocation2 + $0x70] sm:$0xff] %v449
      %534 = vst [vmem:[#allocation2 + $0x78] sm:$0xff] %v452
      %535 = vst [vmem:[#allocation2 + $0x80] sm:$0xff] %v457
      %536 = vst [vmem:[#allocation2 + $0x88] sm:$0xff] %v460
      %537 = vst [vmem:[#allocation2 + $0x90] sm:$0xff] %v465
      %538 = vst [vmem:[#allocation2 + $0x98] sm:$0xff] %v468
      %539 = vst [vmem:[#allocation2 + $0xa0] sm:$0xff] %v473
      %540 = vst [vmem:[#allocation2 + $0xa8] sm:$0xff] %v476
      %541 = vst [vmem:[#allocation2 + $0xb0] sm:$0xff] %v481
      %542 = vst [vmem:[#allocation2 + $0xb8] sm:$0xff] %v484
      %543 = vst [vmem:[#allocation2 + $0xc0] sm:$0xff] %v489
      %544 = vst [vmem:[#allocation2 + $0xc8] sm:$0xff] %v492
      %545 = vst [vmem:[#allocation2 + $0xd0] sm:$0xff] %v497
      %546 = vst [vmem:[#allocation2 + $0xd8] sm:$0xff] %v500
      %547 = vst [vmem:[#allocation2 + $0xe0] sm:$0xff] %v505
      %548 = vst [vmem:[#allocation2 + $0xe8] sm:$0xff] %v508
      %549 = vst [vmem:[#allocation2 + $0xf0] sm:$0xff] %v513
      %550 = vst [vmem:[#allocation2 + $0xf8] sm:$0xff] %v516
      %vm551 = vsmask.f32 3328
      %vm552 = vsmask.f32 7440
      %vm553 = vmor %vm551, %vm552
      %v555 = vshrl.u32 %v170, 16
      %v557 = vrot.slane %v555, 4
      %v558 = vshll.u32 %v170, 16
      %v560 = vrot.slane %v558, 5
      %v561 = vor.u32 %v557, %v560
      %v562 = vrot.slane %v561, 4
      %v564 = vshll.u32 %v171, 16
      %v566 = vrot.slane %v564, 5
      %v567 = vsel %vm553, %v562, %v566
      %v568 = vshrl.u32 %v171, 16
      %v570 = vrot.slane %v568, 4
      %v571 = vor.u32 %v570, %v566
      %v572 = vrot.slane %v571, 4
      %v574 = vshll.u32 %v172, 16
      %v576 = vrot.slane %v574, 5
      %v577 = vsel %vm553, %v572, %v576
      %v579 = vshrl.u32 %v173, 16
      %v581 = vrot.slane %v579, 4
      %v582 = vshll.u32 %v173, 16
      %v584 = vrot.slane %v582, 5
      %v585 = vor.u32 %v581, %v584
      %v586 = vrot.slane %v585, 4
      %v588 = vshll.u32 %v174, 16
      %v590 = vrot.slane %v588, 5
      %v591 = vsel %vm553, %v586, %v590
      %v592 = vshrl.u32 %v174, 16
      %v594 = vrot.slane %v592, 4
      %v595 = vor.u32 %v594, %v590
      %v596 = vrot.slane %v595, 4
      %v598 = vshll.u32 %v175, 16
      %v600 = vrot.slane %v598, 5
      %v601 = vsel %vm553, %v596, %v600
      %v603 = vshrl.u32 %v176, 16
      %v605 = vrot.slane %v603, 4
      %v606 = vshll.u32 %v176, 16
      %v608 = vrot.slane %v606, 5
      %v609 = vor.u32 %v605, %v608
      %v610 = vrot.slane %v609, 4
      %v612 = vshll.u32 %v177, 16
      %v614 = vrot.slane %v612, 5
      %v615 = vsel %vm553, %v610, %v614
      %v616 = vshrl.u32 %v177, 16
      %v618 = vrot.slane %v616, 4
      %v619 = vor.u32 %v618, %v614
      %v620 = vrot.slane %v619, 4
      %v622 = vshll.u32 %v178, 16
      %v624 = vrot.slane %v622, 5
      %v625 = vsel %vm553, %v620, %v624
      %v627 = vshrl.u32 %v179, 16
      %v629 = vrot.slane %v627, 4
      %v630 = vshll.u32 %v179, 16
      %v632 = vrot.slane %v630, 5
      %v633 = vor.u32 %v629, %v632
      %v634 = vrot.slane %v633, 4
      %v636 = vshll.u32 %v180, 16
      %v638 = vrot.slane %v636, 5
      %v639 = vsel %vm553, %v634, %v638
      %v640 = vshrl.u32 %v180, 16
      %v642 = vrot.slane %v640, 4
      %v643 = vor.u32 %v642, %v638
      %v644 = vrot.slane %v643, 4
      %v646 = vshll.u32 %v181, 16
      %v648 = vrot.slane %v646, 5
      %v649 = vsel %vm553, %v644, %v648
      %v651 = vshrl.u32 %v182, 16
      %v653 = vrot.slane %v651, 4
      %v654 = vshll.u32 %v182, 16
      %v656 = vrot.slane %v654, 5
      %v657 = vor.u32 %v653, %v656
      %v658 = vrot.slane %v657, 4
      %v660 = vshll.u32 %v183, 16
      %v662 = vrot.slane %v660, 5
      %v663 = vsel %vm553, %v658, %v662
      %v664 = vshrl.u32 %v183, 16
      %v666 = vrot.slane %v664, 4
      %v667 = vor.u32 %v666, %v662
      %v668 = vrot.slane %v667, 4
      %v670 = vshll.u32 %v184, 16
      %v672 = vrot.slane %v670, 5
      %v673 = vsel %vm553, %v668, %v672
      %v675 = vshrl.u32 %v185, 16
      %v677 = vrot.slane %v675, 4
      %v678 = vshll.u32 %v185, 16
      %v680 = vrot.slane %v678, 5
      %v681 = vor.u32 %v677, %v680
      %v682 = vrot.slane %v681, 4
      %v684 = vshll.u32 %v186, 16
      %v686 = vrot.slane %v684, 5
      %v687 = vsel %vm553, %v682, %v686
      %v688 = vshrl.u32 %v186, 16
      %v690 = vrot.slane %v688, 4
      %v691 = vor.u32 %v690, %v686
      %v692 = vrot.slane %v691, 4
      %v694 = vshll.u32 %v187, 16
      %v696 = vrot.slane %v694, 5
      %v697 = vsel %vm553, %v692, %v696
      %v699 = vshrl.u32 %v188, 16
      %v701 = vrot.slane %v699, 4
      %v702 = vshll.u32 %v188, 16
      %v704 = vrot.slane %v702, 5
      %v705 = vor.u32 %v701, %v704
      %v706 = vrot.slane %v705, 4
      %v708 = vshll.u32 %v189, 16
      %v710 = vrot.slane %v708, 5
      %v711 = vsel %vm553, %v706, %v710
      %v712 = vshrl.u32 %v189, 16
      %v714 = vrot.slane %v712, 4
      %v715 = vor.u32 %v714, %v710
      %v716 = vrot.slane %v715, 4
      %v718 = vshll.u32 %v190, 16
      %v720 = vrot.slane %v718, 5
      %v721 = vsel %vm553, %v716, %v720
      %v723 = vshrl.u32 %v191, 16
      %v725 = vrot.slane %v723, 4
      %v726 = vshll.u32 %v191, 16
      %v728 = vrot.slane %v726, 5
      %v729 = vor.u32 %v725, %v728
      %v730 = vrot.slane %v729, 4
      %v732 = vshll.u32 %v192, 16
      %v734 = vrot.slane %v732, 5
      %v735 = vsel %vm553, %v730, %v734
      %v736 = vshrl.u32 %v192, 16
      %v738 = vrot.slane %v736, 4
      %v739 = vor.u32 %v738, %v734
      %v740 = vrot.slane %v739, 4
      %v742 = vshll.u32 %v193, 16
      %v744 = vrot.slane %v742, 5
      %v745 = vsel %vm553, %v740, %v744
      %v747 = vshrl.u32 %v194, 16
      %v749 = vrot.slane %v747, 4
      %v750 = vshll.u32 %v194, 16
      %v752 = vrot.slane %v750, 5
      %v753 = vor.u32 %v749, %v752
      %v754 = vrot.slane %v753, 4
      %v756 = vshll.u32 %v195, 16
      %v758 = vrot.slane %v756, 5
      %v759 = vsel %vm553, %v754, %v758
      %v760 = vshrl.u32 %v195, 16
      %v762 = vrot.slane %v760, 4
      %v763 = vor.u32 %v762, %v758
      %v764 = vrot.slane %v763, 4
      %v766 = vshll.u32 %v196, 16
      %v768 = vrot.slane %v766, 5
      %v769 = vsel %vm553, %v764, %v768
      %v771 = vshrl.u32 %v197, 16
      %v773 = vrot.slane %v771, 4
      %v774 = vshll.u32 %v197, 16
      %v776 = vrot.slane %v774, 5
      %v777 = vor.u32 %v773, %v776
      %v778 = vrot.slane %v777, 4
      %v780 = vshll.u32 %v198, 16
      %v782 = vrot.slane %v780, 5
      %v783 = vsel %vm553, %v778, %v782
      %v784 = vshrl.u32 %v198, 16
      %v786 = vrot.slane %v784, 4
      %v787 = vor.u32 %v786, %v782
      %v788 = vrot.slane %v787, 4
      %v790 = vshll.u32 %v199, 16
      %v792 = vrot.slane %v790, 5
      %v793 = vsel %vm553, %v788, %v792
      %v795 = vshrl.u32 %v200, 16
      %v797 = vrot.slane %v795, 4
      %v798 = vshll.u32 %v200, 16
      %v800 = vrot.slane %v798, 5
      %v801 = vor.u32 %v797, %v800
      %v802 = vrot.slane %v801, 4
      %v804 = vshll.u32 %v201, 16
      %v806 = vrot.slane %v804, 5
      %v807 = vsel %vm553, %v802, %v806
      %v808 = vshrl.u32 %v201, 16
      %v810 = vrot.slane %v808, 4
      %v811 = vor.u32 %v810, %v806
      %v812 = vrot.slane %v811, 4
      %v814 = vshll.u32 %v202, 16
      %v816 = vrot.slane %v814, 5
      %v817 = vsel %vm553, %v812, %v816
      %v819 = vshrl.u32 %v203, 16
      %v821 = vrot.slane %v819, 4
      %v822 = vshll.u32 %v203, 16
      %v824 = vrot.slane %v822, 5
      %v825 = vor.u32 %v821, %v824
      %v826 = vrot.slane %v825, 4
      %v828 = vshll.u32 %v204, 16
      %v830 = vrot.slane %v828, 5
      %v831 = vsel %vm553, %v826, %v830
      %v832 = vshrl.u32 %v204, 16
      %v834 = vrot.slane %v832, 4
      %v835 = vor.u32 %v834, %v830
      %v836 = vrot.slane %v835, 4
      %v838 = vshll.u32 %v205, 16
      %v840 = vrot.slane %v838, 5
      %v841 = vsel %vm553, %v836, %v840
      %v843 = vshrl.u32 %v206, 16
      %v845 = vrot.slane %v843, 4
      %v846 = vshll.u32 %v206, 16
      %v848 = vrot.slane %v846, 5
      %v849 = vor.u32 %v845, %v848
      %v850 = vrot.slane %v849, 4
      %v852 = vshll.u32 %v207, 16
      %v854 = vrot.slane %v852, 5
      %v855 = vsel %vm553, %v850, %v854
      %v856 = vshrl.u32 %v207, 16
      %v858 = vrot.slane %v856, 4
      %v859 = vor.u32 %v858, %v854
      %v860 = vrot.slane %v859, 4
      %v862 = vshll.u32 %v208, 16
      %v864 = vrot.slane %v862, 5
      %v865 = vsel %vm553, %v860, %v864
      %v867 = vshrl.u32 %v209, 16
      %v869 = vrot.slane %v867, 4
      %v870 = vshll.u32 %v209, 16
      %v872 = vrot.slane %v870, 5
      %v873 = vor.u32 %v869, %v872
      %v874 = vrot.slane %v873, 4
      %v876 = vshll.u32 %v210, 16
      %v878 = vrot.slane %v876, 5
      %v879 = vsel %vm553, %v874, %v878
      %v880 = vshrl.u32 %v210, 16
      %v882 = vrot.slane %v880, 4
      %v883 = vor.u32 %v882, %v878
      %v884 = vrot.slane %v883, 4
      %v886 = vshll.u32 %v211, 16
      %v888 = vrot.slane %v886, 5
      %v889 = vsel %vm553, %v884, %v888
      %v891 = vshrl.u32 %v212, 16
      %v893 = vrot.slane %v891, 4
      %v894 = vshll.u32 %v212, 16
      %v896 = vrot.slane %v894, 5
      %v897 = vor.u32 %v893, %v896
      %v898 = vrot.slane %v897, 4
      %v900 = vshll.u32 %v213, 16
      %v902 = vrot.slane %v900, 5
      %v903 = vsel %vm553, %v898, %v902
      %v904 = vshrl.u32 %v213, 16
      %v906 = vrot.slane %v904, 4
      %v907 = vor.u32 %v906, %v902
      %v908 = vrot.slane %v907, 4
      %v910 = vshll.u32 %v214, 16
      %v912 = vrot.slane %v910, 5
      %v913 = vsel %vm553, %v908, %v912
      %v915 = vshrl.u32 %v215, 16
      %v917 = vrot.slane %v915, 4
      %v918 = vshll.u32 %v215, 16
      %v920 = vrot.slane %v918, 5
      %v921 = vor.u32 %v917, %v920
      %v922 = vrot.slane %v921, 4
      %v924 = vshll.u32 %v216, 16
      %v926 = vrot.slane %v924, 5
      %v927 = vsel %vm553, %v922, %v926
      %v928 = vshrl.u32 %v216, 16
      %v930 = vrot.slane %v928, 4
      %v931 = vor.u32 %v930, %v926
      %v932 = vrot.slane %v931, 4
      %v934 = vshll.u32 %v217, 16
      %v936 = vrot.slane %v934, 5
      %v937 = vsel %vm553, %v932, %v936
      %s938 = scalar_lea.vmem %s1, 2
      %v939 = vld [vmem:[%s938] sm:$0x3]
      %v940 = vunpack.c.l.b16 %v567
      %v941 = vunpack.c.l.b16 %v577
      %v942 = vunpack.c.l.b16 %v591
      %v943 = vunpack.c.l.b16 %v601
      %v944 = vunpack.c.l.b16 %v615
      %v945 = vunpack.c.l.b16 %v625
      %v946 = vunpack.c.l.b16 %v639
      %v947 = vunpack.c.l.b16 %v649
      %v948 = vunpack.c.l.b16 %v663
      %v949 = vunpack.c.l.b16 %v673
      %v950 = vunpack.c.l.b16 %v687
      %v951 = vunpack.c.l.b16 %v697
      %v952 = vunpack.c.l.b16 %v711
      %v953 = vunpack.c.l.b16 %v721
      %v954 = vunpack.c.l.b16 %v735
      %v955 = vunpack.c.l.b16 %v745
      %v956 = vunpack.c.l.b16 %v759
      %v957 = vunpack.c.l.b16 %v769
      %v958 = vunpack.c.l.b16 %v783
      %v959 = vunpack.c.l.b16 %v793
      %v960 = vunpack.c.l.b16 %v807
      %v961 = vunpack.c.l.b16 %v817
      %v962 = vunpack.c.l.b16 %v831
      %v963 = vunpack.c.l.b16 %v841
      %v964 = vunpack.c.l.b16 %v855
      %v965 = vunpack.c.l.b16 %v865
      %v966 = vunpack.c.l.b16 %v879
      %v967 = vunpack.c.l.b16 %v889
      %v968 = vunpack.c.l.b16 %v903
      %v969 = vunpack.c.l.b16 %v913
      %v970 = vunpack.c.l.b16 %v927
      %v971 = vunpack.c.l.b16 %v937
      %v972 = vpack.c.b16 %v941, %v940
      %v973 = vpack.c.b16 %v943, %v942
      %v974 = vpack.c.b16 %v945, %v944
      %v975 = vpack.c.b16 %v947, %v946
      %v976 = vpack.c.b16 %v949, %v948
      %v977 = vpack.c.b16 %v951, %v950
      %v978 = vpack.c.b16 %v953, %v952
      %v979 = vpack.c.b16 %v955, %v954
      %v980 = vpack.c.b16 %v957, %v956
      %v981 = vpack.c.b16 %v959, %v958
      %v982 = vpack.c.b16 %v961, %v960
      %v983 = vpack.c.b16 %v963, %v962
      %v984 = vpack.c.b16 %v965, %v964
      %v985 = vpack.c.b16 %v967, %v966
      %v986 = vpack.c.b16 %v969, %v968
      %v987 = vpack.c.b16 %v971, %v970
      %v989 = vsel %vm305, %v972, 0
      %v992 = vsel %vm305, %v973, 0
      %v995 = vsel %vm305, %v974, 0
      %v998 = vsel %vm305, %v975, 0
      %v1001 = vsel %vm305, %v976, 0
      %v1004 = vsel %vm305, %v977, 0
      %v1007 = vsel %vm305, %v978, 0
      %v1010 = vsel %vm305, %v979, 0
      %v1013 = vsel %vm305, %v980, 0
      %v1016 = vsel %vm305, %v981, 0
      %v1019 = vsel %vm305, %v982, 0
      %v1022 = vsel %vm305, %v983, 0
      %v1025 = vsel %vm305, %v984, 0
      %v1028 = vsel %vm305, %v985, 0
      %v1031 = vsel %vm305, %v986, 0
      %v1034 = vsel %vm305, %v987, 0
      %v1037 = vsel %vm354, %v939, 0
      %1039 = vmatprep.subr.bf16.mxu0 0
      %1040 = vmatpush1.bf16.msra.mxu0 %v1037
      %1041 = vmatprep.subr.bf16.mxu0 0
      %1042 = vmatpush1.bf16.msra.mxu0 0
      %1043 = vmatprep.subr.bf16.mxu0 0
      %1044 = vmatpush1.bf16.msra.mxu0 0
      %1045 = vmatprep.subr.bf16.mxu0 0
      %1046 = vmatpush1.bf16.msra.mxu0 0
      %1047 = vmatprep.subr.bf16.mxu0 0
      %1048 = vmatpush1.bf16.msra.mxu0 0
      %1049 = vmatprep.subr.bf16.mxu0 0
      %1050 = vmatpush1.bf16.msra.mxu0 0
      %1051 = vmatprep.subr.bf16.mxu0 0
      %1052 = vmatpush1.bf16.msra.mxu0 0
      %1053 = vmatprep.subr.bf16.mxu0 0
      %1054 = vmatpush1.bf16.msra.mxu0 0
      %1055 = vmatprep.subr.bf16.mxu0 0
      %1056 = vmatpush1.bf16.msra.mxu0 0
      %1057 = vmatprep.subr.bf16.mxu0 0
      %1058 = vmatpush1.bf16.msra.mxu0 0
      %1059 = vmatprep.subr.bf16.mxu0 0
      %1060 = vmatpush1.bf16.msra.mxu0 0
      %1061 = vmatprep.subr.bf16.mxu0 0
      %1062 = vmatpush1.bf16.msra.mxu0 0
      %1063 = vmatprep.subr.bf16.mxu0 0
      %1064 = vmatpush1.bf16.msra.mxu0 0
      %1065 = vmatprep.subr.bf16.mxu0 0
      %1066 = vmatpush1.bf16.msra.mxu0 0
      %1067 = vmatprep.subr.bf16.mxu0 0
      %1068 = vmatpush1.bf16.msra.mxu0 0
      %1069 = vmatprep.subr.bf16.mxu0 0
      %1070 = vmatpush1.bf16.msra.mxu0 0
      %1071 = vmatprep.mubr.bf16.mxu0 0
      %1072 = vmatmul.mubr.bf16.gmra.mrb[0].mxu0 %v989
      %v1073 = vpop.f32.mrb[0].mxu0
      %v1074 = vadd.f32 0.0, %v1073
      %v1075 = vpop.f32.mrb[0].mxu0
      %v1076 = vpop.f32.mrb[0].mxu0
      %v1077 = vadd.f32 0.0, %v1076
      %v1078 = vpop.f32.mrb[0].mxu0
      %1079 = vmatprep.mubr.bf16.mxu0 0
      %1080 = vmatmul.mubr.bf16.gmra.mrb[0].mxu0 %v992
      %v1081 = vpop.f32.mrb[0].mxu0
      %v1082 = vadd.f32 0.0, %v1081
      %v1083 = vpop.f32.mrb[0].mxu0
      %v1084 = vpop.f32.mrb[0].mxu0
      %v1085 = vadd.f32 0.0, %v1084
      %v1086 = vpop.f32.mrb[0].mxu0
      %1087 = vmatprep.mubr.bf16.mxu0 0
      %1088 = vmatmul.mubr.bf16.gmra.mrb[0].mxu0 %v995
      %v1089 = vpop.f32.mrb[0].mxu0
      %v1090 = vadd.f32 0.0, %v1089
      %v1091 = vpop.f32.mrb[0].mxu0
      %v1092 = vpop.f32.mrb[0].mxu0
      %v1093 = vadd.f32 0.0, %v1092
      %v1094 = vpop.f32.mrb[0].mxu0
      %1095 = vmatprep.mubr.bf16.mxu0 0
      %1096 = vmatmul.mubr.bf16.gmra.mrb[0].mxu0 %v998
      %v1097 = vpop.f32.mrb[0].mxu0
      %v1098 = vadd.f32 0.0, %v1097
      %v1099 = vpop.f32.mrb[0].mxu0
      %v1100 = vpop.f32.mrb[0].mxu0
      %v1101 = vadd.f32 0.0, %v1100
      %v1102 = vpop.f32.mrb[0].mxu0
      %1103 = vmatprep.mubr.bf16.mxu0 0
      %1104 = vmatmul.mubr.bf16.gmra.mrb[0].mxu0 %v1001
      %v1105 = vpop.f32.mrb[0].mxu0
      %v1106 = vadd.f32 0.0, %v1105
      %v1107 = vpop.f32.mrb[0].mxu0
      %v1108 = vpop.f32.mrb[0].mxu0
      %v1109 = vadd.f32 0.0, %v1108
      %v1110 = vpop.f32.mrb[0].mxu0
      %1111 = vmatprep.mubr.bf16.mxu0 0
      %1112 = vmatmul.mubr.bf16.gmra.mrb[0].mxu0 %v1004
      %v1113 = vpop.f32.mrb[0].mxu0
      %v1114 = vadd.f32 0.0, %v1113
      %v1115 = vpop.f32.mrb[0].mxu0
      %v1116 = vpop.f32.mrb[0].mxu0
      %v1117 = vadd.f32 0.0, %v1116
      %v1118 = vpop.f32.mrb[0].mxu0
      %1119 = vmatprep.mubr.bf16.mxu0 0
      %1120 = vmatmul.mubr.bf16.gmra.mrb[0].mxu0 %v1007
      %v1121 = vpop.f32.mrb[0].mxu0
      %v1122 = vadd.f32 0.0, %v1121
      %v1123 = vpop.f32.mrb[0].mxu0
      %v1124 = vpop.f32.mrb[0].mxu0
      %v1125 = vadd.f32 0.0, %v1124
      %v1126 = vpop.f32.mrb[0].mxu0
      %1127 = vmatprep.mubr.bf16.mxu0 0
      %1128 = vmatmul.mubr.bf16.gmra.mrb[0].mxu0 %v1010
      %v1129 = vpop.f32.mrb[0].mxu0
      %v1130 = vadd.f32 0.0, %v1129
      %v1131 = vpop.f32.mrb[0].mxu0
      %v1132 = vpop.f32.mrb[0].mxu0
      %v1133 = vadd.f32 0.0, %v1132
      %v1134 = vpop.f32.mrb[0].mxu0
      %1135 = vmatprep.mubr.bf16.mxu0 0
      %1136 = vmatmul.mubr.bf16.gmra.mrb[0].mxu0 %v1013
      %v1137 = vpop.f32.mrb[0].mxu0
      %v1138 = vadd.f32 0.0, %v1137
      %v1139 = vpop.f32.mrb[0].mxu0
      %v1140 = vpop.f32.mrb[0].mxu0
      %v1141 = vadd.f32 0.0, %v1140
      %v1142 = vpop.f32.mrb[0].mxu0
      %1143 = vmatprep.mubr.bf16.mxu0 0
      %1144 = vmatmul.mubr.bf16.gmra.mrb[0].mxu0 %v1016
      %v1145 = vpop.f32.mrb[0].mxu0
      %v1146 = vadd.f32 0.0, %v1145
      %v1147 = vpop.f32.mrb[0].mxu0
      %v1148 = vpop.f32.mrb[0].mxu0
      %v1149 = vadd.f32 0.0, %v1148
      %v1150 = vpop.f32.mrb[0].mxu0
      %1151 = vmatprep.mubr.bf16.mxu0 0
      %1152 = vmatmul.mubr.bf16.gmra.mrb[0].mxu0 %v1019
      %v1153 = vpop.f32.mrb[0].mxu0
      %v1154 = vadd.f32 0.0, %v1153
      %v1155 = vpop.f32.mrb[0].mxu0
      %v1156 = vpop.f32.mrb[0].mxu0
      %v1157 = vadd.f32 0.0, %v1156
      %v1158 = vpop.f32.mrb[0].mxu0
      %1159 = vmatprep.mubr.bf16.mxu0 0
      %1160 = vmatmul.mubr.bf16.gmra.mrb[0].mxu0 %v1022
      %v1161 = vpop.f32.mrb[0].mxu0
      %v1162 = vadd.f32 0.0, %v1161
      %v1163 = vpop.f32.mrb[0].mxu0
      %v1164 = vpop.f32.mrb[0].mxu0
      %v1165 = vadd.f32 0.0, %v1164
      %v1166 = vpop.f32.mrb[0].mxu0
      %1167 = vmatprep.mubr.bf16.mxu0 0
      %1168 = vmatmul.mubr.bf16.gmra.mrb[0].mxu0 %v1025
      %v1169 = vpop.f32.mrb[0].mxu0
      %v1170 = vadd.f32 0.0, %v1169
      %v1171 = vpop.f32.mrb[0].mxu0
      %v1172 = vpop.f32.mrb[0].mxu0
      %v1173 = vadd.f32 0.0, %v1172
      %v1174 = vpop.f32.mrb[0].mxu0
      %1175 = vmatprep.mubr.bf16.mxu0 0
      %1176 = vmatmul.mubr.bf16.gmra.mrb[0].mxu0 %v1028
      %v1177 = vpop.f32.mrb[0].mxu0
      %v1178 = vadd.f32 0.0, %v1177
      %v1179 = vpop.f32.mrb[0].mxu0
      %v1180 = vpop.f32.mrb[0].mxu0
      %v1181 = vadd.f32 0.0, %v1180
      %v1182 = vpop.f32.mrb[0].mxu0
      %1183 = vmatprep.mubr.bf16.mxu0 0
      %1184 = vmatmul.mubr.bf16.gmra.mrb[0].mxu0 %v1031
      %v1185 = vpop.f32.mrb[0].mxu0
      %v1186 = vadd.f32 0.0, %v1185
      %v1187 = vpop.f32.mrb[0].mxu0
      %v1188 = vpop.f32.mrb[0].mxu0
      %v1189 = vadd.f32 0.0, %v1188
      %v1190 = vpop.f32.mrb[0].mxu0
      %1191 = vmatprep.mubr.bf16.mxu0 0
      %1192 = vmatmul.mubr.bf16.gmra.mrb[0].mxu0 %v1034
      %v1193 = vpop.f32.mrb[0].mxu0
      %v1194 = vadd.f32 0.0, %v1193
      %v1195 = vpop.f32.mrb[0].mxu0
      %v1196 = vpop.f32.mrb[0].mxu0
      %v1197 = vadd.f32 0.0, %v1196
      %v1198 = vpop.f32.mrb[0].mxu0
      %1199 = vdwg.mxu0
      %v1200 = vld [vmem:[#allocation2] sm:$0xff]
      %v1201 = vld [vmem:[#allocation2 + $0x8] sm:$0xff]
      %v1202 = vld [vmem:[#allocation2 + $0x10] sm:$0xff]
      %v1203 = vld [vmem:[#allocation2 + $0x18] sm:$0xff]
      %v1204 = vld [vmem:[#allocation2 + $0x20] sm:$0xff]
      %v1205 = vld [vmem:[#allocation2 + $0x28] sm:$0xff]
      %v1206 = vld [vmem:[#allocation2 + $0x30] sm:$0xff]
      %v1207 = vld [vmem:[#allocation2 + $0x38] sm:$0xff]
      %v1208 = vld [vmem:[#allocation2 + $0x40] sm:$0xff]
      %v1209 = vld [vmem:[#allocation2 + $0x48] sm:$0xff]
      %v1210 = vld [vmem:[#allocation2 + $0x50] sm:$0xff]
      %v1211 = vld [vmem:[#allocation2 + $0x58] sm:$0xff]
      %v1212 = vld [vmem:[#allocation2 + $0x60] sm:$0xff]
      %v1213 = vld [vmem:[#allocation2 + $0x68] sm:$0xff]
      %v1214 = vld [vmem:[#allocation2 + $0x70] sm:$0xff]
      %v1215 = vld [vmem:[#allocation2 + $0x78] sm:$0xff]
      %v1216 = vld [vmem:[#allocation2 + $0x80] sm:$0xff]
      %v1217 = vld [vmem:[#allocation2 + $0x88] sm:$0xff]
      %v1218 = vld [vmem:[#allocation2 + $0x90] sm:$0xff]
      %v1219 = vld [vmem:[#allocation2 + $0x98] sm:$0xff]
      %v1220 = vld [vmem:[#allocation2 + $0xa0] sm:$0xff]
      %v1221 = vld [vmem:[#allocation2 + $0xa8] sm:$0xff]
      %v1222 = vld [vmem:[#allocation2 + $0xb0] sm:$0xff]
      %v1223 = vld [vmem:[#allocation2 + $0xb8] sm:$0xff]
      %v1224 = vld [vmem:[#allocation2 + $0xc0] sm:$0xff]
      %v1225 = vld [vmem:[#allocation2 + $0xc8] sm:$0xff]
      %v1226 = vld [vmem:[#allocation2 + $0xd0] sm:$0xff]
      %v1227 = vld [vmem:[#allocation2 + $0xd8] sm:$0xff]
      %v1228 = vld [vmem:[#allocation2 + $0xe0] sm:$0xff]
      %v1229 = vld [vmem:[#allocation2 + $0xe8] sm:$0xff]
      %v1230 = vld [vmem:[#allocation2 + $0xf0] sm:$0xff]
      %v1231 = vld [vmem:[#allocation2 + $0xf8] sm:$0xff]
      %v1232 = vadd.f32 %v1200, %v1074
      %v1233 = vadd.f32 %v1201, %v1077
      %v1234 = vadd.f32 %v1202, %v1082
      %v1235 = vadd.f32 %v1203, %v1085
      %v1236 = vadd.f32 %v1204, %v1090
      %v1237 = vadd.f32 %v1205, %v1093
      %v1238 = vadd.f32 %v1206, %v1098
      %v1239 = vadd.f32 %v1207, %v1101
      %v1240 = vadd.f32 %v1208, %v1106
      %v1241 = vadd.f32 %v1209, %v1109
      %v1242 = vadd.f32 %v1210, %v1114
      %v1243 = vadd.f32 %v1211, %v1117
      %v1244 = vadd.f32 %v1212, %v1122
      %v1245 = vadd.f32 %v1213, %v1125
      %v1246 = vadd.f32 %v1214, %v1130
      %v1247 = vadd.f32 %v1215, %v1133
      %v1248 = vadd.f32 %v1216, %v1138
      %v1249 = vadd.f32 %v1217, %v1141
      %v1250 = vadd.f32 %v1218, %v1146
      %v1251 = vadd.f32 %v1219, %v1149
      %v1252 = vadd.f32 %v1220, %v1154
      %v1253 = vadd.f32 %v1221, %v1157
      %v1254 = vadd.f32 %v1222, %v1162
      %v1255 = vadd.f32 %v1223, %v1165
      %v1256 = vadd.f32 %v1224, %v1170
      %v1257 = vadd.f32 %v1225, %v1173
      %v1258 = vadd.f32 %v1226, %v1178
      %v1259 = vadd.f32 %v1227, %v1181
      %v1260 = vadd.f32 %v1228, %v1186
      %v1261 = vadd.f32 %v1229, %v1189
      %v1262 = vadd.f32 %v1230, %v1194
      %v1263 = vadd.f32 %v1231, %v1197
      %1264 = vst [vmem:[#allocation2] sm:$0xff] %v1232
      %1265 = vst [vmem:[#allocation2 + $0x8] sm:$0xff] %v1233
      %1266 = vst [vmem:[#allocation2 + $0x10] sm:$0xff] %v1234
      %1267 = vst [vmem:[#allocation2 + $0x18] sm:$0xff] %v1235
      %1268 = vst [vmem:[#allocation2 + $0x20] sm:$0xff] %v1236
      %1269 = vst [vmem:[#allocation2 + $0x28] sm:$0xff] %v1237
      %1270 = vst [vmem:[#allocation2 + $0x30] sm:$0xff] %v1238
      %1271 = vst [vmem:[#allocation2 + $0x38] sm:$0xff] %v1239
      %1272 = vst [vmem:[#allocation2 + $0x40] sm:$0xff] %v1240
      %1273 = vst [vmem:[#allocation2 + $0x48] sm:$0xff] %v1241
      %1274 = vst [vmem:[#allocation2 + $0x50] sm:$0xff] %v1242
      %1275 = vst [vmem:[#allocation2 + $0x58] sm:$0xff] %v1243
      %1276 = vst [vmem:[#allocation2 + $0x60] sm:$0xff] %v1244
      %1277 = vst [vmem:[#allocation2 + $0x68] sm:$0xff] %v1245
      %1278 = vst [vmem:[#allocation2 + $0x70] sm:$0xff] %v1246
      %1279 = vst [vmem:[#allocation2 + $0x78] sm:$0xff] %v1247
      %1280 = vst [vmem:[#allocation2 + $0x80] sm:$0xff] %v1248
      %1281 = vst [vmem:[#allocation2 + $0x88] sm:$0xff] %v1249
      %1282 = vst [vmem:[#allocation2 + $0x90] sm:$0xff] %v1250
      %1283 = vst [vmem:[#allocation2 + $0x98] sm:$0xff] %v1251
      %1284 = vst [vmem:[#allocation2 + $0xa0] sm:$0xff] %v1252
      %1285 = vst [vmem:[#allocation2 + $0xa8] sm:$0xff] %v1253
      %1286 = vst [vmem:[#allocation2 + $0xb0] sm:$0xff] %v1254
      %1287 = vst [vmem:[#allocation2 + $0xb8] sm:$0xff] %v1255
      %1288 = vst [vmem:[#allocation2 + $0xc0] sm:$0xff] %v1256
      %1289 = vst [vmem:[#allocation2 + $0xc8] sm:$0xff] %v1257
      %1290 = vst [vmem:[#allocation2 + $0xd0] sm:$0xff] %v1258
      %1291 = vst [vmem:[#allocation2 + $0xd8] sm:$0xff] %v1259
      %1292 = vst [vmem:[#allocation2 + $0xe0] sm:$0xff] %v1260
      %1293 = vst [vmem:[#allocation2 + $0xe8] sm:$0xff] %v1261
      %1294 = vst [vmem:[#allocation2 + $0xf0] sm:$0xff] %v1262
      %1295 = vst [vmem:[#allocation2 + $0xf8] sm:$0xff] %v1263
      %vm1312 = vcmask 1042432
      %vm1313 = vcmask 1046532
      %vm1314 = vmor %vm1312, %vm1313
      %v1315 = vrot.slane %v170, 5
      %v1316 = vrot.slane %v1315, 4
      %v1317 = vrot.slane %v171, 5
      %v1318 = vsel %vm1314, %v1316, %v1317
      %v1319 = vrot.slane %v1317, 4
      %v1320 = vrot.slane %v172, 5
      %v1321 = vsel %vm1314, %v1319, %v1320
      %v1322 = vrot.slane %v173, 5
      %v1323 = vrot.slane %v1322, 4
      %v1324 = vrot.slane %v174, 5
      %v1325 = vsel %vm1314, %v1323, %v1324
      %v1326 = vrot.slane %v1324, 4
      %v1327 = vrot.slane %v175, 5
      %v1328 = vsel %vm1314, %v1326, %v1327
      %v1329 = vrot.slane %v176, 5
      %v1330 = vrot.slane %v1329, 4
      %v1331 = vrot.slane %v177, 5
      %v1332 = vsel %vm1314, %v1330, %v1331
      %v1333 = vrot.slane %v1331, 4
      %v1334 = vrot.slane %v178, 5
      %v1335 = vsel %vm1314, %v1333, %v1334
      %v1336 = vrot.slane %v179, 5
      %v1337 = vrot.slane %v1336, 4
      %v1338 = vrot.slane %v180, 5
      %v1339 = vsel %vm1314, %v1337, %v1338
      %v1340 = vrot.slane %v1338, 4
      %v1341 = vrot.slane %v181, 5
      %v1342 = vsel %vm1314, %v1340, %v1341
      %v1343 = vrot.slane %v182, 5
      %v1344 = vrot.slane %v1343, 4
      %v1345 = vrot.slane %v183, 5
      %v1346 = vsel %vm1314, %v1344, %v1345
      %v1347 = vrot.slane %v1345, 4
      %v1348 = vrot.slane %v184, 5
      %v1349 = vsel %vm1314, %v1347, %v1348
      %v1350 = vrot.slane %v185, 5
      %v1351 = vrot.slane %v1350, 4
      %v1352 = vrot.slane %v186, 5
      %v1353 = vsel %vm1314, %v1351, %v1352
      %v1354 = vrot.slane %v1352, 4
      %v1355 = vrot.slane %v187, 5
      %v1356 = vsel %vm1314, %v1354, %v1355
      %v1357 = vrot.slane %v188, 5
      %v1358 = vrot.slane %v1357, 4
      %v1359 = vrot.slane %v189, 5
      %v1360 = vsel %vm1314, %v1358, %v1359
      %v1361 = vrot.slane %v1359, 4
      %v1362 = vrot.slane %v190, 5
      %v1363 = vsel %vm1314, %v1361, %v1362
      %v1364 = vrot.slane %v191, 5
      %v1365 = vrot.slane %v1364, 4
      %v1366 = vrot.slane %v192, 5
      %v1367 = vsel %vm1314, %v1365, %v1366
      %v1368 = vrot.slane %v1366, 4
      %v1369 = vrot.slane %v193, 5
      %v1370 = vsel %vm1314, %v1368, %v1369
      %v1371 = vrot.slane %v194, 5
      %v1372 = vrot.slane %v1371, 4
      %v1373 = vrot.slane %v195, 5
      %v1374 = vsel %vm1314, %v1372, %v1373
      %v1375 = vrot.slane %v1373, 4
      %v1376 = vrot.slane %v196, 5
      %v1377 = vsel %vm1314, %v1375, %v1376
      %v1378 = vrot.slane %v197, 5
      %v1379 = vrot.slane %v1378, 4
      %v1380 = vrot.slane %v198, 5
      %v1381 = vsel %vm1314, %v1379, %v1380
      %v1382 = vrot.slane %v1380, 4
      %v1383 = vrot.slane %v199, 5
      %v1384 = vsel %vm1314, %v1382, %v1383
      %v1385 = vrot.slane %v200, 5
      %v1386 = vrot.slane %v1385, 4
      %v1387 = vrot.slane %v201, 5
      %v1388 = vsel %vm1314, %v1386, %v1387
      %v1389 = vrot.slane %v1387, 4
      %v1390 = vrot.slane %v202, 5
      %v1391 = vsel %vm1314, %v1389, %v1390
      %v1392 = vrot.slane %v203, 5
      %v1393 = vrot.slane %v1392, 4
      %v1394 = vrot.slane %v204, 5
      %v1395 = vsel %vm1314, %v1393, %v1394
      %v1396 = vrot.slane %v1394, 4
      %v1397 = vrot.slane %v205, 5
      %v1398 = vsel %vm1314, %v1396, %v1397
      %v1399 = vrot.slane %v206, 5
      %v1400 = vrot.slane %v1399, 4
      %v1401 = vrot.slane %v207, 5
      %v1402 = vsel %vm1314, %v1400, %v1401
      %v1403 = vrot.slane %v1401, 4
      %v1404 = vrot.slane %v208, 5
      %v1405 = vsel %vm1314, %v1403, %v1404
      %v1406 = vrot.slane %v209, 5
      %v1407 = vrot.slane %v1406, 4
      %v1408 = vrot.slane %v210, 5
      %v1409 = vsel %vm1314, %v1407, %v1408
      %v1410 = vrot.slane %v1408, 4
      %v1411 = vrot.slane %v211, 5
      %v1412 = vsel %vm1314, %v1410, %v1411
      %v1413 = vrot.slane %v212, 5
      %v1414 = vrot.slane %v1413, 4
      %v1415 = vrot.slane %v213, 5
      %v1416 = vsel %vm1314, %v1414, %v1415
      %v1417 = vrot.slane %v1415, 4
      %v1418 = vrot.slane %v214, 5
      %v1419 = vsel %vm1314, %v1417, %v1418
      %v1420 = vrot.slane %v215, 5
      %v1421 = vrot.slane %v1420, 4
      %v1422 = vrot.slane %v216, 5
      %v1423 = vsel %vm1314, %v1421, %v1422
      %v1424 = vrot.slane %v1422, 4
      %v1425 = vrot.slane %v217, 5
      %v1426 = vsel %vm1314, %v1424, %v1425
      %s1427 = scalar_lea.vmem %s1, 4
      %v1428 = vld [vmem:[%s1427] sm:$0x3]
      %v1429 = vunpack.c.l.b16 %v1318
      %v1430 = vunpack.c.l.b16 %v1321
      %v1431 = vunpack.c.l.b16 %v1325
      %v1432 = vunpack.c.l.b16 %v1328
      %v1433 = vunpack.c.l.b16 %v1332
      %v1434 = vunpack.c.l.b16 %v1335
      %v1435 = vunpack.c.l.b16 %v1339
      %v1436 = vunpack.c.l.b16 %v1342
      %v1437 = vunpack.c.l.b16 %v1346
      %v1438 = vunpack.c.l.b16 %v1349
      %v1439 = vunpack.c.l.b16 %v1353
      %v1440 = vunpack.c.l.b16 %v1356
      %v1441 = vunpack.c.l.b16 %v1360
      %v1442 = vunpack.c.l.b16 %v1363
      %v1443 = vunpack.c.l.b16 %v1367
      %v1444 = vunpack.c.l.b16 %v1370
      %v1445 = vunpack.c.l.b16 %v1374
      %v1446 = vunpack.c.l.b16 %v1377
      %v1447 = vunpack.c.l.b16 %v1381
      %v1448 = vunpack.c.l.b16 %v1384
      %v1449 = vunpack.c.l.b16 %v1388
      %v1450 = vunpack.c.l.b16 %v1391
      %v1451 = vunpack.c.l.b16 %v1395
      %v1452 = vunpack.c.l.b16 %v1398
      %v1453 = vunpack.c.l.b16 %v1402
      %v1454 = vunpack.c.l.b16 %v1405
      %v1455 = vunpack.c.l.b16 %v1409
      %v1456 = vunpack.c.l.b16 %v1412
      %v1457 = vunpack.c.l.b16 %v1416
      %v1458 = vunpack.c.l.b16 %v1419
      %v1459 = vunpack.c.l.b16 %v1423
      %v1460 = vunpack.c.l.b16 %v1426
      %v1461 = vpack.c.b16 %v1430, %v1429
      %v1462 = vpack.c.b16 %v1432, %v1431
      %v1463 = vpack.c.b16 %v1434, %v1433
      %v1464 = vpack.c.b16 %v1436, %v1435
      %v1465 = vpack.c.b16 %v1438, %v1437
      %v1466 = vpack.c.b16 %v1440, %v1439
      %v1467 = vpack.c.b16 %v1442, %v1441
      %v1468 = vpack.c.b16 %v1444, %v1443
      %v1469 = vpack.c.b16 %v1446, %v1445
      %v1470 = vpack.c.b16 %v1448, %v1447
      %v1471 = vpack.c.b16 %v1450, %v1449
      %v1472 = vpack.c.b16 %v1452, %v1451
      %v1473 = vpack.c.b16 %v1454, %v1453
      %v1474 = vpack.c.b16 %v1456, %v1455
      %v1475 = vpack.c.b16 %v1458, %v1457
      %v1476 = vpack.c.b16 %v1460, %v1459
      %v1478 = vsel %vm305, %v1461, 0
      %v1481 = vsel %vm305, %v1462, 0
      %v1484 = vsel %vm305, %v1463, 0
      %v1487 = vsel %vm305, %v1464, 0
      %v1490 = vsel %vm305, %v1465, 0
      %v1493 = vsel %vm305, %v1466, 0
      %v1496 = vsel %vm305, %v1467, 0
      %v1499 = vsel %vm305, %v1468, 0
      %v1502 = vsel %vm305, %v1469, 0
      %v1505 = vsel %vm305, %v1470, 0
      %v1508 = vsel %vm305, %v1471, 0
      %v1511 = vsel %vm305, %v1472, 0
      %v1514 = vsel %vm305, %v1473, 0
      %v1517 = vsel %vm305, %v1474, 0
      %v1520 = vsel %vm305, %v1475, 0
      %v1523 = vsel %vm305, %v1476, 0
      %v1526 = vsel %vm354, %v1428, 0
      %1528 = vmatprep.subr.bf16.mxu0 0
      %1529 = vmatpush1.bf16.msra.mxu0 %v1526
      %1530 = vmatprep.subr.bf16.mxu0 0
      %1531 = vmatpush1.bf16.msra.mxu0 0
      %1532 = vmatprep.subr.bf16.mxu0 0
      %1533 = vmatpush1.bf16.msra.mxu0 0
      %1534 = vmatprep.subr.bf16.mxu0 0
      %1535 = vmatpush1.bf16.msra.mxu0 0
      %1536 = vmatprep.subr.bf16.mxu0 0
      %1537 = vmatpush1.bf16.msra.mxu0 0
      %1538 = vmatprep.subr.bf16.mxu0 0
      %1539 = vmatpush1.bf16.msra.mxu0 0
      %1540 = vmatprep.subr.bf16.mxu0 0
      %1541 = vmatpush1.bf16.msra.mxu0 0
      %1542 = vmatprep.subr.bf16.mxu0 0
      %1543 = vmatpush1.bf16.msra.mxu0 0
      %1544 = vmatprep.subr.bf16.mxu0 0
      %1545 = vmatpush1.bf16.msra.mxu0 0
      %1546 = vmatprep.subr.bf16.mxu0 0
      %1547 = vmatpush1.bf16.msra.mxu0 0
      %1548 = vmatprep.subr.bf16.mxu0 0
      %1549 = vmatpush1.bf16.msra.mxu0 0
      %1550 = vmatprep.subr.bf16.mxu0 0
      %1551 = vmatpush1.bf16.msra.mxu0 0
      %1552 = vmatprep.subr.bf16.mxu0 0
      %1553 = vmatpush1.bf16.msra.mxu0 0
      %1554 = vmatprep.subr.bf16.mxu0 0
      %1555 = vmatpush1.bf16.msra.mxu0 0
      %1556 = vmatprep.subr.bf16.mxu0 0
      %1557 = vmatpush1.bf16.msra.mxu0 0
      %1558 = vmatprep.subr.bf16.mxu0 0
      %1559 = vmatpush1.bf16.msra.mxu0 0
      %1560 = vmatprep.mubr.bf16.mxu0 0
      %1561 = vmatmul.mubr.bf16.gmra.mrb[0].mxu0 %v1478
      %v1562 = vpop.f32.mrb[0].mxu0
      %v1563 = vadd.f32 0.0, %v1562
      %v1564 = vpop.f32.mrb[0].mxu0
      %v1565 = vpop.f32.mrb[0].mxu0
      %v1566 = vadd.f32 0.0, %v1565
      %v1567 = vpop.f32.mrb[0].mxu0
      %1568 = vmatprep.mubr.bf16.mxu0 0
      %1569 = vmatmul.mubr.bf16.gmra.mrb[0].mxu0 %v1481
      %v1570 = vpop.f32.mrb[0].mxu0
      %v1571 = vadd.f32 0.0, %v1570
      %v1572 = vpop.f32.mrb[0].mxu0
      %v1573 = vpop.f32.mrb[0].mxu0
      %v1574 = vadd.f32 0.0, %v1573
      %v1575 = vpop.f32.mrb[0].mxu0
      %1576 = vmatprep.mubr.bf16.mxu0 0
      %1577 = vmatmul.mubr.bf16.gmra.mrb[0].mxu0 %v1484
      %v1578 = vpop.f32.mrb[0].mxu0
      %v1579 = vadd.f32 0.0, %v1578
      %v1580 = vpop.f32.mrb[0].mxu0
      %v1581 = vpop.f32.mrb[0].mxu0
      %v1582 = vadd.f32 0.0, %v1581
      %v1583 = vpop.f32.mrb[0].mxu0
      %1584 = vmatprep.mubr.bf16.mxu0 0
      %1585 = vmatmul.mubr.bf16.gmra.mrb[0].mxu0 %v1487
      %v1586 = vpop.f32.mrb[0].mxu0
      %v1587 = vadd.f32 0.0, %v1586
      %v1588 = vpop.f32.mrb[0].mxu0
      %v1589 = vpop.f32.mrb[0].mxu0
      %v1590 = vadd.f32 0.0, %v1589
      %v1591 = vpop.f32.mrb[0].mxu0
      %1592 = vmatprep.mubr.bf16.mxu0 0
      %1593 = vmatmul.mubr.bf16.gmra.mrb[0].mxu0 %v1490
      %v1594 = vpop.f32.mrb[0].mxu0
      %v1595 = vadd.f32 0.0, %v1594
      %v1596 = vpop.f32.mrb[0].mxu0
      %v1597 = vpop.f32.mrb[0].mxu0
      %v1598 = vadd.f32 0.0, %v1597
      %v1599 = vpop.f32.mrb[0].mxu0
      %1600 = vmatprep.mubr.bf16.mxu0 0
      %1601 = vmatmul.mubr.bf16.gmra.mrb[0].mxu0 %v1493
      %v1602 = vpop.f32.mrb[0].mxu0
      %v1603 = vadd.f32 0.0, %v1602
      %v1604 = vpop.f32.mrb[0].mxu0
      %v1605 = vpop.f32.mrb[0].mxu0
      %v1606 = vadd.f32 0.0, %v1605
      %v1607 = vpop.f32.mrb[0].mxu0
      %1608 = vmatprep.mubr.bf16.mxu0 0
      %1609 = vmatmul.mubr.bf16.gmra.mrb[0].mxu0 %v1496
      %v1610 = vpop.f32.mrb[0].mxu0
      %v1611 = vadd.f32 0.0, %v1610
      %v1612 = vpop.f32.mrb[0].mxu0
      %v1613 = vpop.f32.mrb[0].mxu0
      %v1614 = vadd.f32 0.0, %v1613
      %v1615 = vpop.f32.mrb[0].mxu0
      %1616 = vmatprep.mubr.bf16.mxu0 0
      %1617 = vmatmul.mubr.bf16.gmra.mrb[0].mxu0 %v1499
      %v1618 = vpop.f32.mrb[0].mxu0
      %v1619 = vadd.f32 0.0, %v1618
      %v1620 = vpop.f32.mrb[0].mxu0
      %v1621 = vpop.f32.mrb[0].mxu0
      %v1622 = vadd.f32 0.0, %v1621
      %v1623 = vpop.f32.mrb[0].mxu0
      %1624 = vmatprep.mubr.bf16.mxu0 0
      %1625 = vmatmul.mubr.bf16.gmra.mrb[0].mxu0 %v1502
      %v1626 = vpop.f32.mrb[0].mxu0
      %v1627 = vadd.f32 0.0, %v1626
      %v1628 = vpop.f32.mrb[0].mxu0
      %v1629 = vpop.f32.mrb[0].mxu0
      %v1630 = vadd.f32 0.0, %v1629
      %v1631 = vpop.f32.mrb[0].mxu0
      %1632 = vmatprep.mubr.bf16.mxu0 0
      %1633 = vmatmul.mubr.bf16.gmra.mrb[0].mxu0 %v1505
      %v1634 = vpop.f32.mrb[0].mxu0
      %v1635 = vadd.f32 0.0, %v1634
      %v1636 = vpop.f32.mrb[0].mxu0
      %v1637 = vpop.f32.mrb[0].mxu0
      %v1638 = vadd.f32 0.0, %v1637
      %v1639 = vpop.f32.mrb[0].mxu0
      %1640 = vmatprep.mubr.bf16.mxu0 0
      %1641 = vmatmul.mubr.bf16.gmra.mrb[0].mxu0 %v1508
      %v1642 = vpop.f32.mrb[0].mxu0
      %v1643 = vadd.f32 0.0, %v1642
      %v1644 = vpop.f32.mrb[0].mxu0
      %v1645 = vpop.f32.mrb[0].mxu0
      %v1646 = vadd.f32 0.0, %v1645
      %v1647 = vpop.f32.mrb[0].mxu0
      %1648 = vmatprep.mubr.bf16.mxu0 0
      %1649 = vmatmul.mubr.bf16.gmra.mrb[0].mxu0 %v1511
      %v1650 = vpop.f32.mrb[0].mxu0
      %v1651 = vadd.f32 0.0, %v1650
      %v1652 = vpop.f32.mrb[0].mxu0
      %v1653 = vpop.f32.mrb[0].mxu0
      %v1654 = vadd.f32 0.0, %v1653
      %v1655 = vpop.f32.mrb[0].mxu0
      %1656 = vmatprep.mubr.bf16.mxu0 0
      %1657 = vmatmul.mubr.bf16.gmra.mrb[0].mxu0 %v1514
      %v1658 = vpop.f32.mrb[0].mxu0
      %v1659 = vadd.f32 0.0, %v1658
      %v1660 = vpop.f32.mrb[0].mxu0
      %v1661 = vpop.f32.mrb[0].mxu0
      %v1662 = vadd.f32 0.0, %v1661
      %v1663 = vpop.f32.mrb[0].mxu0
      %1664 = vmatprep.mubr.bf16.mxu0 0
      %1665 = vmatmul.mubr.bf16.gmra.mrb[0].mxu0 %v1517
      %v1666 = vpop.f32.mrb[0].mxu0
      %v1667 = vadd.f32 0.0, %v1666
      %v1668 = vpop.f32.mrb[0].mxu0
      %v1669 = vpop.f32.mrb[0].mxu0
      %v1670 = vadd.f32 0.0, %v1669
      %v1671 = vpop.f32.mrb[0].mxu0
      %1672 = vmatprep.mubr.bf16.mxu0 0
      %1673 = vmatmul.mubr.bf16.gmra.mrb[0].mxu0 %v1520
      %v1674 = vpop.f32.mrb[0].mxu0
      %v1675 = vadd.f32 0.0, %v1674
      %v1676 = vpop.f32.mrb[0].mxu0
      %v1677 = vpop.f32.mrb[0].mxu0
      %v1678 = vadd.f32 0.0, %v1677
      %v1679 = vpop.f32.mrb[0].mxu0
      %1680 = vmatprep.mubr.bf16.mxu0 0
      %1681 = vmatmul.mubr.bf16.gmra.mrb[0].mxu0 %v1523
      %v1682 = vpop.f32.mrb[0].mxu0
      %v1683 = vadd.f32 0.0, %v1682
      %v1684 = vpop.f32.mrb[0].mxu0
      %v1685 = vpop.f32.mrb[0].mxu0
      %v1686 = vadd.f32 0.0, %v1685
      %v1687 = vpop.f32.mrb[0].mxu0
      %1688 = vdwg.mxu0
      %v1689 = vld [vmem:[#allocation2] sm:$0xff]
      %v1690 = vld [vmem:[#allocation2 + $0x8] sm:$0xff]
      %v1691 = vld [vmem:[#allocation2 + $0x10] sm:$0xff]
      %v1692 = vld [vmem:[#allocation2 + $0x18] sm:$0xff]
      %v1693 = vld [vmem:[#allocation2 + $0x20] sm:$0xff]
      %v1694 = vld [vmem:[#allocation2 + $0x28] sm:$0xff]
      %v1695 = vld [vmem:[#allocation2 + $0x30] sm:$0xff]
      %v1696 = vld [vmem:[#allocation2 + $0x38] sm:$0xff]
      %v1697 = vld [vmem:[#allocation2 + $0x40] sm:$0xff]
      %v1698 = vld [vmem:[#allocation2 + $0x48] sm:$0xff]
      %v1699 = vld [vmem:[#allocation2 + $0x50] sm:$0xff]
      %v1700 = vld [vmem:[#allocation2 + $0x58] sm:$0xff]
      %v1701 = vld [vmem:[#allocation2 + $0x60] sm:$0xff]
      %v1702 = vld [vmem:[#allocation2 + $0x68] sm:$0xff]
      %v1703 = vld [vmem:[#allocation2 + $0x70] sm:$0xff]
      %v1704 = vld [vmem:[#allocation2 + $0x78] sm:$0xff]
      %v1705 = vld [vmem:[#allocation2 + $0x80] sm:$0xff]
      %v1706 = vld [vmem:[#allocation2 + $0x88] sm:$0xff]
      %v1707 = vld [vmem:[#allocation2 + $0x90] sm:$0xff]
      %v1708 = vld [vmem:[#allocation2 + $0x98] sm:$0xff]
      %v1709 = vld [vmem:[#allocation2 + $0xa0] sm:$0xff]
      %v1710 = vld [vmem:[#allocation2 + $0xa8] sm:$0xff]
      %v1711 = vld [vmem:[#allocation2 + $0xb0] sm:$0xff]
      %v1712 = vld [vmem:[#allocation2 + $0xb8] sm:$0xff]
      %v1713 = vld [vmem:[#allocation2 + $0xc0] sm:$0xff]
      %v1714 = vld [vmem:[#allocation2 + $0xc8] sm:$0xff]
      %v1715 = vld [vmem:[#allocation2 + $0xd0] sm:$0xff]
      %v1716 = vld [vmem:[#allocation2 + $0xd8] sm:$0xff]
      %v1717 = vld [vmem:[#allocation2 + $0xe0] sm:$0xff]
      %v1718 = vld [vmem:[#allocation2 + $0xe8] sm:$0xff]
      %v1719 = vld [vmem:[#allocation2 + $0xf0] sm:$0xff]
      %v1720 = vld [vmem:[#allocation2 + $0xf8] sm:$0xff]
      %v1721 = vadd.f32 %v1689, %v1563
      %v1722 = vadd.f32 %v1690, %v1566
      %v1723 = vadd.f32 %v1691, %v1571
      %v1724 = vadd.f32 %v1692, %v1574
      %v1725 = vadd.f32 %v1693, %v1579
      %v1726 = vadd.f32 %v1694, %v1582
      %v1727 = vadd.f32 %v1695, %v1587
      %v1728 = vadd.f32 %v1696, %v1590
      %v1729 = vadd.f32 %v1697, %v1595
      %v1730 = vadd.f32 %v1698, %v1598
      %v1731 = vadd.f32 %v1699, %v1603
      %v1732 = vadd.f32 %v1700, %v1606
      %v1733 = vadd.f32 %v1701, %v1611
      %v1734 = vadd.f32 %v1702, %v1614
      %v1735 = vadd.f32 %v1703, %v1619
      %v1736 = vadd.f32 %v1704, %v1622
      %v1737 = vadd.f32 %v1705, %v1627
      %v1738 = vadd.f32 %v1706, %v1630
      %v1739 = vadd.f32 %v1707, %v1635
      %v1740 = vadd.f32 %v1708, %v1638
      %v1741 = vadd.f32 %v1709, %v1643
      %v1742 = vadd.f32 %v1710, %v1646
      %v1743 = vadd.f32 %v1711, %v1651
      %v1744 = vadd.f32 %v1712, %v1654
      %v1745 = vadd.f32 %v1713, %v1659
      %v1746 = vadd.f32 %v1714, %v1662
      %v1747 = vadd.f32 %v1715, %v1667
      %v1748 = vadd.f32 %v1716, %v1670
      %v1749 = vadd.f32 %v1717, %v1675
      %v1750 = vadd.f32 %v1718, %v1678
      %v1751 = vadd.f32 %v1719, %v1683
      %v1752 = vadd.f32 %v1720, %v1686
      %1753 = vst [vmem:[#allocation2] sm:$0xff] %v1721
      %1754 = vst [vmem:[#allocation2 + $0x8] sm:$0xff] %v1722
      %1755 = vst [vmem:[#allocation2 + $0x10] sm:$0xff] %v1723
      %1756 = vst [vmem:[#allocation2 + $0x18] sm:$0xff] %v1724
      %1757 = vst [vmem:[#allocation2 + $0x20] sm:$0xff] %v1725
      %1758 = vst [vmem:[#allocation2 + $0x28] sm:$0xff] %v1726
      %1759 = vst [vmem:[#allocation2 + $0x30] sm:$0xff] %v1727
      %1760 = vst [vmem:[#allocation2 + $0x38] sm:$0xff] %v1728
      %1761 = vst [vmem:[#allocation2 + $0x40] sm:$0xff] %v1729
      %1762 = vst [vmem:[#allocation2 + $0x48] sm:$0xff] %v1730
      %1763 = vst [vmem:[#allocation2 + $0x50] sm:$0xff] %v1731
      %1764 = vst [vmem:[#allocation2 + $0x58] sm:$0xff] %v1732
      %1765 = vst [vmem:[#allocation2 + $0x60] sm:$0xff] %v1733
      %1766 = vst [vmem:[#allocation2 + $0x68] sm:$0xff] %v1734
      %1767 = vst [vmem:[#allocation2 + $0x70] sm:$0xff] %v1735
      %1768 = vst [vmem:[#allocation2 + $0x78] sm:$0xff] %v1736
      %1769 = vst [vmem:[#allocation2 + $0x80] sm:$0xff] %v1737
      %1770 = vst [vmem:[#allocation2 + $0x88] sm:$0xff] %v1738
      %1771 = vst [vmem:[#allocation2 + $0x90] sm:$0xff] %v1739
      %1772 = vst [vmem:[#allocation2 + $0x98] sm:$0xff] %v1740
      %1773 = vst [vmem:[#allocation2 + $0xa0] sm:$0xff] %v1741
      %1774 = vst [vmem:[#allocation2 + $0xa8] sm:$0xff] %v1742
      %1775 = vst [vmem:[#allocation2 + $0xb0] sm:$0xff] %v1743
      %1776 = vst [vmem:[#allocation2 + $0xb8] sm:$0xff] %v1744
      %1777 = vst [vmem:[#allocation2 + $0xc0] sm:$0xff] %v1745
      %1778 = vst [vmem:[#allocation2 + $0xc8] sm:$0xff] %v1746
      %1779 = vst [vmem:[#allocation2 + $0xd0] sm:$0xff] %v1747
      %1780 = vst [vmem:[#allocation2 + $0xd8] sm:$0xff] %v1748
      %1781 = vst [vmem:[#allocation2 + $0xe0] sm:$0xff] %v1749
      %1782 = vst [vmem:[#allocation2 + $0xe8] sm:$0xff] %v1750
      %1783 = vst [vmem:[#allocation2 + $0xf0] sm:$0xff] %v1751
      %1784 = vst [vmem:[#allocation2 + $0xf8] sm:$0xff] %v1752
      %s1785 = scalar_lea.vmem %s1, 6
      %v1786 = vld [vmem:[%s1785] sm:$0x3]
      %v1789 = vunpack.c.l.b16 %v218
      %v1790 = vunpack.c.l.b16 %v219
      %v1791 = vpack.c.b16 %v1790, %v1789
      %v1793 = vsel %vm305, %v1791, 0
      %v1796 = vsel %vm354, %v1786, 0
      %1798 = vmatprep.subr.bf16.mxu0 0
      %1799 = vmatpush1.bf16.msra.mxu0 %v1796
      %1800 = vmatprep.subr.bf16.mxu0 0
      %1801 = vmatpush1.bf16.msra.mxu0 0
      %1802 = vmatprep.subr.bf16.mxu0 0
      %1803 = vmatpush1.bf16.msra.mxu0 0
      %1804 = vmatprep.subr.bf16.mxu0 0
      %1805 = vmatpush1.bf16.msra.mxu0 0
      %1806 = vmatprep.subr.bf16.mxu0 0
      %1807 = vmatpush1.bf16.msra.mxu0 0
      %1808 = vmatprep.subr.bf16.mxu0 0
      %1809 = vmatpush1.bf16.msra.mxu0 0
      %1810 = vmatprep.subr.bf16.mxu0 0
      %1811 = vmatpush1.bf16.msra.mxu0 0
      %1812 = vmatprep.subr.bf16.mxu0 0
      %1813 = vmatpush1.bf16.msra.mxu0 0
      %1814 = vmatprep.subr.bf16.mxu0 0
      %1815 = vmatpush1.bf16.msra.mxu0 0
      %1816 = vmatprep.subr.bf16.mxu0 0
      %1817 = vmatpush1.bf16.msra.mxu0 0
      %1818 = vmatprep.subr.bf16.mxu0 0
      %1819 = vmatpush1.bf16.msra.mxu0 0
      %1820 = vmatprep.subr.bf16.mxu0 0
      %1821 = vmatpush1.bf16.msra.mxu0 0
      %1822 = vmatprep.subr.bf16.mxu0 0
      %1823 = vmatpush1.bf16.msra.mxu0 0
      %1824 = vmatprep.subr.bf16.mxu0 0
      %1825 = vmatpush1.bf16.msra.mxu0 0
      %1826 = vmatprep.subr.bf16.mxu0 0
      %1827 = vmatpush1.bf16.msra.mxu0 0
      %1828 = vmatprep.subr.bf16.mxu0 0
      %1829 = vmatpush1.bf16.msra.mxu0 0
      %1830 = vmatprep.mubr.bf16.mxu0 0
      %1831 = vmatmul.mubr.bf16.gmra.mrb[0].mxu0 %v310
      %v1832 = vpop.f32.mrb[0].mxu0
      %v1833 = vadd.f32 0.0, %v1832
      %v1834 = vpop.f32.mrb[0].mxu0
      %v1835 = vpop.f32.mrb[0].mxu0
      %v1836 = vadd.f32 0.0, %v1835
      %v1837 = vpop.f32.mrb[0].mxu0
      %1838 = vmatprep.mubr.bf16.mxu0 0
      %1839 = vmatmul.mubr.bf16.gmra.mrb[0].mxu0 %v313
      %v1840 = vpop.f32.mrb[0].mxu0
      %v1841 = vadd.f32 0.0, %v1840
      %v1842 = vpop.f32.mrb[0].mxu0
      %v1843 = vpop.f32.mrb[0].mxu0
      %v1844 = vadd.f32 0.0, %v1843
      %v1845 = vpop.f32.mrb[0].mxu0
      %1846 = vmatprep.mubr.bf16.mxu0 0
      %1847 = vmatmul.mubr.bf16.gmra.mrb[0].mxu0 %v316
      %v1848 = vpop.f32.mrb[0].mxu0
      %v1849 = vadd.f32 0.0, %v1848
      %v1850 = vpop.f32.mrb[0].mxu0
      %v1851 = vpop.f32.mrb[0].mxu0
      %v1852 = vadd.f32 0.0, %v1851
      %v1853 = vpop.f32.mrb[0].mxu0
      %1854 = vmatprep.mubr.bf16.mxu0 0
      %1855 = vmatmul.mubr.bf16.gmra.mrb[0].mxu0 %v319
      %v1856 = vpop.f32.mrb[0].mxu0
      %v1857 = vadd.f32 0.0, %v1856
      %v1858 = vpop.f32.mrb[0].mxu0
      %v1859 = vpop.f32.mrb[0].mxu0
      %v1860 = vadd.f32 0.0, %v1859
      %v1861 = vpop.f32.mrb[0].mxu0
      %1862 = vmatprep.mubr.bf16.mxu0 0
      %1863 = vmatmul.mubr.bf16.gmra.mrb[0].mxu0 %v322
      %v1864 = vpop.f32.mrb[0].mxu0
      %v1865 = vadd.f32 0.0, %v1864
      %v1866 = vpop.f32.mrb[0].mxu0
      %v1867 = vpop.f32.mrb[0].mxu0
      %v1868 = vadd.f32 0.0, %v1867
      %v1869 = vpop.f32.mrb[0].mxu0
      %1870 = vmatprep.mubr.bf16.mxu0 0
      %1871 = vmatmul.mubr.bf16.gmra.mrb[0].mxu0 %v325
      %v1872 = vpop.f32.mrb[0].mxu0
      %v1873 = vadd.f32 0.0, %v1872
      %v1874 = vpop.f32.mrb[0].mxu0
      %v1875 = vpop.f32.mrb[0].mxu0
      %v1876 = vadd.f32 0.0, %v1875
      %v1877 = vpop.f32.mrb[0].mxu0
      %1878 = vmatprep.mubr.bf16.mxu0 0
      %1879 = vmatmul.mubr.bf16.gmra.mrb[0].mxu0 %v328
      %v1880 = vpop.f32.mrb[0].mxu0
      %v1881 = vadd.f32 0.0, %v1880
      %v1882 = vpop.f32.mrb[0].mxu0
      %v1883 = vpop.f32.mrb[0].mxu0
      %v1884 = vadd.f32 0.0, %v1883
      %v1885 = vpop.f32.mrb[0].mxu0
      %1886 = vmatprep.mubr.bf16.mxu0 0
      %1887 = vmatmul.mubr.bf16.gmra.mrb[0].mxu0 %v331
      %v1888 = vpop.f32.mrb[0].mxu0
      %v1889 = vadd.f32 0.0, %v1888
      %v1890 = vpop.f32.mrb[0].mxu0
      %v1891 = vpop.f32.mrb[0].mxu0
      %v1892 = vadd.f32 0.0, %v1891
      %v1893 = vpop.f32.mrb[0].mxu0
      %1894 = vmatprep.mubr.bf16.mxu0 0
      %1895 = vmatmul.mubr.bf16.gmra.mrb[0].mxu0 %v334
      %v1896 = vpop.f32.mrb[0].mxu0
      %v1897 = vadd.f32 0.0, %v1896
      %v1898 = vpop.f32.mrb[0].mxu0
      %v1899 = vpop.f32.mrb[0].mxu0
      %v1900 = vadd.f32 0.0, %v1899
      %v1901 = vpop.f32.mrb[0].mxu0
      %1902 = vmatprep.mubr.bf16.mxu0 0
      %1903 = vmatmul.mubr.bf16.gmra.mrb[0].mxu0 %v337
      %v1904 = vpop.f32.mrb[0].mxu0
      %v1905 = vadd.f32 0.0, %v1904
      %v1906 = vpop.f32.mrb[0].mxu0
      %v1907 = vpop.f32.mrb[0].mxu0
      %v1908 = vadd.f32 0.0, %v1907
      %v1909 = vpop.f32.mrb[0].mxu0
      %1910 = vmatprep.mubr.bf16.mxu0 0
      %1911 = vmatmul.mubr.bf16.gmra.mrb[0].mxu0 %v340
      %v1912 = vpop.f32.mrb[0].mxu0
      %v1913 = vadd.f32 0.0, %v1912
      %v1914 = vpop.f32.mrb[0].mxu0
      %v1915 = vpop.f32.mrb[0].mxu0
      %v1916 = vadd.f32 0.0, %v1915
      %v1917 = vpop.f32.mrb[0].mxu0
      %1918 = vmatprep.mubr.bf16.mxu0 0
      %1919 = vmatmul.mubr.bf16.gmra.mrb[0].mxu0 %v343
      %v1920 = vpop.f32.mrb[0].mxu0
      %v1921 = vadd.f32 0.0, %v1920
      %v1922 = vpop.f32.mrb[0].mxu0
      %v1923 = vpop.f32.mrb[0].mxu0
      %v1924 = vadd.f32 0.0, %v1923
      %v1925 = vpop.f32.mrb[0].mxu0
      %1926 = vmatprep.mubr.bf16.mxu0 0
      %1927 = vmatmul.mubr.bf16.gmra.mrb[0].mxu0 %v346
      %v1928 = vpop.f32.mrb[0].mxu0
      %v1929 = vadd.f32 0.0, %v1928
      %v1930 = vpop.f32.mrb[0].mxu0
      %v1931 = vpop.f32.mrb[0].mxu0
      %v1932 = vadd.f32 0.0, %v1931
      %v1933 = vpop.f32.mrb[0].mxu0
      %1934 = vmatprep.mubr.bf16.mxu0 0
      %1935 = vmatmul.mubr.bf16.gmra.mrb[0].mxu0 %v349
      %v1936 = vpop.f32.mrb[0].mxu0
      %v1937 = vadd.f32 0.0, %v1936
      %v1938 = vpop.f32.mrb[0].mxu0
      %v1939 = vpop.f32.mrb[0].mxu0
      %v1940 = vadd.f32 0.0, %v1939
      %v1941 = vpop.f32.mrb[0].mxu0
      %1942 = vmatprep.mubr.bf16.mxu0 0
      %1943 = vmatmul.mubr.bf16.gmra.mrb[0].mxu0 %v352
      %v1944 = vpop.f32.mrb[0].mxu0
      %v1945 = vadd.f32 0.0, %v1944
      %v1946 = vpop.f32.mrb[0].mxu0
      %v1947 = vpop.f32.mrb[0].mxu0
      %v1948 = vadd.f32 0.0, %v1947
      %v1949 = vpop.f32.mrb[0].mxu0
      %1950 = vmatprep.mubr.bf16.mxu0 0
      %1951 = vmatmul.mubr.bf16.gmra.mrb[0].mxu0 %v1793
      %v1952 = vpop.f32.mrb[0].mxu0
      %v1953 = vadd.f32 0.0, %v1952
      %v1954 = vpop.f32.mrb[0].mxu0
      %v1955 = vpop.f32.mrb[0].mxu0
      %v1956 = vadd.f32 0.0, %v1955
      %v1957 = vpop.f32.mrb[0].mxu0
      %1958 = vdwg.mxu0
      %v1959 = vld [vmem:[#allocation2] sm:$0xff]
      %v1960 = vld [vmem:[#allocation2 + $0x8] sm:$0xff]
      %v1961 = vld [vmem:[#allocation2 + $0x10] sm:$0xff]
      %v1962 = vld [vmem:[#allocation2 + $0x18] sm:$0xff]
      %v1963 = vld [vmem:[#allocation2 + $0x20] sm:$0xff]
      %v1964 = vld [vmem:[#allocation2 + $0x28] sm:$0xff]
      %v1965 = vld [vmem:[#allocation2 + $0x30] sm:$0xff]
      %v1966 = vld [vmem:[#allocation2 + $0x38] sm:$0xff]
      %v1967 = vld [vmem:[#allocation2 + $0x40] sm:$0xff]
      %v1968 = vld [vmem:[#allocation2 + $0x48] sm:$0xff]
      %v1969 = vld [vmem:[#allocation2 + $0x50] sm:$0xff]
      %v1970 = vld [vmem:[#allocation2 + $0x58] sm:$0xff]
      %v1971 = vld [vmem:[#allocation2 + $0x60] sm:$0xff]
      %v1972 = vld [vmem:[#allocation2 + $0x68] sm:$0xff]
      %v1973 = vld [vmem:[#allocation2 + $0x70] sm:$0xff]
      %v1974 = vld [vmem:[#allocation2 + $0x78] sm:$0xff]
      %v1975 = vld [vmem:[#allocation2 + $0x80] sm:$0xff]
      %v1976 = vld [vmem:[#allocation2 + $0x88] sm:$0xff]
      %v1977 = vld [vmem:[#allocation2 + $0x90] sm:$0xff]
      %v1978 = vld [vmem:[#allocation2 + $0x98] sm:$0xff]
      %v1979 = vld [vmem:[#allocation2 + $0xa0] sm:$0xff]
      %v1980 = vld [vmem:[#allocation2 + $0xa8] sm:$0xff]
      %v1981 = vld [vmem:[#allocation2 + $0xb0] sm:$0xff]
      %v1982 = vld [vmem:[#allocation2 + $0xb8] sm:$0xff]
      %v1983 = vld [vmem:[#allocation2 + $0xc0] sm:$0xff]
      %v1984 = vld [vmem:[#allocation2 + $0xc8] sm:$0xff]
      %v1985 = vld [vmem:[#allocation2 + $0xd0] sm:$0xff]
      %v1986 = vld [vmem:[#allocation2 + $0xd8] sm:$0xff]
      %v1987 = vld [vmem:[#allocation2 + $0xe0] sm:$0xff]
      %v1988 = vld [vmem:[#allocation2 + $0xe8] sm:$0xff]
      %v1989 = vld [vmem:[#allocation2 + $0xf0] sm:$0xff]
      %v1990 = vld [vmem:[#allocation2 + $0xf8] sm:$0xff]
      %v1991 = vadd.f32 %v1959, %v1833
      %v1992 = vadd.f32 %v1960, %v1836
      %v1993 = vadd.f32 %v1961, %v1841
      %v1994 = vadd.f32 %v1962, %v1844
      %v1995 = vadd.f32 %v1963, %v1849
      %v1996 = vadd.f32 %v1964, %v1852
      %v1997 = vadd.f32 %v1965, %v1857
      %v1998 = vadd.f32 %v1966, %v1860
      %v1999 = vadd.f32 %v1967, %v1865
      %v2000 = vadd.f32 %v1968, %v1868
      %v2001 = vadd.f32 %v1969, %v1873
      %v2002 = vadd.f32 %v1970, %v1876
      %v2003 = vadd.f32 %v1971, %v1881
      %v2004 = vadd.f32 %v1972, %v1884
      %v2005 = vadd.f32 %v1973, %v1889
      %v2006 = vadd.f32 %v1974, %v1892
      %v2007 = vadd.f32 %v1975, %v1897
      %v2008 = vadd.f32 %v1976, %v1900
      %v2009 = vadd.f32 %v1977, %v1905
      %v2010 = vadd.f32 %v1978, %v1908
      %v2011 = vadd.f32 %v1979, %v1913
      %v2012 = vadd.f32 %v1980, %v1916
      %v2013 = vadd.f32 %v1981, %v1921
      %v2014 = vadd.f32 %v1982, %v1924
      %v2015 = vadd.f32 %v1983, %v1929
      %v2016 = vadd.f32 %v1984, %v1932
      %v2017 = vadd.f32 %v1985, %v1937
      %v2018 = vadd.f32 %v1986, %v1940
      %v2019 = vadd.f32 %v1987, %v1945
      %v2020 = vadd.f32 %v1988, %v1948
      %v2021 = vadd.f32 %v1989, %v1953
      %v2022 = vadd.f32 %v1990, %v1956
      %2023 = vst [vmem:[#allocation2] sm:$0xff] %v1991
      %2024 = vst [vmem:[#allocation2 + $0x8] sm:$0xff] %v1992
      %2025 = vst [vmem:[#allocation2 + $0x10] sm:$0xff] %v1993
      %2026 = vst [vmem:[#allocation2 + $0x18] sm:$0xff] %v1994
      %2027 = vst [vmem:[#allocation2 + $0x20] sm:$0xff] %v1995
      %2028 = vst [vmem:[#allocation2 + $0x28] sm:$0xff] %v1996
      %2029 = vst [vmem:[#allocation2 + $0x30] sm:$0xff] %v1997
      %2030 = vst [vmem:[#allocation2 + $0x38] sm:$0xff] %v1998
      %2031 = vst [vmem:[#allocation2 + $0x40] sm:$0xff] %v1999
      %2032 = vst [vmem:[#allocation2 + $0x48] sm:$0xff] %v2000
      %2033 = vst [vmem:[#allocation2 + $0x50] sm:$0xff] %v2001
      %2034 = vst [vmem:[#allocation2 + $0x58] sm:$0xff] %v2002
      %2035 = vst [vmem:[#allocation2 + $0x60] sm:$0xff] %v2003
      %2036 = vst [vmem:[#allocation2 + $0x68] sm:$0xff] %v2004
      %2037 = vst [vmem:[#allocation2 + $0x70] sm:$0xff] %v2005
      %2038 = vst [vmem:[#allocation2 + $0x78] sm:$0xff] %v2006
      %2039 = vst [vmem:[#allocation2 + $0x80] sm:$0xff] %v2007
      %2040 = vst [vmem:[#allocation2 + $0x88] sm:$0xff] %v2008
      %2041 = vst [vmem:[#allocation2 + $0x90] sm:$0xff] %v2009
      %2042 = vst [vmem:[#allocation2 + $0x98] sm:$0xff] %v2010
      %2043 = vst [vmem:[#allocation2 + $0xa0] sm:$0xff] %v2011
      %2044 = vst [vmem:[#allocation2 + $0xa8] sm:$0xff] %v2012
      %2045 = vst [vmem:[#allocation2 + $0xb0] sm:$0xff] %v2013
      %2046 = vst [vmem:[#allocation2 + $0xb8] sm:$0xff] %v2014
      %2047 = vst [vmem:[#allocation2 + $0xc0] sm:$0xff] %v2015
      %2048 = vst [vmem:[#allocation2 + $0xc8] sm:$0xff] %v2016
      %2049 = vst [vmem:[#allocation2 + $0xd0] sm:$0xff] %v2017
      %2050 = vst [vmem:[#allocation2 + $0xd8] sm:$0xff] %v2018
      %2051 = vst [vmem:[#allocation2 + $0xe0] sm:$0xff] %v2019
      %2052 = vst [vmem:[#allocation2 + $0xe8] sm:$0xff] %v2020
      %2053 = vst [vmem:[#allocation2 + $0xf0] sm:$0xff] %v2021
      %2054 = vst [vmem:[#allocation2 + $0xf8] sm:$0xff] %v2022
      %v2056 = vshrl.u32 %v218, 16
      %v2058 = vrot.slane %v2056, 4
      %v2059 = vshll.u32 %v218, 16
      %v2061 = vrot.slane %v2059, 5
      %v2062 = vor.u32 %v2058, %v2061
      %v2063 = vrot.slane %v2062, 4
      %v2065 = vshll.u32 %v219, 16
      %v2067 = vrot.slane %v2065, 5
      %v2068 = vsel %vm553, %v2063, %v2067
      %v2069 = vshrl.u32 %v219, 16
      %v2071 = vrot.slane %v2069, 4
      %v2072 = vor.u32 %v2071, %v2067
      %v2073 = vrot.slane %v2072, 4
      %v2075 = vshll.u32 %v220, 16
      %v2077 = vrot.slane %v2075, 5
      %v2078 = vsel %vm553, %v2073, %v2077
      %s2079 = scalar_lea.vmem %s1, 8
      %v2080 = vld [vmem:[%s2079] sm:$0x3]
      %v2081 = vunpack.c.l.b16 %v2068
      %v2082 = vunpack.c.l.b16 %v2078
      %v2083 = vpack.c.b16 %v2082, %v2081
      %v2085 = vsel %vm305, %v2083, 0
      %v2088 = vsel %vm354, %v2080, 0
      %2090 = vmatprep.subr.bf16.mxu0 0
      %2091 = vmatpush1.bf16.msra.mxu0 %v2088
      %2092 = vmatprep.subr.bf16.mxu0 0
      %2093 = vmatpush1.bf16.msra.mxu0 0
      %2094 = vmatprep.subr.bf16.mxu0 0
      %2095 = vmatpush1.bf16.msra.mxu0 0
      %2096 = vmatprep.subr.bf16.mxu0 0
      %2097 = vmatpush1.bf16.msra.mxu0 0
      %2098 = vmatprep.subr.bf16.mxu0 0
      %2099 = vmatpush1.bf16.msra.mxu0 0
      %2100 = vmatprep.subr.bf16.mxu0 0
      %2101 = vmatpush1.bf16.msra.mxu0 0
      %2102 = vmatprep.subr.bf16.mxu0 0
      %2103 = vmatpush1.bf16.msra.mxu0 0
      %2104 = vmatprep.subr.bf16.mxu0 0
      %2105 = vmatpush1.bf16.msra.mxu0 0
      %2106 = vmatprep.subr.bf16.mxu0 0
      %2107 = vmatpush1.bf16.msra.mxu0 0
      %2108 = vmatprep.subr.bf16.mxu0 0
      %2109 = vmatpush1.bf16.msra.mxu0 0
      %2110 = vmatprep.subr.bf16.mxu0 0
      %2111 = vmatpush1.bf16.msra.mxu0 0
      %2112 = vmatprep.subr.bf16.mxu0 0
      %2113 = vmatpush1.bf16.msra.mxu0 0
      %2114 = vmatprep.subr.bf16.mxu0 0
      %2115 = vmatpush1.bf16.msra.mxu0 0
      %2116 = vmatprep.subr.bf16.mxu0 0
      %2117 = vmatpush1.bf16.msra.mxu0 0
      %2118 = vmatprep.subr.bf16.mxu0 0
      %2119 = vmatpush1.bf16.msra.mxu0 0
      %2120 = vmatprep.subr.bf16.mxu0 0
      %2121 = vmatpush1.bf16.msra.mxu0 0
      %2122 = vmatprep.mubr.bf16.mxu0 0
      %2123 = vmatmul.mubr.bf16.gmra.mrb[0].mxu0 %v992
      %v2124 = vpop.f32.mrb[0].mxu0
      %v2125 = vadd.f32 0.0, %v2124
      %v2126 = vpop.f32.mrb[0].mxu0
      %v2127 = vpop.f32.mrb[0].mxu0
      %v2128 = vadd.f32 0.0, %v2127
      %v2129 = vpop.f32.mrb[0].mxu0
      %2130 = vmatprep.mubr.bf16.mxu0 0
      %2131 = vmatmul.mubr.bf16.gmra.mrb[0].mxu0 %v995
      %v2132 = vpop.f32.mrb[0].mxu0
      %v2133 = vadd.f32 0.0, %v2132
      %v2134 = vpop.f32.mrb[0].mxu0
      %v2135 = vpop.f32.mrb[0].mxu0
      %v2136 = vadd.f32 0.0, %v2135
      %v2137 = vpop.f32.mrb[0].mxu0
      %2138 = vmatprep.mubr.bf16.mxu0 0
      %2139 = vmatmul.mubr.bf16.gmra.mrb[0].mxu0 %v998
      %v2140 = vpop.f32.mrb[0].mxu0
      %v2141 = vadd.f32 0.0, %v2140
      %v2142 = vpop.f32.mrb[0].mxu0
      %v2143 = vpop.f32.mrb[0].mxu0
      %v2144 = vadd.f32 0.0, %v2143
      %v2145 = vpop.f32.mrb[0].mxu0
      %2146 = vmatprep.mubr.bf16.mxu0 0
      %2147 = vmatmul.mubr.bf16.gmra.mrb[0].mxu0 %v1001
      %v2148 = vpop.f32.mrb[0].mxu0
      %v2149 = vadd.f32 0.0, %v2148
      %v2150 = vpop.f32.mrb[0].mxu0
      %v2151 = vpop.f32.mrb[0].mxu0
      %v2152 = vadd.f32 0.0, %v2151
      %v2153 = vpop.f32.mrb[0].mxu0
      %2154 = vmatprep.mubr.bf16.mxu0 0
      %2155 = vmatmul.mubr.bf16.gmra.mrb[0].mxu0 %v1004
      %v2156 = vpop.f32.mrb[0].mxu0
      %v2157 = vadd.f32 0.0, %v2156
      %v2158 = vpop.f32.mrb[0].mxu0
      %v2159 = vpop.f32.mrb[0].mxu0
      %v2160 = vadd.f32 0.0, %v2159
      %v2161 = vpop.f32.mrb[0].mxu0
      %2162 = vmatprep.mubr.bf16.mxu0 0
      %2163 = vmatmul.mubr.bf16.gmra.mrb[0].mxu0 %v1007
      %v2164 = vpop.f32.mrb[0].mxu0
      %v2165 = vadd.f32 0.0, %v2164
      %v2166 = vpop.f32.mrb[0].mxu0
      %v2167 = vpop.f32.mrb[0].mxu0
      %v2168 = vadd.f32 0.0, %v2167
      %v2169 = vpop.f32.mrb[0].mxu0
      %2170 = vmatprep.mubr.bf16.mxu0 0
      %2171 = vmatmul.mubr.bf16.gmra.mrb[0].mxu0 %v1010
      %v2172 = vpop.f32.mrb[0].mxu0
      %v2173 = vadd.f32 0.0, %v2172
      %v2174 = vpop.f32.mrb[0].mxu0
      %v2175 = vpop.f32.mrb[0].mxu0
      %v2176 = vadd.f32 0.0, %v2175
      %v2177 = vpop.f32.mrb[0].mxu0
      %2178 = vmatprep.mubr.bf16.mxu0 0
      %2179 = vmatmul.mubr.bf16.gmra.mrb[0].mxu0 %v1013
      %v2180 = vpop.f32.mrb[0].mxu0
      %v2181 = vadd.f32 0.0, %v2180
      %v2182 = vpop.f32.mrb[0].mxu0
      %v2183 = vpop.f32.mrb[0].mxu0
      %v2184 = vadd.f32 0.0, %v2183
      %v2185 = vpop.f32.mrb[0].mxu0
      %2186 = vmatprep.mubr.bf16.mxu0 0
      %2187 = vmatmul.mubr.bf16.gmra.mrb[0].mxu0 %v1016
      %v2188 = vpop.f32.mrb[0].mxu0
      %v2189 = vadd.f32 0.0, %v2188
      %v2190 = vpop.f32.mrb[0].mxu0
      %v2191 = vpop.f32.mrb[0].mxu0
      %v2192 = vadd.f32 0.0, %v2191
      %v2193 = vpop.f32.mrb[0].mxu0
      %2194 = vmatprep.mubr.bf16.mxu0 0
      %2195 = vmatmul.mubr.bf16.gmra.mrb[0].mxu0 %v1019
      %v2196 = vpop.f32.mrb[0].mxu0
      %v2197 = vadd.f32 0.0, %v2196
      %v2198 = vpop.f32.mrb[0].mxu0
      %v2199 = vpop.f32.mrb[0].mxu0
      %v2200 = vadd.f32 0.0, %v2199
      %v2201 = vpop.f32.mrb[0].mxu0
      %2202 = vmatprep.mubr.bf16.mxu0 0
      %2203 = vmatmul.mubr.bf16.gmra.mrb[0].mxu0 %v1022
      %v2204 = vpop.f32.mrb[0].mxu0
      %v2205 = vadd.f32 0.0, %v2204
      %v2206 = vpop.f32.mrb[0].mxu0
      %v2207 = vpop.f32.mrb[0].mxu0
      %v2208 = vadd.f32 0.0, %v2207
      %v2209 = vpop.f32.mrb[0].mxu0
      %2210 = vmatprep.mubr.bf16.mxu0 0
      %2211 = vmatmul.mubr.bf16.gmra.mrb[0].mxu0 %v1025
      %v2212 = vpop.f32.mrb[0].mxu0
      %v2213 = vadd.f32 0.0, %v2212
      %v2214 = vpop.f32.mrb[0].mxu0
      %v2215 = vpop.f32.mrb[0].mxu0
      %v2216 = vadd.f32 0.0, %v2215
      %v2217 = vpop.f32.mrb[0].mxu0
      %2218 = vmatprep.mubr.bf16.mxu0 0
      %2219 = vmatmul.mubr.bf16.gmra.mrb[0].mxu0 %v1028
      %v2220 = vpop.f32.mrb[0].mxu0
      %v2221 = vadd.f32 0.0, %v2220
      %v2222 = vpop.f32.mrb[0].mxu0
      %v2223 = vpop.f32.mrb[0].mxu0
      %v2224 = vadd.f32 0.0, %v2223
      %v2225 = vpop.f32.mrb[0].mxu0
      %2226 = vmatprep.mubr.bf16.mxu0 0
      %2227 = vmatmul.mubr.bf16.gmra.mrb[0].mxu0 %v1031
      %v2228 = vpop.f32.mrb[0].mxu0
      %v2229 = vadd.f32 0.0, %v2228
      %v2230 = vpop.f32.mrb[0].mxu0
      %v2231 = vpop.f32.mrb[0].mxu0
      %v2232 = vadd.f32 0.0, %v2231
      %v2233 = vpop.f32.mrb[0].mxu0
      %2234 = vmatprep.mubr.bf16.mxu0 0
      %2235 = vmatmul.mubr.bf16.gmra.mrb[0].mxu0 %v1034
      %v2236 = vpop.f32.mrb[0].mxu0
      %v2237 = vadd.f32 0.0, %v2236
      %v2238 = vpop.f32.mrb[0].mxu0
      %v2239 = vpop.f32.mrb[0].mxu0
      %v2240 = vadd.f32 0.0, %v2239
      %v2241 = vpop.f32.mrb[0].mxu0
      %2242 = vmatprep.mubr.bf16.mxu0 0
      %2243 = vmatmul.mubr.bf16.gmra.mrb[0].mxu0 %v2085
      %v2244 = vpop.f32.mrb[0].mxu0
      %v2245 = vadd.f32 0.0, %v2244
      %v2246 = vpop.f32.mrb[0].mxu0
      %v2247 = vpop.f32.mrb[0].mxu0
      %v2248 = vadd.f32 0.0, %v2247
      %v2249 = vpop.f32.mrb[0].mxu0
      %2250 = vdwg.mxu0
      %v2251 = vld [vmem:[#allocation2] sm:$0xff]
      %v2252 = vld [vmem:[#allocation2 + $0x8] sm:$0xff]
      %v2253 = vld [vmem:[#allocation2 + $0x10] sm:$0xff]
      %v2254 = vld [vmem:[#allocation2 + $0x18] sm:$0xff]
      %v2255 = vld [vmem:[#allocation2 + $0x20] sm:$0xff]
      %v2256 = vld [vmem:[#allocation2 + $0x28] sm:$0xff]
      %v2257 = vld [vmem:[#allocation2 + $0x30] sm:$0xff]
      %v2258 = vld [vmem:[#allocation2 + $0x38] sm:$0xff]
      %v2259 = vld [vmem:[#allocation2 + $0x40] sm:$0xff]
      %v2260 = vld [vmem:[#allocation2 + $0x48] sm:$0xff]
      %v2261 = vld [vmem:[#allocation2 + $0x50] sm:$0xff]
      %v2262 = vld [vmem:[#allocation2 + $0x58] sm:$0xff]
      %v2263 = vld [vmem:[#allocation2 + $0x60] sm:$0xff]
      %v2264 = vld [vmem:[#allocation2 + $0x68] sm:$0xff]
      %v2265 = vld [vmem:[#allocation2 + $0x70] sm:$0xff]
      %v2266 = vld [vmem:[#allocation2 + $0x78] sm:$0xff]
      %v2267 = vld [vmem:[#allocation2 + $0x80] sm:$0xff]
      %v2268 = vld [vmem:[#allocation2 + $0x88] sm:$0xff]
      %v2269 = vld [vmem:[#allocation2 + $0x90] sm:$0xff]
      %v2270 = vld [vmem:[#allocation2 + $0x98] sm:$0xff]
      %v2271 = vld [vmem:[#allocation2 + $0xa0] sm:$0xff]
      %v2272 = vld [vmem:[#allocation2 + $0xa8] sm:$0xff]
      %v2273 = vld [vmem:[#allocation2 + $0xb0] sm:$0xff]
      %v2274 = vld [vmem:[#allocation2 + $0xb8] sm:$0xff]
      %v2275 = vld [vmem:[#allocation2 + $0xc0] sm:$0xff]
      %v2276 = vld [vmem:[#allocation2 + $0xc8] sm:$0xff]
      %v2277 = vld [vmem:[#allocation2 + $0xd0] sm:$0xff]
      %v2278 = vld [vmem:[#allocation2 + $0xd8] sm:$0xff]
      %v2279 = vld [vmem:[#allocation2 + $0xe0] sm:$0xff]
      %v2280 = vld [vmem:[#allocation2 + $0xe8] sm:$0xff]
      %v2281 = vld [vmem:[#allocation2 + $0xf0] sm:$0xff]
      %v2282 = vld [vmem:[#allocation2 + $0xf8] sm:$0xff]
      %v2283 = vadd.f32 %v2251, %v2125
      %v2284 = vadd.f32 %v2252, %v2128
      %v2285 = vadd.f32 %v2253, %v2133
      %v2286 = vadd.f32 %v2254, %v2136
      %v2287 = vadd.f32 %v2255, %v2141
      %v2288 = vadd.f32 %v2256, %v2144
      %v2289 = vadd.f32 %v2257, %v2149
      %v2290 = vadd.f32 %v2258, %v2152
      %v2291 = vadd.f32 %v2259, %v2157
      %v2292 = vadd.f32 %v2260, %v2160
      %v2293 = vadd.f32 %v2261, %v2165
      %v2294 = vadd.f32 %v2262, %v2168
      %v2295 = vadd.f32 %v2263, %v2173
      %v2296 = vadd.f32 %v2264, %v2176
      %v2297 = vadd.f32 %v2265, %v2181
      %v2298 = vadd.f32 %v2266, %v2184
      %v2299 = vadd.f32 %v2267, %v2189
      %v2300 = vadd.f32 %v2268, %v2192
      %v2301 = vadd.f32 %v2269, %v2197
      %v2302 = vadd.f32 %v2270, %v2200
      %v2303 = vadd.f32 %v2271, %v2205
      %v2304 = vadd.f32 %v2272, %v2208
      %v2305 = vadd.f32 %v2273, %v2213
      %v2306 = vadd.f32 %v2274, %v2216
      %v2307 = vadd.f32 %v2275, %v2221
      %v2308 = vadd.f32 %v2276, %v2224
      %v2309 = vadd.f32 %v2277, %v2229
      %v2310 = vadd.f32 %v2278, %v2232
      %v2311 = vadd.f32 %v2279, %v2237
      %v2312 = vadd.f32 %v2280, %v2240
      %v2313 = vadd.f32 %v2281, %v2245
      %v2314 = vadd.f32 %v2282, %v2248
      %2315 = vst [vmem:[#allocation2] sm:$0xff] %v2283
      %2316 = vst [vmem:[#allocation2 + $0x8] sm:$0xff] %v2284
      %2317 = vst [vmem:[#allocation2 + $0x10] sm:$0xff] %v2285
      %2318 = vst [vmem:[#allocation2 + $0x18] sm:$0xff] %v2286
      %2319 = vst [vmem:[#allocation2 + $0x20] sm:$0xff] %v2287
      %2320 = vst [vmem:[#allocation2 + $0x28] sm:$0xff] %v2288
      %2321 = vst [vmem:[#allocation2 + $0x30] sm:$0xff] %v2289
      %2322 = vst [vmem:[#allocation2 + $0x38] sm:$0xff] %v2290
      %2323 = vst [vmem:[#allocation2 + $0x40] sm:$0xff] %v2291
      %2324 = vst [vmem:[#allocation2 + $0x48] sm:$0xff] %v2292
      %2325 = vst [vmem:[#allocation2 + $0x50] sm:$0xff] %v2293
      %2326 = vst [vmem:[#allocation2 + $0x58] sm:$0xff] %v2294
      %2327 = vst [vmem:[#allocation2 + $0x60] sm:$0xff] %v2295
      %2328 = vst [vmem:[#allocation2 + $0x68] sm:$0xff] %v2296
      %2329 = vst [vmem:[#allocation2 + $0x70] sm:$0xff] %v2297
      %2330 = vst [vmem:[#allocation2 + $0x78] sm:$0xff] %v2298
      %2331 = vst [vmem:[#allocation2 + $0x80] sm:$0xff] %v2299
      %2332 = vst [vmem:[#allocation2 + $0x88] sm:$0xff] %v2300
      %2333 = vst [vmem:[#allocation2 + $0x90] sm:$0xff] %v2301
      %2334 = vst [vmem:[#allocation2 + $0x98] sm:$0xff] %v2302
      %2335 = vst [vmem:[#allocation2 + $0xa0] sm:$0xff] %v2303
      %2336 = vst [vmem:[#allocation2 + $0xa8] sm:$0xff] %v2304
      %2337 = vst [vmem:[#allocation2 + $0xb0] sm:$0xff] %v2305
      %2338 = vst [vmem:[#allocation2 + $0xb8] sm:$0xff] %v2306
      %2339 = vst [vmem:[#allocation2 + $0xc0] sm:$0xff] %v2307
      %2340 = vst [vmem:[#allocation2 + $0xc8] sm:$0xff] %v2308
      %2341 = vst [vmem:[#allocation2 + $0xd0] sm:$0xff] %v2309
      %2342 = vst [vmem:[#allocation2 + $0xd8] sm:$0xff] %v2310
      %2343 = vst [vmem:[#allocation2 + $0xe0] sm:$0xff] %v2311
      %2344 = vst [vmem:[#allocation2 + $0xe8] sm:$0xff] %v2312
      %2345 = vst [vmem:[#allocation2 + $0xf0] sm:$0xff] %v2313
      %2346 = vst [vmem:[#allocation2 + $0xf8] sm:$0xff] %v2314
      %v2348 = vrot.slane %v218, 5
      %v2349 = vrot.slane %v2348, 4
      %v2350 = vrot.slane %v219, 5
      %v2351 = vsel %vm1314, %v2349, %v2350
      %v2352 = vrot.slane %v2350, 4
      %v2353 = vrot.slane %v220, 5
      %v2354 = vsel %vm1314, %v2352, %v2353
      %s2355 = scalar_lea.vmem %s1, 10
      %v2356 = vld [vmem:[%s2355] sm:$0x3]
      %v2357 = vunpack.c.l.b16 %v2351
      %v2358 = vunpack.c.l.b16 %v2354
      %v2359 = vpack.c.b16 %v2358, %v2357
      %v2361 = vsel %vm305, %v2359, 0
      %v2364 = vsel %vm354, %v2356, 0
      %2366 = vmatprep.subr.bf16.mxu0 0
      %2367 = vmatpush1.bf16.msra.mxu0 %v2364
      %2368 = vmatprep.subr.bf16.mxu0 0
      %2369 = vmatpush1.bf16.msra.mxu0 0
      %2370 = vmatprep.subr.bf16.mxu0 0
      %2371 = vmatpush1.bf16.msra.mxu0 0
      %2372 = vmatprep.subr.bf16.mxu0 0
      %2373 = vmatpush1.bf16.msra.mxu0 0
      %2374 = vmatprep.subr.bf16.mxu0 0
      %2375 = vmatpush1.bf16.msra.mxu0 0
      %2376 = vmatprep.subr.bf16.mxu0 0
      %2377 = vmatpush1.bf16.msra.mxu0 0
      %2378 = vmatprep.subr.bf16.mxu0 0
      %2379 = vmatpush1.bf16.msra.mxu0 0
      %2380 = vmatprep.subr.bf16.mxu0 0
      %2381 = vmatpush1.bf16.msra.mxu0 0
      %2382 = vmatprep.subr.bf16.mxu0 0
      %2383 = vmatpush1.bf16.msra.mxu0 0
      %2384 = vmatprep.subr.bf16.mxu0 0
      %2385 = vmatpush1.bf16.msra.mxu0 0
      %2386 = vmatprep.subr.bf16.mxu0 0
      %2387 = vmatpush1.bf16.msra.mxu0 0
      %2388 = vmatprep.subr.bf16.mxu0 0
      %2389 = vmatpush1.bf16.msra.mxu0 0
      %2390 = vmatprep.subr.bf16.mxu0 0
      %2391 = vmatpush1.bf16.msra.mxu0 0
      %2392 = vmatprep.subr.bf16.mxu0 0
      %2393 = vmatpush1.bf16.msra.mxu0 0
      %2394 = vmatprep.subr.bf16.mxu0 0
      %2395 = vmatpush1.bf16.msra.mxu0 0
      %2396 = vmatprep.subr.bf16.mxu0 0
      %2397 = vmatpush1.bf16.msra.mxu0 0
      %2398 = vmatprep.mubr.bf16.mxu0 0
      %2399 = vmatmul.mubr.bf16.gmra.mrb[0].mxu0 %v1481
      %v2400 = vpop.f32.mrb[0].mxu0
      %v2401 = vadd.f32 0.0, %v2400
      %v2402 = vpop.f32.mrb[0].mxu0
      %v2403 = vpop.f32.mrb[0].mxu0
      %v2404 = vadd.f32 0.0, %v2403
      %v2405 = vpop.f32.mrb[0].mxu0
      %2406 = vmatprep.mubr.bf16.mxu0 0
      %2407 = vmatmul.mubr.bf16.gmra.mrb[0].mxu0 %v1484
      %v2408 = vpop.f32.mrb[0].mxu0
      %v2409 = vadd.f32 0.0, %v2408
      %v2410 = vpop.f32.mrb[0].mxu0
      %v2411 = vpop.f32.mrb[0].mxu0
      %v2412 = vadd.f32 0.0, %v2411
      %v2413 = vpop.f32.mrb[0].mxu0
      %2414 = vmatprep.mubr.bf16.mxu0 0
      %2415 = vmatmul.mubr.bf16.gmra.mrb[0].mxu0 %v1487
      %v2416 = vpop.f32.mrb[0].mxu0
      %v2417 = vadd.f32 0.0, %v2416
      %v2418 = vpop.f32.mrb[0].mxu0
      %v2419 = vpop.f32.mrb[0].mxu0
      %v2420 = vadd.f32 0.0, %v2419
      %v2421 = vpop.f32.mrb[0].mxu0
      %2422 = vmatprep.mubr.bf16.mxu0 0
      %2423 = vmatmul.mubr.bf16.gmra.mrb[0].mxu0 %v1490
      %v2424 = vpop.f32.mrb[0].mxu0
      %v2425 = vadd.f32 0.0, %v2424
      %v2426 = vpop.f32.mrb[0].mxu0
      %v2427 = vpop.f32.mrb[0].mxu0
      %v2428 = vadd.f32 0.0, %v2427
      %v2429 = vpop.f32.mrb[0].mxu0
      %2430 = vmatprep.mubr.bf16.mxu0 0
      %2431 = vmatmul.mubr.bf16.gmra.mrb[0].mxu0 %v1493
      %v2432 = vpop.f32.mrb[0].mxu0
      %v2433 = vadd.f32 0.0, %v2432
      %v2434 = vpop.f32.mrb[0].mxu0
      %v2435 = vpop.f32.mrb[0].mxu0
      %v2436 = vadd.f32 0.0, %v2435
      %v2437 = vpop.f32.mrb[0].mxu0
      %2438 = vmatprep.mubr.bf16.mxu0 0
      %2439 = vmatmul.mubr.bf16.gmra.mrb[0].mxu0 %v1496
      %v2440 = vpop.f32.mrb[0].mxu0
      %v2441 = vadd.f32 0.0, %v2440
      %v2442 = vpop.f32.mrb[0].mxu0
      %v2443 = vpop.f32.mrb[0].mxu0
      %v2444 = vadd.f32 0.0, %v2443
      %v2445 = vpop.f32.mrb[0].mxu0
      %2446 = vmatprep.mubr.bf16.mxu0 0
      %2447 = vmatmul.mubr.bf16.gmra.mrb[0].mxu0 %v1499
      %v2448 = vpop.f32.mrb[0].mxu0
      %v2449 = vadd.f32 0.0, %v2448
      %v2450 = vpop.f32.mrb[0].mxu0
      %v2451 = vpop.f32.mrb[0].mxu0
      %v2452 = vadd.f32 0.0, %v2451
      %v2453 = vpop.f32.mrb[0].mxu0
      %2454 = vmatprep.mubr.bf16.mxu0 0
      %2455 = vmatmul.mubr.bf16.gmra.mrb[0].mxu0 %v1502
      %v2456 = vpop.f32.mrb[0].mxu0
      %v2457 = vadd.f32 0.0, %v2456
      %v2458 = vpop.f32.mrb[0].mxu0
      %v2459 = vpop.f32.mrb[0].mxu0
      %v2460 = vadd.f32 0.0, %v2459
      %v2461 = vpop.f32.mrb[0].mxu0
      %2462 = vmatprep.mubr.bf16.mxu0 0
      %2463 = vmatmul.mubr.bf16.gmra.mrb[0].mxu0 %v1505
      %v2464 = vpop.f32.mrb[0].mxu0
      %v2465 = vadd.f32 0.0, %v2464
      %v2466 = vpop.f32.mrb[0].mxu0
      %v2467 = vpop.f32.mrb[0].mxu0
      %v2468 = vadd.f32 0.0, %v2467
      %v2469 = vpop.f32.mrb[0].mxu0
      %2470 = vmatprep.mubr.bf16.mxu0 0
      %2471 = vmatmul.mubr.bf16.gmra.mrb[0].mxu0 %v1508
      %v2472 = vpop.f32.mrb[0].mxu0
      %v2473 = vadd.f32 0.0, %v2472
      %v2474 = vpop.f32.mrb[0].mxu0
      %v2475 = vpop.f32.mrb[0].mxu0
      %v2476 = vadd.f32 0.0, %v2475
      %v2477 = vpop.f32.mrb[0].mxu0
      %2478 = vmatprep.mubr.bf16.mxu0 0
      %2479 = vmatmul.mubr.bf16.gmra.mrb[0].mxu0 %v1511
      %v2480 = vpop.f32.mrb[0].mxu0
      %v2481 = vadd.f32 0.0, %v2480
      %v2482 = vpop.f32.mrb[0].mxu0
      %v2483 = vpop.f32.mrb[0].mxu0
      %v2484 = vadd.f32 0.0, %v2483
      %v2485 = vpop.f32.mrb[0].mxu0
      %2486 = vmatprep.mubr.bf16.mxu0 0
      %2487 = vmatmul.mubr.bf16.gmra.mrb[0].mxu0 %v1514
      %v2488 = vpop.f32.mrb[0].mxu0
      %v2489 = vadd.f32 0.0, %v2488
      %v2490 = vpop.f32.mrb[0].mxu0
      %v2491 = vpop.f32.mrb[0].mxu0
      %v2492 = vadd.f32 0.0, %v2491
      %v2493 = vpop.f32.mrb[0].mxu0
      %2494 = vmatprep.mubr.bf16.mxu0 0
      %2495 = vmatmul.mubr.bf16.gmra.mrb[0].mxu0 %v1517
      %v2496 = vpop.f32.mrb[0].mxu0
      %v2497 = vadd.f32 0.0, %v2496
      %v2498 = vpop.f32.mrb[0].mxu0
      %v2499 = vpop.f32.mrb[0].mxu0
      %v2500 = vadd.f32 0.0, %v2499
      %v2501 = vpop.f32.mrb[0].mxu0
      %2502 = vmatprep.mubr.bf16.mxu0 0
      %2503 = vmatmul.mubr.bf16.gmra.mrb[0].mxu0 %v1520
      %v2504 = vpop.f32.mrb[0].mxu0
      %v2505 = vadd.f32 0.0, %v2504
      %v2506 = vpop.f32.mrb[0].mxu0
      %v2507 = vpop.f32.mrb[0].mxu0
      %v2508 = vadd.f32 0.0, %v2507
      %v2509 = vpop.f32.mrb[0].mxu0
      %2510 = vmatprep.mubr.bf16.mxu0 0
      %2511 = vmatmul.mubr.bf16.gmra.mrb[0].mxu0 %v1523
      %v2512 = vpop.f32.mrb[0].mxu0
      %v2513 = vadd.f32 0.0, %v2512
      %v2514 = vpop.f32.mrb[0].mxu0
      %v2515 = vpop.f32.mrb[0].mxu0
      %v2516 = vadd.f32 0.0, %v2515
      %v2517 = vpop.f32.mrb[0].mxu0
      %2518 = vmatprep.mubr.bf16.mxu0 0
      %2519 = vmatmul.mubr.bf16.gmra.mrb[0].mxu0 %v2361
      %v2520 = vpop.f32.mrb[0].mxu0
      %v2521 = vadd.f32 0.0, %v2520
      %v2522 = vpop.f32.mrb[0].mxu0
      %v2523 = vpop.f32.mrb[0].mxu0
      %v2524 = vadd.f32 0.0, %v2523
      %v2525 = vpop.f32.mrb[0].mxu0
      %2526 = vdwg.mxu0
      %v2527 = vld [vmem:[#allocation2] sm:$0xff]
      %v2528 = vld [vmem:[#allocation2 + $0x8] sm:$0xff]
      %v2529 = vld [vmem:[#allocation2 + $0x10] sm:$0xff]
      %v2530 = vld [vmem:[#allocation2 + $0x18] sm:$0xff]
      %v2531 = vld [vmem:[#allocation2 + $0x20] sm:$0xff]
      %v2532 = vld [vmem:[#allocation2 + $0x28] sm:$0xff]
      %v2533 = vld [vmem:[#allocation2 + $0x30] sm:$0xff]
      %v2534 = vld [vmem:[#allocation2 + $0x38] sm:$0xff]
      %v2535 = vld [vmem:[#allocation2 + $0x40] sm:$0xff]
      %v2536 = vld [vmem:[#allocation2 + $0x48] sm:$0xff]
      %v2537 = vld [vmem:[#allocation2 + $0x50] sm:$0xff]
      %v2538 = vld [vmem:[#allocation2 + $0x58] sm:$0xff]
      %v2539 = vld [vmem:[#allocation2 + $0x60] sm:$0xff]
      %v2540 = vld [vmem:[#allocation2 + $0x68] sm:$0xff]
      %v2541 = vld [vmem:[#allocation2 + $0x70] sm:$0xff]
      %v2542 = vld [vmem:[#allocation2 + $0x78] sm:$0xff]
      %v2543 = vld [vmem:[#allocation2 + $0x80] sm:$0xff]
      %v2544 = vld [vmem:[#allocation2 + $0x88] sm:$0xff]
      %v2545 = vld [vmem:[#allocation2 + $0x90] sm:$0xff]
      %v2546 = vld [vmem:[#allocation2 + $0x98] sm:$0xff]
      %v2547 = vld [vmem:[#allocation2 + $0xa0] sm:$0xff]
      %v2548 = vld [vmem:[#allocation2 + $0xa8] sm:$0xff]
      %v2549 = vld [vmem:[#allocation2 + $0xb0] sm:$0xff]
      %v2550 = vld [vmem:[#allocation2 + $0xb8] sm:$0xff]
      %v2551 = vld [vmem:[#allocation2 + $0xc0] sm:$0xff]
      %v2552 = vld [vmem:[#allocation2 + $0xc8] sm:$0xff]
      %v2553 = vld [vmem:[#allocation2 + $0xd0] sm:$0xff]
      %v2554 = vld [vmem:[#allocation2 + $0xd8] sm:$0xff]
      %v2555 = vld [vmem:[#allocation2 + $0xe0] sm:$0xff]
      %v2556 = vld [vmem:[#allocation2 + $0xe8] sm:$0xff]
      %v2557 = vld [vmem:[#allocation2 + $0xf0] sm:$0xff]
      %v2558 = vld [vmem:[#allocation2 + $0xf8] sm:$0xff]
      %v2559 = vadd.f32 %v2527, %v2401
      %v2560 = vadd.f32 %v2528, %v2404
      %v2561 = vadd.f32 %v2529, %v2409
      %v2562 = vadd.f32 %v2530, %v2412
      %v2563 = vadd.f32 %v2531, %v2417
      %v2564 = vadd.f32 %v2532, %v2420
      %v2565 = vadd.f32 %v2533, %v2425
      %v2566 = vadd.f32 %v2534, %v2428
      %v2567 = vadd.f32 %v2535, %v2433
      %v2568 = vadd.f32 %v2536, %v2436
      %v2569 = vadd.f32 %v2537, %v2441
      %v2570 = vadd.f32 %v2538, %v2444
      %v2571 = vadd.f32 %v2539, %v2449
      %v2572 = vadd.f32 %v2540, %v2452
      %v2573 = vadd.f32 %v2541, %v2457
      %v2574 = vadd.f32 %v2542, %v2460
      %v2575 = vadd.f32 %v2543, %v2465
      %v2576 = vadd.f32 %v2544, %v2468
      %v2577 = vadd.f32 %v2545, %v2473
      %v2578 = vadd.f32 %v2546, %v2476
      %v2579 = vadd.f32 %v2547, %v2481
      %v2580 = vadd.f32 %v2548, %v2484
      %v2581 = vadd.f32 %v2549, %v2489
      %v2582 = vadd.f32 %v2550, %v2492
      %v2583 = vadd.f32 %v2551, %v2497
      %v2584 = vadd.f32 %v2552, %v2500
      %v2585 = vadd.f32 %v2553, %v2505
      %v2586 = vadd.f32 %v2554, %v2508
      %v2587 = vadd.f32 %v2555, %v2513
      %v2588 = vadd.f32 %v2556, %v2516
      %v2589 = vadd.f32 %v2557, %v2521
      %v2590 = vadd.f32 %v2558, %v2524
      %2591 = vst [vmem:[#allocation2] sm:$0xff] %v2559
      %2592 = vst [vmem:[#allocation2 + $0x8] sm:$0xff] %v2560
      %2593 = vst [vmem:[#allocation2 + $0x10] sm:$0xff] %v2561
      %2594 = vst [vmem:[#allocation2 + $0x18] sm:$0xff] %v2562
      %2595 = vst [vmem:[#allocation2 + $0x20] sm:$0xff] %v2563
      %2596 = vst [vmem:[#allocation2 + $0x28] sm:$0xff] %v2564
      %2597 = vst [vmem:[#allocation2 + $0x30] sm:$0xff] %v2565
      %2598 = vst [vmem:[#allocation2 + $0x38] sm:$0xff] %v2566
      %2599 = vst [vmem:[#allocation2 + $0x40] sm:$0xff] %v2567
      %2600 = vst [vmem:[#allocation2 + $0x48] sm:$0xff] %v2568
      %2601 = vst [vmem:[#allocation2 + $0x50] sm:$0xff] %v2569
      %2602 = vst [vmem:[#allocation2 + $0x58] sm:$0xff] %v2570
      %2603 = vst [vmem:[#allocation2 + $0x60] sm:$0xff] %v2571
      %2604 = vst [vmem:[#allocation2 + $0x68] sm:$0xff] %v2572
      %2605 = vst [vmem:[#allocation2 + $0x70] sm:$0xff] %v2573
      %2606 = vst [vmem:[#allocation2 + $0x78] sm:$0xff] %v2574
      %2607 = vst [vmem:[#allocation2 + $0x80] sm:$0xff] %v2575
      %2608 = vst [vmem:[#allocation2 + $0x88] sm:$0xff] %v2576
      %2609 = vst [vmem:[#allocation2 + $0x90] sm:$0xff] %v2577
      %2610 = vst [vmem:[#allocation2 + $0x98] sm:$0xff] %v2578
      %2611 = vst [vmem:[#allocation2 + $0xa0] sm:$0xff] %v2579
      %2612 = vst [vmem:[#allocation2 + $0xa8] sm:$0xff] %v2580
      %2613 = vst [vmem:[#allocation2 + $0xb0] sm:$0xff] %v2581
      %2614 = vst [vmem:[#allocation2 + $0xb8] sm:$0xff] %v2582
      %2615 = vst [vmem:[#allocation2 + $0xc0] sm:$0xff] %v2583
      %2616 = vst [vmem:[#allocation2 + $0xc8] sm:$0xff] %v2584
      %2617 = vst [vmem:[#allocation2 + $0xd0] sm:$0xff] %v2585
      %2618 = vst [vmem:[#allocation2 + $0xd8] sm:$0xff] %v2586
      %2619 = vst [vmem:[#allocation2 + $0xe0] sm:$0xff] %v2587
      %2620 = vst [vmem:[#allocation2 + $0xe8] sm:$0xff] %v2588
      %2621 = vst [vmem:[#allocation2 + $0xf0] sm:$0xff] %v2589
      %2622 = vst [vmem:[#allocation2 + $0xf8] sm:$0xff] %v2590
      %s2623 = scalar_lea.vmem %s1, 12
      %v2624 = vld [vmem:[%s2623] sm:$0x3]
      %v2627 = vunpack.c.l.b16 %v221
      %v2628 = vunpack.c.l.b16 %v222
      %v2629 = vpack.c.b16 %v2628, %v2627
      %v2631 = vsel %vm305, %v2629, 0
      %v2634 = vsel %vm354, %v2624, 0
      %2636 = vmatprep.subr.bf16.mxu0 0
      %2637 = vmatpush1.bf16.msra.mxu0 %v2634
      %2638 = vmatprep.subr.bf16.mxu0 0
      %2639 = vmatpush1.bf16.msra.mxu0 0
      %2640 = vmatprep.subr.bf16.mxu0 0
      %2641 = vmatpush1.bf16.msra.mxu0 0
      %2642 = vmatprep.subr.bf16.mxu0 0
      %2643 = vmatpush1.bf16.msra.mxu0 0
      %2644 = vmatprep.subr.bf16.mxu0 0
      %2645 = vmatpush1.bf16.msra.mxu0 0
      %2646 = vmatprep.subr.bf16.mxu0 0
      %2647 = vmatpush1.bf16.msra.mxu0 0
      %2648 = vmatprep.subr.bf16.mxu0 0
      %2649 = vmatpush1.bf16.msra.mxu0 0
      %2650 = vmatprep.subr.bf16.mxu0 0
      %2651 = vmatpush1.bf16.msra.mxu0 0
      %2652 = vmatprep.subr.bf16.mxu0 0
      %2653 = vmatpush1.bf16.msra.mxu0 0
      %2654 = vmatprep.subr.bf16.mxu0 0
      %2655 = vmatpush1.bf16.msra.mxu0 0
      %2656 = vmatprep.subr.bf16.mxu0 0
      %2657 = vmatpush1.bf16.msra.mxu0 0
      %2658 = vmatprep.subr.bf16.mxu0 0
      %2659 = vmatpush1.bf16.msra.mxu0 0
      %2660 = vmatprep.subr.bf16.mxu0 0
      %2661 = vmatpush1.bf16.msra.mxu0 0
      %2662 = vmatprep.subr.bf16.mxu0 0
      %2663 = vmatpush1.bf16.msra.mxu0 0
      %2664 = vmatprep.subr.bf16.mxu0 0
      %2665 = vmatpush1.bf16.msra.mxu0 0
      %2666 = vmatprep.subr.bf16.mxu0 0
      %2667 = vmatpush1.bf16.msra.mxu0 0
      %2668 = vmatprep.mubr.bf16.mxu0 0
      %2669 = vmatmul.mubr.bf16.gmra.mrb[0].mxu0 %v313
      %v2670 = vpop.f32.mrb[0].mxu0
      %v2671 = vadd.f32 0.0, %v2670
      %v2672 = vpop.f32.mrb[0].mxu0
      %v2673 = vpop.f32.mrb[0].mxu0
      %v2674 = vadd.f32 0.0, %v2673
      %v2675 = vpop.f32.mrb[0].mxu0
      %2676 = vmatprep.mubr.bf16.mxu0 0
      %2677 = vmatmul.mubr.bf16.gmra.mrb[0].mxu0 %v316
      %v2678 = vpop.f32.mrb[0].mxu0
      %v2679 = vadd.f32 0.0, %v2678
      %v2680 = vpop.f32.mrb[0].mxu0
      %v2681 = vpop.f32.mrb[0].mxu0
      %v2682 = vadd.f32 0.0, %v2681
      %v2683 = vpop.f32.mrb[0].mxu0
      %2684 = vmatprep.mubr.bf16.mxu0 0
      %2685 = vmatmul.mubr.bf16.gmra.mrb[0].mxu0 %v319
      %v2686 = vpop.f32.mrb[0].mxu0
      %v2687 = vadd.f32 0.0, %v2686
      %v2688 = vpop.f32.mrb[0].mxu0
      %v2689 = vpop.f32.mrb[0].mxu0
      %v2690 = vadd.f32 0.0, %v2689
      %v2691 = vpop.f32.mrb[0].mxu0
      %2692 = vmatprep.mubr.bf16.mxu0 0
      %2693 = vmatmul.mubr.bf16.gmra.mrb[0].mxu0 %v322
      %v2694 = vpop.f32.mrb[0].mxu0
      %v2695 = vadd.f32 0.0, %v2694
      %v2696 = vpop.f32.mrb[0].mxu0
      %v2697 = vpop.f32.mrb[0].mxu0
      %v2698 = vadd.f32 0.0, %v2697
      %v2699 = vpop.f32.mrb[0].mxu0
      %2700 = vmatprep.mubr.bf16.mxu0 0
      %2701 = vmatmul.mubr.bf16.gmra.mrb[0].mxu0 %v325
      %v2702 = vpop.f32.mrb[0].mxu0
      %v2703 = vadd.f32 0.0, %v2702
      %v2704 = vpop.f32.mrb[0].mxu0
      %v2705 = vpop.f32.mrb[0].mxu0
      %v2706 = vadd.f32 0.0, %v2705
      %v2707 = vpop.f32.mrb[0].mxu0
      %2708 = vmatprep.mubr.bf16.mxu0 0
      %2709 = vmatmul.mubr.bf16.gmra.mrb[0].mxu0 %v328
      %v2710 = vpop.f32.mrb[0].mxu0
      %v2711 = vadd.f32 0.0, %v2710
      %v2712 = vpop.f32.mrb[0].mxu0
      %v2713 = vpop.f32.mrb[0].mxu0
      %v2714 = vadd.f32 0.0, %v2713
      %v2715 = vpop.f32.mrb[0].mxu0
      %2716 = vmatprep.mubr.bf16.mxu0 0
      %2717 = vmatmul.mubr.bf16.gmra.mrb[0].mxu0 %v331
      %v2718 = vpop.f32.mrb[0].mxu0
      %v2719 = vadd.f32 0.0, %v2718
      %v2720 = vpop.f32.mrb[0].mxu0
      %v2721 = vpop.f32.mrb[0].mxu0
      %v2722 = vadd.f32 0.0, %v2721
      %v2723 = vpop.f32.mrb[0].mxu0
      %2724 = vmatprep.mubr.bf16.mxu0 0
      %2725 = vmatmul.mubr.bf16.gmra.mrb[0].mxu0 %v334
      %v2726 = vpop.f32.mrb[0].mxu0
      %v2727 = vadd.f32 0.0, %v2726
      %v2728 = vpop.f32.mrb[0].mxu0
      %v2729 = vpop.f32.mrb[0].mxu0
      %v2730 = vadd.f32 0.0, %v2729
      %v2731 = vpop.f32.mrb[0].mxu0
      %2732 = vmatprep.mubr.bf16.mxu0 0
      %2733 = vmatmul.mubr.bf16.gmra.mrb[0].mxu0 %v337
      %v2734 = vpop.f32.mrb[0].mxu0
      %v2735 = vadd.f32 0.0, %v2734
      %v2736 = vpop.f32.mrb[0].mxu0
      %v2737 = vpop.f32.mrb[0].mxu0
      %v2738 = vadd.f32 0.0, %v2737
      %v2739 = vpop.f32.mrb[0].mxu0
      %2740 = vmatprep.mubr.bf16.mxu0 0
      %2741 = vmatmul.mubr.bf16.gmra.mrb[0].mxu0 %v340
      %v2742 = vpop.f32.mrb[0].mxu0
      %v2743 = vadd.f32 0.0, %v2742
      %v2744 = vpop.f32.mrb[0].mxu0
      %v2745 = vpop.f32.mrb[0].mxu0
      %v2746 = vadd.f32 0.0, %v2745
      %v2747 = vpop.f32.mrb[0].mxu0
      %2748 = vmatprep.mubr.bf16.mxu0 0
      %2749 = vmatmul.mubr.bf16.gmra.mrb[0].mxu0 %v343
      %v2750 = vpop.f32.mrb[0].mxu0
      %v2751 = vadd.f32 0.0, %v2750
      %v2752 = vpop.f32.mrb[0].mxu0
      %v2753 = vpop.f32.mrb[0].mxu0
      %v2754 = vadd.f32 0.0, %v2753
      %v2755 = vpop.f32.mrb[0].mxu0
      %2756 = vmatprep.mubr.bf16.mxu0 0
      %2757 = vmatmul.mubr.bf16.gmra.mrb[0].mxu0 %v346
      %v2758 = vpop.f32.mrb[0].mxu0
      %v2759 = vadd.f32 0.0, %v2758
      %v2760 = vpop.f32.mrb[0].mxu0
      %v2761 = vpop.f32.mrb[0].mxu0
      %v2762 = vadd.f32 0.0, %v2761
      %v2763 = vpop.f32.mrb[0].mxu0
      %2764 = vmatprep.mubr.bf16.mxu0 0
      %2765 = vmatmul.mubr.bf16.gmra.mrb[0].mxu0 %v349
      %v2766 = vpop.f32.mrb[0].mxu0
      %v2767 = vadd.f32 0.0, %v2766
      %v2768 = vpop.f32.mrb[0].mxu0
      %v2769 = vpop.f32.mrb[0].mxu0
      %v2770 = vadd.f32 0.0, %v2769
      %v2771 = vpop.f32.mrb[0].mxu0
      %2772 = vmatprep.mubr.bf16.mxu0 0
      %2773 = vmatmul.mubr.bf16.gmra.mrb[0].mxu0 %v352
      %v2774 = vpop.f32.mrb[0].mxu0
      %v2775 = vadd.f32 0.0, %v2774
      %v2776 = vpop.f32.mrb[0].mxu0
      %v2777 = vpop.f32.mrb[0].mxu0
      %v2778 = vadd.f32 0.0, %v2777
      %v2779 = vpop.f32.mrb[0].mxu0
      %2780 = vmatprep.mubr.bf16.mxu0 0
      %2781 = vmatmul.mubr.bf16.gmra.mrb[0].mxu0 %v1793
      %v2782 = vpop.f32.mrb[0].mxu0
      %v2783 = vadd.f32 0.0, %v2782
      %v2784 = vpop.f32.mrb[0].mxu0
      %v2785 = vpop.f32.mrb[0].mxu0
      %v2786 = vadd.f32 0.0, %v2785
      %v2787 = vpop.f32.mrb[0].mxu0
      %2788 = vmatprep.mubr.bf16.mxu0 0
      %2789 = vmatmul.mubr.bf16.gmra.mrb[0].mxu0 %v2631
      %v2790 = vpop.f32.mrb[0].mxu0
      %v2791 = vadd.f32 0.0, %v2790
      %v2792 = vpop.f32.mrb[0].mxu0
      %v2793 = vpop.f32.mrb[0].mxu0
      %v2794 = vadd.f32 0.0, %v2793
      %v2795 = vpop.f32.mrb[0].mxu0
      %2796 = vdwg.mxu0
      %v2797 = vld [vmem:[#allocation2] sm:$0xff]
      %v2798 = vld [vmem:[#allocation2 + $0x8] sm:$0xff]
      %v2799 = vld [vmem:[#allocation2 + $0x10] sm:$0xff]
      %v2800 = vld [vmem:[#allocation2 + $0x18] sm:$0xff]
      %v2801 = vld [vmem:[#allocation2 + $0x20] sm:$0xff]
      %v2802 = vld [vmem:[#allocation2 + $0x28] sm:$0xff]
      %v2803 = vld [vmem:[#allocation2 + $0x30] sm:$0xff]
      %v2804 = vld [vmem:[#allocation2 + $0x38] sm:$0xff]
      %v2805 = vld [vmem:[#allocation2 + $0x40] sm:$0xff]
      %v2806 = vld [vmem:[#allocation2 + $0x48] sm:$0xff]
      %v2807 = vld [vmem:[#allocation2 + $0x50] sm:$0xff]
      %v2808 = vld [vmem:[#allocation2 + $0x58] sm:$0xff]
      %v2809 = vld [vmem:[#allocation2 + $0x60] sm:$0xff]
      %v2810 = vld [vmem:[#allocation2 + $0x68] sm:$0xff]
      %v2811 = vld [vmem:[#allocation2 + $0x70] sm:$0xff]
      %v2812 = vld [vmem:[#allocation2 + $0x78] sm:$0xff]
      %v2813 = vld [vmem:[#allocation2 + $0x80] sm:$0xff]
      %v2814 = vld [vmem:[#allocation2 + $0x88] sm:$0xff]
      %v2815 = vld [vmem:[#allocation2 + $0x90] sm:$0xff]
      %v2816 = vld [vmem:[#allocation2 + $0x98] sm:$0xff]
      %v2817 = vld [vmem:[#allocation2 + $0xa0] sm:$0xff]
      %v2818 = vld [vmem:[#allocation2 + $0xa8] sm:$0xff]
      %v2819 = vld [vmem:[#allocation2 + $0xb0] sm:$0xff]
      %v2820 = vld [vmem:[#allocation2 + $0xb8] sm:$0xff]
      %v2821 = vld [vmem:[#allocation2 + $0xc0] sm:$0xff]
      %v2822 = vld [vmem:[#allocation2 + $0xc8] sm:$0xff]
      %v2823 = vld [vmem:[#allocation2 + $0xd0] sm:$0xff]
      %v2824 = vld [vmem:[#allocation2 + $0xd8] sm:$0xff]
      %v2825 = vld [vmem:[#allocation2 + $0xe0] sm:$0xff]
      %v2826 = vld [vmem:[#allocation2 + $0xe8] sm:$0xff]
      %v2827 = vld [vmem:[#allocation2 + $0xf0] sm:$0xff]
      %v2828 = vld [vmem:[#allocation2 + $0xf8] sm:$0xff]
      %v2829 = vadd.f32 %v2797, %v2671
      %v2830 = vadd.f32 %v2798, %v2674
      %v2831 = vadd.f32 %v2799, %v2679
      %v2832 = vadd.f32 %v2800, %v2682
      %v2833 = vadd.f32 %v2801, %v2687
      %v2834 = vadd.f32 %v2802, %v2690
      %v2835 = vadd.f32 %v2803, %v2695
      %v2836 = vadd.f32 %v2804, %v2698
      %v2837 = vadd.f32 %v2805, %v2703
      %v2838 = vadd.f32 %v2806, %v2706
      %v2839 = vadd.f32 %v2807, %v2711
      %v2840 = vadd.f32 %v2808, %v2714
      %v2841 = vadd.f32 %v2809, %v2719
      %v2842 = vadd.f32 %v2810, %v2722
      %v2843 = vadd.f32 %v2811, %v2727
      %v2844 = vadd.f32 %v2812, %v2730
      %v2845 = vadd.f32 %v2813, %v2735
      %v2846 = vadd.f32 %v2814, %v2738
      %v2847 = vadd.f32 %v2815, %v2743
      %v2848 = vadd.f32 %v2816, %v2746
      %v2849 = vadd.f32 %v2817, %v2751
      %v2850 = vadd.f32 %v2818, %v2754
      %v2851 = vadd.f32 %v2819, %v2759
      %v2852 = vadd.f32 %v2820, %v2762
      %v2853 = vadd.f32 %v2821, %v2767
      %v2854 = vadd.f32 %v2822, %v2770
      %v2855 = vadd.f32 %v2823, %v2775
      %v2856 = vadd.f32 %v2824, %v2778
      %v2857 = vadd.f32 %v2825, %v2783
      %v2858 = vadd.f32 %v2826, %v2786
      %v2859 = vadd.f32 %v2827, %v2791
      %v2860 = vadd.f32 %v2828, %v2794
      %2861 = vst [vmem:[#allocation2] sm:$0xff] %v2829
      %2862 = vst [vmem:[#allocation2 + $0x8] sm:$0xff] %v2830
      %2863 = vst [vmem:[#allocation2 + $0x10] sm:$0xff] %v2831
      %2864 = vst [vmem:[#allocation2 + $0x18] sm:$0xff] %v2832
      %2865 = vst [vmem:[#allocation2 + $0x20] sm:$0xff] %v2833
      %2866 = vst [vmem:[#allocation2 + $0x28] sm:$0xff] %v2834
      %2867 = vst [vmem:[#allocation2 + $0x30] sm:$0xff] %v2835
      %2868 = vst [vmem:[#allocation2 + $0x38] sm:$0xff] %v2836
      %2869 = vst [vmem:[#allocation2 + $0x40] sm:$0xff] %v2837
      %2870 = vst [vmem:[#allocation2 + $0x48] sm:$0xff] %v2838
      %2871 = vst [vmem:[#allocation2 + $0x50] sm:$0xff] %v2839
      %2872 = vst [vmem:[#allocation2 + $0x58] sm:$0xff] %v2840
      %2873 = vst [vmem:[#allocation2 + $0x60] sm:$0xff] %v2841
      %2874 = vst [vmem:[#allocation2 + $0x68] sm:$0xff] %v2842
      %2875 = vst [vmem:[#allocation2 + $0x70] sm:$0xff] %v2843
      %2876 = vst [vmem:[#allocation2 + $0x78] sm:$0xff] %v2844
      %2877 = vst [vmem:[#allocation2 + $0x80] sm:$0xff] %v2845
      %2878 = vst [vmem:[#allocation2 + $0x88] sm:$0xff] %v2846
      %2879 = vst [vmem:[#allocation2 + $0x90] sm:$0xff] %v2847
      %2880 = vst [vmem:[#allocation2 + $0x98] sm:$0xff] %v2848
      %2881 = vst [vmem:[#allocation2 + $0xa0] sm:$0xff] %v2849
      %2882 = vst [vmem:[#allocation2 + $0xa8] sm:$0xff] %v2850
      %2883 = vst [vmem:[#allocation2 + $0xb0] sm:$0xff] %v2851
      %2884 = vst [vmem:[#allocation2 + $0xb8] sm:$0xff] %v2852
      %2885 = vst [vmem:[#allocation2 + $0xc0] sm:$0xff] %v2853
      %2886 = vst [vmem:[#allocation2 + $0xc8] sm:$0xff] %v2854
      %2887 = vst [vmem:[#allocation2 + $0xd0] sm:$0xff] %v2855
      %2888 = vst [vmem:[#allocation2 + $0xd8] sm:$0xff] %v2856
      %2889 = vst [vmem:[#allocation2 + $0xe0] sm:$0xff] %v2857
      %2890 = vst [vmem:[#allocation2 + $0xe8] sm:$0xff] %v2858
      %2891 = vst [vmem:[#allocation2 + $0xf0] sm:$0xff] %v2859
      %2892 = vst [vmem:[#allocation2 + $0xf8] sm:$0xff] %v2860
      %v2894 = vshrl.u32 %v221, 16
      %v2896 = vrot.slane %v2894, 4
      %v2897 = vshll.u32 %v221, 16
      %v2899 = vrot.slane %v2897, 5
      %v2900 = vor.u32 %v2896, %v2899
      %v2901 = vrot.slane %v2900, 4
      %v2903 = vshll.u32 %v222, 16
      %v2905 = vrot.slane %v2903, 5
      %v2906 = vsel %vm553, %v2901, %v2905
      %v2907 = vshrl.u32 %v222, 16
      %v2909 = vrot.slane %v2907, 4
      %v2910 = vor.u32 %v2909, %v2905
      %v2911 = vrot.slane %v2910, 4
      %v2913 = vshll.u32 %v223, 16
      %v2915 = vrot.slane %v2913, 5
      %v2916 = vsel %vm553, %v2911, %v2915
      %s2917 = scalar_lea.vmem %s1, 14
      %v2918 = vld [vmem:[%s2917] sm:$0x3]
      %v2919 = vunpack.c.l.b16 %v2906
      %v2920 = vunpack.c.l.b16 %v2916
      %v2921 = vpack.c.b16 %v2920, %v2919
      %v2923 = vsel %vm305, %v2921, 0
      %v2926 = vsel %vm354, %v2918, 0
      %2928 = vmatprep.subr.bf16.mxu0 0
      %2929 = vmatpush1.bf16.msra.mxu0 %v2926
      %2930 = vmatprep.subr.bf16.mxu0 0
      %2931 = vmatpush1.bf16.msra.mxu0 0
      %2932 = vmatprep.subr.bf16.mxu0 0
      %2933 = vmatpush1.bf16.msra.mxu0 0
      %2934 = vmatprep.subr.bf16.mxu0 0
      %2935 = vmatpush1.bf16.msra.mxu0 0
      %2936 = vmatprep.subr.bf16.mxu0 0
      %2937 = vmatpush1.bf16.msra.mxu0 0
      %2938 = vmatprep.subr.bf16.mxu0 0
      %2939 = vmatpush1.bf16.msra.mxu0 0
      %2940 = vmatprep.subr.bf16.mxu0 0
      %2941 = vmatpush1.bf16.msra.mxu0 0
      %2942 = vmatprep.subr.bf16.mxu0 0
      %2943 = vmatpush1.bf16.msra.mxu0 0
      %2944 = vmatprep.subr.bf16.mxu0 0
      %2945 = vmatpush1.bf16.msra.mxu0 0
      %2946 = vmatprep.subr.bf16.mxu0 0
      %2947 = vmatpush1.bf16.msra.mxu0 0
      %2948 = vmatprep.subr.bf16.mxu0 0
      %2949 = vmatpush1.bf16.msra.mxu0 0
      %2950 = vmatprep.subr.bf16.mxu0 0
      %2951 = vmatpush1.bf16.msra.mxu0 0
      %2952 = vmatprep.subr.bf16.mxu0 0
      %2953 = vmatpush1.bf16.msra.mxu0 0
      %2954 = vmatprep.subr.bf16.mxu0 0
      %2955 = vmatpush1.bf16.msra.mxu0 0
      %2956 = vmatprep.subr.bf16.mxu0 0
      %2957 = vmatpush1.bf16.msra.mxu0 0
      %2958 = vmatprep.subr.bf16.mxu0 0
      %2959 = vmatpush1.bf16.msra.mxu0 0
      %2960 = vmatprep.mubr.bf16.mxu0 0
      %2961 = vmatmul.mubr.bf16.gmra.mrb[0].mxu0 %v995
      %v2962 = vpop.f32.mrb[0].mxu0
      %v2963 = vadd.f32 0.0, %v2962
      %v2964 = vpop.f32.mrb[0].mxu0
      %v2965 = vpop.f32.mrb[0].mxu0
      %v2966 = vadd.f32 0.0, %v2965
      %v2967 = vpop.f32.mrb[0].mxu0
      %2968 = vmatprep.mubr.bf16.mxu0 0
      %2969 = vmatmul.mubr.bf16.gmra.mrb[0].mxu0 %v998
      %v2970 = vpop.f32.mrb[0].mxu0
      %v2971 = vadd.f32 0.0, %v2970
      %v2972 = vpop.f32.mrb[0].mxu0
      %v2973 = vpop.f32.mrb[0].mxu0
      %v2974 = vadd.f32 0.0, %v2973
      %v2975 = vpop.f32.mrb[0].mxu0
      %2976 = vmatprep.mubr.bf16.mxu0 0
      %2977 = vmatmul.mubr.bf16.gmra.mrb[0].mxu0 %v1001
      %v2978 = vpop.f32.mrb[0].mxu0
      %v2979 = vadd.f32 0.0, %v2978
      %v2980 = vpop.f32.mrb[0].mxu0
      %v2981 = vpop.f32.mrb[0].mxu0
      %v2982 = vadd.f32 0.0, %v2981
      %v2983 = vpop.f32.mrb[0].mxu0
      %2984 = vmatprep.mubr.bf16.mxu0 0
      %2985 = vmatmul.mubr.bf16.gmra.mrb[0].mxu0 %v1004
      %v2986 = vpop.f32.mrb[0].mxu0
      %v2987 = vadd.f32 0.0, %v2986
      %v2988 = vpop.f32.mrb[0].mxu0
      %v2989 = vpop.f32.mrb[0].mxu0
      %v2990 = vadd.f32 0.0, %v2989
      %v2991 = vpop.f32.mrb[0].mxu0
      %2992 = vmatprep.mubr.bf16.mxu0 0
      %2993 = vmatmul.mubr.bf16.gmra.mrb[0].mxu0 %v1007
      %v2994 = vpop.f32.mrb[0].mxu0
      %v2995 = vadd.f32 0.0, %v2994
      %v2996 = vpop.f32.mrb[0].mxu0
      %v2997 = vpop.f32.mrb[0].mxu0
      %v2998 = vadd.f32 0.0, %v2997
      %v2999 = vpop.f32.mrb[0].mxu0
      %3000 = vmatprep.mubr.bf16.mxu0 0
      %3001 = vmatmul.mubr.bf16.gmra.mrb[0].mxu0 %v1010
      %v3002 = vpop.f32.mrb[0].mxu0
      %v3003 = vadd.f32 0.0, %v3002
      %v3004 = vpop.f32.mrb[0].mxu0
      %v3005 = vpop.f32.mrb[0].mxu0
      %v3006 = vadd.f32 0.0, %v3005
      %v3007 = vpop.f32.mrb[0].mxu0
      %3008 = vmatprep.mubr.bf16.mxu0 0
      %3009 = vmatmul.mubr.bf16.gmra.mrb[0].mxu0 %v1013
      %v3010 = vpop.f32.mrb[0].mxu0
      %v3011 = vadd.f32 0.0, %v3010
      %v3012 = vpop.f32.mrb[0].mxu0
      %v3013 = vpop.f32.mrb[0].mxu0
      %v3014 = vadd.f32 0.0, %v3013
      %v3015 = vpop.f32.mrb[0].mxu0
      %3016 = vmatprep.mubr.bf16.mxu0 0
      %3017 = vmatmul.mubr.bf16.gmra.mrb[0].mxu0 %v1016
      %v3018 = vpop.f32.mrb[0].mxu0
      %v3019 = vadd.f32 0.0, %v3018
      %v3020 = vpop.f32.mrb[0].mxu0
      %v3021 = vpop.f32.mrb[0].mxu0
      %v3022 = vadd.f32 0.0, %v3021
      %v3023 = vpop.f32.mrb[0].mxu0
      %3024 = vmatprep.mubr.bf16.mxu0 0
      %3025 = vmatmul.mubr.bf16.gmra.mrb[0].mxu0 %v1019
      %v3026 = vpop.f32.mrb[0].mxu0
      %v3027 = vadd.f32 0.0, %v3026
      %v3028 = vpop.f32.mrb[0].mxu0
      %v3029 = vpop.f32.mrb[0].mxu0
      %v3030 = vadd.f32 0.0, %v3029
      %v3031 = vpop.f32.mrb[0].mxu0
      %3032 = vmatprep.mubr.bf16.mxu0 0
      %3033 = vmatmul.mubr.bf16.gmra.mrb[0].mxu0 %v1022
      %v3034 = vpop.f32.mrb[0].mxu0
      %v3035 = vadd.f32 0.0, %v3034
      %v3036 = vpop.f32.mrb[0].mxu0
      %v3037 = vpop.f32.mrb[0].mxu0
      %v3038 = vadd.f32 0.0, %v3037
      %v3039 = vpop.f32.mrb[0].mxu0
      %3040 = vmatprep.mubr.bf16.mxu0 0
      %3041 = vmatmul.mubr.bf16.gmra.mrb[0].mxu0 %v1025
      %v3042 = vpop.f32.mrb[0].mxu0
      %v3043 = vadd.f32 0.0, %v3042
      %v3044 = vpop.f32.mrb[0].mxu0
      %v3045 = vpop.f32.mrb[0].mxu0
      %v3046 = vadd.f32 0.0, %v3045
      %v3047 = vpop.f32.mrb[0].mxu0
      %3048 = vmatprep.mubr.bf16.mxu0 0
      %3049 = vmatmul.mubr.bf16.gmra.mrb[0].mxu0 %v1028
      %v3050 = vpop.f32.mrb[0].mxu0
      %v3051 = vadd.f32 0.0, %v3050
      %v3052 = vpop.f32.mrb[0].mxu0
      %v3053 = vpop.f32.mrb[0].mxu0
      %v3054 = vadd.f32 0.0, %v3053
      %v3055 = vpop.f32.mrb[0].mxu0
      %3056 = vmatprep.mubr.bf16.mxu0 0
      %3057 = vmatmul.mubr.bf16.gmra.mrb[0].mxu0 %v1031
      %v3058 = vpop.f32.mrb[0].mxu0
      %v3059 = vadd.f32 0.0, %v3058
      %v3060 = vpop.f32.mrb[0].mxu0
      %v3061 = vpop.f32.mrb[0].mxu0
      %v3062 = vadd.f32 0.0, %v3061
      %v3063 = vpop.f32.mrb[0].mxu0
      %3064 = vmatprep.mubr.bf16.mxu0 0
      %3065 = vmatmul.mubr.bf16.gmra.mrb[0].mxu0 %v1034
      %v3066 = vpop.f32.mrb[0].mxu0
      %v3067 = vadd.f32 0.0, %v3066
      %v3068 = vpop.f32.mrb[0].mxu0
      %v3069 = vpop.f32.mrb[0].mxu0
      %v3070 = vadd.f32 0.0, %v3069
      %v3071 = vpop.f32.mrb[0].mxu0
      %3072 = vmatprep.mubr.bf16.mxu0 0
      %3073 = vmatmul.mubr.bf16.gmra.mrb[0].mxu0 %v2085
      %v3074 = vpop.f32.mrb[0].mxu0
      %v3075 = vadd.f32 0.0, %v3074
      %v3076 = vpop.f32.mrb[0].mxu0
      %v3077 = vpop.f32.mrb[0].mxu0
      %v3078 = vadd.f32 0.0, %v3077
      %v3079 = vpop.f32.mrb[0].mxu0
      %3080 = vmatprep.mubr.bf16.mxu0 0
      %3081 = vmatmul.mubr.bf16.gmra.mrb[0].mxu0 %v2923
      %v3082 = vpop.f32.mrb[0].mxu0
      %v3083 = vadd.f32 0.0, %v3082
      %v3084 = vpop.f32.mrb[0].mxu0
      %v3085 = vpop.f32.mrb[0].mxu0
      %v3086 = vadd.f32 0.0, %v3085
      %v3087 = vpop.f32.mrb[0].mxu0
      %3088 = vdwg.mxu0
      %v3089 = vld [vmem:[#allocation2] sm:$0xff]
      %v3090 = vld [vmem:[#allocation2 + $0x8] sm:$0xff]
      %v3091 = vld [vmem:[#allocation2 + $0x10] sm:$0xff]
      %v3092 = vld [vmem:[#allocation2 + $0x18] sm:$0xff]
      %v3093 = vld [vmem:[#allocation2 + $0x20] sm:$0xff]
      %v3094 = vld [vmem:[#allocation2 + $0x28] sm:$0xff]
      %v3095 = vld [vmem:[#allocation2 + $0x30] sm:$0xff]
      %v3096 = vld [vmem:[#allocation2 + $0x38] sm:$0xff]
      %v3097 = vld [vmem:[#allocation2 + $0x40] sm:$0xff]
      %v3098 = vld [vmem:[#allocation2 + $0x48] sm:$0xff]
      %v3099 = vld [vmem:[#allocation2 + $0x50] sm:$0xff]
      %v3100 = vld [vmem:[#allocation2 + $0x58] sm:$0xff]
      %v3101 = vld [vmem:[#allocation2 + $0x60] sm:$0xff]
      %v3102 = vld [vmem:[#allocation2 + $0x68] sm:$0xff]
      %v3103 = vld [vmem:[#allocation2 + $0x70] sm:$0xff]
      %v3104 = vld [vmem:[#allocation2 + $0x78] sm:$0xff]
      %v3105 = vld [vmem:[#allocation2 + $0x80] sm:$0xff]
      %v3106 = vld [vmem:[#allocation2 + $0x88] sm:$0xff]
      %v3107 = vld [vmem:[#allocation2 + $0x90] sm:$0xff]
      %v3108 = vld [vmem:[#allocation2 + $0x98] sm:$0xff]
      %v3109 = vld [vmem:[#allocation2 + $0xa0] sm:$0xff]
      %v3110 = vld [vmem:[#allocation2 + $0xa8] sm:$0xff]
      %v3111 = vld [vmem:[#allocation2 + $0xb0] sm:$0xff]
      %v3112 = vld [vmem:[#allocation2 + $0xb8] sm:$0xff]
      %v3113 = vld [vmem:[#allocation2 + $0xc0] sm:$0xff]
      %v3114 = vld [vmem:[#allocation2 + $0xc8] sm:$0xff]
      %v3115 = vld [vmem:[#allocation2 + $0xd0] sm:$0xff]
      %v3116 = vld [vmem:[#allocation2 + $0xd8] sm:$0xff]
      %v3117 = vld [vmem:[#allocation2 + $0xe0] sm:$0xff]
      %v3118 = vld [vmem:[#allocation2 + $0xe8] sm:$0xff]
      %v3119 = vld [vmem:[#allocation2 + $0xf0] sm:$0xff]
      %v3120 = vld [vmem:[#allocation2 + $0xf8] sm:$0xff]
      %v3121 = vadd.f32 %v3089, %v2963
      %v3122 = vadd.f32 %v3090, %v2966
      %v3123 = vadd.f32 %v3091, %v2971
      %v3124 = vadd.f32 %v3092, %v2974
      %v3125 = vadd.f32 %v3093, %v2979
      %v3126 = vadd.f32 %v3094, %v2982
      %v3127 = vadd.f32 %v3095, %v2987
      %v3128 = vadd.f32 %v3096, %v2990
      %v3129 = vadd.f32 %v3097, %v2995
      %v3130 = vadd.f32 %v3098, %v2998
      %v3131 = vadd.f32 %v3099, %v3003
      %v3132 = vadd.f32 %v3100, %v3006
      %v3133 = vadd.f32 %v3101, %v3011
      %v3134 = vadd.f32 %v3102, %v3014
      %v3135 = vadd.f32 %v3103, %v3019
      %v3136 = vadd.f32 %v3104, %v3022
      %v3137 = vadd.f32 %v3105, %v3027
      %v3138 = vadd.f32 %v3106, %v3030
      %v3139 = vadd.f32 %v3107, %v3035
      %v3140 = vadd.f32 %v3108, %v3038
      %v3141 = vadd.f32 %v3109, %v3043
      %v3142 = vadd.f32 %v3110, %v3046
      %v3143 = vadd.f32 %v3111, %v3051
      %v3144 = vadd.f32 %v3112, %v3054
      %v3145 = vadd.f32 %v3113, %v3059
      %v3146 = vadd.f32 %v3114, %v3062
      %v3147 = vadd.f32 %v3115, %v3067
      %v3148 = vadd.f32 %v3116, %v3070
      %v3149 = vadd.f32 %v3117, %v3075
      %v3150 = vadd.f32 %v3118, %v3078
      %v3151 = vadd.f32 %v3119, %v3083
      %v3152 = vadd.f32 %v3120, %v3086
      %3153 = vst [vmem:[#allocation2] sm:$0xff] %v3121
      %3154 = vst [vmem:[#allocation2 + $0x8] sm:$0xff] %v3122
      %3155 = vst [vmem:[#allocation2 + $0x10] sm:$0xff] %v3123
      %3156 = vst [vmem:[#allocation2 + $0x18] sm:$0xff] %v3124
      %3157 = vst [vmem:[#allocation2 + $0x20] sm:$0xff] %v3125
      %3158 = vst [vmem:[#allocation2 + $0x28] sm:$0xff] %v3126
      %3159 = vst [vmem:[#allocation2 + $0x30] sm:$0xff] %v3127
      %3160 = vst [vmem:[#allocation2 + $0x38] sm:$0xff] %v3128
      %3161 = vst [vmem:[#allocation2 + $0x40] sm:$0xff] %v3129
      %3162 = vst [vmem:[#allocation2 + $0x48] sm:$0xff] %v3130
      %3163 = vst [vmem:[#allocation2 + $0x50] sm:$0xff] %v3131
      %3164 = vst [vmem:[#allocation2 + $0x58] sm:$0xff] %v3132
      %3165 = vst [vmem:[#allocation2 + $0x60] sm:$0xff] %v3133
      %3166 = vst [vmem:[#allocation2 + $0x68] sm:$0xff] %v3134
      %3167 = vst [vmem:[#allocation2 + $0x70] sm:$0xff] %v3135
      %3168 = vst [vmem:[#allocation2 + $0x78] sm:$0xff] %v3136
      %3169 = vst [vmem:[#allocation2 + $0x80] sm:$0xff] %v3137
      %3170 = vst [vmem:[#allocation2 + $0x88] sm:$0xff] %v3138
      %3171 = vst [vmem:[#allocation2 + $0x90] sm:$0xff] %v3139
      %3172 = vst [vmem:[#allocation2 + $0x98] sm:$0xff] %v3140
      %3173 = vst [vmem:[#allocation2 + $0xa0] sm:$0xff] %v3141
      %3174 = vst [vmem:[#allocation2 + $0xa8] sm:$0xff] %v3142
      %3175 = vst [vmem:[#allocation2 + $0xb0] sm:$0xff] %v3143
      %3176 = vst [vmem:[#allocation2 + $0xb8] sm:$0xff] %v3144
      %3177 = vst [vmem:[#allocation2 + $0xc0] sm:$0xff] %v3145
      %3178 = vst [vmem:[#allocation2 + $0xc8] sm:$0xff] %v3146
      %3179 = vst [vmem:[#allocation2 + $0xd0] sm:$0xff] %v3147
      %3180 = vst [vmem:[#allocation2 + $0xd8] sm:$0xff] %v3148
      %3181 = vst [vmem:[#allocation2 + $0xe0] sm:$0xff] %v3149
      %3182 = vst [vmem:[#allocation2 + $0xe8] sm:$0xff] %v3150
      %3183 = vst [vmem:[#allocation2 + $0xf0] sm:$0xff] %v3151
      %3184 = vst [vmem:[#allocation2 + $0xf8] sm:$0xff] %v3152
      %v3186 = vrot.slane %v221, 5
      %v3187 = vrot.slane %v3186, 4
      %v3188 = vrot.slane %v222, 5
      %v3189 = vsel %vm1314, %v3187, %v3188
      %v3190 = vrot.slane %v3188, 4
      %v3191 = vrot.slane %v223, 5
      %v3192 = vsel %vm1314, %v3190, %v3191
      %s3193 = scalar_lea.vmem %s1, 16
      %v3194 = vld [vmem:[%s3193] sm:$0x3]
      %v3195 = vunpack.c.l.b16 %v3189
      %v3196 = vunpack.c.l.b16 %v3192
      %v3197 = vpack.c.b16 %v3196, %v3195
      %v3199 = vsel %vm305, %v3197, 0
      %v3202 = vsel %vm354, %v3194, 0
      %3204 = vmatprep.subr.bf16.mxu0 0
      %3205 = vmatpush1.bf16.msra.mxu0 %v3202
      %3206 = vmatprep.subr.bf16.mxu0 0
      %3207 = vmatpush1.bf16.msra.mxu0 0
      %3208 = vmatprep.subr.bf16.mxu0 0
      %3209 = vmatpush1.bf16.msra.mxu0 0
      %3210 = vmatprep.subr.bf16.mxu0 0
      %3211 = vmatpush1.bf16.msra.mxu0 0
      %3212 = vmatprep.subr.bf16.mxu0 0
      %3213 = vmatpush1.bf16.msra.mxu0 0
      %3214 = vmatprep.subr.bf16.mxu0 0
      %3215 = vmatpush1.bf16.msra.mxu0 0
      %3216 = vmatprep.subr.bf16.mxu0 0
      %3217 = vmatpush1.bf16.msra.mxu0 0
      %3218 = vmatprep.subr.bf16.mxu0 0
      %3219 = vmatpush1.bf16.msra.mxu0 0
      %3220 = vmatprep.subr.bf16.mxu0 0
      %3221 = vmatpush1.bf16.msra.mxu0 0
      %3222 = vmatprep.subr.bf16.mxu0 0
      %3223 = vmatpush1.bf16.msra.mxu0 0
      %3224 = vmatprep.subr.bf16.mxu0 0
      %3225 = vmatpush1.bf16.msra.mxu0 0
      %3226 = vmatprep.subr.bf16.mxu0 0
      %3227 = vmatpush1.bf16.msra.mxu0 0
      %3228 = vmatprep.subr.bf16.mxu0 0
      %3229 = vmatpush1.bf16.msra.mxu0 0
      %3230 = vmatprep.subr.bf16.mxu0 0
      %3231 = vmatpush1.bf16.msra.mxu0 0
      %3232 = vmatprep.subr.bf16.mxu0 0
      %3233 = vmatpush1.bf16.msra.mxu0 0
      %3234 = vmatprep.subr.bf16.mxu0 0
      %3235 = vmatpush1.bf16.msra.mxu0 0
      %3236 = vmatprep.mubr.bf16.mxu0 0
      %3237 = vmatmul.mubr.bf16.gmra.mrb[0].mxu0 %v1484
      %v3238 = vpop.f32.mrb[0].mxu0
      %v3239 = vadd.f32 0.0, %v3238
      %v3240 = vpop.f32.mrb[0].mxu0
      %v3241 = vpop.f32.mrb[0].mxu0
      %v3242 = vadd.f32 0.0, %v3241
      %v3243 = vpop.f32.mrb[0].mxu0
      %3244 = vmatprep.mubr.bf16.mxu0 0
      %3245 = vmatmul.mubr.bf16.gmra.mrb[0].mxu0 %v1487
      %v3246 = vpop.f32.mrb[0].mxu0
      %v3247 = vadd.f32 0.0, %v3246
      %v3248 = vpop.f32.mrb[0].mxu0
      %v3249 = vpop.f32.mrb[0].mxu0
      %v3250 = vadd.f32 0.0, %v3249
      %v3251 = vpop.f32.mrb[0].mxu0
      %3252 = vmatprep.mubr.bf16.mxu0 0
      %3253 = vmatmul.mubr.bf16.gmra.mrb[0].mxu0 %v1490
      %v3254 = vpop.f32.mrb[0].mxu0
      %v3255 = vadd.f32 0.0, %v3254
      %v3256 = vpop.f32.mrb[0].mxu0
      %v3257 = vpop.f32.mrb[0].mxu0
      %v3258 = vadd.f32 0.0, %v3257
      %v3259 = vpop.f32.mrb[0].mxu0
      %3260 = vmatprep.mubr.bf16.mxu0 0
      %3261 = vmatmul.mubr.bf16.gmra.mrb[0].mxu0 %v1493
      %v3262 = vpop.f32.mrb[0].mxu0
      %v3263 = vadd.f32 0.0, %v3262
      %v3264 = vpop.f32.mrb[0].mxu0
      %v3265 = vpop.f32.mrb[0].mxu0
      %v3266 = vadd.f32 0.0, %v3265
      %v3267 = vpop.f32.mrb[0].mxu0
      %3268 = vmatprep.mubr.bf16.mxu0 0
      %3269 = vmatmul.mubr.bf16.gmra.mrb[0].mxu0 %v1496
      %v3270 = vpop.f32.mrb[0].mxu0
      %v3271 = vadd.f32 0.0, %v3270
      %v3272 = vpop.f32.mrb[0].mxu0
      %v3273 = vpop.f32.mrb[0].mxu0
      %v3274 = vadd.f32 0.0, %v3273
      %v3275 = vpop.f32.mrb[0].mxu0
      %3276 = vmatprep.mubr.bf16.mxu0 0
      %3277 = vmatmul.mubr.bf16.gmra.mrb[0].mxu0 %v1499
      %v3278 = vpop.f32.mrb[0].mxu0
      %v3279 = vadd.f32 0.0, %v3278
      %v3280 = vpop.f32.mrb[0].mxu0
      %v3281 = vpop.f32.mrb[0].mxu0
      %v3282 = vadd.f32 0.0, %v3281
      %v3283 = vpop.f32.mrb[0].mxu0
      %3284 = vmatprep.mubr.bf16.mxu0 0
      %3285 = vmatmul.mubr.bf16.gmra.mrb[0].mxu0 %v1502
      %v3286 = vpop.f32.mrb[0].mxu0
      %v3287 = vadd.f32 0.0, %v3286
      %v3288 = vpop.f32.mrb[0].mxu0
      %v3289 = vpop.f32.mrb[0].mxu0
      %v3290 = vadd.f32 0.0, %v3289
      %v3291 = vpop.f32.mrb[0].mxu0
      %3292 = vmatprep.mubr.bf16.mxu0 0
      %3293 = vmatmul.mubr.bf16.gmra.mrb[0].mxu0 %v1505
      %v3294 = vpop.f32.mrb[0].mxu0
      %v3295 = vadd.f32 0.0, %v3294
      %v3296 = vpop.f32.mrb[0].mxu0
      %v3297 = vpop.f32.mrb[0].mxu0
      %v3298 = vadd.f32 0.0, %v3297
      %v3299 = vpop.f32.mrb[0].mxu0
      %3300 = vmatprep.mubr.bf16.mxu0 0
      %3301 = vmatmul.mubr.bf16.gmra.mrb[0].mxu0 %v1508
      %v3302 = vpop.f32.mrb[0].mxu0
      %v3303 = vadd.f32 0.0, %v3302
      %v3304 = vpop.f32.mrb[0].mxu0
      %v3305 = vpop.f32.mrb[0].mxu0
      %v3306 = vadd.f32 0.0, %v3305
      %v3307 = vpop.f32.mrb[0].mxu0
      %3308 = vmatprep.mubr.bf16.mxu0 0
      %3309 = vmatmul.mubr.bf16.gmra.mrb[0].mxu0 %v1511
      %v3310 = vpop.f32.mrb[0].mxu0
      %v3311 = vadd.f32 0.0, %v3310
      %v3312 = vpop.f32.mrb[0].mxu0
      %v3313 = vpop.f32.mrb[0].mxu0
      %v3314 = vadd.f32 0.0, %v3313
      %v3315 = vpop.f32.mrb[0].mxu0
      %3316 = vmatprep.mubr.bf16.mxu0 0
      %3317 = vmatmul.mubr.bf16.gmra.mrb[0].mxu0 %v1514
      %v3318 = vpop.f32.mrb[0].mxu0
      %v3319 = vadd.f32 0.0, %v3318
      %v3320 = vpop.f32.mrb[0].mxu0
      %v3321 = vpop.f32.mrb[0].mxu0
      %v3322 = vadd.f32 0.0, %v3321
      %v3323 = vpop.f32.mrb[0].mxu0
      %3324 = vmatprep.mubr.bf16.mxu0 0
      %3325 = vmatmul.mubr.bf16.gmra.mrb[0].mxu0 %v1517
      %v3326 = vpop.f32.mrb[0].mxu0
      %v3327 = vadd.f32 0.0, %v3326
      %v3328 = vpop.f32.mrb[0].mxu0
      %v3329 = vpop.f32.mrb[0].mxu0
      %v3330 = vadd.f32 0.0, %v3329
      %v3331 = vpop.f32.mrb[0].mxu0
      %3332 = vmatprep.mubr.bf16.mxu0 0
      %3333 = vmatmul.mubr.bf16.gmra.mrb[0].mxu0 %v1520
      %v3334 = vpop.f32.mrb[0].mxu0
      %v3335 = vadd.f32 0.0, %v3334
      %v3336 = vpop.f32.mrb[0].mxu0
      %v3337 = vpop.f32.mrb[0].mxu0
      %v3338 = vadd.f32 0.0, %v3337
      %v3339 = vpop.f32.mrb[0].mxu0
      %3340 = vmatprep.mubr.bf16.mxu0 0
      %3341 = vmatmul.mubr.bf16.gmra.mrb[0].mxu0 %v1523
      %v3342 = vpop.f32.mrb[0].mxu0
      %v3343 = vadd.f32 0.0, %v3342
      %v3344 = vpop.f32.mrb[0].mxu0
      %v3345 = vpop.f32.mrb[0].mxu0
      %v3346 = vadd.f32 0.0, %v3345
      %v3347 = vpop.f32.mrb[0].mxu0
      %3348 = vmatprep.mubr.bf16.mxu0 0
      %3349 = vmatmul.mubr.bf16.gmra.mrb[0].mxu0 %v2361
      %v3350 = vpop.f32.mrb[0].mxu0
      %v3351 = vadd.f32 0.0, %v3350
      %v3352 = vpop.f32.mrb[0].mxu0
      %v3353 = vpop.f32.mrb[0].mxu0
      %v3354 = vadd.f32 0.0, %v3353
      %v3355 = vpop.f32.mrb[0].mxu0
      %3356 = vmatprep.mubr.bf16.mxu0 0
      %3357 = vmatmul.mubr.bf16.gmra.mrb[0].mxu0 %v3199
      %v3358 = vpop.f32.mrb[0].mxu0
      %v3359 = vadd.f32 0.0, %v3358
      %v3360 = vpop.f32.mrb[0].mxu0
      %v3361 = vpop.f32.mrb[0].mxu0
      %v3362 = vadd.f32 0.0, %v3361
      %v3363 = vpop.f32.mrb[0].mxu0
      %3364 = vdwg.mxu0
      %v3365 = vld [vmem:[#allocation2] sm:$0xff]
      %v3366 = vld [vmem:[#allocation2 + $0x8] sm:$0xff]
      %v3367 = vld [vmem:[#allocation2 + $0x10] sm:$0xff]
      %v3368 = vld [vmem:[#allocation2 + $0x18] sm:$0xff]
      %v3369 = vld [vmem:[#allocation2 + $0x20] sm:$0xff]
      %v3370 = vld [vmem:[#allocation2 + $0x28] sm:$0xff]
      %v3371 = vld [vmem:[#allocation2 + $0x30] sm:$0xff]
      %v3372 = vld [vmem:[#allocation2 + $0x38] sm:$0xff]
      %v3373 = vld [vmem:[#allocation2 + $0x40] sm:$0xff]
      %v3374 = vld [vmem:[#allocation2 + $0x48] sm:$0xff]
      %v3375 = vld [vmem:[#allocation2 + $0x50] sm:$0xff]
      %v3376 = vld [vmem:[#allocation2 + $0x58] sm:$0xff]
      %v3377 = vld [vmem:[#allocation2 + $0x60] sm:$0xff]
      %v3378 = vld [vmem:[#allocation2 + $0x68] sm:$0xff]
      %v3379 = vld [vmem:[#allocation2 + $0x70] sm:$0xff]
      %v3380 = vld [vmem:[#allocation2 + $0x78] sm:$0xff]
      %v3381 = vld [vmem:[#allocation2 + $0x80] sm:$0xff]
      %v3382 = vld [vmem:[#allocation2 + $0x88] sm:$0xff]
      %v3383 = vld [vmem:[#allocation2 + $0x90] sm:$0xff]
      %v3384 = vld [vmem:[#allocation2 + $0x98] sm:$0xff]
      %v3385 = vld [vmem:[#allocation2 + $0xa0] sm:$0xff]
      %v3386 = vld [vmem:[#allocation2 + $0xa8] sm:$0xff]
      %v3387 = vld [vmem:[#allocation2 + $0xb0] sm:$0xff]
      %v3388 = vld [vmem:[#allocation2 + $0xb8] sm:$0xff]
      %v3389 = vld [vmem:[#allocation2 + $0xc0] sm:$0xff]
      %v3390 = vld [vmem:[#allocation2 + $0xc8] sm:$0xff]
      %v3391 = vld [vmem:[#allocation2 + $0xd0] sm:$0xff]
      %v3392 = vld [vmem:[#allocation2 + $0xd8] sm:$0xff]
      %v3393 = vld [vmem:[#allocation2 + $0xe0] sm:$0xff]
      %v3394 = vld [vmem:[#allocation2 + $0xe8] sm:$0xff]
      %v3395 = vld [vmem:[#allocation2 + $0xf0] sm:$0xff]
      %v3396 = vld [vmem:[#allocation2 + $0xf8] sm:$0xff]
      %v3397 = vadd.f32 %v3365, %v3239
      %v3398 = vadd.f32 %v3366, %v3242
      %v3399 = vadd.f32 %v3367, %v3247
      %v3400 = vadd.f32 %v3368, %v3250
      %v3401 = vadd.f32 %v3369, %v3255
      %v3402 = vadd.f32 %v3370, %v3258
      %v3403 = vadd.f32 %v3371, %v3263
      %v3404 = vadd.f32 %v3372, %v3266
      %v3405 = vadd.f32 %v3373, %v3271
      %v3406 = vadd.f32 %v3374, %v3274
      %v3407 = vadd.f32 %v3375, %v3279
      %v3408 = vadd.f32 %v3376, %v3282
      %v3409 = vadd.f32 %v3377, %v3287
      %v3410 = vadd.f32 %v3378, %v3290
      %v3411 = vadd.f32 %v3379, %v3295
      %v3412 = vadd.f32 %v3380, %v3298
      %v3413 = vadd.f32 %v3381, %v3303
      %v3414 = vadd.f32 %v3382, %v3306
      %v3415 = vadd.f32 %v3383, %v3311
      %v3416 = vadd.f32 %v3384, %v3314
      %v3417 = vadd.f32 %v3385, %v3319
      %v3418 = vadd.f32 %v3386, %v3322
      %v3419 = vadd.f32 %v3387, %v3327
      %v3420 = vadd.f32 %v3388, %v3330
      %v3421 = vadd.f32 %v3389, %v3335
      %v3422 = vadd.f32 %v3390, %v3338
      %v3423 = vadd.f32 %v3391, %v3343
      %v3424 = vadd.f32 %v3392, %v3346
      %v3425 = vadd.f32 %v3393, %v3351
      %v3426 = vadd.f32 %v3394, %v3354
      %v3427 = vadd.f32 %v3395, %v3359
      %v3428 = vadd.f32 %v3396, %v3362
      %3429 = vst [vmem:[#allocation2] sm:$0xff] %v3397
      %3430 = vst [vmem:[#allocation2 + $0x8] sm:$0xff] %v3398
      %3431 = vst [vmem:[#allocation2 + $0x10] sm:$0xff] %v3399
      %3432 = vst [vmem:[#allocation2 + $0x18] sm:$0xff] %v3400
      %3433 = vst [vmem:[#allocation2 + $0x20] sm:$0xff] %v3401
      %3434 = vst [vmem:[#allocation2 + $0x28] sm:$0xff] %v3402
      %3435 = vst [vmem:[#allocation2 + $0x30] sm:$0xff] %v3403
      %3436 = vst [vmem:[#allocation2 + $0x38] sm:$0xff] %v3404
      %3437 = vst [vmem:[#allocation2 + $0x40] sm:$0xff] %v3405
      %3438 = vst [vmem:[#allocation2 + $0x48] sm:$0xff] %v3406
      %3439 = vst [vmem:[#allocation2 + $0x50] sm:$0xff] %v3407
      %3440 = vst [vmem:[#allocation2 + $0x58] sm:$0xff] %v3408
      %3441 = vst [vmem:[#allocation2 + $0x60] sm:$0xff] %v3409
      %3442 = vst [vmem:[#allocation2 + $0x68] sm:$0xff] %v3410
      %3443 = vst [vmem:[#allocation2 + $0x70] sm:$0xff] %v3411
      %3444 = vst [vmem:[#allocation2 + $0x78] sm:$0xff] %v3412
      %3445 = vst [vmem:[#allocation2 + $0x80] sm:$0xff] %v3413
      %3446 = vst [vmem:[#allocation2 + $0x88] sm:$0xff] %v3414
      %3447 = vst [vmem:[#allocation2 + $0x90] sm:$0xff] %v3415
      %3448 = vst [vmem:[#allocation2 + $0x98] sm:$0xff] %v3416
      %3449 = vst [vmem:[#allocation2 + $0xa0] sm:$0xff] %v3417
      %3450 = vst [vmem:[#allocation2 + $0xa8] sm:$0xff] %v3418
      %3451 = vst [vmem:[#allocation2 + $0xb0] sm:$0xff] %v3419
      %3452 = vst [vmem:[#allocation2 + $0xb8] sm:$0xff] %v3420
      %3453 = vst [vmem:[#allocation2 + $0xc0] sm:$0xff] %v3421
      %3454 = vst [vmem:[#allocation2 + $0xc8] sm:$0xff] %v3422
      %3455 = vst [vmem:[#allocation2 + $0xd0] sm:$0xff] %v3423
      %3456 = vst [vmem:[#allocation2 + $0xd8] sm:$0xff] %v3424
      %3457 = vst [vmem:[#allocation2 + $0xe0] sm:$0xff] %v3425
      %3458 = vst [vmem:[#allocation2 + $0xe8] sm:$0xff] %v3426
      %3459 = vst [vmem:[#allocation2 + $0xf0] sm:$0xff] %v3427
      %3460 = vst [vmem:[#allocation2 + $0xf8] sm:$0xff] %v3428
      %v3461 = vld [vmem:[#allocation2] sm:$0xff]
      %v3462 = vld [vmem:[#allocation2 + $0x8] sm:$0xff]
      %v3463 = vld [vmem:[#allocation2 + $0x10] sm:$0xff]
      %v3464 = vld [vmem:[#allocation2 + $0x18] sm:$0xff]
      %v3465 = vld [vmem:[#allocation2 + $0x20] sm:$0xff]
      %v3466 = vld [vmem:[#allocation2 + $0x28] sm:$0xff]
      %v3467 = vld [vmem:[#allocation2 + $0x30] sm:$0xff]
      %v3468 = vld [vmem:[#allocation2 + $0x38] sm:$0xff]
      %v3469 = vld [vmem:[#allocation2 + $0x40] sm:$0xff]
      %v3470 = vld [vmem:[#allocation2 + $0x48] sm:$0xff]
      %v3471 = vld [vmem:[#allocation2 + $0x50] sm:$0xff]
      %v3472 = vld [vmem:[#allocation2 + $0x58] sm:$0xff]
      %v3473 = vld [vmem:[#allocation2 + $0x60] sm:$0xff]
      %v3474 = vld [vmem:[#allocation2 + $0x68] sm:$0xff]
      %v3475 = vld [vmem:[#allocation2 + $0x70] sm:$0xff]
      %v3476 = vld [vmem:[#allocation2 + $0x78] sm:$0xff]
      %v3477 = vld [vmem:[#allocation2 + $0x80] sm:$0xff]
      %v3478 = vld [vmem:[#allocation2 + $0x88] sm:$0xff]
      %v3479 = vld [vmem:[#allocation2 + $0x90] sm:$0xff]
      %v3480 = vld [vmem:[#allocation2 + $0x98] sm:$0xff]
      %v3481 = vld [vmem:[#allocation2 + $0xa0] sm:$0xff]
      %v3482 = vld [vmem:[#allocation2 + $0xa8] sm:$0xff]
      %v3483 = vld [vmem:[#allocation2 + $0xb0] sm:$0xff]
      %v3484 = vld [vmem:[#allocation2 + $0xb8] sm:$0xff]
      %v3485 = vld [vmem:[#allocation2 + $0xc0] sm:$0xff]
      %v3486 = vld [vmem:[#allocation2 + $0xc8] sm:$0xff]
      %v3487 = vld [vmem:[#allocation2 + $0xd0] sm:$0xff]
      %v3488 = vld [vmem:[#allocation2 + $0xd8] sm:$0xff]
      %v3489 = vld [vmem:[#allocation2 + $0xe0] sm:$0xff]
      %v3490 = vld [vmem:[#allocation2 + $0xe8] sm:$0xff]
      %v3491 = vld [vmem:[#allocation2 + $0xf0] sm:$0xff]
      %v3492 = vld [vmem:[#allocation2 + $0xf8] sm:$0xff]
      %v3493 = vld [vmem:[%s2] sm:$0xff]
      %v3494 = vld [vmem:[%s2 + $0x8] sm:$0xff]
      %v3495 = vld [vmem:[%s2 + $0x10] sm:$0xff]
      %v3496 = vld [vmem:[%s2 + $0x18] sm:$0xff]
      %v3497 = vld [vmem:[%s2 + $0x20] sm:$0xff]
      %v3498 = vld [vmem:[%s2 + $0x28] sm:$0xff]
      %v3499 = vld [vmem:[%s2 + $0x30] sm:$0xff]
      %v3500 = vld [vmem:[%s2 + $0x38] sm:$0xff]
      %v3501 = vld [vmem:[%s2 + $0x40] sm:$0xff]
      %v3502 = vld [vmem:[%s2 + $0x48] sm:$0xff]
      %v3503 = vld [vmem:[%s2 + $0x50] sm:$0xff]
      %v3504 = vld [vmem:[%s2 + $0x58] sm:$0xff]
      %v3505 = vld [vmem:[%s2 + $0x60] sm:$0xff]
      %v3506 = vld [vmem:[%s2 + $0x68] sm:$0xff]
      %v3507 = vld [vmem:[%s2 + $0x70] sm:$0xff]
      %v3508 = vld [vmem:[%s2 + $0x78] sm:$0xff]
      %v3509 = vld [vmem:[%s2 + $0x80] sm:$0xff]
      %v3510 = vld [vmem:[%s2 + $0x88] sm:$0xff]
      %v3511 = vld [vmem:[%s2 + $0x90] sm:$0xff]
      %v3512 = vld [vmem:[%s2 + $0x98] sm:$0xff]
      %v3513 = vld [vmem:[%s2 + $0xa0] sm:$0xff]
      %v3514 = vld [vmem:[%s2 + $0xa8] sm:$0xff]
      %v3515 = vld [vmem:[%s2 + $0xb0] sm:$0xff]
      %v3516 = vld [vmem:[%s2 + $0xb8] sm:$0xff]
      %v3517 = vld [vmem:[%s2 + $0xc0] sm:$0xff]
      %v3518 = vld [vmem:[%s2 + $0xc8] sm:$0xff]
      %v3519 = vld [vmem:[%s2 + $0xd0] sm:$0xff]
      %v3520 = vld [vmem:[%s2 + $0xd8] sm:$0xff]
      %v3521 = vld [vmem:[%s2 + $0xe0] sm:$0xff]
      %v3522 = vld [vmem:[%s2 + $0xe8] sm:$0xff]
      %v3523 = vld [vmem:[%s2 + $0xf0] sm:$0xff]
      %v3524 = vld [vmem:[%s2 + $0xf8] sm:$0xff]
      %3526 = vset.pattern.permute.xlu0 0
      %3527 = vperm.xlu0 %3526, %v3493
      %v3528 = vpop.permute.xlu0 %3527
      %3531 = vset.pattern.permute.xlu0 0
      %3532 = vperm.xlu0 %3531, %v3494
      %v3533 = vpop.permute.xlu0 %3532
      %3536 = vset.pattern.permute.xlu0 0
      %3537 = vperm.xlu0 %3536, %v3495
      %v3538 = vpop.permute.xlu0 %3537
      %3541 = vset.pattern.permute.xlu0 0
      %3542 = vperm.xlu0 %3541, %v3496
      %v3543 = vpop.permute.xlu0 %3542
      %3546 = vset.pattern.permute.xlu0 0
      %3547 = vperm.xlu0 %3546, %v3497
      %v3548 = vpop.permute.xlu0 %3547
      %3551 = vset.pattern.permute.xlu0 0
      %3552 = vperm.xlu0 %3551, %v3498
      %v3553 = vpop.permute.xlu0 %3552
      %3556 = vset.pattern.permute.xlu0 0
      %3557 = vperm.xlu0 %3556, %v3499
      %v3558 = vpop.permute.xlu0 %3557
      %3561 = vset.pattern.permute.xlu0 0
      %3562 = vperm.xlu0 %3561, %v3500
      %v3563 = vpop.permute.xlu0 %3562
      %3566 = vset.pattern.permute.xlu0 0
      %3567 = vperm.xlu0 %3566, %v3501
      %v3568 = vpop.permute.xlu0 %3567
      %3571 = vset.pattern.permute.xlu0 0
      %3572 = vperm.xlu0 %3571, %v3502
      %v3573 = vpop.permute.xlu0 %3572
      %3576 = vset.pattern.permute.xlu0 0
      %3577 = vperm.xlu0 %3576, %v3503
      %v3578 = vpop.permute.xlu0 %3577
      %3581 = vset.pattern.permute.xlu0 0
      %3582 = vperm.xlu0 %3581, %v3504
      %v3583 = vpop.permute.xlu0 %3582
      %3586 = vset.pattern.permute.xlu0 0
      %3587 = vperm.xlu0 %3586, %v3505
      %v3588 = vpop.permute.xlu0 %3587
      %3591 = vset.pattern.permute.xlu0 0
      %3592 = vperm.xlu0 %3591, %v3506
      %v3593 = vpop.permute.xlu0 %3592
      %3596 = vset.pattern.permute.xlu0 0
      %3597 = vperm.xlu0 %3596, %v3507
      %v3598 = vpop.permute.xlu0 %3597
      %3601 = vset.pattern.permute.xlu0 0
      %3602 = vperm.xlu0 %3601, %v3508
      %v3603 = vpop.permute.xlu0 %3602
      %3606 = vset.pattern.permute.xlu0 0
      %3607 = vperm.xlu0 %3606, %v3509
      %v3608 = vpop.permute.xlu0 %3607
      %3611 = vset.pattern.permute.xlu0 0
      %3612 = vperm.xlu0 %3611, %v3510
      %v3613 = vpop.permute.xlu0 %3612
      %3616 = vset.pattern.permute.xlu0 0
      %3617 = vperm.xlu0 %3616, %v3511
      %v3618 = vpop.permute.xlu0 %3617
      %3621 = vset.pattern.permute.xlu0 0
      %3622 = vperm.xlu0 %3621, %v3512
      %v3623 = vpop.permute.xlu0 %3622
      %3626 = vset.pattern.permute.xlu0 0
      %3627 = vperm.xlu0 %3626, %v3513
      %v3628 = vpop.permute.xlu0 %3627
      %3631 = vset.pattern.permute.xlu0 0
      %3632 = vperm.xlu0 %3631, %v3514
      %v3633 = vpop.permute.xlu0 %3632
      %3636 = vset.pattern.permute.xlu0 0
      %3637 = vperm.xlu0 %3636, %v3515
      %v3638 = vpop.permute.xlu0 %3637
      %3641 = vset.pattern.permute.xlu0 0
      %3642 = vperm.xlu0 %3641, %v3516
      %v3643 = vpop.permute.xlu0 %3642
      %3646 = vset.pattern.permute.xlu0 0
      %3647 = vperm.xlu0 %3646, %v3517
      %v3648 = vpop.permute.xlu0 %3647
      %3651 = vset.pattern.permute.xlu0 0
      %3652 = vperm.xlu0 %3651, %v3518
      %v3653 = vpop.permute.xlu0 %3652
      %3656 = vset.pattern.permute.xlu0 0
      %3657 = vperm.xlu0 %3656, %v3519
      %v3658 = vpop.permute.xlu0 %3657
      %3661 = vset.pattern.permute.xlu0 0
      %3662 = vperm.xlu0 %3661, %v3520
      %v3663 = vpop.permute.xlu0 %3662
      %3666 = vset.pattern.permute.xlu0 0
      %3667 = vperm.xlu0 %3666, %v3521
      %v3668 = vpop.permute.xlu0 %3667
      %3671 = vset.pattern.permute.xlu0 0
      %3672 = vperm.xlu0 %3671, %v3522
      %v3673 = vpop.permute.xlu0 %3672
      %3676 = vset.pattern.permute.xlu0 0
      %3677 = vperm.xlu0 %3676, %v3523
      %v3678 = vpop.permute.xlu0 %3677
      %3681 = vset.pattern.permute.xlu0 0
      %3682 = vperm.xlu0 %3681, %v3524
      %v3683 = vpop.permute.xlu0 %3682
      %v3685 = vmul.f32 %v3461, %v3528
      %v3686 = vmul.f32 %v3462, %v3533
      %v3687 = vmul.f32 %v3463, %v3538
      %v3688 = vmul.f32 %v3464, %v3543
      %v3689 = vmul.f32 %v3465, %v3548
      %v3690 = vmul.f32 %v3466, %v3553
      %v3691 = vmul.f32 %v3467, %v3558
      %v3692 = vmul.f32 %v3468, %v3563
      %v3693 = vmul.f32 %v3469, %v3568
      %v3694 = vmul.f32 %v3470, %v3573
      %v3695 = vmul.f32 %v3471, %v3578
      %v3696 = vmul.f32 %v3472, %v3583
      %v3697 = vmul.f32 %v3473, %v3588
      %v3698 = vmul.f32 %v3474, %v3593
      %v3699 = vmul.f32 %v3475, %v3598
      %v3700 = vmul.f32 %v3476, %v3603
      %v3701 = vmul.f32 %v3477, %v3608
      %v3702 = vmul.f32 %v3478, %v3613
      %v3703 = vmul.f32 %v3479, %v3618
      %v3704 = vmul.f32 %v3480, %v3623
      %v3705 = vmul.f32 %v3481, %v3628
      %v3706 = vmul.f32 %v3482, %v3633
      %v3707 = vmul.f32 %v3483, %v3638
      %v3708 = vmul.f32 %v3484, %v3643
      %v3709 = vmul.f32 %v3485, %v3648
      %v3710 = vmul.f32 %v3486, %v3653
      %v3711 = vmul.f32 %v3487, %v3658
      %v3712 = vmul.f32 %v3488, %v3663
      %v3713 = vmul.f32 %v3489, %v3668
      %v3714 = vmul.f32 %v3490, %v3673
      %v3715 = vmul.f32 %v3491, %v3678
      %v3716 = vmul.f32 %v3492, %v3683
      %v3717 = vadd.f32 %v3685, %v3686
      %v3718 = vadd.f32 %v3717, %v3687
      %v3719 = vadd.f32 %v3718, %v3688
      %v3720 = vadd.f32 %v3719, %v3689
      %v3721 = vadd.f32 %v3720, %v3690
      %v3722 = vadd.f32 %v3721, %v3691
      %v3723 = vadd.f32 %v3722, %v3692
      %v3724 = vadd.f32 %v3723, %v3693
      %v3725 = vadd.f32 %v3724, %v3694
      %v3726 = vadd.f32 %v3725, %v3695
      %v3727 = vadd.f32 %v3726, %v3696
      %v3728 = vadd.f32 %v3727, %v3697
      %v3729 = vadd.f32 %v3728, %v3698
      %v3730 = vadd.f32 %v3729, %v3699
      %v3731 = vadd.f32 %v3730, %v3700
      %v3732 = vadd.f32 %v3731, %v3701
      %v3733 = vadd.f32 %v3732, %v3702
      %v3734 = vadd.f32 %v3733, %v3703
      %v3735 = vadd.f32 %v3734, %v3704
      %v3736 = vadd.f32 %v3735, %v3705
      %v3737 = vadd.f32 %v3736, %v3706
      %v3738 = vadd.f32 %v3737, %v3707
      %v3739 = vadd.f32 %v3738, %v3708
      %v3740 = vadd.f32 %v3739, %v3709
      %v3741 = vadd.f32 %v3740, %v3710
      %v3742 = vadd.f32 %v3741, %v3711
      %v3743 = vadd.f32 %v3742, %v3712
      %v3744 = vadd.f32 %v3743, %v3713
      %v3745 = vadd.f32 %v3744, %v3714
      %v3746 = vadd.f32 %v3745, %v3715
      %v3747 = vadd.f32 %v3746, %v3716
      %v3748 = vrot.slane %v3747, 4
      %v3749 = vadd.f32 %v3747, %v3748
      %v3750 = vrot.slane %v3749, 2
      %v3751 = vadd.f32 %v3749, %v3750
      %v3752 = vrot.slane %v3751, 1
      %v3753 = vadd.f32 %v3751, %v3752
      %vm3754 = vcmask 57344
      %3755 = vst.msk [vmem:[%s168] sm:$0x1] %vm3754, %v3753
      %v3756 = vmul.f32 %v3685, %v3461
      %v3757 = vmul.f32 %v3686, %v3462
      %v3758 = vmul.f32 %v3687, %v3463
      %v3759 = vmul.f32 %v3688, %v3464
      %v3760 = vmul.f32 %v3689, %v3465
      %v3761 = vmul.f32 %v3690, %v3466
      %v3762 = vmul.f32 %v3691, %v3467
      %v3763 = vmul.f32 %v3692, %v3468
      %v3764 = vmul.f32 %v3693, %v3469
      %v3765 = vmul.f32 %v3694, %v3470
      %v3766 = vmul.f32 %v3695, %v3471
      %v3767 = vmul.f32 %v3696, %v3472
      %v3768 = vmul.f32 %v3697, %v3473
      %v3769 = vmul.f32 %v3698, %v3474
      %v3770 = vmul.f32 %v3699, %v3475
      %v3771 = vmul.f32 %v3700, %v3476
      %v3772 = vmul.f32 %v3701, %v3477
      %v3773 = vmul.f32 %v3702, %v3478
      %v3774 = vmul.f32 %v3703, %v3479
      %v3775 = vmul.f32 %v3704, %v3480
      %v3776 = vmul.f32 %v3705, %v3481
      %v3777 = vmul.f32 %v3706, %v3482
      %v3778 = vmul.f32 %v3707, %v3483
      %v3779 = vmul.f32 %v3708, %v3484
      %v3780 = vmul.f32 %v3709, %v3485
      %v3781 = vmul.f32 %v3710, %v3486
      %v3782 = vmul.f32 %v3711, %v3487
      %v3783 = vmul.f32 %v3712, %v3488
      %v3784 = vmul.f32 %v3713, %v3489
      %v3785 = vmul.f32 %v3714, %v3490
      %v3786 = vmul.f32 %v3715, %v3491
      %v3787 = vmul.f32 %v3716, %v3492
      %v3788 = vadd.f32 %v3756, %v3757
      %v3789 = vadd.f32 %v3788, %v3758
      %v3790 = vadd.f32 %v3789, %v3759
      %v3791 = vadd.f32 %v3790, %v3760
      %v3792 = vadd.f32 %v3791, %v3761
      %v3793 = vadd.f32 %v3792, %v3762
      %v3794 = vadd.f32 %v3793, %v3763
      %v3795 = vadd.f32 %v3794, %v3764
      %v3796 = vadd.f32 %v3795, %v3765
      %v3797 = vadd.f32 %v3796, %v3766
      %v3798 = vadd.f32 %v3797, %v3767
      %v3799 = vadd.f32 %v3798, %v3768
      %v3800 = vadd.f32 %v3799, %v3769
      %v3801 = vadd.f32 %v3800, %v3770
      %v3802 = vadd.f32 %v3801, %v3771
      %v3803 = vadd.f32 %v3802, %v3772
      %v3804 = vadd.f32 %v3803, %v3773
      %v3805 = vadd.f32 %v3804, %v3774
      %v3806 = vadd.f32 %v3805, %v3775
      %v3807 = vadd.f32 %v3806, %v3776
      %v3808 = vadd.f32 %v3807, %v3777
      %v3809 = vadd.f32 %v3808, %v3778
      %v3810 = vadd.f32 %v3809, %v3779
      %v3811 = vadd.f32 %v3810, %v3780
      %v3812 = vadd.f32 %v3811, %v3781
      %v3813 = vadd.f32 %v3812, %v3782
      %v3814 = vadd.f32 %v3813, %v3783
      %v3815 = vadd.f32 %v3814, %v3784
      %v3816 = vadd.f32 %v3815, %v3785
      %v3817 = vadd.f32 %v3816, %v3786
      %v3818 = vadd.f32 %v3817, %v3787
      %v3819 = vrot.slane %v3818, 4
      %v3820 = vadd.f32 %v3818, %v3819
      %v3821 = vrot.slane %v3820, 2
      %v3822 = vadd.f32 %v3820, %v3821
      %v3823 = vrot.slane %v3822, 1
      %v3824 = vadd.f32 %v3822, %v3823
      %3825 = vst.msk [vmem:[%s168 + $0x1] sm:$0x1] %vm3754, %v3824
      %p3826 = scmp.lt.s32.totalorder %s14, 1
      %s3827 = scalar_select %p3826, %s14, 1
      %s3828 = smul.addr %s3827, 2
      %s3829 = scalar_lea.vmem %s3, %s3828
      // Predicated region
      $region33: #{conv_bn_leaky_relu.2} parent=31 // pred_check
        %p3830 = pneg %p100
      $region34: #{conv_bn_leaky_relu.2} parent=31 // pred_check_branch
        %3832 = sbr.rel (%p3830) target = $region36
      $region35: #{conv_bn_leaky_relu.2} parent=31 // pred_region
        _
      $region36: #{conv_bn_leaky_relu.2} parent=31 // pred_fallthru
        _
    $region32: #{conv_bn_leaky_relu.2} parent=5 // pred_fallthru
      _
    %p3833 = scmp.le.s32.totalorder 2, %s9
    // Predicated region
    $region37: #{conv_bn_leaky_relu.2} parent=5 // pred_check
      %p3834 = pneg %p3833
    $region38: #{conv_bn_leaky_relu.2} parent=5 // pred_check_branch
      %3836 = sbr.rel (%p3834) target = $region40
    $region39: #{conv_bn_leaky_relu.2} parent=5 // pred_region
      %s3837 = ssub.s32 %s9, 2
      // Predicated region
      $region41: #{conv_bn_leaky_relu.2} parent=39 // pred_check
        %p3838 = pneg %p106
      $region42: #{conv_bn_leaky_relu.2} parent=39 // pred_check_branch
        %3840 = sbr.rel (%p3838) target = $region44
      $region43: #{conv_bn_leaky_relu.2} parent=39 // pred_region
        %p3841 = scmp.lt.s32.totalorder %s15, 1
        %s3842 = scalar_select %p3841, %s15, 1
        %s3843 = smul.addr %s3842, 2
        %s3844 = scalar_lea.vmem %s3, %s3843
      $region44: #{conv_bn_leaky_relu.2} parent=39 // pred_fallthru
        _
    $region40: #{conv_bn_leaky_relu.2} parent=5 // pred_fallthru
      _
  $region6: #{conv_bn_leaky_relu.2} parent=0 // loop_footer
    %s13 = sadd.s32 1, %s9
  $region7: #{conv_bn_leaky_relu.2} parent=0 // loop_footer_branch
    %8 = sbr.rel target = $region3
  $region8: #{conv_bn_leaky_relu.2} parent=0 // loop_exit
    _

</llo_original>
